<compile_context>
chip_gen: v5e
topology: v5e:2x2
jax: 0.10.0
libtpu: 0.0.40
codegen_flags: <defaults>
</compile_context>

<pallas_src>
import jax
import jax.numpy as jnp
from jax.experimental import pallas as pl
from jax.experimental.pallas import tpu as pltpu


def conv1x1_kernel(w_ref, x_ref, o_ref):
    # w_ref: [cout_blk, Cin]
    # x_ref: [1, Cin, lane_blk]   (lane_blk = H*W rounded up to 128 lanes).
    #        NOTE: the padded tail lanes (HW..lane_blk-1) are UNINITIALIZED
    #        after the masked input DMA.  They only feed output lanes that are
    #        masked off on writeback, so results are correct -- but do NOT add
    #        a reduction over the lane axis here without masking first.
    # o_ref: [1, cout_blk, lane_blk]
    o_ref[0] = jnp.dot(
        w_ref[...],
        x_ref[0],
        preferred_element_type=jnp.float32,
        precision=jax.lax.Precision.HIGHEST,  # true f32 multiplies on the MXU
    ).astype(o_ref.dtype)


def _default_cout_tiles():
    """2 on parts with two TensorCores per chip (v7x), else 1 (v5e/v6e)."""
    try:
        kind = jax.devices()[0].device_kind.lower()
    except Exception:
        return 1
    return 2 if "v7" in kind else 1


def conv2d_1x1(x_nchw, weight_oihw, *, cout_tiles=None):
    """1x1 conv, stride 1, no bias. x: [N, Cin, H, W], weight: [Cout, Cin, 1, 1]."""
    N, Cin, H, W = x_nchw.shape
    Cout = weight_oihw.shape[0]
    HW = H * W

    if cout_tiles is None:
        cout_tiles = _default_cout_tiles()
    if cout_tiles < 1 or Cout % cout_tiles != 0 or (Cout // cout_tiles) % 8 != 0:
        cout_tiles = 1
    cout_blk = Cout // cout_tiles

    # Lane-dense blocks: round H*W (=49) up to 128 lanes in the block shape.
    # Pallas masks the out-of-bounds tail in the block DMAs, so no wrapper-side
    # pad/slice ops are needed and the in-kernel stores stay lane-dense.
    lane_blk = pl.cdiv(HW, 128) * 128

    # Contiguous (free) reshapes only -- no transposes anywhere.
    x_mat = x_nchw.reshape(N, Cin, HW)         # [N, Cin, HW]
    w_mat = weight_oihw.reshape(Cout, Cin)     # [Cout, Cin]

    itemsize = x_nchw.dtype.itemsize
    cost = pl.CostEstimate(
        flops=2 * N * HW * Cin * Cout,
        transcendentals=0,
        bytes_accessed=(x_mat.size + w_mat.size + N * Cout * HW) * itemsize,
    )

    if N == 1:
        # Drop the trivial batch axis from the grid entirely.
        grid = (cout_tiles,)
        in_specs = [
            pl.BlockSpec((cout_blk, Cin), lambda j: (j, 0)),         # weight tile
            pl.BlockSpec((1, Cin, lane_blk), lambda j: (0, 0, 0)),   # activations
        ]
        out_specs = pl.BlockSpec((1, cout_blk, lane_blk), lambda j: (0, j, 0))
        dim_sem = ("parallel",)
    else:
        # Cout outer (shardable across TCs), batch inner.  The weight block
        # index is constant across the inner batch axis, so Pallas keeps the
        # large weight tile resident and only re-DMAs the small x tile.
        grid = (cout_tiles, N)
        in_specs = [
            pl.BlockSpec((cout_blk, Cin), lambda j, b: (j, 0)),
            pl.BlockSpec((1, Cin, lane_blk), lambda j, b: (b, 0, 0)),
        ]
        out_specs = pl.BlockSpec((1, cout_blk, lane_blk), lambda j, b: (b, j, 0))
        dim_sem = ("parallel", "arbitrary")

    out_mat = pl.pallas_call(
        conv1x1_kernel,
        out_shape=jax.ShapeDtypeStruct((N, Cout, HW), x_nchw.dtype),
        grid=grid,
        in_specs=in_specs,
        out_specs=out_specs,
        compiler_params=pltpu.CompilerParams(dimension_semantics=dim_sem),
        cost_estimate=cost,
    )(w_mat, x_mat)

    return out_mat.reshape(N, Cout, H, W)


# TODO(synk): at ~30 MFLOP this op is launch/DMA bound; the biggest remaining
# win is fusing the surrounding BN/activation of the EfficientNet block into
# this pallas_call rather than further tuning the matmul.


if __name__ == "__main__":
    key = jax.random.PRNGKey(0)
    k_x, k_w = jax.random.split(key)

    # Shapes implied by the module's forward: x369 = [1, 232, 7, 7],
    # Conv2d(232 -> 1392, kernel 1x1, stride 1, bias=False).
    N, Cin, H, W = 1, 232, 7, 7
    Cout = 1392

    x = jax.random.normal(k_x, (N, Cin, H, W), dtype=jnp.float32)
    weight = jax.random.normal(k_w, (Cout, Cin, 1, 1), dtype=jnp.float32) * (
        1.0 / jnp.sqrt(Cin)
    )

    out = conv2d_1x1(x, weight)
    jax.block_until_ready(out)

    # Sanity check against a plain-JAX reference (same f32 precision).
    ref = jax.lax.conv_general_dilated(
        x, weight, window_strides=(1, 1), padding="VALID",
        dimension_numbers=("NCHW", "OIHW", "NCHW"),
        precision=jax.lax.Precision.HIGHEST,
    )
    assert out.shape == (N, Cout, H, W), out.shape
    assert jnp.allclose(out, ref, atol=1e-3, rtol=1e-3)

    # Exercise the batched (N > 1) grid path too: weight stays resident across
    # the inner batch axis.
    xb = jax.random.normal(k_x, (2, Cin, H, W), dtype=jnp.float32)
    outb = conv2d_1x1(xb, weight)
    jax.block_until_ready(outb)
    refb = jax.lax.conv_general_dilated(
        xb, weight, window_strides=(1, 1), padding="VALID",
        dimension_numbers=("NCHW", "OIHW", "NCHW"),
        precision=jax.lax.Precision.HIGHEST,
    )
    assert jnp.allclose(outb, refb, atol=1e-3, rtol=1e-3)

    print("KERNEL_OK")
</pallas_src>

<mosaic_0001>
module attributes {stable_mosaic.version = 11 : i64} {
  func.func @conv1x1_kernel(%arg0: i32, %arg1: memref<1392x232xf32, #tpu.memory_space<vmem>>, %arg2: memref<1x232x128xf32, #tpu.memory_space<vmem>>, %arg3: memref<1x1392x128xf32, #tpu.memory_space<vmem>>) attributes {dimension_semantics = [#tpu.dimension_semantics<parallel>], iteration_bounds = array<i64: 1>, scalar_prefetch = 0 : i64, scratch_operands = 0 : i64, tpu.core_type = #tpu.core_type<tc>, window_params = [{transform_indices = @transform_0, window_bounds = array<i64: 1392, 232>}, {transform_indices = @transform_1, window_bounds = array<i64: 1, 232, 128>}, {transform_indices = @transform_2, window_bounds = array<i64: 1, 1392, 128>}]} {
    %c0 = arith.constant 0 : index
    %c0_0 = arith.constant 0 : index
    %0 = vector.load %arg1[%c0, %c0_0] : memref<1392x232xf32, #tpu.memory_space<vmem>>, vector<1392x232xf32>
    %c0_1 = arith.constant 0 : index
    %c0_2 = arith.constant 0 : index
    %c0_3 = arith.constant 0 : index
    %1 = vector.load %arg2[%c0_1, %c0_2, %c0_3] : memref<1x232x128xf32, #tpu.memory_space<vmem>>, vector<1x232x128xf32>
    %2 = vector.shape_cast %1 : vector<1x232x128xf32> to vector<232x128xf32>
    %cst = arith.constant dense<0.000000e+00> : vector<1392x128xf32>
    %3 = tpu.matmul %0, %2, %cst {dimension_numbers = #tpu.dot_dimension_numbers<[1], [0], [0], [1], [0, 0, 1, 1], [], []>, precision = #tpu.contract_precision<fp32>} : vector<1392x232xf32>, vector<232x128xf32>, vector<1392x128xf32> -> vector<1392x128xf32>
    %c0_4 = arith.constant 0 : index
    %c0_5 = arith.constant 0 : index
    %c0_6 = arith.constant 0 : index
    %4 = vector.load %arg3[%c0_4, %c0_5, %c0_6] : memref<1x1392x128xf32, #tpu.memory_space<vmem>>, vector<1x1392x128xf32>
    %5 = vector.shape_cast %4 : vector<1x1392x128xf32> to vector<1392x128xf32>
    %6 = vector.shape_cast %3 : vector<1392x128xf32> to vector<1x1392x128xf32>
    tpu.vector_store %arg3[%c0_4, %c0_5, %c0_6], %6 {strides = array<i32>} : memref<1x1392x128xf32, #tpu.memory_space<vmem>>, vector<1x1392x128xf32>,
    return
  }
  func.func @transform_0(%arg0: i32) -> (i32, i32) {
    %c0_i32 = arith.constant 0 : i32
    %c0_i32_0 = arith.constant 0 : i32
    return %arg0, %c0_i32 : i32, i32
  }
  func.func @transform_1(%arg0: i32) -> (i32, i32, i32) {
    %c0_i32 = arith.constant 0 : i32
    %c0_i32_0 = arith.constant 0 : i32
    %c0_i32_1 = arith.constant 0 : i32
    %c0_i32_2 = arith.constant 0 : i32
    return %c0_i32, %c0_i32_0, %c0_i32_1 : i32, i32, i32
  }
  func.func @transform_2(%arg0: i32) -> (i32, i32, i32) {
    %c0_i32 = arith.constant 0 : i32
    %c0_i32_0 = arith.constant 0 : i32
    %c0_i32_1 = arith.constant 0 : i32
    return %c0_i32, %arg0, %c0_i32_0 : i32, i32, i32
  }
}

</mosaic_0001>

<llo_original>
// kernel: tpu_custom_call.1
$region0: #{tpu_custom_call.1}
  #allocation0 [shape = 'u32[]', space=smem, size = 0x4, offset = 0x4, fixed_abs, tag = 'smem constant byte address 0x4 - core index']
  #allocation1 [shape = 'u32[72,128]{1,0:T(1,128)}', space=vmem, size = 0x9000, scoped, tag = 'internal scratch']
  %s0 = inlined_call_operand.vmem [shape: f32[1392,232], index: 0, kind: input, shape index: {}]
  %s1 = inlined_call_operand.vmem [shape: f32[1,232,49], index: 1, kind: input, shape index: {}]
  %s2 = inlined_call_operand.vmem [shape: f32[1,1392,49], index: 2, kind: output, shape index: {}]
  %s3 = sld [smem:[#allocation0]]
  $region18: #{tpu_custom_call.1} parent=0
    _
  %s5 = ssub.s32 1, %s3
  %s6 = scalar_select 0, %s5, %s3
  // Predicated region
  $region2: #{tpu_custom_call.1} parent=0 // pred_check
    _
  $region3: #{tpu_custom_call.1} parent=0 // pred_check_branch
    %8 = sbr.rel (0) target = $region5
  $region4: #{tpu_custom_call.1} parent=0 // pred_region
    _
  $region5: #{tpu_custom_call.1} parent=0 // pred_fallthru
    _
  // Predicated region
  $region6: #{tpu_custom_call.1} parent=0 // pred_check
    _
  $region7: #{tpu_custom_call.1} parent=0 // pred_check_branch
    %10 = sbr.rel (0) target = $region9
  $region8: #{tpu_custom_call.1} parent=0 // pred_region
    _
  $region9: #{tpu_custom_call.1} parent=0 // pred_fallthru
    _
  %v11 = vld [vmem:[%s0] sm:$0xff]
  %v12 = vld [vmem:[%s0 + $0x8] sm:$0xff]
  %v13 = vld [vmem:[%s0 + $0x10] sm:$0xff]
  %v14 = vld [vmem:[%s0 + $0x18] sm:$0xff]
  %v15 = vld [vmem:[%s0 + $0x20] sm:$0xff]
  %v16 = vld [vmem:[%s0 + $0x28] sm:$0xff]
  %v17 = vld [vmem:[%s0 + $0x30] sm:$0xff]
  %v18 = vld [vmem:[%s0 + $0x38] sm:$0xff]
  %v19 = vld [vmem:[%s0 + $0x40] sm:$0xff]
  %v20 = vld [vmem:[%s0 + $0x48] sm:$0xff]
  %v21 = vld [vmem:[%s0 + $0x50] sm:$0xff]
  %v22 = vld [vmem:[%s0 + $0x58] sm:$0xff]
  %v23 = vld [vmem:[%s0 + $0x60] sm:$0xff]
  %v24 = vld [vmem:[%s0 + $0x68] sm:$0xff]
  %v25 = vld [vmem:[%s0 + $0x70] sm:$0xff]
  %v26 = vld [vmem:[%s0 + $0x78] sm:$0xff]
  %v27 = vld [vmem:[%s0 + $0x80] sm:$0xff]
  %v28 = vld [vmem:[%s0 + $0x88] sm:$0xff]
  %v29 = vld [vmem:[%s0 + $0x90] sm:$0xff]
  %v30 = vld [vmem:[%s0 + $0x98] sm:$0xff]
  %v31 = vld [vmem:[%s0 + $0xa0] sm:$0xff]
  %v32 = vld [vmem:[%s0 + $0xa8] sm:$0xff]
  %v33 = vld [vmem:[%s0 + $0xb0] sm:$0xff]
  %v34 = vld [vmem:[%s0 + $0xb8] sm:$0xff]
  %v35 = vld [vmem:[%s0 + $0xc0] sm:$0xff]
  %v36 = vld [vmem:[%s0 + $0xc8] sm:$0xff]
  %v37 = vld [vmem:[%s0 + $0xd0] sm:$0xff]
  %v38 = vld [vmem:[%s0 + $0xd8] sm:$0xff]
  %v39 = vld [vmem:[%s0 + $0xe0] sm:$0xff]
  %v40 = vld [vmem:[%s0 + $0xe8] sm:$0xff]
  %v41 = vld [vmem:[%s0 + $0xf0] sm:$0xff]
  %v42 = vld [vmem:[%s0 + $0xf8] sm:$0xff]
  %v43 = vld [vmem:[%s0 + $0x100] sm:$0xff]
  %v44 = vld [vmem:[%s0 + $0x108] sm:$0xff]
  %v45 = vld [vmem:[%s0 + $0x110] sm:$0xff]
  %v46 = vld [vmem:[%s0 + $0x118] sm:$0xff]
  %v47 = vld [vmem:[%s0 + $0x120] sm:$0xff]
  %v48 = vld [vmem:[%s0 + $0x128] sm:$0xff]
  %v49 = vld [vmem:[%s0 + $0x130] sm:$0xff]
  %v50 = vld [vmem:[%s0 + $0x138] sm:$0xff]
  %v51 = vld [vmem:[%s0 + $0x140] sm:$0xff]
  %v52 = vld [vmem:[%s0 + $0x148] sm:$0xff]
  %v53 = vld [vmem:[%s0 + $0x150] sm:$0xff]
  %v54 = vld [vmem:[%s0 + $0x158] sm:$0xff]
  %v55 = vld [vmem:[%s0 + $0x160] sm:$0xff]
  %v56 = vld [vmem:[%s0 + $0x168] sm:$0xff]
  %v57 = vld [vmem:[%s0 + $0x170] sm:$0xff]
  %v58 = vld [vmem:[%s0 + $0x178] sm:$0xff]
  %v59 = vld [vmem:[%s0 + $0x180] sm:$0xff]
  %v60 = vld [vmem:[%s0 + $0x188] sm:$0xff]
  %v61 = vld [vmem:[%s0 + $0x190] sm:$0xff]
  %v62 = vld [vmem:[%s0 + $0x198] sm:$0xff]
  %v63 = vld [vmem:[%s0 + $0x1a0] sm:$0xff]
  %v64 = vld [vmem:[%s0 + $0x1a8] sm:$0xff]
  %v65 = vld [vmem:[%s0 + $0x1b0] sm:$0xff]
  %v66 = vld [vmem:[%s0 + $0x1b8] sm:$0xff]
  %v67 = vld [vmem:[%s0 + $0x1c0] sm:$0xff]
  %v68 = vld [vmem:[%s0 + $0x1c8] sm:$0xff]
  %v69 = vld [vmem:[%s0 + $0x1d0] sm:$0xff]
  %v70 = vld [vmem:[%s0 + $0x1d8] sm:$0xff]
  %v71 = vld [vmem:[%s0 + $0x1e0] sm:$0xff]
  %v72 = vld [vmem:[%s0 + $0x1e8] sm:$0xff]
  %v73 = vld [vmem:[%s0 + $0x1f0] sm:$0xff]
  %v74 = vld [vmem:[%s0 + $0x1f8] sm:$0xff]
  %v75 = vld [vmem:[%s0 + $0x200] sm:$0xff]
  %v76 = vld [vmem:[%s0 + $0x208] sm:$0xff]
  %v77 = vld [vmem:[%s0 + $0x210] sm:$0xff]
  %v78 = vld [vmem:[%s0 + $0x218] sm:$0xff]
  %v79 = vld [vmem:[%s0 + $0x220] sm:$0xff]
  %v80 = vld [vmem:[%s0 + $0x228] sm:$0xff]
  %v81 = vld [vmem:[%s0 + $0x230] sm:$0xff]
  %v82 = vld [vmem:[%s0 + $0x238] sm:$0xff]
  %v83 = vld [vmem:[%s0 + $0x240] sm:$0xff]
  %v84 = vld [vmem:[%s0 + $0x248] sm:$0xff]
  %v85 = vld [vmem:[%s0 + $0x250] sm:$0xff]
  %v86 = vld [vmem:[%s0 + $0x258] sm:$0xff]
  %v87 = vld [vmem:[%s0 + $0x260] sm:$0xff]
  %v88 = vld [vmem:[%s0 + $0x268] sm:$0xff]
  %v89 = vld [vmem:[%s0 + $0x270] sm:$0xff]
  %v90 = vld [vmem:[%s0 + $0x278] sm:$0xff]
  %v91 = vld [vmem:[%s0 + $0x280] sm:$0xff]
  %v92 = vld [vmem:[%s0 + $0x288] sm:$0xff]
  %v93 = vld [vmem:[%s0 + $0x290] sm:$0xff]
  %v94 = vld [vmem:[%s0 + $0x298] sm:$0xff]
  %v95 = vld [vmem:[%s0 + $0x2a0] sm:$0xff]
  %v96 = vld [vmem:[%s0 + $0x2a8] sm:$0xff]
  %v97 = vld [vmem:[%s0 + $0x2b0] sm:$0xff]
  %v98 = vld [vmem:[%s0 + $0x2b8] sm:$0xff]
  %v99 = vld [vmem:[%s0 + $0x2c0] sm:$0xff]
  %v100 = vld [vmem:[%s0 + $0x2c8] sm:$0xff]
  %v101 = vld [vmem:[%s0 + $0x2d0] sm:$0xff]
  %v102 = vld [vmem:[%s0 + $0x2d8] sm:$0xff]
  %v103 = vld [vmem:[%s0 + $0x2e0] sm:$0xff]
  %v104 = vld [vmem:[%s0 + $0x2e8] sm:$0xff]
  %v105 = vld [vmem:[%s0 + $0x2f0] sm:$0xff]
  %v106 = vld [vmem:[%s0 + $0x2f8] sm:$0xff]
  %v107 = vld [vmem:[%s0 + $0x300] sm:$0xff]
  %v108 = vld [vmem:[%s0 + $0x308] sm:$0xff]
  %v109 = vld [vmem:[%s0 + $0x310] sm:$0xff]
  %v110 = vld [vmem:[%s0 + $0x318] sm:$0xff]
  %v111 = vld [vmem:[%s0 + $0x320] sm:$0xff]
  %v112 = vld [vmem:[%s0 + $0x328] sm:$0xff]
  %v113 = vld [vmem:[%s0 + $0x330] sm:$0xff]
  %v114 = vld [vmem:[%s0 + $0x338] sm:$0xff]
  %v115 = vld [vmem:[%s0 + $0x340] sm:$0xff]
  %v116 = vld [vmem:[%s0 + $0x348] sm:$0xff]
  %v117 = vld [vmem:[%s0 + $0x350] sm:$0xff]
  %v118 = vld [vmem:[%s0 + $0x358] sm:$0xff]
  %v119 = vld [vmem:[%s0 + $0x360] sm:$0xff]
  %v120 = vld [vmem:[%s0 + $0x368] sm:$0xff]
  %v121 = vld [vmem:[%s0 + $0x370] sm:$0xff]
  %v122 = vld [vmem:[%s0 + $0x378] sm:$0xff]
  %v123 = vld [vmem:[%s0 + $0x380] sm:$0xff]
  %v124 = vld [vmem:[%s0 + $0x388] sm:$0xff]
  %v125 = vld [vmem:[%s0 + $0x390] sm:$0xff]
  %v126 = vld [vmem:[%s0 + $0x398] sm:$0xff]
  %v127 = vld [vmem:[%s0 + $0x3a0] sm:$0xff]
  %v128 = vld [vmem:[%s0 + $0x3a8] sm:$0xff]
  %v129 = vld [vmem:[%s0 + $0x3b0] sm:$0xff]
  %v130 = vld [vmem:[%s0 + $0x3b8] sm:$0xff]
  %v131 = vld [vmem:[%s0 + $0x3c0] sm:$0xff]
  %v132 = vld [vmem:[%s0 + $0x3c8] sm:$0xff]
  %v133 = vld [vmem:[%s0 + $0x3d0] sm:$0xff]
  %v134 = vld [vmem:[%s0 + $0x3d8] sm:$0xff]
  %v135 = vld [vmem:[%s0 + $0x3e0] sm:$0xff]
  %v136 = vld [vmem:[%s0 + $0x3e8] sm:$0xff]
  %v137 = vld [vmem:[%s0 + $0x3f0] sm:$0xff]
  %v138 = vld [vmem:[%s0 + $0x3f8] sm:$0xff]
  %v139 = vld [vmem:[%s0 + $0x400] sm:$0xff]
  %v140 = vld [vmem:[%s0 + $0x408] sm:$0xff]
  %v141 = vld [vmem:[%s0 + $0x410] sm:$0xff]
  %v142 = vld [vmem:[%s0 + $0x418] sm:$0xff]
  %v143 = vld [vmem:[%s0 + $0x420] sm:$0xff]
  %v144 = vld [vmem:[%s0 + $0x428] sm:$0xff]
  %v145 = vld [vmem:[%s0 + $0x430] sm:$0xff]
  %v146 = vld [vmem:[%s0 + $0x438] sm:$0xff]
  %v147 = vld [vmem:[%s0 + $0x440] sm:$0xff]
  %v148 = vld [vmem:[%s0 + $0x448] sm:$0xff]
  %v149 = vld [vmem:[%s0 + $0x450] sm:$0xff]
  %v150 = vld [vmem:[%s0 + $0x458] sm:$0xff]
  %v151 = vld [vmem:[%s0 + $0x460] sm:$0xff]
  %v152 = vld [vmem:[%s0 + $0x468] sm:$0xff]
  %v153 = vld [vmem:[%s0 + $0x470] sm:$0xff]
  %v154 = vld [vmem:[%s0 + $0x478] sm:$0xff]
  %v155 = vld [vmem:[%s0 + $0x480] sm:$0xff]
  %v156 = vld [vmem:[%s0 + $0x488] sm:$0xff]
  %v157 = vld [vmem:[%s0 + $0x490] sm:$0xff]
  %v158 = vld [vmem:[%s0 + $0x498] sm:$0xff]
  %v159 = vld [vmem:[%s0 + $0x4a0] sm:$0xff]
  %v160 = vld [vmem:[%s0 + $0x4a8] sm:$0xff]
  %v161 = vld [vmem:[%s0 + $0x4b0] sm:$0xff]
  %v162 = vld [vmem:[%s0 + $0x4b8] sm:$0xff]
  %v163 = vld [vmem:[%s0 + $0x4c0] sm:$0xff]
  %v164 = vld [vmem:[%s0 + $0x4c8] sm:$0xff]
  %v165 = vld [vmem:[%s0 + $0x4d0] sm:$0xff]
  %v166 = vld [vmem:[%s0 + $0x4d8] sm:$0xff]
  %v167 = vld [vmem:[%s0 + $0x4e0] sm:$0xff]
  %v168 = vld [vmem:[%s0 + $0x4e8] sm:$0xff]
  %v169 = vld [vmem:[%s0 + $0x4f0] sm:$0xff]
  %v170 = vld [vmem:[%s0 + $0x4f8] sm:$0xff]
  %v171 = vld [vmem:[%s0 + $0x500] sm:$0xff]
  %v172 = vld [vmem:[%s0 + $0x508] sm:$0xff]
  %v173 = vld [vmem:[%s0 + $0x510] sm:$0xff]
  %v174 = vld [vmem:[%s0 + $0x518] sm:$0xff]
  %v175 = vld [vmem:[%s0 + $0x520] sm:$0xff]
  %v176 = vld [vmem:[%s0 + $0x528] sm:$0xff]
  %v177 = vld [vmem:[%s0 + $0x530] sm:$0xff]
  %v178 = vld [vmem:[%s0 + $0x538] sm:$0xff]
  %v179 = vld [vmem:[%s0 + $0x540] sm:$0xff]
  %v180 = vld [vmem:[%s0 + $0x548] sm:$0xff]
  %v181 = vld [vmem:[%s0 + $0x550] sm:$0xff]
  %v182 = vld [vmem:[%s0 + $0x558] sm:$0xff]
  %v183 = vld [vmem:[%s0 + $0x560] sm:$0xff]
  %v184 = vld [vmem:[%s0 + $0x568] sm:$0xff]
  %v185 = vld [vmem:[%s0 + $0x570] sm:$0xff]
  %v186 = vld [vmem:[%s0 + $0x578] sm:$0xff]
  %v187 = vld [vmem:[%s0 + $0x580] sm:$0xff]
  %v188 = vld [vmem:[%s0 + $0x588] sm:$0xff]
  %v189 = vld [vmem:[%s0 + $0x590] sm:$0xff]
  %v190 = vld [vmem:[%s0 + $0x598] sm:$0xff]
  %v191 = vld [vmem:[%s0 + $0x5a0] sm:$0xff]
  %v192 = vld [vmem:[%s0 + $0x5a8] sm:$0xff]
  %v193 = vld [vmem:[%s0 + $0x5b0] sm:$0xff]
  %v194 = vld [vmem:[%s0 + $0x5b8] sm:$0xff]
  %v195 = vld [vmem:[%s0 + $0x5c0] sm:$0xff]
  %v196 = vld [vmem:[%s0 + $0x5c8] sm:$0xff]
  %v197 = vld [vmem:[%s0 + $0x5d0] sm:$0xff]
  %v198 = vld [vmem:[%s0 + $0x5d8] sm:$0xff]
  %v199 = vld [vmem:[%s0 + $0x5e0] sm:$0xff]
  %v200 = vld [vmem:[%s0 + $0x5e8] sm:$0xff]
  %v201 = vld [vmem:[%s0 + $0x5f0] sm:$0xff]
  %v202 = vld [vmem:[%s0 + $0x5f8] sm:$0xff]
  %v203 = vld [vmem:[%s0 + $0x600] sm:$0xff]
  %v204 = vld [vmem:[%s0 + $0x608] sm:$0xff]
  %v205 = vld [vmem:[%s0 + $0x610] sm:$0xff]
  %v206 = vld [vmem:[%s0 + $0x618] sm:$0xff]
  %v207 = vld [vmem:[%s0 + $0x620] sm:$0xff]
  %v208 = vld [vmem:[%s0 + $0x628] sm:$0xff]
  %v209 = vld [vmem:[%s0 + $0x630] sm:$0xff]
  %v210 = vld [vmem:[%s0 + $0x638] sm:$0xff]
  %v211 = vld [vmem:[%s0 + $0x640] sm:$0xff]
  %v212 = vld [vmem:[%s0 + $0x648] sm:$0xff]
  %v213 = vld [vmem:[%s0 + $0x650] sm:$0xff]
  %v214 = vld [vmem:[%s0 + $0x658] sm:$0xff]
  %v215 = vld [vmem:[%s0 + $0x660] sm:$0xff]
  %v216 = vld [vmem:[%s0 + $0x668] sm:$0xff]
  %v217 = vld [vmem:[%s0 + $0x670] sm:$0xff]
  %v218 = vld [vmem:[%s0 + $0x678] sm:$0xff]
  %v219 = vld [vmem:[%s0 + $0x680] sm:$0xff]
  %v220 = vld [vmem:[%s0 + $0x688] sm:$0xff]
  %v221 = vld [vmem:[%s0 + $0x690] sm:$0xff]
  %v222 = vld [vmem:[%s0 + $0x698] sm:$0xff]
  %v223 = vld [vmem:[%s0 + $0x6a0] sm:$0xff]
  %v224 = vld [vmem:[%s0 + $0x6a8] sm:$0xff]
  %v225 = vld [vmem:[%s0 + $0x6b0] sm:$0xff]
  %v226 = vld [vmem:[%s0 + $0x6b8] sm:$0xff]
  %v227 = vld [vmem:[%s0 + $0x6c0] sm:$0xff]
  %v228 = vld [vmem:[%s0 + $0x6c8] sm:$0xff]
  %v229 = vld [vmem:[%s0 + $0x6d0] sm:$0xff]
  %v230 = vld [vmem:[%s0 + $0x6d8] sm:$0xff]
  %v231 = vld [vmem:[%s0 + $0x6e0] sm:$0xff]
  %v232 = vld [vmem:[%s0 + $0x6e8] sm:$0xff]
  %v233 = vld [vmem:[%s0 + $0x6f0] sm:$0xff]
  %v234 = vld [vmem:[%s0 + $0x6f8] sm:$0xff]
  %v235 = vld [vmem:[%s0 + $0x700] sm:$0xff]
  %v236 = vld [vmem:[%s0 + $0x708] sm:$0xff]
  %v237 = vld [vmem:[%s0 + $0x710] sm:$0xff]
  %v238 = vld [vmem:[%s0 + $0x718] sm:$0xff]
  %v239 = vld [vmem:[%s0 + $0x720] sm:$0xff]
  %v240 = vld [vmem:[%s0 + $0x728] sm:$0xff]
  %v241 = vld [vmem:[%s0 + $0x730] sm:$0xff]
  %v242 = vld [vmem:[%s0 + $0x738] sm:$0xff]
  %v243 = vld [vmem:[%s0 + $0x740] sm:$0xff]
  %v244 = vld [vmem:[%s0 + $0x748] sm:$0xff]
  %v245 = vld [vmem:[%s0 + $0x750] sm:$0xff]
  %v246 = vld [vmem:[%s0 + $0x758] sm:$0xff]
  %v247 = vld [vmem:[%s0 + $0x760] sm:$0xff]
  %v248 = vld [vmem:[%s0 + $0x768] sm:$0xff]
  %v249 = vld [vmem:[%s0 + $0x770] sm:$0xff]
  %v250 = vld [vmem:[%s0 + $0x778] sm:$0xff]
  %v251 = vld [vmem:[%s0 + $0x780] sm:$0xff]
  %v252 = vld [vmem:[%s0 + $0x788] sm:$0xff]
  %v253 = vld [vmem:[%s0 + $0x790] sm:$0xff]
  %v254 = vld [vmem:[%s0 + $0x798] sm:$0xff]
  %v255 = vld [vmem:[%s0 + $0x7a0] sm:$0xff]
  %v256 = vld [vmem:[%s0 + $0x7a8] sm:$0xff]
  %v257 = vld [vmem:[%s0 + $0x7b0] sm:$0xff]
  %v258 = vld [vmem:[%s0 + $0x7b8] sm:$0xff]
  %v259 = vld [vmem:[%s0 + $0x7c0] sm:$0xff]
  %v260 = vld [vmem:[%s0 + $0x7c8] sm:$0xff]
  %v261 = vld [vmem:[%s0 + $0x7d0] sm:$0xff]
  %v262 = vld [vmem:[%s0 + $0x7d8] sm:$0xff]
  %v263 = vld [vmem:[%s0 + $0x7e0] sm:$0xff]
  %v264 = vld [vmem:[%s0 + $0x7e8] sm:$0xff]
  %v265 = vld [vmem:[%s0 + $0x7f0] sm:$0xff]
  %v266 = vld [vmem:[%s0 + $0x7f8] sm:$0xff]
  %v267 = vld [vmem:[%s0 + $0x800] sm:$0xff]
  %v268 = vld [vmem:[%s0 + $0x808] sm:$0xff]
  %v269 = vld [vmem:[%s0 + $0x810] sm:$0xff]
  %v270 = vld [vmem:[%s0 + $0x818] sm:$0xff]
  %v271 = vld [vmem:[%s0 + $0x820] sm:$0xff]
  %v272 = vld [vmem:[%s0 + $0x828] sm:$0xff]
  %v273 = vld [vmem:[%s0 + $0x830] sm:$0xff]
  %v274 = vld [vmem:[%s0 + $0x838] sm:$0xff]
  %v275 = vld [vmem:[%s0 + $0x840] sm:$0xff]
  %v276 = vld [vmem:[%s0 + $0x848] sm:$0xff]
  %v277 = vld [vmem:[%s0 + $0x850] sm:$0xff]
  %v278 = vld [vmem:[%s0 + $0x858] sm:$0xff]
  %v279 = vld [vmem:[%s0 + $0x860] sm:$0xff]
  %v280 = vld [vmem:[%s0 + $0x868] sm:$0xff]
  %v281 = vld [vmem:[%s0 + $0x870] sm:$0xff]
  %v282 = vld [vmem:[%s0 + $0x878] sm:$0xff]
  %v283 = vld [vmem:[%s0 + $0x880] sm:$0xff]
  %v284 = vld [vmem:[%s0 + $0x888] sm:$0xff]
  %v285 = vld [vmem:[%s0 + $0x890] sm:$0xff]
  %v286 = vld [vmem:[%s0 + $0x898] sm:$0xff]
  %v287 = vld [vmem:[%s0 + $0x8a0] sm:$0xff]
  %v288 = vld [vmem:[%s0 + $0x8a8] sm:$0xff]
  %v289 = vld [vmem:[%s0 + $0x8b0] sm:$0xff]
  %v290 = vld [vmem:[%s0 + $0x8b8] sm:$0xff]
  %v291 = vld [vmem:[%s0 + $0x8c0] sm:$0xff]
  %v292 = vld [vmem:[%s0 + $0x8c8] sm:$0xff]
  %v293 = vld [vmem:[%s0 + $0x8d0] sm:$0xff]
  %v294 = vld [vmem:[%s0 + $0x8d8] sm:$0xff]
  %v295 = vld [vmem:[%s0 + $0x8e0] sm:$0xff]
  %v296 = vld [vmem:[%s0 + $0x8e8] sm:$0xff]
  %v297 = vld [vmem:[%s0 + $0x8f0] sm:$0xff]
  %v298 = vld [vmem:[%s0 + $0x8f8] sm:$0xff]
  %v299 = vld [vmem:[%s0 + $0x900] sm:$0xff]
  %v300 = vld [vmem:[%s0 + $0x908] sm:$0xff]
  %v301 = vld [vmem:[%s0 + $0x910] sm:$0xff]
  %v302 = vld [vmem:[%s0 + $0x918] sm:$0xff]
  %v303 = vld [vmem:[%s0 + $0x920] sm:$0xff]
  %v304 = vld [vmem:[%s0 + $0x928] sm:$0xff]
  %v305 = vld [vmem:[%s0 + $0x930] sm:$0xff]
  %v306 = vld [vmem:[%s0 + $0x938] sm:$0xff]
  %v307 = vld [vmem:[%s0 + $0x940] sm:$0xff]
  %v308 = vld [vmem:[%s0 + $0x948] sm:$0xff]
  %v309 = vld [vmem:[%s0 + $0x950] sm:$0xff]
  %v310 = vld [vmem:[%s0 + $0x958] sm:$0xff]
  %v311 = vld [vmem:[%s0 + $0x960] sm:$0xff]
  %v312 = vld [vmem:[%s0 + $0x968] sm:$0xff]
  %v313 = vld [vmem:[%s0 + $0x970] sm:$0xff]
  %v314 = vld [vmem:[%s0 + $0x978] sm:$0xff]
  %v315 = vld [vmem:[%s0 + $0x980] sm:$0xff]
  %v316 = vld [vmem:[%s0 + $0x988] sm:$0xff]
  %v317 = vld [vmem:[%s0 + $0x990] sm:$0xff]
  %v318 = vld [vmem:[%s0 + $0x998] sm:$0xff]
  %v319 = vld [vmem:[%s0 + $0x9a0] sm:$0xff]
  %v320 = vld [vmem:[%s0 + $0x9a8] sm:$0xff]
  %v321 = vld [vmem:[%s0 + $0x9b0] sm:$0xff]
  %v322 = vld [vmem:[%s0 + $0x9b8] sm:$0xff]
  %v323 = vld [vmem:[%s0 + $0x9c0] sm:$0xff]
  %v324 = vld [vmem:[%s0 + $0x9c8] sm:$0xff]
  %v325 = vld [vmem:[%s0 + $0x9d0] sm:$0xff]
  %v326 = vld [vmem:[%s0 + $0x9d8] sm:$0xff]
  %v327 = vld [vmem:[%s0 + $0x9e0] sm:$0xff]
  %v328 = vld [vmem:[%s0 + $0x9e8] sm:$0xff]
  %v329 = vld [vmem:[%s0 + $0x9f0] sm:$0xff]
  %v330 = vld [vmem:[%s0 + $0x9f8] sm:$0xff]
  %v331 = vld [vmem:[%s0 + $0xa00] sm:$0xff]
  %v332 = vld [vmem:[%s0 + $0xa08] sm:$0xff]
  %v333 = vld [vmem:[%s0 + $0xa10] sm:$0xff]
  %v334 = vld [vmem:[%s0 + $0xa18] sm:$0xff]
  %v335 = vld [vmem:[%s0 + $0xa20] sm:$0xff]
  %v336 = vld [vmem:[%s0 + $0xa28] sm:$0xff]
  %v337 = vld [vmem:[%s0 + $0xa30] sm:$0xff]
  %v338 = vld [vmem:[%s0 + $0xa38] sm:$0xff]
  %v339 = vld [vmem:[%s0 + $0xa40] sm:$0xff]
  %v340 = vld [vmem:[%s0 + $0xa48] sm:$0xff]
  %v341 = vld [vmem:[%s0 + $0xa50] sm:$0xff]
  %v342 = vld [vmem:[%s0 + $0xa58] sm:$0xff]
  %v343 = vld [vmem:[%s0 + $0xa60] sm:$0xff]
  %v344 = vld [vmem:[%s0 + $0xa68] sm:$0xff]
  %v345 = vld [vmem:[%s0 + $0xa70] sm:$0xff]
  %v346 = vld [vmem:[%s0 + $0xa78] sm:$0xff]
  %v347 = vld [vmem:[%s0 + $0xa80] sm:$0xff]
  %v348 = vld [vmem:[%s0 + $0xa88] sm:$0xff]
  %v349 = vld [vmem:[%s0 + $0xa90] sm:$0xff]
  %v350 = vld [vmem:[%s0 + $0xa98] sm:$0xff]
  %v351 = vld [vmem:[%s0 + $0xaa0] sm:$0xff]
  %v352 = vld [vmem:[%s0 + $0xaa8] sm:$0xff]
  %v353 = vld [vmem:[%s0 + $0xab0] sm:$0xff]
  %v354 = vld [vmem:[%s0 + $0xab8] sm:$0xff]
  %v355 = vld [vmem:[%s0 + $0xac0] sm:$0xff]
  %v356 = vld [vmem:[%s0 + $0xac8] sm:$0xff]
  %v357 = vld [vmem:[%s0 + $0xad0] sm:$0xff]
  %v358 = vld [vmem:[%s0 + $0xad8] sm:$0xff]
  %v359 = vld [vmem:[%s1] sm:$0xff]
  %v360 = vld [vmem:[%s1 + $0x8] sm:$0xff]
  %v361 = vld [vmem:[%s1 + $0x10] sm:$0xff]
  %v362 = vld [vmem:[%s1 + $0x18] sm:$0xff]
  %v363 = vld [vmem:[%s1 + $0x20] sm:$0xff]
  %v364 = vld [vmem:[%s1 + $0x28] sm:$0xff]
  %v365 = vld [vmem:[%s1 + $0x30] sm:$0xff]
  %v366 = vld [vmem:[%s1 + $0x38] sm:$0xff]
  %v367 = vld [vmem:[%s1 + $0x40] sm:$0xff]
  %v368 = vld [vmem:[%s1 + $0x48] sm:$0xff]
  %v369 = vld [vmem:[%s1 + $0x50] sm:$0xff]
  %v370 = vld [vmem:[%s1 + $0x58] sm:$0xff]
  %v371 = vld [vmem:[%s1 + $0x60] sm:$0xff]
  %v372 = vld [vmem:[%s1 + $0x68] sm:$0xff]
  %v373 = vld [vmem:[%s1 + $0x70] sm:$0xff]
  %v374 = vld [vmem:[%s1 + $0x78] sm:$0xff]
  %v375 = vld [vmem:[%s1 + $0x80] sm:$0xff]
  %v376 = vld [vmem:[%s1 + $0x88] sm:$0xff]
  %v377 = vld [vmem:[%s1 + $0x90] sm:$0xff]
  %v378 = vld [vmem:[%s1 + $0x98] sm:$0xff]
  %v379 = vld [vmem:[%s1 + $0xa0] sm:$0xff]
  %v380 = vld [vmem:[%s1 + $0xa8] sm:$0xff]
  %v381 = vld [vmem:[%s1 + $0xb0] sm:$0xff]
  %v382 = vld [vmem:[%s1 + $0xb8] sm:$0xff]
  %v383 = vld [vmem:[%s1 + $0xc0] sm:$0xff]
  %v384 = vld [vmem:[%s1 + $0xc8] sm:$0xff]
  %v385 = vld [vmem:[%s1 + $0xd0] sm:$0xff]
  %v386 = vld [vmem:[%s1 + $0xd8] sm:$0xff]
  %v387 = vld [vmem:[%s1 + $0xe0] sm:$0xff]
  %vm388 = vcmask 850944
  %v390 = vsel %vm388, %v12, 0
  %v393 = vsel %vm388, %v14, 0
  %v396 = vsel %vm388, %v16, 0
  %v399 = vsel %vm388, %v18, 0
  %v402 = vsel %vm388, %v20, 0
  %v405 = vsel %vm388, %v22, 0
  %v408 = vsel %vm388, %v24, 0
  %v411 = vsel %vm388, %v26, 0
  %v414 = vsel %vm388, %v28, 0
  %v417 = vsel %vm388, %v30, 0
  %v420 = vsel %vm388, %v32, 0
  %v423 = vsel %vm388, %v34, 0
  %v426 = vsel %vm388, %v36, 0
  %v429 = vsel %vm388, %v38, 0
  %v432 = vsel %vm388, %v40, 0
  %v435 = vsel %vm388, %v42, 0
  %v438 = vsel %vm388, %v44, 0
  %v441 = vsel %vm388, %v46, 0
  %v444 = vsel %vm388, %v48, 0
  %v447 = vsel %vm388, %v50, 0
  %v450 = vsel %vm388, %v52, 0
  %v453 = vsel %vm388, %v54, 0
  %v456 = vsel %vm388, %v56, 0
  %v459 = vsel %vm388, %v58, 0
  %v462 = vsel %vm388, %v60, 0
  %v465 = vsel %vm388, %v62, 0
  %v468 = vsel %vm388, %v64, 0
  %v471 = vsel %vm388, %v66, 0
  %v474 = vsel %vm388, %v68, 0
  %v477 = vsel %vm388, %v70, 0
  %v480 = vsel %vm388, %v72, 0
  %v483 = vsel %vm388, %v74, 0
  %v486 = vsel %vm388, %v76, 0
  %v489 = vsel %vm388, %v78, 0
  %v492 = vsel %vm388, %v80, 0
  %v495 = vsel %vm388, %v82, 0
  %v498 = vsel %vm388, %v84, 0
  %v501 = vsel %vm388, %v86, 0
  %v504 = vsel %vm388, %v88, 0
  %v507 = vsel %vm388, %v90, 0
  %v510 = vsel %vm388, %v92, 0
  %v513 = vsel %vm388, %v94, 0
  %v516 = vsel %vm388, %v96, 0
  %v519 = vsel %vm388, %v98, 0
  %v522 = vsel %vm388, %v100, 0
  %v525 = vsel %vm388, %v102, 0
  %v528 = vsel %vm388, %v104, 0
  %v531 = vsel %vm388, %v106, 0
  %v534 = vsel %vm388, %v108, 0
  %v537 = vsel %vm388, %v110, 0
  %v540 = vsel %vm388, %v112, 0
  %v543 = vsel %vm388, %v114, 0
  %v546 = vsel %vm388, %v116, 0
  %v549 = vsel %vm388, %v118, 0
  %v552 = vsel %vm388, %v120, 0
  %v555 = vsel %vm388, %v122, 0
  %v558 = vsel %vm388, %v124, 0
  %v561 = vsel %vm388, %v126, 0
  %v564 = vsel %vm388, %v128, 0
  %v567 = vsel %vm388, %v130, 0
  %v570 = vsel %vm388, %v132, 0
  %v573 = vsel %vm388, %v134, 0
  %v576 = vsel %vm388, %v136, 0
  %v579 = vsel %vm388, %v138, 0
  %v582 = vsel %vm388, %v140, 0
  %v585 = vsel %vm388, %v142, 0
  %v588 = vsel %vm388, %v144, 0
  %v591 = vsel %vm388, %v146, 0
  %v594 = vsel %vm388, %v148, 0
  %v597 = vsel %vm388, %v150, 0
  %v600 = vsel %vm388, %v152, 0
  %v603 = vsel %vm388, %v154, 0
  %v606 = vsel %vm388, %v156, 0
  %v609 = vsel %vm388, %v158, 0
  %v612 = vsel %vm388, %v160, 0
  %v615 = vsel %vm388, %v162, 0
  %v618 = vsel %vm388, %v164, 0
  %v621 = vsel %vm388, %v166, 0
  %v624 = vsel %vm388, %v168, 0
  %v627 = vsel %vm388, %v170, 0
  %v630 = vsel %vm388, %v172, 0
  %v633 = vsel %vm388, %v174, 0
  %v636 = vsel %vm388, %v176, 0
  %v639 = vsel %vm388, %v178, 0
  %v642 = vsel %vm388, %v180, 0
  %v645 = vsel %vm388, %v182, 0
  %v648 = vsel %vm388, %v184, 0
  %v651 = vsel %vm388, %v186, 0
  %v654 = vsel %vm388, %v188, 0
  %v657 = vsel %vm388, %v190, 0
  %v660 = vsel %vm388, %v192, 0
  %v663 = vsel %vm388, %v194, 0
  %v666 = vsel %vm388, %v196, 0
  %v669 = vsel %vm388, %v198, 0
  %v672 = vsel %vm388, %v200, 0
  %v675 = vsel %vm388, %v202, 0
  %v678 = vsel %vm388, %v204, 0
  %v681 = vsel %vm388, %v206, 0
  %v684 = vsel %vm388, %v208, 0
  %v687 = vsel %vm388, %v210, 0
  %v690 = vsel %vm388, %v212, 0
  %v693 = vsel %vm388, %v214, 0
  %v696 = vsel %vm388, %v216, 0
  %v699 = vsel %vm388, %v218, 0
  %v702 = vsel %vm388, %v220, 0
  %v705 = vsel %vm388, %v222, 0
  %v708 = vsel %vm388, %v224, 0
  %v711 = vsel %vm388, %v226, 0
  %v714 = vsel %vm388, %v228, 0
  %v717 = vsel %vm388, %v230, 0
  %v720 = vsel %vm388, %v232, 0
  %v723 = vsel %vm388, %v234, 0
  %v726 = vsel %vm388, %v236, 0
  %v729 = vsel %vm388, %v238, 0
  %v732 = vsel %vm388, %v240, 0
  %v735 = vsel %vm388, %v242, 0
  %v738 = vsel %vm388, %v244, 0
  %v741 = vsel %vm388, %v246, 0
  %v744 = vsel %vm388, %v248, 0
  %v747 = vsel %vm388, %v250, 0
  %v750 = vsel %vm388, %v252, 0
  %v753 = vsel %vm388, %v254, 0
  %v756 = vsel %vm388, %v256, 0
  %v759 = vsel %vm388, %v258, 0
  %v762 = vsel %vm388, %v260, 0
  %v765 = vsel %vm388, %v262, 0
  %v768 = vsel %vm388, %v264, 0
  %v771 = vsel %vm388, %v266, 0
  %v774 = vsel %vm388, %v268, 0
  %v777 = vsel %vm388, %v270, 0
  %v780 = vsel %vm388, %v272, 0
  %v783 = vsel %vm388, %v274, 0
  %v786 = vsel %vm388, %v276, 0
  %v789 = vsel %vm388, %v278, 0
  %v792 = vsel %vm388, %v280, 0
  %v795 = vsel %vm388, %v282, 0
  %v798 = vsel %vm388, %v284, 0
  %v801 = vsel %vm388, %v286, 0
  %v804 = vsel %vm388, %v288, 0
  %v807 = vsel %vm388, %v290, 0
  %v810 = vsel %vm388, %v292, 0
  %v813 = vsel %vm388, %v294, 0
  %v816 = vsel %vm388, %v296, 0
  %v819 = vsel %vm388, %v298, 0
  %v822 = vsel %vm388, %v300, 0
  %v825 = vsel %vm388, %v302, 0
  %v828 = vsel %vm388, %v304, 0
  %v831 = vsel %vm388, %v306, 0
  %v834 = vsel %vm388, %v308, 0
  %v837 = vsel %vm388, %v310, 0
  %v840 = vsel %vm388, %v312, 0
  %v843 = vsel %vm388, %v314, 0
  %v846 = vsel %vm388, %v316, 0
  %v849 = vsel %vm388, %v318, 0
  %v852 = vsel %vm388, %v320, 0
  %v855 = vsel %vm388, %v322, 0
  %v858 = vsel %vm388, %v324, 0
  %v861 = vsel %vm388, %v326, 0
  %v864 = vsel %vm388, %v328, 0
  %v867 = vsel %vm388, %v330, 0
  %v870 = vsel %vm388, %v332, 0
  %v873 = vsel %vm388, %v334, 0
  %v876 = vsel %vm388, %v336, 0
  %v879 = vsel %vm388, %v338, 0
  %v882 = vsel %vm388, %v340, 0
  %v885 = vsel %vm388, %v342, 0
  %v888 = vsel %vm388, %v344, 0
  %v891 = vsel %vm388, %v346, 0
  %v894 = vsel %vm388, %v348, 0
  %v897 = vsel %vm388, %v350, 0
  %v900 = vsel %vm388, %v352, 0
  %v903 = vsel %vm388, %v354, 0
  %v906 = vsel %vm388, %v356, 0
  %v909 = vsel %vm388, %v358, 0
  %v911 = vand.u32 %v374, 4294901760
  %912 = vmatpush.msra.mxu0 %v911
  %v913 = vand.u32 %v373, 4294901760
  %914 = vmatpush.msra.mxu0 %v913
  %v915 = vand.u32 %v372, 4294901760
  %916 = vmatpush.msra.mxu0 %v915
  %v917 = vand.u32 %v371, 4294901760
  %918 = vmatpush.msra.mxu0 %v917
  %v919 = vand.u32 %v370, 4294901760
  %920 = vmatpush.msra.mxu0 %v919
  %v921 = vand.u32 %v369, 4294901760
  %922 = vmatpush.msra.mxu0 %v921
  %v923 = vand.u32 %v368, 4294901760
  %924 = vmatpush.msra.mxu0 %v923
  %v925 = vand.u32 %v367, 4294901760
  %926 = vmatpush.msra.mxu0 %v925
  %v927 = vand.u32 %v366, 4294901760
  %928 = vmatpush.msra.mxu0 %v927
  %v929 = vand.u32 %v365, 4294901760
  %930 = vmatpush.msra.mxu0 %v929
  %v931 = vand.u32 %v364, 4294901760
  %932 = vmatpush.msra.mxu0 %v931
  %v933 = vand.u32 %v363, 4294901760
  %934 = vmatpush.msra.mxu0 %v933
  %v935 = vand.u32 %v362, 4294901760
  %936 = vmatpush.msra.mxu0 %v935
  %v937 = vand.u32 %v361, 4294901760
  %938 = vmatpush.msra.mxu0 %v937
  %v939 = vand.u32 %v360, 4294901760
  %940 = vmatpush.msra.mxu0 %v939
  %v941 = vand.u32 %v359, 4294901760
  %942 = vmatpush.msra.mxu0 %v941
  %v943 = vand.u32 %v11, 4294901760
  %v944 = vsub.f32 %v11, %v943
  %v945 = vand.u32 %v944, 4294901760
  %v946 = vsub.f32 %v944, %v945
  %v947 = vand.u32 %v946, 4294901760
  %948 = vmatmul.f32.gmra.mxu0 %v947
  %v949 = vpop.f32.mrf.mxu0
  %v950 = vadd.f32 0.0, %v949
  %v951 = vand.u32 %v13, 4294901760
  %v952 = vsub.f32 %v13, %v951
  %v953 = vand.u32 %v952, 4294901760
  %v954 = vsub.f32 %v952, %v953
  %v955 = vand.u32 %v954, 4294901760
  %956 = vmatmul.f32.gmra.mxu0 %v955
  %v957 = vpop.f32.mrf.mxu0
  %v958 = vadd.f32 0.0, %v957
  %v959 = vand.u32 %v15, 4294901760
  %v960 = vsub.f32 %v15, %v959
  %v961 = vand.u32 %v960, 4294901760
  %v962 = vsub.f32 %v960, %v961
  %v963 = vand.u32 %v962, 4294901760
  %964 = vmatmul.f32.gmra.mxu0 %v963
  %v965 = vpop.f32.mrf.mxu0
  %v966 = vadd.f32 0.0, %v965
  %v967 = vand.u32 %v17, 4294901760
  %v968 = vsub.f32 %v17, %v967
  %v969 = vand.u32 %v968, 4294901760
  %v970 = vsub.f32 %v968, %v969
  %v971 = vand.u32 %v970, 4294901760
  %972 = vmatmul.f32.gmra.mxu0 %v971
  %v973 = vpop.f32.mrf.mxu0
  %v974 = vadd.f32 0.0, %v973
  %v975 = vand.u32 %v19, 4294901760
  %v976 = vsub.f32 %v19, %v975
  %v977 = vand.u32 %v976, 4294901760
  %v978 = vsub.f32 %v976, %v977
  %v979 = vand.u32 %v978, 4294901760
  %980 = vmatmul.f32.gmra.mxu0 %v979
  %v981 = vpop.f32.mrf.mxu0
  %v982 = vadd.f32 0.0, %v981
  %v983 = vand.u32 %v21, 4294901760
  %v984 = vsub.f32 %v21, %v983
  %v985 = vand.u32 %v984, 4294901760
  %v986 = vsub.f32 %v984, %v985
  %v987 = vand.u32 %v986, 4294901760
  %988 = vmatmul.f32.gmra.mxu0 %v987
  %v989 = vpop.f32.mrf.mxu0
  %v990 = vadd.f32 0.0, %v989
  %v991 = vand.u32 %v23, 4294901760
  %v992 = vsub.f32 %v23, %v991
  %v993 = vand.u32 %v992, 4294901760
  %v994 = vsub.f32 %v992, %v993
  %v995 = vand.u32 %v994, 4294901760
  %996 = vmatmul.f32.gmra.mxu0 %v995
  %v997 = vpop.f32.mrf.mxu0
  %v998 = vadd.f32 0.0, %v997
  %v999 = vand.u32 %v25, 4294901760
  %v1000 = vsub.f32 %v25, %v999
  %v1001 = vand.u32 %v1000, 4294901760
  %v1002 = vsub.f32 %v1000, %v1001
  %v1003 = vand.u32 %v1002, 4294901760
  %1004 = vmatmul.f32.gmra.mxu0 %v1003
  %v1005 = vpop.f32.mrf.mxu0
  %v1006 = vadd.f32 0.0, %v1005
  %v1007 = vand.u32 %v27, 4294901760
  %v1008 = vsub.f32 %v27, %v1007
  %v1009 = vand.u32 %v1008, 4294901760
  %v1010 = vsub.f32 %v1008, %v1009
  %v1011 = vand.u32 %v1010, 4294901760
  %1012 = vmatmul.f32.gmra.mxu0 %v1011
  %v1013 = vpop.f32.mrf.mxu0
  %v1014 = vadd.f32 0.0, %v1013
  %v1015 = vand.u32 %v29, 4294901760
  %v1016 = vsub.f32 %v29, %v1015
  %v1017 = vand.u32 %v1016, 4294901760
  %v1018 = vsub.f32 %v1016, %v1017
  %v1019 = vand.u32 %v1018, 4294901760
  %1020 = vmatmul.f32.gmra.mxu0 %v1019
  %v1021 = vpop.f32.mrf.mxu0
  %v1022 = vadd.f32 0.0, %v1021
  %v1023 = vand.u32 %v31, 4294901760
  %v1024 = vsub.f32 %v31, %v1023
  %v1025 = vand.u32 %v1024, 4294901760
  %v1026 = vsub.f32 %v1024, %v1025
  %v1027 = vand.u32 %v1026, 4294901760
  %1028 = vmatmul.f32.gmra.mxu0 %v1027
  %v1029 = vpop.f32.mrf.mxu0
  %v1030 = vadd.f32 0.0, %v1029
  %v1031 = vand.u32 %v33, 4294901760
  %v1032 = vsub.f32 %v33, %v1031
  %v1033 = vand.u32 %v1032, 4294901760
  %v1034 = vsub.f32 %v1032, %v1033
  %v1035 = vand.u32 %v1034, 4294901760
  %1036 = vmatmul.f32.gmra.mxu0 %v1035
  %v1037 = vpop.f32.mrf.mxu0
  %v1038 = vadd.f32 0.0, %v1037
  %v1039 = vand.u32 %v35, 4294901760
  %v1040 = vsub.f32 %v35, %v1039
  %v1041 = vand.u32 %v1040, 4294901760
  %v1042 = vsub.f32 %v1040, %v1041
  %v1043 = vand.u32 %v1042, 4294901760
  %1044 = vmatmul.f32.gmra.mxu0 %v1043
  %v1045 = vpop.f32.mrf.mxu0
  %v1046 = vadd.f32 0.0, %v1045
  %v1047 = vand.u32 %v37, 4294901760
  %v1048 = vsub.f32 %v37, %v1047
  %v1049 = vand.u32 %v1048, 4294901760
  %v1050 = vsub.f32 %v1048, %v1049
  %v1051 = vand.u32 %v1050, 4294901760
  %1052 = vmatmul.f32.gmra.mxu0 %v1051
  %v1053 = vpop.f32.mrf.mxu0
  %v1054 = vadd.f32 0.0, %v1053
  %v1055 = vand.u32 %v39, 4294901760
  %v1056 = vsub.f32 %v39, %v1055
  %v1057 = vand.u32 %v1056, 4294901760
  %v1058 = vsub.f32 %v1056, %v1057
  %v1059 = vand.u32 %v1058, 4294901760
  %1060 = vmatmul.f32.gmra.mxu0 %v1059
  %v1061 = vpop.f32.mrf.mxu0
  %v1062 = vadd.f32 0.0, %v1061
  %v1063 = vand.u32 %v41, 4294901760
  %v1064 = vsub.f32 %v41, %v1063
  %v1065 = vand.u32 %v1064, 4294901760
  %v1066 = vsub.f32 %v1064, %v1065
  %v1067 = vand.u32 %v1066, 4294901760
  %1068 = vmatmul.f32.gmra.mxu0 %v1067
  %v1069 = vpop.f32.mrf.mxu0
  %v1070 = vadd.f32 0.0, %v1069
  %v1071 = vand.u32 %v43, 4294901760
  %v1072 = vsub.f32 %v43, %v1071
  %v1073 = vand.u32 %v1072, 4294901760
  %v1074 = vsub.f32 %v1072, %v1073
  %v1075 = vand.u32 %v1074, 4294901760
  %1076 = vmatmul.f32.gmra.mxu0 %v1075
  %v1077 = vpop.f32.mrf.mxu0
  %v1078 = vadd.f32 0.0, %v1077
  %v1079 = vand.u32 %v45, 4294901760
  %v1080 = vsub.f32 %v45, %v1079
  %v1081 = vand.u32 %v1080, 4294901760
  %v1082 = vsub.f32 %v1080, %v1081
  %v1083 = vand.u32 %v1082, 4294901760
  %1084 = vmatmul.f32.gmra.mxu0 %v1083
  %v1085 = vpop.f32.mrf.mxu0
  %v1086 = vadd.f32 0.0, %v1085
  %v1087 = vand.u32 %v47, 4294901760
  %v1088 = vsub.f32 %v47, %v1087
  %v1089 = vand.u32 %v1088, 4294901760
  %v1090 = vsub.f32 %v1088, %v1089
  %v1091 = vand.u32 %v1090, 4294901760
  %1092 = vmatmul.f32.gmra.mxu0 %v1091
  %v1093 = vpop.f32.mrf.mxu0
  %v1094 = vadd.f32 0.0, %v1093
  %v1095 = vand.u32 %v49, 4294901760
  %v1096 = vsub.f32 %v49, %v1095
  %v1097 = vand.u32 %v1096, 4294901760
  %v1098 = vsub.f32 %v1096, %v1097
  %v1099 = vand.u32 %v1098, 4294901760
  %1100 = vmatmul.f32.gmra.mxu0 %v1099
  %v1101 = vpop.f32.mrf.mxu0
  %v1102 = vadd.f32 0.0, %v1101
  %v1103 = vand.u32 %v51, 4294901760
  %v1104 = vsub.f32 %v51, %v1103
  %v1105 = vand.u32 %v1104, 4294901760
  %v1106 = vsub.f32 %v1104, %v1105
  %v1107 = vand.u32 %v1106, 4294901760
  %1108 = vmatmul.f32.gmra.mxu0 %v1107
  %v1109 = vpop.f32.mrf.mxu0
  %v1110 = vadd.f32 0.0, %v1109
  %v1111 = vand.u32 %v53, 4294901760
  %v1112 = vsub.f32 %v53, %v1111
  %v1113 = vand.u32 %v1112, 4294901760
  %v1114 = vsub.f32 %v1112, %v1113
  %v1115 = vand.u32 %v1114, 4294901760
  %1116 = vmatmul.f32.gmra.mxu0 %v1115
  %v1117 = vpop.f32.mrf.mxu0
  %v1118 = vadd.f32 0.0, %v1117
  %v1119 = vand.u32 %v55, 4294901760
  %v1120 = vsub.f32 %v55, %v1119
  %v1121 = vand.u32 %v1120, 4294901760
  %v1122 = vsub.f32 %v1120, %v1121
  %v1123 = vand.u32 %v1122, 4294901760
  %1124 = vmatmul.f32.gmra.mxu0 %v1123
  %v1125 = vpop.f32.mrf.mxu0
  %v1126 = vadd.f32 0.0, %v1125
  %v1127 = vand.u32 %v57, 4294901760
  %v1128 = vsub.f32 %v57, %v1127
  %v1129 = vand.u32 %v1128, 4294901760
  %v1130 = vsub.f32 %v1128, %v1129
  %v1131 = vand.u32 %v1130, 4294901760
  %1132 = vmatmul.f32.gmra.mxu0 %v1131
  %v1133 = vpop.f32.mrf.mxu0
  %v1134 = vadd.f32 0.0, %v1133
  %v1135 = vand.u32 %v59, 4294901760
  %v1136 = vsub.f32 %v59, %v1135
  %v1137 = vand.u32 %v1136, 4294901760
  %v1138 = vsub.f32 %v1136, %v1137
  %v1139 = vand.u32 %v1138, 4294901760
  %1140 = vmatmul.f32.gmra.mxu0 %v1139
  %v1141 = vpop.f32.mrf.mxu0
  %v1142 = vadd.f32 0.0, %v1141
  %v1143 = vand.u32 %v61, 4294901760
  %v1144 = vsub.f32 %v61, %v1143
  %v1145 = vand.u32 %v1144, 4294901760
  %v1146 = vsub.f32 %v1144, %v1145
  %v1147 = vand.u32 %v1146, 4294901760
  %1148 = vmatmul.f32.gmra.mxu0 %v1147
  %v1149 = vpop.f32.mrf.mxu0
  %v1150 = vadd.f32 0.0, %v1149
  %v1151 = vand.u32 %v63, 4294901760
  %v1152 = vsub.f32 %v63, %v1151
  %v1153 = vand.u32 %v1152, 4294901760
  %v1154 = vsub.f32 %v1152, %v1153
  %v1155 = vand.u32 %v1154, 4294901760
  %1156 = vmatmul.f32.gmra.mxu0 %v1155
  %v1157 = vpop.f32.mrf.mxu0
  %v1158 = vadd.f32 0.0, %v1157
  %v1159 = vand.u32 %v65, 4294901760
  %v1160 = vsub.f32 %v65, %v1159
  %v1161 = vand.u32 %v1160, 4294901760
  %v1162 = vsub.f32 %v1160, %v1161
  %v1163 = vand.u32 %v1162, 4294901760
  %1164 = vmatmul.f32.gmra.mxu0 %v1163
  %v1165 = vpop.f32.mrf.mxu0
  %v1166 = vadd.f32 0.0, %v1165
  %v1167 = vand.u32 %v67, 4294901760
  %v1168 = vsub.f32 %v67, %v1167
  %v1169 = vand.u32 %v1168, 4294901760
  %v1170 = vsub.f32 %v1168, %v1169
  %v1171 = vand.u32 %v1170, 4294901760
  %1172 = vmatmul.f32.gmra.mxu0 %v1171
  %v1173 = vpop.f32.mrf.mxu0
  %v1174 = vadd.f32 0.0, %v1173
  %v1175 = vand.u32 %v69, 4294901760
  %v1176 = vsub.f32 %v69, %v1175
  %v1177 = vand.u32 %v1176, 4294901760
  %v1178 = vsub.f32 %v1176, %v1177
  %v1179 = vand.u32 %v1178, 4294901760
  %1180 = vmatmul.f32.gmra.mxu0 %v1179
  %v1181 = vpop.f32.mrf.mxu0
  %v1182 = vadd.f32 0.0, %v1181
  %v1183 = vand.u32 %v71, 4294901760
  %v1184 = vsub.f32 %v71, %v1183
  %v1185 = vand.u32 %v1184, 4294901760
  %v1186 = vsub.f32 %v1184, %v1185
  %v1187 = vand.u32 %v1186, 4294901760
  %1188 = vmatmul.f32.gmra.mxu0 %v1187
  %v1189 = vpop.f32.mrf.mxu0
  %v1190 = vadd.f32 0.0, %v1189
  %v1191 = vand.u32 %v73, 4294901760
  %v1192 = vsub.f32 %v73, %v1191
  %v1193 = vand.u32 %v1192, 4294901760
  %v1194 = vsub.f32 %v1192, %v1193
  %v1195 = vand.u32 %v1194, 4294901760
  %1196 = vmatmul.f32.gmra.mxu0 %v1195
  %v1197 = vpop.f32.mrf.mxu0
  %v1198 = vadd.f32 0.0, %v1197
  %v1199 = vand.u32 %v75, 4294901760
  %v1200 = vsub.f32 %v75, %v1199
  %v1201 = vand.u32 %v1200, 4294901760
  %v1202 = vsub.f32 %v1200, %v1201
  %v1203 = vand.u32 %v1202, 4294901760
  %1204 = vmatmul.f32.gmra.mxu0 %v1203
  %v1205 = vpop.f32.mrf.mxu0
  %v1206 = vadd.f32 0.0, %v1205
  %v1207 = vand.u32 %v77, 4294901760
  %v1208 = vsub.f32 %v77, %v1207
  %v1209 = vand.u32 %v1208, 4294901760
  %v1210 = vsub.f32 %v1208, %v1209
  %v1211 = vand.u32 %v1210, 4294901760
  %1212 = vmatmul.f32.gmra.mxu0 %v1211
  %v1213 = vpop.f32.mrf.mxu0
  %v1214 = vadd.f32 0.0, %v1213
  %v1215 = vand.u32 %v79, 4294901760
  %v1216 = vsub.f32 %v79, %v1215
  %v1217 = vand.u32 %v1216, 4294901760
  %v1218 = vsub.f32 %v1216, %v1217
  %v1219 = vand.u32 %v1218, 4294901760
  %1220 = vmatmul.f32.gmra.mxu0 %v1219
  %v1221 = vpop.f32.mrf.mxu0
  %v1222 = vadd.f32 0.0, %v1221
  %v1223 = vand.u32 %v81, 4294901760
  %v1224 = vsub.f32 %v81, %v1223
  %v1225 = vand.u32 %v1224, 4294901760
  %v1226 = vsub.f32 %v1224, %v1225
  %v1227 = vand.u32 %v1226, 4294901760
  %1228 = vmatmul.f32.gmra.mxu0 %v1227
  %v1229 = vpop.f32.mrf.mxu0
  %v1230 = vadd.f32 0.0, %v1229
  %v1231 = vand.u32 %v83, 4294901760
  %v1232 = vsub.f32 %v83, %v1231
  %v1233 = vand.u32 %v1232, 4294901760
  %v1234 = vsub.f32 %v1232, %v1233
  %v1235 = vand.u32 %v1234, 4294901760
  %1236 = vmatmul.f32.gmra.mxu0 %v1235
  %v1237 = vpop.f32.mrf.mxu0
  %v1238 = vadd.f32 0.0, %v1237
  %v1239 = vand.u32 %v85, 4294901760
  %v1240 = vsub.f32 %v85, %v1239
  %v1241 = vand.u32 %v1240, 4294901760
  %v1242 = vsub.f32 %v1240, %v1241
  %v1243 = vand.u32 %v1242, 4294901760
  %1244 = vmatmul.f32.gmra.mxu0 %v1243
  %v1245 = vpop.f32.mrf.mxu0
  %v1246 = vadd.f32 0.0, %v1245
  %v1247 = vand.u32 %v87, 4294901760
  %v1248 = vsub.f32 %v87, %v1247
  %v1249 = vand.u32 %v1248, 4294901760
  %v1250 = vsub.f32 %v1248, %v1249
  %v1251 = vand.u32 %v1250, 4294901760
  %1252 = vmatmul.f32.gmra.mxu0 %v1251
  %v1253 = vpop.f32.mrf.mxu0
  %v1254 = vadd.f32 0.0, %v1253
  %v1255 = vand.u32 %v89, 4294901760
  %v1256 = vsub.f32 %v89, %v1255
  %v1257 = vand.u32 %v1256, 4294901760
  %v1258 = vsub.f32 %v1256, %v1257
  %v1259 = vand.u32 %v1258, 4294901760
  %1260 = vmatmul.f32.gmra.mxu0 %v1259
  %v1261 = vpop.f32.mrf.mxu0
  %v1262 = vadd.f32 0.0, %v1261
  %v1263 = vand.u32 %v91, 4294901760
  %v1264 = vsub.f32 %v91, %v1263
  %v1265 = vand.u32 %v1264, 4294901760
  %v1266 = vsub.f32 %v1264, %v1265
  %v1267 = vand.u32 %v1266, 4294901760
  %1268 = vmatmul.f32.gmra.mxu0 %v1267
  %v1269 = vpop.f32.mrf.mxu0
  %v1270 = vadd.f32 0.0, %v1269
  %v1271 = vand.u32 %v93, 4294901760
  %v1272 = vsub.f32 %v93, %v1271
  %v1273 = vand.u32 %v1272, 4294901760
  %v1274 = vsub.f32 %v1272, %v1273
  %v1275 = vand.u32 %v1274, 4294901760
  %1276 = vmatmul.f32.gmra.mxu0 %v1275
  %v1277 = vpop.f32.mrf.mxu0
  %v1278 = vadd.f32 0.0, %v1277
  %v1279 = vand.u32 %v95, 4294901760
  %v1280 = vsub.f32 %v95, %v1279
  %v1281 = vand.u32 %v1280, 4294901760
  %v1282 = vsub.f32 %v1280, %v1281
  %v1283 = vand.u32 %v1282, 4294901760
  %1284 = vmatmul.f32.gmra.mxu0 %v1283
  %v1285 = vpop.f32.mrf.mxu0
  %v1286 = vadd.f32 0.0, %v1285
  %v1287 = vand.u32 %v97, 4294901760
  %v1288 = vsub.f32 %v97, %v1287
  %v1289 = vand.u32 %v1288, 4294901760
  %v1290 = vsub.f32 %v1288, %v1289
  %v1291 = vand.u32 %v1290, 4294901760
  %1292 = vmatmul.f32.gmra.mxu0 %v1291
  %v1293 = vpop.f32.mrf.mxu0
  %v1294 = vadd.f32 0.0, %v1293
  %v1295 = vand.u32 %v99, 4294901760
  %v1296 = vsub.f32 %v99, %v1295
  %v1297 = vand.u32 %v1296, 4294901760
  %v1298 = vsub.f32 %v1296, %v1297
  %v1299 = vand.u32 %v1298, 4294901760
  %1300 = vmatmul.f32.gmra.mxu0 %v1299
  %v1301 = vpop.f32.mrf.mxu0
  %v1302 = vadd.f32 0.0, %v1301
  %v1303 = vand.u32 %v101, 4294901760
  %v1304 = vsub.f32 %v101, %v1303
  %v1305 = vand.u32 %v1304, 4294901760
  %v1306 = vsub.f32 %v1304, %v1305
  %v1307 = vand.u32 %v1306, 4294901760
  %1308 = vmatmul.f32.gmra.mxu0 %v1307
  %v1309 = vpop.f32.mrf.mxu0
  %v1310 = vadd.f32 0.0, %v1309
  %v1311 = vand.u32 %v103, 4294901760
  %v1312 = vsub.f32 %v103, %v1311
  %v1313 = vand.u32 %v1312, 4294901760
  %v1314 = vsub.f32 %v1312, %v1313
  %v1315 = vand.u32 %v1314, 4294901760
  %1316 = vmatmul.f32.gmra.mxu0 %v1315
  %v1317 = vpop.f32.mrf.mxu0
  %v1318 = vadd.f32 0.0, %v1317
  %v1319 = vand.u32 %v105, 4294901760
  %v1320 = vsub.f32 %v105, %v1319
  %v1321 = vand.u32 %v1320, 4294901760
  %v1322 = vsub.f32 %v1320, %v1321
  %v1323 = vand.u32 %v1322, 4294901760
  %1324 = vmatmul.f32.gmra.mxu0 %v1323
  %v1325 = vpop.f32.mrf.mxu0
  %v1326 = vadd.f32 0.0, %v1325
  %v1327 = vand.u32 %v107, 4294901760
  %v1328 = vsub.f32 %v107, %v1327
  %v1329 = vand.u32 %v1328, 4294901760
  %v1330 = vsub.f32 %v1328, %v1329
  %v1331 = vand.u32 %v1330, 4294901760
  %1332 = vmatmul.f32.gmra.mxu0 %v1331
  %v1333 = vpop.f32.mrf.mxu0
  %v1334 = vadd.f32 0.0, %v1333
  %v1335 = vand.u32 %v109, 4294901760
  %v1336 = vsub.f32 %v109, %v1335
  %v1337 = vand.u32 %v1336, 4294901760
  %v1338 = vsub.f32 %v1336, %v1337
  %v1339 = vand.u32 %v1338, 4294901760
  %1340 = vmatmul.f32.gmra.mxu0 %v1339
  %v1341 = vpop.f32.mrf.mxu0
  %v1342 = vadd.f32 0.0, %v1341
  %v1343 = vand.u32 %v111, 4294901760
  %v1344 = vsub.f32 %v111, %v1343
  %v1345 = vand.u32 %v1344, 4294901760
  %v1346 = vsub.f32 %v1344, %v1345
  %v1347 = vand.u32 %v1346, 4294901760
  %1348 = vmatmul.f32.gmra.mxu0 %v1347
  %v1349 = vpop.f32.mrf.mxu0
  %v1350 = vadd.f32 0.0, %v1349
  %v1351 = vand.u32 %v113, 4294901760
  %v1352 = vsub.f32 %v113, %v1351
  %v1353 = vand.u32 %v1352, 4294901760
  %v1354 = vsub.f32 %v1352, %v1353
  %v1355 = vand.u32 %v1354, 4294901760
  %1356 = vmatmul.f32.gmra.mxu0 %v1355
  %v1357 = vpop.f32.mrf.mxu0
  %v1358 = vadd.f32 0.0, %v1357
  %v1359 = vand.u32 %v115, 4294901760
  %v1360 = vsub.f32 %v115, %v1359
  %v1361 = vand.u32 %v1360, 4294901760
  %v1362 = vsub.f32 %v1360, %v1361
  %v1363 = vand.u32 %v1362, 4294901760
  %1364 = vmatmul.f32.gmra.mxu0 %v1363
  %v1365 = vpop.f32.mrf.mxu0
  %v1366 = vadd.f32 0.0, %v1365
  %v1367 = vand.u32 %v117, 4294901760
  %v1368 = vsub.f32 %v117, %v1367
  %v1369 = vand.u32 %v1368, 4294901760
  %v1370 = vsub.f32 %v1368, %v1369
  %v1371 = vand.u32 %v1370, 4294901760
  %1372 = vmatmul.f32.gmra.mxu0 %v1371
  %v1373 = vpop.f32.mrf.mxu0
  %v1374 = vadd.f32 0.0, %v1373
  %v1375 = vand.u32 %v119, 4294901760
  %v1376 = vsub.f32 %v119, %v1375
  %v1377 = vand.u32 %v1376, 4294901760
  %v1378 = vsub.f32 %v1376, %v1377
  %v1379 = vand.u32 %v1378, 4294901760
  %1380 = vmatmul.f32.gmra.mxu0 %v1379
  %v1381 = vpop.f32.mrf.mxu0
  %v1382 = vadd.f32 0.0, %v1381
  %v1383 = vand.u32 %v121, 4294901760
  %v1384 = vsub.f32 %v121, %v1383
  %v1385 = vand.u32 %v1384, 4294901760
  %v1386 = vsub.f32 %v1384, %v1385
  %v1387 = vand.u32 %v1386, 4294901760
  %1388 = vmatmul.f32.gmra.mxu0 %v1387
  %v1389 = vpop.f32.mrf.mxu0
  %v1390 = vadd.f32 0.0, %v1389
  %v1391 = vand.u32 %v123, 4294901760
  %v1392 = vsub.f32 %v123, %v1391
  %v1393 = vand.u32 %v1392, 4294901760
  %v1394 = vsub.f32 %v1392, %v1393
  %v1395 = vand.u32 %v1394, 4294901760
  %1396 = vmatmul.f32.gmra.mxu0 %v1395
  %v1397 = vpop.f32.mrf.mxu0
  %v1398 = vadd.f32 0.0, %v1397
  %v1399 = vand.u32 %v125, 4294901760
  %v1400 = vsub.f32 %v125, %v1399
  %v1401 = vand.u32 %v1400, 4294901760
  %v1402 = vsub.f32 %v1400, %v1401
  %v1403 = vand.u32 %v1402, 4294901760
  %1404 = vmatmul.f32.gmra.mxu0 %v1403
  %v1405 = vpop.f32.mrf.mxu0
  %v1406 = vadd.f32 0.0, %v1405
  %v1407 = vand.u32 %v127, 4294901760
  %v1408 = vsub.f32 %v127, %v1407
  %v1409 = vand.u32 %v1408, 4294901760
  %v1410 = vsub.f32 %v1408, %v1409
  %v1411 = vand.u32 %v1410, 4294901760
  %1412 = vmatmul.f32.gmra.mxu0 %v1411
  %v1413 = vpop.f32.mrf.mxu0
  %v1414 = vadd.f32 0.0, %v1413
  %v1415 = vand.u32 %v129, 4294901760
  %v1416 = vsub.f32 %v129, %v1415
  %v1417 = vand.u32 %v1416, 4294901760
  %v1418 = vsub.f32 %v1416, %v1417
  %v1419 = vand.u32 %v1418, 4294901760
  %1420 = vmatmul.f32.gmra.mxu0 %v1419
  %v1421 = vpop.f32.mrf.mxu0
  %v1422 = vadd.f32 0.0, %v1421
  %v1423 = vand.u32 %v131, 4294901760
  %v1424 = vsub.f32 %v131, %v1423
  %v1425 = vand.u32 %v1424, 4294901760
  %v1426 = vsub.f32 %v1424, %v1425
  %v1427 = vand.u32 %v1426, 4294901760
  %1428 = vmatmul.f32.gmra.mxu0 %v1427
  %v1429 = vpop.f32.mrf.mxu0
  %v1430 = vadd.f32 0.0, %v1429
  %v1431 = vand.u32 %v133, 4294901760
  %v1432 = vsub.f32 %v133, %v1431
  %v1433 = vand.u32 %v1432, 4294901760
  %v1434 = vsub.f32 %v1432, %v1433
  %v1435 = vand.u32 %v1434, 4294901760
  %1436 = vmatmul.f32.gmra.mxu0 %v1435
  %v1437 = vpop.f32.mrf.mxu0
  %v1438 = vadd.f32 0.0, %v1437
  %v1439 = vand.u32 %v135, 4294901760
  %v1440 = vsub.f32 %v135, %v1439
  %v1441 = vand.u32 %v1440, 4294901760
  %v1442 = vsub.f32 %v1440, %v1441
  %v1443 = vand.u32 %v1442, 4294901760
  %1444 = vmatmul.f32.gmra.mxu0 %v1443
  %v1445 = vpop.f32.mrf.mxu0
  %v1446 = vadd.f32 0.0, %v1445
  %v1447 = vand.u32 %v137, 4294901760
  %v1448 = vsub.f32 %v137, %v1447
  %v1449 = vand.u32 %v1448, 4294901760
  %v1450 = vsub.f32 %v1448, %v1449
  %v1451 = vand.u32 %v1450, 4294901760
  %1452 = vmatmul.f32.gmra.mxu0 %v1451
  %v1453 = vpop.f32.mrf.mxu0
  %v1454 = vadd.f32 0.0, %v1453
  %v1455 = vand.u32 %v139, 4294901760
  %v1456 = vsub.f32 %v139, %v1455
  %v1457 = vand.u32 %v1456, 4294901760
  %v1458 = vsub.f32 %v1456, %v1457
  %v1459 = vand.u32 %v1458, 4294901760
  %1460 = vmatmul.f32.gmra.mxu0 %v1459
  %v1461 = vpop.f32.mrf.mxu0
  %v1462 = vadd.f32 0.0, %v1461
  %v1463 = vand.u32 %v141, 4294901760
  %v1464 = vsub.f32 %v141, %v1463
  %v1465 = vand.u32 %v1464, 4294901760
  %v1466 = vsub.f32 %v1464, %v1465
  %v1467 = vand.u32 %v1466, 4294901760
  %1468 = vmatmul.f32.gmra.mxu0 %v1467
  %v1469 = vpop.f32.mrf.mxu0
  %v1470 = vadd.f32 0.0, %v1469
  %v1471 = vand.u32 %v143, 4294901760
  %v1472 = vsub.f32 %v143, %v1471
  %v1473 = vand.u32 %v1472, 4294901760
  %v1474 = vsub.f32 %v1472, %v1473
  %v1475 = vand.u32 %v1474, 4294901760
  %1476 = vmatmul.f32.gmra.mxu0 %v1475
  %v1477 = vpop.f32.mrf.mxu0
  %v1478 = vadd.f32 0.0, %v1477
  %v1479 = vand.u32 %v145, 4294901760
  %v1480 = vsub.f32 %v145, %v1479
  %v1481 = vand.u32 %v1480, 4294901760
  %v1482 = vsub.f32 %v1480, %v1481
  %v1483 = vand.u32 %v1482, 4294901760
  %1484 = vmatmul.f32.gmra.mxu0 %v1483
  %v1485 = vpop.f32.mrf.mxu0
  %v1486 = vadd.f32 0.0, %v1485
  %v1487 = vand.u32 %v147, 4294901760
  %v1488 = vsub.f32 %v147, %v1487
  %v1489 = vand.u32 %v1488, 4294901760
  %v1490 = vsub.f32 %v1488, %v1489
  %v1491 = vand.u32 %v1490, 4294901760
  %1492 = vmatmul.f32.gmra.mxu0 %v1491
  %v1493 = vpop.f32.mrf.mxu0
  %v1494 = vadd.f32 0.0, %v1493
  %v1495 = vand.u32 %v149, 4294901760
  %v1496 = vsub.f32 %v149, %v1495
  %v1497 = vand.u32 %v1496, 4294901760
  %v1498 = vsub.f32 %v1496, %v1497
  %v1499 = vand.u32 %v1498, 4294901760
  %1500 = vmatmul.f32.gmra.mxu0 %v1499
  %v1501 = vpop.f32.mrf.mxu0
  %v1502 = vadd.f32 0.0, %v1501
  %v1503 = vand.u32 %v151, 4294901760
  %v1504 = vsub.f32 %v151, %v1503
  %v1505 = vand.u32 %v1504, 4294901760
  %v1506 = vsub.f32 %v1504, %v1505
  %v1507 = vand.u32 %v1506, 4294901760
  %1508 = vmatmul.f32.gmra.mxu0 %v1507
  %v1509 = vpop.f32.mrf.mxu0
  %v1510 = vadd.f32 0.0, %v1509
  %v1511 = vand.u32 %v153, 4294901760
  %v1512 = vsub.f32 %v153, %v1511
  %v1513 = vand.u32 %v1512, 4294901760
  %v1514 = vsub.f32 %v1512, %v1513
  %v1515 = vand.u32 %v1514, 4294901760
  %1516 = vmatmul.f32.gmra.mxu0 %v1515
  %v1517 = vpop.f32.mrf.mxu0
  %v1518 = vadd.f32 0.0, %v1517
  %v1519 = vand.u32 %v155, 4294901760
  %v1520 = vsub.f32 %v155, %v1519
  %v1521 = vand.u32 %v1520, 4294901760
  %v1522 = vsub.f32 %v1520, %v1521
  %v1523 = vand.u32 %v1522, 4294901760
  %1524 = vmatmul.f32.gmra.mxu0 %v1523
  %v1525 = vpop.f32.mrf.mxu0
  %v1526 = vadd.f32 0.0, %v1525
  %v1527 = vand.u32 %v157, 4294901760
  %v1528 = vsub.f32 %v157, %v1527
  %v1529 = vand.u32 %v1528, 4294901760
  %v1530 = vsub.f32 %v1528, %v1529
  %v1531 = vand.u32 %v1530, 4294901760
  %1532 = vmatmul.f32.gmra.mxu0 %v1531
  %v1533 = vpop.f32.mrf.mxu0
  %v1534 = vadd.f32 0.0, %v1533
  %v1535 = vand.u32 %v159, 4294901760
  %v1536 = vsub.f32 %v159, %v1535
  %v1537 = vand.u32 %v1536, 4294901760
  %v1538 = vsub.f32 %v1536, %v1537
  %v1539 = vand.u32 %v1538, 4294901760
  %1540 = vmatmul.f32.gmra.mxu0 %v1539
  %v1541 = vpop.f32.mrf.mxu0
  %v1542 = vadd.f32 0.0, %v1541
  %v1543 = vand.u32 %v161, 4294901760
  %v1544 = vsub.f32 %v161, %v1543
  %v1545 = vand.u32 %v1544, 4294901760
  %v1546 = vsub.f32 %v1544, %v1545
  %v1547 = vand.u32 %v1546, 4294901760
  %1548 = vmatmul.f32.gmra.mxu0 %v1547
  %v1549 = vpop.f32.mrf.mxu0
  %v1550 = vadd.f32 0.0, %v1549
  %v1551 = vand.u32 %v163, 4294901760
  %v1552 = vsub.f32 %v163, %v1551
  %v1553 = vand.u32 %v1552, 4294901760
  %v1554 = vsub.f32 %v1552, %v1553
  %v1555 = vand.u32 %v1554, 4294901760
  %1556 = vmatmul.f32.gmra.mxu0 %v1555
  %v1557 = vpop.f32.mrf.mxu0
  %v1558 = vadd.f32 0.0, %v1557
  %v1559 = vand.u32 %v165, 4294901760
  %v1560 = vsub.f32 %v165, %v1559
  %v1561 = vand.u32 %v1560, 4294901760
  %v1562 = vsub.f32 %v1560, %v1561
  %v1563 = vand.u32 %v1562, 4294901760
  %1564 = vmatmul.f32.gmra.mxu0 %v1563
  %v1565 = vpop.f32.mrf.mxu0
  %v1566 = vadd.f32 0.0, %v1565
  %v1567 = vand.u32 %v167, 4294901760
  %v1568 = vsub.f32 %v167, %v1567
  %v1569 = vand.u32 %v1568, 4294901760
  %v1570 = vsub.f32 %v1568, %v1569
  %v1571 = vand.u32 %v1570, 4294901760
  %1572 = vmatmul.f32.gmra.mxu0 %v1571
  %v1573 = vpop.f32.mrf.mxu0
  %v1574 = vadd.f32 0.0, %v1573
  %v1575 = vand.u32 %v169, 4294901760
  %v1576 = vsub.f32 %v169, %v1575
  %v1577 = vand.u32 %v1576, 4294901760
  %v1578 = vsub.f32 %v1576, %v1577
  %v1579 = vand.u32 %v1578, 4294901760
  %1580 = vmatmul.f32.gmra.mxu0 %v1579
  %v1581 = vpop.f32.mrf.mxu0
  %v1582 = vadd.f32 0.0, %v1581
  %v1583 = vand.u32 %v171, 4294901760
  %v1584 = vsub.f32 %v171, %v1583
  %v1585 = vand.u32 %v1584, 4294901760
  %v1586 = vsub.f32 %v1584, %v1585
  %v1587 = vand.u32 %v1586, 4294901760
  %1588 = vmatmul.f32.gmra.mxu0 %v1587
  %v1589 = vpop.f32.mrf.mxu0
  %v1590 = vadd.f32 0.0, %v1589
  %v1591 = vand.u32 %v173, 4294901760
  %v1592 = vsub.f32 %v173, %v1591
  %v1593 = vand.u32 %v1592, 4294901760
  %v1594 = vsub.f32 %v1592, %v1593
  %v1595 = vand.u32 %v1594, 4294901760
  %1596 = vmatmul.f32.gmra.mxu0 %v1595
  %v1597 = vpop.f32.mrf.mxu0
  %v1598 = vadd.f32 0.0, %v1597
  %v1599 = vand.u32 %v175, 4294901760
  %v1600 = vsub.f32 %v175, %v1599
  %v1601 = vand.u32 %v1600, 4294901760
  %v1602 = vsub.f32 %v1600, %v1601
  %v1603 = vand.u32 %v1602, 4294901760
  %1604 = vmatmul.f32.gmra.mxu0 %v1603
  %v1605 = vpop.f32.mrf.mxu0
  %v1606 = vadd.f32 0.0, %v1605
  %v1607 = vand.u32 %v177, 4294901760
  %v1608 = vsub.f32 %v177, %v1607
  %v1609 = vand.u32 %v1608, 4294901760
  %v1610 = vsub.f32 %v1608, %v1609
  %v1611 = vand.u32 %v1610, 4294901760
  %1612 = vmatmul.f32.gmra.mxu0 %v1611
  %v1613 = vpop.f32.mrf.mxu0
  %v1614 = vadd.f32 0.0, %v1613
  %v1615 = vand.u32 %v179, 4294901760
  %v1616 = vsub.f32 %v179, %v1615
  %v1617 = vand.u32 %v1616, 4294901760
  %v1618 = vsub.f32 %v1616, %v1617
  %v1619 = vand.u32 %v1618, 4294901760
  %1620 = vmatmul.f32.gmra.mxu0 %v1619
  %v1621 = vpop.f32.mrf.mxu0
  %v1622 = vadd.f32 0.0, %v1621
  %v1623 = vand.u32 %v181, 4294901760
  %v1624 = vsub.f32 %v181, %v1623
  %v1625 = vand.u32 %v1624, 4294901760
  %v1626 = vsub.f32 %v1624, %v1625
  %v1627 = vand.u32 %v1626, 4294901760
  %1628 = vmatmul.f32.gmra.mxu0 %v1627
  %v1629 = vpop.f32.mrf.mxu0
  %v1630 = vadd.f32 0.0, %v1629
  %v1631 = vand.u32 %v183, 4294901760
  %v1632 = vsub.f32 %v183, %v1631
  %v1633 = vand.u32 %v1632, 4294901760
  %v1634 = vsub.f32 %v1632, %v1633
  %v1635 = vand.u32 %v1634, 4294901760
  %1636 = vmatmul.f32.gmra.mxu0 %v1635
  %v1637 = vpop.f32.mrf.mxu0
  %v1638 = vadd.f32 0.0, %v1637
  %v1639 = vand.u32 %v185, 4294901760
  %v1640 = vsub.f32 %v185, %v1639
  %v1641 = vand.u32 %v1640, 4294901760
  %v1642 = vsub.f32 %v1640, %v1641
  %v1643 = vand.u32 %v1642, 4294901760
  %1644 = vmatmul.f32.gmra.mxu0 %v1643
  %v1645 = vpop.f32.mrf.mxu0
  %v1646 = vadd.f32 0.0, %v1645
  %v1647 = vand.u32 %v187, 4294901760
  %v1648 = vsub.f32 %v187, %v1647
  %v1649 = vand.u32 %v1648, 4294901760
  %v1650 = vsub.f32 %v1648, %v1649
  %v1651 = vand.u32 %v1650, 4294901760
  %1652 = vmatmul.f32.gmra.mxu0 %v1651
  %v1653 = vpop.f32.mrf.mxu0
  %v1654 = vadd.f32 0.0, %v1653
  %v1655 = vand.u32 %v189, 4294901760
  %v1656 = vsub.f32 %v189, %v1655
  %v1657 = vand.u32 %v1656, 4294901760
  %v1658 = vsub.f32 %v1656, %v1657
  %v1659 = vand.u32 %v1658, 4294901760
  %1660 = vmatmul.f32.gmra.mxu0 %v1659
  %v1661 = vpop.f32.mrf.mxu0
  %v1662 = vadd.f32 0.0, %v1661
  %v1663 = vand.u32 %v191, 4294901760
  %v1664 = vsub.f32 %v191, %v1663
  %v1665 = vand.u32 %v1664, 4294901760
  %v1666 = vsub.f32 %v1664, %v1665
  %v1667 = vand.u32 %v1666, 4294901760
  %1668 = vmatmul.f32.gmra.mxu0 %v1667
  %v1669 = vpop.f32.mrf.mxu0
  %v1670 = vadd.f32 0.0, %v1669
  %v1671 = vand.u32 %v193, 4294901760
  %v1672 = vsub.f32 %v193, %v1671
  %v1673 = vand.u32 %v1672, 4294901760
  %v1674 = vsub.f32 %v1672, %v1673
  %v1675 = vand.u32 %v1674, 4294901760
  %1676 = vmatmul.f32.gmra.mxu0 %v1675
  %v1677 = vpop.f32.mrf.mxu0
  %v1678 = vadd.f32 0.0, %v1677
  %v1679 = vand.u32 %v195, 4294901760
  %v1680 = vsub.f32 %v195, %v1679
  %v1681 = vand.u32 %v1680, 4294901760
  %v1682 = vsub.f32 %v1680, %v1681
  %v1683 = vand.u32 %v1682, 4294901760
  %1684 = vmatmul.f32.gmra.mxu0 %v1683
  %v1685 = vpop.f32.mrf.mxu0
  %v1686 = vadd.f32 0.0, %v1685
  %v1687 = vand.u32 %v197, 4294901760
  %v1688 = vsub.f32 %v197, %v1687
  %v1689 = vand.u32 %v1688, 4294901760
  %v1690 = vsub.f32 %v1688, %v1689
  %v1691 = vand.u32 %v1690, 4294901760
  %1692 = vmatmul.f32.gmra.mxu0 %v1691
  %v1693 = vpop.f32.mrf.mxu0
  %v1694 = vadd.f32 0.0, %v1693
  %v1695 = vand.u32 %v199, 4294901760
  %v1696 = vsub.f32 %v199, %v1695
  %v1697 = vand.u32 %v1696, 4294901760
  %v1698 = vsub.f32 %v1696, %v1697
  %v1699 = vand.u32 %v1698, 4294901760
  %1700 = vmatmul.f32.gmra.mxu0 %v1699
  %v1701 = vpop.f32.mrf.mxu0
  %v1702 = vadd.f32 0.0, %v1701
  %v1703 = vand.u32 %v201, 4294901760
  %v1704 = vsub.f32 %v201, %v1703
  %v1705 = vand.u32 %v1704, 4294901760
  %v1706 = vsub.f32 %v1704, %v1705
  %v1707 = vand.u32 %v1706, 4294901760
  %1708 = vmatmul.f32.gmra.mxu0 %v1707
  %v1709 = vpop.f32.mrf.mxu0
  %v1710 = vadd.f32 0.0, %v1709
  %v1711 = vand.u32 %v203, 4294901760
  %v1712 = vsub.f32 %v203, %v1711
  %v1713 = vand.u32 %v1712, 4294901760
  %v1714 = vsub.f32 %v1712, %v1713
  %v1715 = vand.u32 %v1714, 4294901760
  %1716 = vmatmul.f32.gmra.mxu0 %v1715
  %v1717 = vpop.f32.mrf.mxu0
  %v1718 = vadd.f32 0.0, %v1717
  %v1719 = vand.u32 %v205, 4294901760
  %v1720 = vsub.f32 %v205, %v1719
  %v1721 = vand.u32 %v1720, 4294901760
  %v1722 = vsub.f32 %v1720, %v1721
  %v1723 = vand.u32 %v1722, 4294901760
  %1724 = vmatmul.f32.gmra.mxu0 %v1723
  %v1725 = vpop.f32.mrf.mxu0
  %v1726 = vadd.f32 0.0, %v1725
  %v1727 = vand.u32 %v207, 4294901760
  %v1728 = vsub.f32 %v207, %v1727
  %v1729 = vand.u32 %v1728, 4294901760
  %v1730 = vsub.f32 %v1728, %v1729
  %v1731 = vand.u32 %v1730, 4294901760
  %1732 = vmatmul.f32.gmra.mxu0 %v1731
  %v1733 = vpop.f32.mrf.mxu0
  %v1734 = vadd.f32 0.0, %v1733
  %v1735 = vand.u32 %v209, 4294901760
  %v1736 = vsub.f32 %v209, %v1735
  %v1737 = vand.u32 %v1736, 4294901760
  %v1738 = vsub.f32 %v1736, %v1737
  %v1739 = vand.u32 %v1738, 4294901760
  %1740 = vmatmul.f32.gmra.mxu0 %v1739
  %v1741 = vpop.f32.mrf.mxu0
  %v1742 = vadd.f32 0.0, %v1741
  %v1743 = vand.u32 %v211, 4294901760
  %v1744 = vsub.f32 %v211, %v1743
  %v1745 = vand.u32 %v1744, 4294901760
  %v1746 = vsub.f32 %v1744, %v1745
  %v1747 = vand.u32 %v1746, 4294901760
  %1748 = vmatmul.f32.gmra.mxu0 %v1747
  %v1749 = vpop.f32.mrf.mxu0
  %v1750 = vadd.f32 0.0, %v1749
  %v1751 = vand.u32 %v213, 4294901760
  %v1752 = vsub.f32 %v213, %v1751
  %v1753 = vand.u32 %v1752, 4294901760
  %v1754 = vsub.f32 %v1752, %v1753
  %v1755 = vand.u32 %v1754, 4294901760
  %1756 = vmatmul.f32.gmra.mxu0 %v1755
  %v1757 = vpop.f32.mrf.mxu0
  %v1758 = vadd.f32 0.0, %v1757
  %v1759 = vand.u32 %v215, 4294901760
  %v1760 = vsub.f32 %v215, %v1759
  %v1761 = vand.u32 %v1760, 4294901760
  %v1762 = vsub.f32 %v1760, %v1761
  %v1763 = vand.u32 %v1762, 4294901760
  %1764 = vmatmul.f32.gmra.mxu0 %v1763
  %v1765 = vpop.f32.mrf.mxu0
  %v1766 = vadd.f32 0.0, %v1765
  %v1767 = vand.u32 %v217, 4294901760
  %v1768 = vsub.f32 %v217, %v1767
  %v1769 = vand.u32 %v1768, 4294901760
  %v1770 = vsub.f32 %v1768, %v1769
  %v1771 = vand.u32 %v1770, 4294901760
  %1772 = vmatmul.f32.gmra.mxu0 %v1771
  %v1773 = vpop.f32.mrf.mxu0
  %v1774 = vadd.f32 0.0, %v1773
  %v1775 = vand.u32 %v219, 4294901760
  %v1776 = vsub.f32 %v219, %v1775
  %v1777 = vand.u32 %v1776, 4294901760
  %v1778 = vsub.f32 %v1776, %v1777
  %v1779 = vand.u32 %v1778, 4294901760
  %1780 = vmatmul.f32.gmra.mxu0 %v1779
  %v1781 = vpop.f32.mrf.mxu0
  %v1782 = vadd.f32 0.0, %v1781
  %v1783 = vand.u32 %v221, 4294901760
  %v1784 = vsub.f32 %v221, %v1783
  %v1785 = vand.u32 %v1784, 4294901760
  %v1786 = vsub.f32 %v1784, %v1785
  %v1787 = vand.u32 %v1786, 4294901760
  %1788 = vmatmul.f32.gmra.mxu0 %v1787
  %v1789 = vpop.f32.mrf.mxu0
  %v1790 = vadd.f32 0.0, %v1789
  %v1791 = vand.u32 %v223, 4294901760
  %v1792 = vsub.f32 %v223, %v1791
  %v1793 = vand.u32 %v1792, 4294901760
  %v1794 = vsub.f32 %v1792, %v1793
  %v1795 = vand.u32 %v1794, 4294901760
  %1796 = vmatmul.f32.gmra.mxu0 %v1795
  %v1797 = vpop.f32.mrf.mxu0
  %v1798 = vadd.f32 0.0, %v1797
  %v1799 = vand.u32 %v225, 4294901760
  %v1800 = vsub.f32 %v225, %v1799
  %v1801 = vand.u32 %v1800, 4294901760
  %v1802 = vsub.f32 %v1800, %v1801
  %v1803 = vand.u32 %v1802, 4294901760
  %1804 = vmatmul.f32.gmra.mxu0 %v1803
  %v1805 = vpop.f32.mrf.mxu0
  %v1806 = vadd.f32 0.0, %v1805
  %v1807 = vand.u32 %v227, 4294901760
  %v1808 = vsub.f32 %v227, %v1807
  %v1809 = vand.u32 %v1808, 4294901760
  %v1810 = vsub.f32 %v1808, %v1809
  %v1811 = vand.u32 %v1810, 4294901760
  %1812 = vmatmul.f32.gmra.mxu0 %v1811
  %v1813 = vpop.f32.mrf.mxu0
  %v1814 = vadd.f32 0.0, %v1813
  %v1815 = vand.u32 %v229, 4294901760
  %v1816 = vsub.f32 %v229, %v1815
  %v1817 = vand.u32 %v1816, 4294901760
  %v1818 = vsub.f32 %v1816, %v1817
  %v1819 = vand.u32 %v1818, 4294901760
  %1820 = vmatmul.f32.gmra.mxu0 %v1819
  %v1821 = vpop.f32.mrf.mxu0
  %v1822 = vadd.f32 0.0, %v1821
  %v1823 = vand.u32 %v231, 4294901760
  %v1824 = vsub.f32 %v231, %v1823
  %v1825 = vand.u32 %v1824, 4294901760
  %v1826 = vsub.f32 %v1824, %v1825
  %v1827 = vand.u32 %v1826, 4294901760
  %1828 = vmatmul.f32.gmra.mxu0 %v1827
  %v1829 = vpop.f32.mrf.mxu0
  %v1830 = vadd.f32 0.0, %v1829
  %v1831 = vand.u32 %v233, 4294901760
  %v1832 = vsub.f32 %v233, %v1831
  %v1833 = vand.u32 %v1832, 4294901760
  %v1834 = vsub.f32 %v1832, %v1833
  %v1835 = vand.u32 %v1834, 4294901760
  %1836 = vmatmul.f32.gmra.mxu0 %v1835
  %v1837 = vpop.f32.mrf.mxu0
  %v1838 = vadd.f32 0.0, %v1837
  %v1839 = vand.u32 %v235, 4294901760
  %v1840 = vsub.f32 %v235, %v1839
  %v1841 = vand.u32 %v1840, 4294901760
  %v1842 = vsub.f32 %v1840, %v1841
  %v1843 = vand.u32 %v1842, 4294901760
  %1844 = vmatmul.f32.gmra.mxu0 %v1843
  %v1845 = vpop.f32.mrf.mxu0
  %v1846 = vadd.f32 0.0, %v1845
  %v1847 = vand.u32 %v237, 4294901760
  %v1848 = vsub.f32 %v237, %v1847
  %v1849 = vand.u32 %v1848, 4294901760
  %v1850 = vsub.f32 %v1848, %v1849
  %v1851 = vand.u32 %v1850, 4294901760
  %1852 = vmatmul.f32.gmra.mxu0 %v1851
  %v1853 = vpop.f32.mrf.mxu0
  %v1854 = vadd.f32 0.0, %v1853
  %v1855 = vand.u32 %v239, 4294901760
  %v1856 = vsub.f32 %v239, %v1855
  %v1857 = vand.u32 %v1856, 4294901760
  %v1858 = vsub.f32 %v1856, %v1857
  %v1859 = vand.u32 %v1858, 4294901760
  %1860 = vmatmul.f32.gmra.mxu0 %v1859
  %v1861 = vpop.f32.mrf.mxu0
  %v1862 = vadd.f32 0.0, %v1861
  %v1863 = vand.u32 %v241, 4294901760
  %v1864 = vsub.f32 %v241, %v1863
  %v1865 = vand.u32 %v1864, 4294901760
  %v1866 = vsub.f32 %v1864, %v1865
  %v1867 = vand.u32 %v1866, 4294901760
  %1868 = vmatmul.f32.gmra.mxu0 %v1867
  %v1869 = vpop.f32.mrf.mxu0
  %v1870 = vadd.f32 0.0, %v1869
  %v1871 = vand.u32 %v243, 4294901760
  %v1872 = vsub.f32 %v243, %v1871
  %v1873 = vand.u32 %v1872, 4294901760
  %v1874 = vsub.f32 %v1872, %v1873
  %v1875 = vand.u32 %v1874, 4294901760
  %1876 = vmatmul.f32.gmra.mxu0 %v1875
  %v1877 = vpop.f32.mrf.mxu0
  %v1878 = vadd.f32 0.0, %v1877
  %v1879 = vand.u32 %v245, 4294901760
  %v1880 = vsub.f32 %v245, %v1879
  %v1881 = vand.u32 %v1880, 4294901760
  %v1882 = vsub.f32 %v1880, %v1881
  %v1883 = vand.u32 %v1882, 4294901760
  %1884 = vmatmul.f32.gmra.mxu0 %v1883
  %v1885 = vpop.f32.mrf.mxu0
  %v1886 = vadd.f32 0.0, %v1885
  %v1887 = vand.u32 %v247, 4294901760
  %v1888 = vsub.f32 %v247, %v1887
  %v1889 = vand.u32 %v1888, 4294901760
  %v1890 = vsub.f32 %v1888, %v1889
  %v1891 = vand.u32 %v1890, 4294901760
  %1892 = vmatmul.f32.gmra.mxu0 %v1891
  %v1893 = vpop.f32.mrf.mxu0
  %v1894 = vadd.f32 0.0, %v1893
  %v1895 = vand.u32 %v249, 4294901760
  %v1896 = vsub.f32 %v249, %v1895
  %v1897 = vand.u32 %v1896, 4294901760
  %v1898 = vsub.f32 %v1896, %v1897
  %v1899 = vand.u32 %v1898, 4294901760
  %1900 = vmatmul.f32.gmra.mxu0 %v1899
  %v1901 = vpop.f32.mrf.mxu0
  %v1902 = vadd.f32 0.0, %v1901
  %v1903 = vand.u32 %v251, 4294901760
  %v1904 = vsub.f32 %v251, %v1903
  %v1905 = vand.u32 %v1904, 4294901760
  %v1906 = vsub.f32 %v1904, %v1905
  %v1907 = vand.u32 %v1906, 4294901760
  %1908 = vmatmul.f32.gmra.mxu0 %v1907
  %v1909 = vpop.f32.mrf.mxu0
  %v1910 = vadd.f32 0.0, %v1909
  %v1911 = vand.u32 %v253, 4294901760
  %v1912 = vsub.f32 %v253, %v1911
  %v1913 = vand.u32 %v1912, 4294901760
  %v1914 = vsub.f32 %v1912, %v1913
  %v1915 = vand.u32 %v1914, 4294901760
  %1916 = vmatmul.f32.gmra.mxu0 %v1915
  %v1917 = vpop.f32.mrf.mxu0
  %v1918 = vadd.f32 0.0, %v1917
  %v1919 = vand.u32 %v255, 4294901760
  %v1920 = vsub.f32 %v255, %v1919
  %v1921 = vand.u32 %v1920, 4294901760
  %v1922 = vsub.f32 %v1920, %v1921
  %v1923 = vand.u32 %v1922, 4294901760
  %1924 = vmatmul.f32.gmra.mxu0 %v1923
  %v1925 = vpop.f32.mrf.mxu0
  %v1926 = vadd.f32 0.0, %v1925
  %v1927 = vand.u32 %v257, 4294901760
  %v1928 = vsub.f32 %v257, %v1927
  %v1929 = vand.u32 %v1928, 4294901760
  %v1930 = vsub.f32 %v1928, %v1929
  %v1931 = vand.u32 %v1930, 4294901760
  %1932 = vmatmul.f32.gmra.mxu0 %v1931
  %v1933 = vpop.f32.mrf.mxu0
  %v1934 = vadd.f32 0.0, %v1933
  %v1935 = vand.u32 %v259, 4294901760
  %v1936 = vsub.f32 %v259, %v1935
  %v1937 = vand.u32 %v1936, 4294901760
  %v1938 = vsub.f32 %v1936, %v1937
  %v1939 = vand.u32 %v1938, 4294901760
  %1940 = vmatmul.f32.gmra.mxu0 %v1939
  %v1941 = vpop.f32.mrf.mxu0
  %v1942 = vadd.f32 0.0, %v1941
  %v1943 = vand.u32 %v261, 4294901760
  %v1944 = vsub.f32 %v261, %v1943
  %v1945 = vand.u32 %v1944, 4294901760
  %v1946 = vsub.f32 %v1944, %v1945
  %v1947 = vand.u32 %v1946, 4294901760
  %1948 = vmatmul.f32.gmra.mxu0 %v1947
  %v1949 = vpop.f32.mrf.mxu0
  %v1950 = vadd.f32 0.0, %v1949
  %v1951 = vand.u32 %v263, 4294901760
  %v1952 = vsub.f32 %v263, %v1951
  %v1953 = vand.u32 %v1952, 4294901760
  %v1954 = vsub.f32 %v1952, %v1953
  %v1955 = vand.u32 %v1954, 4294901760
  %1956 = vmatmul.f32.gmra.mxu0 %v1955
  %v1957 = vpop.f32.mrf.mxu0
  %v1958 = vadd.f32 0.0, %v1957
  %v1959 = vand.u32 %v265, 4294901760
  %v1960 = vsub.f32 %v265, %v1959
  %v1961 = vand.u32 %v1960, 4294901760
  %v1962 = vsub.f32 %v1960, %v1961
  %v1963 = vand.u32 %v1962, 4294901760
  %1964 = vmatmul.f32.gmra.mxu0 %v1963
  %v1965 = vpop.f32.mrf.mxu0
  %v1966 = vadd.f32 0.0, %v1965
  %v1967 = vand.u32 %v267, 4294901760
  %v1968 = vsub.f32 %v267, %v1967
  %v1969 = vand.u32 %v1968, 4294901760
  %v1970 = vsub.f32 %v1968, %v1969
  %v1971 = vand.u32 %v1970, 4294901760
  %1972 = vmatmul.f32.gmra.mxu0 %v1971
  %v1973 = vpop.f32.mrf.mxu0
  %v1974 = vadd.f32 0.0, %v1973
  %v1975 = vand.u32 %v269, 4294901760
  %v1976 = vsub.f32 %v269, %v1975
  %v1977 = vand.u32 %v1976, 4294901760
  %v1978 = vsub.f32 %v1976, %v1977
  %v1979 = vand.u32 %v1978, 4294901760
  %1980 = vmatmul.f32.gmra.mxu0 %v1979
  %v1981 = vpop.f32.mrf.mxu0
  %v1982 = vadd.f32 0.0, %v1981
  %v1983 = vand.u32 %v271, 4294901760
  %v1984 = vsub.f32 %v271, %v1983
  %v1985 = vand.u32 %v1984, 4294901760
  %v1986 = vsub.f32 %v1984, %v1985
  %v1987 = vand.u32 %v1986, 4294901760
  %1988 = vmatmul.f32.gmra.mxu0 %v1987
  %v1989 = vpop.f32.mrf.mxu0
  %v1990 = vadd.f32 0.0, %v1989
  %v1991 = vand.u32 %v273, 4294901760
  %v1992 = vsub.f32 %v273, %v1991
  %v1993 = vand.u32 %v1992, 4294901760
  %v1994 = vsub.f32 %v1992, %v1993
  %v1995 = vand.u32 %v1994, 4294901760
  %1996 = vmatmul.f32.gmra.mxu0 %v1995
  %v1997 = vpop.f32.mrf.mxu0
  %v1998 = vadd.f32 0.0, %v1997
  %v1999 = vand.u32 %v275, 4294901760
  %v2000 = vsub.f32 %v275, %v1999
  %v2001 = vand.u32 %v2000, 4294901760
  %v2002 = vsub.f32 %v2000, %v2001
  %v2003 = vand.u32 %v2002, 4294901760
  %2004 = vmatmul.f32.gmra.mxu0 %v2003
  %v2005 = vpop.f32.mrf.mxu0
  %v2006 = vadd.f32 0.0, %v2005
  %v2007 = vand.u32 %v277, 4294901760
  %v2008 = vsub.f32 %v277, %v2007
  %v2009 = vand.u32 %v2008, 4294901760
  %v2010 = vsub.f32 %v2008, %v2009
  %v2011 = vand.u32 %v2010, 4294901760
  %2012 = vmatmul.f32.gmra.mxu0 %v2011
  %v2013 = vpop.f32.mrf.mxu0
  %v2014 = vadd.f32 0.0, %v2013
  %v2015 = vand.u32 %v279, 4294901760
  %v2016 = vsub.f32 %v279, %v2015
  %v2017 = vand.u32 %v2016, 4294901760
  %v2018 = vsub.f32 %v2016, %v2017
  %v2019 = vand.u32 %v2018, 4294901760
  %2020 = vmatmul.f32.gmra.mxu0 %v2019
  %v2021 = vpop.f32.mrf.mxu0
  %v2022 = vadd.f32 0.0, %v2021
  %v2023 = vand.u32 %v281, 4294901760
  %v2024 = vsub.f32 %v281, %v2023
  %v2025 = vand.u32 %v2024, 4294901760
  %v2026 = vsub.f32 %v2024, %v2025
  %v2027 = vand.u32 %v2026, 4294901760
  %2028 = vmatmul.f32.gmra.mxu0 %v2027
  %v2029 = vpop.f32.mrf.mxu0
  %v2030 = vadd.f32 0.0, %v2029
  %v2031 = vand.u32 %v283, 4294901760
  %v2032 = vsub.f32 %v283, %v2031
  %v2033 = vand.u32 %v2032, 4294901760
  %v2034 = vsub.f32 %v2032, %v2033
  %v2035 = vand.u32 %v2034, 4294901760
  %2036 = vmatmul.f32.gmra.mxu0 %v2035
  %v2037 = vpop.f32.mrf.mxu0
  %v2038 = vadd.f32 0.0, %v2037
  %v2039 = vand.u32 %v285, 4294901760
  %v2040 = vsub.f32 %v285, %v2039
  %v2041 = vand.u32 %v2040, 4294901760
  %v2042 = vsub.f32 %v2040, %v2041
  %v2043 = vand.u32 %v2042, 4294901760
  %2044 = vmatmul.f32.gmra.mxu0 %v2043
  %v2045 = vpop.f32.mrf.mxu0
  %v2046 = vadd.f32 0.0, %v2045
  %v2047 = vand.u32 %v287, 4294901760
  %v2048 = vsub.f32 %v287, %v2047
  %v2049 = vand.u32 %v2048, 4294901760
  %v2050 = vsub.f32 %v2048, %v2049
  %v2051 = vand.u32 %v2050, 4294901760
  %2052 = vmatmul.f32.gmra.mxu0 %v2051
  %v2053 = vpop.f32.mrf.mxu0
  %v2054 = vadd.f32 0.0, %v2053
  %v2055 = vand.u32 %v289, 4294901760
  %v2056 = vsub.f32 %v289, %v2055
  %v2057 = vand.u32 %v2056, 4294901760
  %v2058 = vsub.f32 %v2056, %v2057
  %v2059 = vand.u32 %v2058, 4294901760
  %2060 = vmatmul.f32.gmra.mxu0 %v2059
  %v2061 = vpop.f32.mrf.mxu0
  %v2062 = vadd.f32 0.0, %v2061
  %v2063 = vand.u32 %v291, 4294901760
  %v2064 = vsub.f32 %v291, %v2063
  %v2065 = vand.u32 %v2064, 4294901760
  %v2066 = vsub.f32 %v2064, %v2065
  %v2067 = vand.u32 %v2066, 4294901760
  %2068 = vmatmul.f32.gmra.mxu0 %v2067
  %v2069 = vpop.f32.mrf.mxu0
  %v2070 = vadd.f32 0.0, %v2069
  %v2071 = vand.u32 %v293, 4294901760
  %v2072 = vsub.f32 %v293, %v2071
  %v2073 = vand.u32 %v2072, 4294901760
  %v2074 = vsub.f32 %v2072, %v2073
  %v2075 = vand.u32 %v2074, 4294901760
  %2076 = vmatmul.f32.gmra.mxu0 %v2075
  %v2077 = vpop.f32.mrf.mxu0
  %v2078 = vadd.f32 0.0, %v2077
  %v2079 = vand.u32 %v295, 4294901760
  %v2080 = vsub.f32 %v295, %v2079
  %v2081 = vand.u32 %v2080, 4294901760
  %v2082 = vsub.f32 %v2080, %v2081
  %v2083 = vand.u32 %v2082, 4294901760
  %2084 = vmatmul.f32.gmra.mxu0 %v2083
  %v2085 = vpop.f32.mrf.mxu0
  %v2086 = vadd.f32 0.0, %v2085
  %v2087 = vand.u32 %v297, 4294901760
  %v2088 = vsub.f32 %v297, %v2087
  %v2089 = vand.u32 %v2088, 4294901760
  %v2090 = vsub.f32 %v2088, %v2089
  %v2091 = vand.u32 %v2090, 4294901760
  %2092 = vmatmul.f32.gmra.mxu0 %v2091
  %v2093 = vpop.f32.mrf.mxu0
  %v2094 = vadd.f32 0.0, %v2093
  %v2095 = vand.u32 %v299, 4294901760
  %v2096 = vsub.f32 %v299, %v2095
  %v2097 = vand.u32 %v2096, 4294901760
  %v2098 = vsub.f32 %v2096, %v2097
  %v2099 = vand.u32 %v2098, 4294901760
  %2100 = vmatmul.f32.gmra.mxu0 %v2099
  %v2101 = vpop.f32.mrf.mxu0
  %v2102 = vadd.f32 0.0, %v2101
  %v2103 = vand.u32 %v301, 4294901760
  %v2104 = vsub.f32 %v301, %v2103
  %v2105 = vand.u32 %v2104, 4294901760
  %v2106 = vsub.f32 %v2104, %v2105
  %v2107 = vand.u32 %v2106, 4294901760
  %2108 = vmatmul.f32.gmra.mxu0 %v2107
  %v2109 = vpop.f32.mrf.mxu0
  %v2110 = vadd.f32 0.0, %v2109
  %v2111 = vand.u32 %v303, 4294901760
  %v2112 = vsub.f32 %v303, %v2111
  %v2113 = vand.u32 %v2112, 4294901760
  %v2114 = vsub.f32 %v2112, %v2113
  %v2115 = vand.u32 %v2114, 4294901760
  %2116 = vmatmul.f32.gmra.mxu0 %v2115
  %v2117 = vpop.f32.mrf.mxu0
  %v2118 = vadd.f32 0.0, %v2117
  %v2119 = vand.u32 %v305, 4294901760
  %v2120 = vsub.f32 %v305, %v2119
  %v2121 = vand.u32 %v2120, 4294901760
  %v2122 = vsub.f32 %v2120, %v2121
  %v2123 = vand.u32 %v2122, 4294901760
  %2124 = vmatmul.f32.gmra.mxu0 %v2123
  %v2125 = vpop.f32.mrf.mxu0
  %v2126 = vadd.f32 0.0, %v2125
  %v2127 = vand.u32 %v307, 4294901760
  %v2128 = vsub.f32 %v307, %v2127
  %v2129 = vand.u32 %v2128, 4294901760
  %v2130 = vsub.f32 %v2128, %v2129
  %v2131 = vand.u32 %v2130, 4294901760
  %2132 = vmatmul.f32.gmra.mxu0 %v2131
  %v2133 = vpop.f32.mrf.mxu0
  %v2134 = vadd.f32 0.0, %v2133
  %v2135 = vand.u32 %v309, 4294901760
  %v2136 = vsub.f32 %v309, %v2135
  %v2137 = vand.u32 %v2136, 4294901760
  %v2138 = vsub.f32 %v2136, %v2137
  %v2139 = vand.u32 %v2138, 4294901760
  %2140 = vmatmul.f32.gmra.mxu0 %v2139
  %v2141 = vpop.f32.mrf.mxu0
  %v2142 = vadd.f32 0.0, %v2141
  %v2143 = vand.u32 %v311, 4294901760
  %v2144 = vsub.f32 %v311, %v2143
  %v2145 = vand.u32 %v2144, 4294901760
  %v2146 = vsub.f32 %v2144, %v2145
  %v2147 = vand.u32 %v2146, 4294901760
  %2148 = vmatmul.f32.gmra.mxu0 %v2147
  %v2149 = vpop.f32.mrf.mxu0
  %v2150 = vadd.f32 0.0, %v2149
  %v2151 = vand.u32 %v313, 4294901760
  %v2152 = vsub.f32 %v313, %v2151
  %v2153 = vand.u32 %v2152, 4294901760
  %v2154 = vsub.f32 %v2152, %v2153
  %v2155 = vand.u32 %v2154, 4294901760
  %2156 = vmatmul.f32.gmra.mxu0 %v2155
  %v2157 = vpop.f32.mrf.mxu0
  %v2158 = vadd.f32 0.0, %v2157
  %v2159 = vand.u32 %v315, 4294901760
  %v2160 = vsub.f32 %v315, %v2159
  %v2161 = vand.u32 %v2160, 4294901760
  %v2162 = vsub.f32 %v2160, %v2161
  %v2163 = vand.u32 %v2162, 4294901760
  %2164 = vmatmul.f32.gmra.mxu0 %v2163
  %v2165 = vpop.f32.mrf.mxu0
  %v2166 = vadd.f32 0.0, %v2165
  %v2167 = vand.u32 %v317, 4294901760
  %v2168 = vsub.f32 %v317, %v2167
  %v2169 = vand.u32 %v2168, 4294901760
  %v2170 = vsub.f32 %v2168, %v2169
  %v2171 = vand.u32 %v2170, 4294901760
  %2172 = vmatmul.f32.gmra.mxu0 %v2171
  %v2173 = vpop.f32.mrf.mxu0
  %v2174 = vadd.f32 0.0, %v2173
  %v2175 = vand.u32 %v319, 4294901760
  %v2176 = vsub.f32 %v319, %v2175
  %v2177 = vand.u32 %v2176, 4294901760
  %v2178 = vsub.f32 %v2176, %v2177
  %v2179 = vand.u32 %v2178, 4294901760
  %2180 = vmatmul.f32.gmra.mxu0 %v2179
  %v2181 = vpop.f32.mrf.mxu0
  %v2182 = vadd.f32 0.0, %v2181
  %v2183 = vand.u32 %v321, 4294901760
  %v2184 = vsub.f32 %v321, %v2183
  %v2185 = vand.u32 %v2184, 4294901760
  %v2186 = vsub.f32 %v2184, %v2185
  %v2187 = vand.u32 %v2186, 4294901760
  %2188 = vmatmul.f32.gmra.mxu0 %v2187
  %v2189 = vpop.f32.mrf.mxu0
  %v2190 = vadd.f32 0.0, %v2189
  %v2191 = vand.u32 %v323, 4294901760
  %v2192 = vsub.f32 %v323, %v2191
  %v2193 = vand.u32 %v2192, 4294901760
  %v2194 = vsub.f32 %v2192, %v2193
  %v2195 = vand.u32 %v2194, 4294901760
  %2196 = vmatmul.f32.gmra.mxu0 %v2195
  %v2197 = vpop.f32.mrf.mxu0
  %v2198 = vadd.f32 0.0, %v2197
  %v2199 = vand.u32 %v325, 4294901760
  %v2200 = vsub.f32 %v325, %v2199
  %v2201 = vand.u32 %v2200, 4294901760
  %v2202 = vsub.f32 %v2200, %v2201
  %v2203 = vand.u32 %v2202, 4294901760
  %2204 = vmatmul.f32.gmra.mxu0 %v2203
  %v2205 = vpop.f32.mrf.mxu0
  %v2206 = vadd.f32 0.0, %v2205
  %v2207 = vand.u32 %v327, 4294901760
  %v2208 = vsub.f32 %v327, %v2207
  %v2209 = vand.u32 %v2208, 4294901760
  %v2210 = vsub.f32 %v2208, %v2209
  %v2211 = vand.u32 %v2210, 4294901760
  %2212 = vmatmul.f32.gmra.mxu0 %v2211
  %v2213 = vpop.f32.mrf.mxu0
  %v2214 = vadd.f32 0.0, %v2213
  %v2215 = vand.u32 %v329, 4294901760
  %v2216 = vsub.f32 %v329, %v2215
  %v2217 = vand.u32 %v2216, 4294901760
  %v2218 = vsub.f32 %v2216, %v2217
  %v2219 = vand.u32 %v2218, 4294901760
  %2220 = vmatmul.f32.gmra.mxu0 %v2219
  %v2221 = vpop.f32.mrf.mxu0
  %v2222 = vadd.f32 0.0, %v2221
  %v2223 = vand.u32 %v331, 4294901760
  %v2224 = vsub.f32 %v331, %v2223
  %v2225 = vand.u32 %v2224, 4294901760
  %v2226 = vsub.f32 %v2224, %v2225
  %v2227 = vand.u32 %v2226, 4294901760
  %2228 = vmatmul.f32.gmra.mxu0 %v2227
  %v2229 = vpop.f32.mrf.mxu0
  %v2230 = vadd.f32 0.0, %v2229
  %v2231 = vand.u32 %v333, 4294901760
  %v2232 = vsub.f32 %v333, %v2231
  %v2233 = vand.u32 %v2232, 4294901760
  %v2234 = vsub.f32 %v2232, %v2233
  %v2235 = vand.u32 %v2234, 4294901760
  %2236 = vmatmul.f32.gmra.mxu0 %v2235
  %v2237 = vpop.f32.mrf.mxu0
  %v2238 = vadd.f32 0.0, %v2237
  %v2239 = vand.u32 %v335, 4294901760
  %v2240 = vsub.f32 %v335, %v2239
  %v2241 = vand.u32 %v2240, 4294901760
  %v2242 = vsub.f32 %v2240, %v2241
  %v2243 = vand.u32 %v2242, 4294901760
  %2244 = vmatmul.f32.gmra.mxu0 %v2243
  %v2245 = vpop.f32.mrf.mxu0
  %v2246 = vadd.f32 0.0, %v2245
  %v2247 = vand.u32 %v337, 4294901760
  %v2248 = vsub.f32 %v337, %v2247
  %v2249 = vand.u32 %v2248, 4294901760
  %v2250 = vsub.f32 %v2248, %v2249
  %v2251 = vand.u32 %v2250, 4294901760
  %2252 = vmatmul.f32.gmra.mxu0 %v2251
  %v2253 = vpop.f32.mrf.mxu0
  %v2254 = vadd.f32 0.0, %v2253
  %v2255 = vand.u32 %v339, 4294901760
  %v2256 = vsub.f32 %v339, %v2255
  %v2257 = vand.u32 %v2256, 4294901760
  %v2258 = vsub.f32 %v2256, %v2257
  %v2259 = vand.u32 %v2258, 4294901760
  %2260 = vmatmul.f32.gmra.mxu0 %v2259
  %v2261 = vpop.f32.mrf.mxu0
  %v2262 = vadd.f32 0.0, %v2261
  %v2263 = vand.u32 %v341, 4294901760
  %v2264 = vsub.f32 %v341, %v2263
  %v2265 = vand.u32 %v2264, 4294901760
  %v2266 = vsub.f32 %v2264, %v2265
  %v2267 = vand.u32 %v2266, 4294901760
  %2268 = vmatmul.f32.gmra.mxu0 %v2267
  %v2269 = vpop.f32.mrf.mxu0
  %v2270 = vadd.f32 0.0, %v2269
  %v2271 = vand.u32 %v343, 4294901760
  %v2272 = vsub.f32 %v343, %v2271
  %v2273 = vand.u32 %v2272, 4294901760
  %v2274 = vsub.f32 %v2272, %v2273
  %v2275 = vand.u32 %v2274, 4294901760
  %2276 = vmatmul.f32.gmra.mxu0 %v2275
  %v2277 = vpop.f32.mrf.mxu0
  %v2278 = vadd.f32 0.0, %v2277
  %v2279 = vand.u32 %v345, 4294901760
  %v2280 = vsub.f32 %v345, %v2279
  %v2281 = vand.u32 %v2280, 4294901760
  %v2282 = vsub.f32 %v2280, %v2281
  %v2283 = vand.u32 %v2282, 4294901760
  %2284 = vmatmul.f32.gmra.mxu0 %v2283
  %v2285 = vpop.f32.mrf.mxu0
  %v2286 = vadd.f32 0.0, %v2285
  %v2287 = vand.u32 %v347, 4294901760
  %v2288 = vsub.f32 %v347, %v2287
  %v2289 = vand.u32 %v2288, 4294901760
  %v2290 = vsub.f32 %v2288, %v2289
  %v2291 = vand.u32 %v2290, 4294901760
  %2292 = vmatmul.f32.gmra.mxu0 %v2291
  %v2293 = vpop.f32.mrf.mxu0
  %v2294 = vadd.f32 0.0, %v2293
  %v2295 = vand.u32 %v349, 4294901760
  %v2296 = vsub.f32 %v349, %v2295
  %v2297 = vand.u32 %v2296, 4294901760
  %v2298 = vsub.f32 %v2296, %v2297
  %v2299 = vand.u32 %v2298, 4294901760
  %2300 = vmatmul.f32.gmra.mxu0 %v2299
  %v2301 = vpop.f32.mrf.mxu0
  %v2302 = vadd.f32 0.0, %v2301
  %v2303 = vand.u32 %v351, 4294901760
  %v2304 = vsub.f32 %v351, %v2303
  %v2305 = vand.u32 %v2304, 4294901760
  %v2306 = vsub.f32 %v2304, %v2305
  %v2307 = vand.u32 %v2306, 4294901760
  %2308 = vmatmul.f32.gmra.mxu0 %v2307
  %v2309 = vpop.f32.mrf.mxu0
  %v2310 = vadd.f32 0.0, %v2309
  %v2311 = vand.u32 %v353, 4294901760
  %v2312 = vsub.f32 %v353, %v2311
  %v2313 = vand.u32 %v2312, 4294901760
  %v2314 = vsub.f32 %v2312, %v2313
  %v2315 = vand.u32 %v2314, 4294901760
  %2316 = vmatmul.f32.gmra.mxu0 %v2315
  %v2317 = vpop.f32.mrf.mxu0
  %v2318 = vadd.f32 0.0, %v2317
  %v2319 = vand.u32 %v355, 4294901760
  %v2320 = vsub.f32 %v355, %v2319
  %v2321 = vand.u32 %v2320, 4294901760
  %v2322 = vsub.f32 %v2320, %v2321
  %v2323 = vand.u32 %v2322, 4294901760
  %2324 = vmatmul.f32.gmra.mxu0 %v2323
  %v2325 = vpop.f32.mrf.mxu0
  %v2326 = vadd.f32 0.0, %v2325
  %v2327 = vand.u32 %v357, 4294901760
  %v2328 = vsub.f32 %v357, %v2327
  %v2329 = vand.u32 %v2328, 4294901760
  %v2330 = vsub.f32 %v2328, %v2329
  %v2331 = vand.u32 %v2330, 4294901760
  %2332 = vmatmul.f32.gmra.mxu0 %v2331
  %v2333 = vpop.f32.mrf.mxu0
  %v2334 = vadd.f32 0.0, %v2333
  %2335 = vdwg.mxu0
  %v2336 = vand.u32 %v374, 4294901760
  %v2337 = vsub.f32 %v374, %v2336
  %v2338 = vand.u32 %v2337, 4294901760
  %v2339 = vsub.f32 %v2337, %v2338
  %v2340 = vand.u32 %v2339, 4294901760
  %2341 = vmatpush.msra.mxu0 %v2340
  %v2342 = vand.u32 %v373, 4294901760
  %v2343 = vsub.f32 %v373, %v2342
  %v2344 = vand.u32 %v2343, 4294901760
  %v2345 = vsub.f32 %v2343, %v2344
  %v2346 = vand.u32 %v2345, 4294901760
  %2347 = vmatpush.msra.mxu0 %v2346
  %v2348 = vand.u32 %v372, 4294901760
  %v2349 = vsub.f32 %v372, %v2348
  %v2350 = vand.u32 %v2349, 4294901760
  %v2351 = vsub.f32 %v2349, %v2350
  %v2352 = vand.u32 %v2351, 4294901760
  %2353 = vmatpush.msra.mxu0 %v2352
  %v2354 = vand.u32 %v371, 4294901760
  %v2355 = vsub.f32 %v371, %v2354
  %v2356 = vand.u32 %v2355, 4294901760
  %v2357 = vsub.f32 %v2355, %v2356
  %v2358 = vand.u32 %v2357, 4294901760
  %2359 = vmatpush.msra.mxu0 %v2358
  %v2360 = vand.u32 %v370, 4294901760
  %v2361 = vsub.f32 %v370, %v2360
  %v2362 = vand.u32 %v2361, 4294901760
  %v2363 = vsub.f32 %v2361, %v2362
  %v2364 = vand.u32 %v2363, 4294901760
  %2365 = vmatpush.msra.mxu0 %v2364
  %v2366 = vand.u32 %v369, 4294901760
  %v2367 = vsub.f32 %v369, %v2366
  %v2368 = vand.u32 %v2367, 4294901760
  %v2369 = vsub.f32 %v2367, %v2368
  %v2370 = vand.u32 %v2369, 4294901760
  %2371 = vmatpush.msra.mxu0 %v2370
  %v2372 = vand.u32 %v368, 4294901760
  %v2373 = vsub.f32 %v368, %v2372
  %v2374 = vand.u32 %v2373, 4294901760
  %v2375 = vsub.f32 %v2373, %v2374
  %v2376 = vand.u32 %v2375, 4294901760
  %2377 = vmatpush.msra.mxu0 %v2376
  %v2378 = vand.u32 %v367, 4294901760
  %v2379 = vsub.f32 %v367, %v2378
  %v2380 = vand.u32 %v2379, 4294901760
  %v2381 = vsub.f32 %v2379, %v2380
  %v2382 = vand.u32 %v2381, 4294901760
  %2383 = vmatpush.msra.mxu0 %v2382
  %v2384 = vand.u32 %v366, 4294901760
  %v2385 = vsub.f32 %v366, %v2384
  %v2386 = vand.u32 %v2385, 4294901760
  %v2387 = vsub.f32 %v2385, %v2386
  %v2388 = vand.u32 %v2387, 4294901760
  %2389 = vmatpush.msra.mxu0 %v2388
  %v2390 = vand.u32 %v365, 4294901760
  %v2391 = vsub.f32 %v365, %v2390
  %v2392 = vand.u32 %v2391, 4294901760
  %v2393 = vsub.f32 %v2391, %v2392
  %v2394 = vand.u32 %v2393, 4294901760
  %2395 = vmatpush.msra.mxu0 %v2394
  %v2396 = vand.u32 %v364, 4294901760
  %v2397 = vsub.f32 %v364, %v2396
  %v2398 = vand.u32 %v2397, 4294901760
  %v2399 = vsub.f32 %v2397, %v2398
  %v2400 = vand.u32 %v2399, 4294901760
  %2401 = vmatpush.msra.mxu0 %v2400
  %v2402 = vand.u32 %v363, 4294901760
  %v2403 = vsub.f32 %v363, %v2402
  %v2404 = vand.u32 %v2403, 4294901760
  %v2405 = vsub.f32 %v2403, %v2404
  %v2406 = vand.u32 %v2405, 4294901760
  %2407 = vmatpush.msra.mxu0 %v2406
  %v2408 = vand.u32 %v362, 4294901760
  %v2409 = vsub.f32 %v362, %v2408
  %v2410 = vand.u32 %v2409, 4294901760
  %v2411 = vsub.f32 %v2409, %v2410
  %v2412 = vand.u32 %v2411, 4294901760
  %2413 = vmatpush.msra.mxu0 %v2412
  %v2414 = vand.u32 %v361, 4294901760
  %v2415 = vsub.f32 %v361, %v2414
  %v2416 = vand.u32 %v2415, 4294901760
  %v2417 = vsub.f32 %v2415, %v2416
  %v2418 = vand.u32 %v2417, 4294901760
  %2419 = vmatpush.msra.mxu0 %v2418
  %v2420 = vand.u32 %v360, 4294901760
  %v2421 = vsub.f32 %v360, %v2420
  %v2422 = vand.u32 %v2421, 4294901760
  %v2423 = vsub.f32 %v2421, %v2422
  %v2424 = vand.u32 %v2423, 4294901760
  %2425 = vmatpush.msra.mxu0 %v2424
  %v2426 = vand.u32 %v359, 4294901760
  %v2427 = vsub.f32 %v359, %v2426
  %v2428 = vand.u32 %v2427, 4294901760
  %v2429 = vsub.f32 %v2427, %v2428
  %v2430 = vand.u32 %v2429, 4294901760
  %2431 = vmatpush.msra.mxu0 %v2430
  %v2432 = vand.u32 %v11, 4294901760
  %2433 = vmatmul.f32.gmra.mxu0 %v2432
  %v2434 = vpop.f32.mrf.mxu0
  %v2435 = vadd.f32 %v950, %v2434
  %v2436 = vand.u32 %v13, 4294901760
  %2437 = vmatmul.f32.gmra.mxu0 %v2436
  %v2438 = vpop.f32.mrf.mxu0
  %v2439 = vadd.f32 %v958, %v2438
  %v2440 = vand.u32 %v15, 4294901760
  %2441 = vmatmul.f32.gmra.mxu0 %v2440
  %v2442 = vpop.f32.mrf.mxu0
  %v2443 = vadd.f32 %v966, %v2442
  %v2444 = vand.u32 %v17, 4294901760
  %2445 = vmatmul.f32.gmra.mxu0 %v2444
  %v2446 = vpop.f32.mrf.mxu0
  %v2447 = vadd.f32 %v974, %v2446
  %v2448 = vand.u32 %v19, 4294901760
  %2449 = vmatmul.f32.gmra.mxu0 %v2448
  %v2450 = vpop.f32.mrf.mxu0
  %v2451 = vadd.f32 %v982, %v2450
  %v2452 = vand.u32 %v21, 4294901760
  %2453 = vmatmul.f32.gmra.mxu0 %v2452
  %v2454 = vpop.f32.mrf.mxu0
  %v2455 = vadd.f32 %v990, %v2454
  %v2456 = vand.u32 %v23, 4294901760
  %2457 = vmatmul.f32.gmra.mxu0 %v2456
  %v2458 = vpop.f32.mrf.mxu0
  %v2459 = vadd.f32 %v998, %v2458
  %v2460 = vand.u32 %v25, 4294901760
  %2461 = vmatmul.f32.gmra.mxu0 %v2460
  %v2462 = vpop.f32.mrf.mxu0
  %v2463 = vadd.f32 %v1006, %v2462
  %v2464 = vand.u32 %v27, 4294901760
  %2465 = vmatmul.f32.gmra.mxu0 %v2464
  %v2466 = vpop.f32.mrf.mxu0
  %v2467 = vadd.f32 %v1014, %v2466
  %v2468 = vand.u32 %v29, 4294901760
  %2469 = vmatmul.f32.gmra.mxu0 %v2468
  %v2470 = vpop.f32.mrf.mxu0
  %v2471 = vadd.f32 %v1022, %v2470
  %v2472 = vand.u32 %v31, 4294901760
  %2473 = vmatmul.f32.gmra.mxu0 %v2472
  %v2474 = vpop.f32.mrf.mxu0
  %v2475 = vadd.f32 %v1030, %v2474
  %v2476 = vand.u32 %v33, 4294901760
  %2477 = vmatmul.f32.gmra.mxu0 %v2476
  %v2478 = vpop.f32.mrf.mxu0
  %v2479 = vadd.f32 %v1038, %v2478
  %v2480 = vand.u32 %v35, 4294901760
  %2481 = vmatmul.f32.gmra.mxu0 %v2480
  %v2482 = vpop.f32.mrf.mxu0
  %v2483 = vadd.f32 %v1046, %v2482
  %v2484 = vand.u32 %v37, 4294901760
  %2485 = vmatmul.f32.gmra.mxu0 %v2484
  %v2486 = vpop.f32.mrf.mxu0
  %v2487 = vadd.f32 %v1054, %v2486
  %v2488 = vand.u32 %v39, 4294901760
  %2489 = vmatmul.f32.gmra.mxu0 %v2488
  %v2490 = vpop.f32.mrf.mxu0
  %v2491 = vadd.f32 %v1062, %v2490
  %v2492 = vand.u32 %v41, 4294901760
  %2493 = vmatmul.f32.gmra.mxu0 %v2492
  %v2494 = vpop.f32.mrf.mxu0
  %v2495 = vadd.f32 %v1070, %v2494
  %v2496 = vand.u32 %v43, 4294901760
  %2497 = vmatmul.f32.gmra.mxu0 %v2496
  %v2498 = vpop.f32.mrf.mxu0
  %v2499 = vadd.f32 %v1078, %v2498
  %v2500 = vand.u32 %v45, 4294901760
  %2501 = vmatmul.f32.gmra.mxu0 %v2500
  %v2502 = vpop.f32.mrf.mxu0
  %v2503 = vadd.f32 %v1086, %v2502
  %v2504 = vand.u32 %v47, 4294901760
  %2505 = vmatmul.f32.gmra.mxu0 %v2504
  %v2506 = vpop.f32.mrf.mxu0
  %v2507 = vadd.f32 %v1094, %v2506
  %v2508 = vand.u32 %v49, 4294901760
  %2509 = vmatmul.f32.gmra.mxu0 %v2508
  %v2510 = vpop.f32.mrf.mxu0
  %v2511 = vadd.f32 %v1102, %v2510
  %v2512 = vand.u32 %v51, 4294901760
  %2513 = vmatmul.f32.gmra.mxu0 %v2512
  %v2514 = vpop.f32.mrf.mxu0
  %v2515 = vadd.f32 %v1110, %v2514
  %v2516 = vand.u32 %v53, 4294901760
  %2517 = vmatmul.f32.gmra.mxu0 %v2516
  %v2518 = vpop.f32.mrf.mxu0
  %v2519 = vadd.f32 %v1118, %v2518
  %v2520 = vand.u32 %v55, 4294901760
  %2521 = vmatmul.f32.gmra.mxu0 %v2520
  %v2522 = vpop.f32.mrf.mxu0
  %v2523 = vadd.f32 %v1126, %v2522
  %v2524 = vand.u32 %v57, 4294901760
  %2525 = vmatmul.f32.gmra.mxu0 %v2524
  %v2526 = vpop.f32.mrf.mxu0
  %v2527 = vadd.f32 %v1134, %v2526
  %v2528 = vand.u32 %v59, 4294901760
  %2529 = vmatmul.f32.gmra.mxu0 %v2528
  %v2530 = vpop.f32.mrf.mxu0
  %v2531 = vadd.f32 %v1142, %v2530
  %v2532 = vand.u32 %v61, 4294901760
  %2533 = vmatmul.f32.gmra.mxu0 %v2532
  %v2534 = vpop.f32.mrf.mxu0
  %v2535 = vadd.f32 %v1150, %v2534
  %v2536 = vand.u32 %v63, 4294901760
  %2537 = vmatmul.f32.gmra.mxu0 %v2536
  %v2538 = vpop.f32.mrf.mxu0
  %v2539 = vadd.f32 %v1158, %v2538
  %v2540 = vand.u32 %v65, 4294901760
  %2541 = vmatmul.f32.gmra.mxu0 %v2540
  %v2542 = vpop.f32.mrf.mxu0
  %v2543 = vadd.f32 %v1166, %v2542
  %v2544 = vand.u32 %v67, 4294901760
  %2545 = vmatmul.f32.gmra.mxu0 %v2544
  %v2546 = vpop.f32.mrf.mxu0
  %v2547 = vadd.f32 %v1174, %v2546
  %v2548 = vand.u32 %v69, 4294901760
  %2549 = vmatmul.f32.gmra.mxu0 %v2548
  %v2550 = vpop.f32.mrf.mxu0
  %v2551 = vadd.f32 %v1182, %v2550
  %v2552 = vand.u32 %v71, 4294901760
  %2553 = vmatmul.f32.gmra.mxu0 %v2552
  %v2554 = vpop.f32.mrf.mxu0
  %v2555 = vadd.f32 %v1190, %v2554
  %v2556 = vand.u32 %v73, 4294901760
  %2557 = vmatmul.f32.gmra.mxu0 %v2556
  %v2558 = vpop.f32.mrf.mxu0
  %v2559 = vadd.f32 %v1198, %v2558
  %v2560 = vand.u32 %v75, 4294901760
  %2561 = vmatmul.f32.gmra.mxu0 %v2560
  %v2562 = vpop.f32.mrf.mxu0
  %v2563 = vadd.f32 %v1206, %v2562
  %v2564 = vand.u32 %v77, 4294901760
  %2565 = vmatmul.f32.gmra.mxu0 %v2564
  %v2566 = vpop.f32.mrf.mxu0
  %v2567 = vadd.f32 %v1214, %v2566
  %v2568 = vand.u32 %v79, 4294901760
  %2569 = vmatmul.f32.gmra.mxu0 %v2568
  %v2570 = vpop.f32.mrf.mxu0
  %v2571 = vadd.f32 %v1222, %v2570
  %v2572 = vand.u32 %v81, 4294901760
  %2573 = vmatmul.f32.gmra.mxu0 %v2572
  %v2574 = vpop.f32.mrf.mxu0
  %v2575 = vadd.f32 %v1230, %v2574
  %v2576 = vand.u32 %v83, 4294901760
  %2577 = vmatmul.f32.gmra.mxu0 %v2576
  %v2578 = vpop.f32.mrf.mxu0
  %v2579 = vadd.f32 %v1238, %v2578
  %v2580 = vand.u32 %v85, 4294901760
  %2581 = vmatmul.f32.gmra.mxu0 %v2580
  %v2582 = vpop.f32.mrf.mxu0
  %v2583 = vadd.f32 %v1246, %v2582
  %v2584 = vand.u32 %v87, 4294901760
  %2585 = vmatmul.f32.gmra.mxu0 %v2584
  %v2586 = vpop.f32.mrf.mxu0
  %v2587 = vadd.f32 %v1254, %v2586
  %v2588 = vand.u32 %v89, 4294901760
  %2589 = vmatmul.f32.gmra.mxu0 %v2588
  %v2590 = vpop.f32.mrf.mxu0
  %v2591 = vadd.f32 %v1262, %v2590
  %v2592 = vand.u32 %v91, 4294901760
  %2593 = vmatmul.f32.gmra.mxu0 %v2592
  %v2594 = vpop.f32.mrf.mxu0
  %v2595 = vadd.f32 %v1270, %v2594
  %v2596 = vand.u32 %v93, 4294901760
  %2597 = vmatmul.f32.gmra.mxu0 %v2596
  %v2598 = vpop.f32.mrf.mxu0
  %v2599 = vadd.f32 %v1278, %v2598
  %v2600 = vand.u32 %v95, 4294901760
  %2601 = vmatmul.f32.gmra.mxu0 %v2600
  %v2602 = vpop.f32.mrf.mxu0
  %v2603 = vadd.f32 %v1286, %v2602
  %v2604 = vand.u32 %v97, 4294901760
  %2605 = vmatmul.f32.gmra.mxu0 %v2604
  %v2606 = vpop.f32.mrf.mxu0
  %v2607 = vadd.f32 %v1294, %v2606
  %v2608 = vand.u32 %v99, 4294901760
  %2609 = vmatmul.f32.gmra.mxu0 %v2608
  %v2610 = vpop.f32.mrf.mxu0
  %v2611 = vadd.f32 %v1302, %v2610
  %v2612 = vand.u32 %v101, 4294901760
  %2613 = vmatmul.f32.gmra.mxu0 %v2612
  %v2614 = vpop.f32.mrf.mxu0
  %v2615 = vadd.f32 %v1310, %v2614
  %v2616 = vand.u32 %v103, 4294901760
  %2617 = vmatmul.f32.gmra.mxu0 %v2616
  %v2618 = vpop.f32.mrf.mxu0
  %v2619 = vadd.f32 %v1318, %v2618
  %v2620 = vand.u32 %v105, 4294901760
  %2621 = vmatmul.f32.gmra.mxu0 %v2620
  %v2622 = vpop.f32.mrf.mxu0
  %v2623 = vadd.f32 %v1326, %v2622
  %v2624 = vand.u32 %v107, 4294901760
  %2625 = vmatmul.f32.gmra.mxu0 %v2624
  %v2626 = vpop.f32.mrf.mxu0
  %v2627 = vadd.f32 %v1334, %v2626
  %v2628 = vand.u32 %v109, 4294901760
  %2629 = vmatmul.f32.gmra.mxu0 %v2628
  %v2630 = vpop.f32.mrf.mxu0
  %v2631 = vadd.f32 %v1342, %v2630
  %v2632 = vand.u32 %v111, 4294901760
  %2633 = vmatmul.f32.gmra.mxu0 %v2632
  %v2634 = vpop.f32.mrf.mxu0
  %v2635 = vadd.f32 %v1350, %v2634
  %v2636 = vand.u32 %v113, 4294901760
  %2637 = vmatmul.f32.gmra.mxu0 %v2636
  %v2638 = vpop.f32.mrf.mxu0
  %v2639 = vadd.f32 %v1358, %v2638
  %v2640 = vand.u32 %v115, 4294901760
  %2641 = vmatmul.f32.gmra.mxu0 %v2640
  %v2642 = vpop.f32.mrf.mxu0
  %v2643 = vadd.f32 %v1366, %v2642
  %v2644 = vand.u32 %v117, 4294901760
  %2645 = vmatmul.f32.gmra.mxu0 %v2644
  %v2646 = vpop.f32.mrf.mxu0
  %v2647 = vadd.f32 %v1374, %v2646
  %v2648 = vand.u32 %v119, 4294901760
  %2649 = vmatmul.f32.gmra.mxu0 %v2648
  %v2650 = vpop.f32.mrf.mxu0
  %v2651 = vadd.f32 %v1382, %v2650
  %v2652 = vand.u32 %v121, 4294901760
  %2653 = vmatmul.f32.gmra.mxu0 %v2652
  %v2654 = vpop.f32.mrf.mxu0
  %v2655 = vadd.f32 %v1390, %v2654
  %v2656 = vand.u32 %v123, 4294901760
  %2657 = vmatmul.f32.gmra.mxu0 %v2656
  %v2658 = vpop.f32.mrf.mxu0
  %v2659 = vadd.f32 %v1398, %v2658
  %v2660 = vand.u32 %v125, 4294901760
  %2661 = vmatmul.f32.gmra.mxu0 %v2660
  %v2662 = vpop.f32.mrf.mxu0
  %v2663 = vadd.f32 %v1406, %v2662
  %v2664 = vand.u32 %v127, 4294901760
  %2665 = vmatmul.f32.gmra.mxu0 %v2664
  %v2666 = vpop.f32.mrf.mxu0
  %v2667 = vadd.f32 %v1414, %v2666
  %v2668 = vand.u32 %v129, 4294901760
  %2669 = vmatmul.f32.gmra.mxu0 %v2668
  %v2670 = vpop.f32.mrf.mxu0
  %v2671 = vadd.f32 %v1422, %v2670
  %v2672 = vand.u32 %v131, 4294901760
  %2673 = vmatmul.f32.gmra.mxu0 %v2672
  %v2674 = vpop.f32.mrf.mxu0
  %v2675 = vadd.f32 %v1430, %v2674
  %v2676 = vand.u32 %v133, 4294901760
  %2677 = vmatmul.f32.gmra.mxu0 %v2676
  %v2678 = vpop.f32.mrf.mxu0
  %v2679 = vadd.f32 %v1438, %v2678
  %v2680 = vand.u32 %v135, 4294901760
  %2681 = vmatmul.f32.gmra.mxu0 %v2680
  %v2682 = vpop.f32.mrf.mxu0
  %v2683 = vadd.f32 %v1446, %v2682
  %v2684 = vand.u32 %v137, 4294901760
  %2685 = vmatmul.f32.gmra.mxu0 %v2684
  %v2686 = vpop.f32.mrf.mxu0
  %v2687 = vadd.f32 %v1454, %v2686
  %v2688 = vand.u32 %v139, 4294901760
  %2689 = vmatmul.f32.gmra.mxu0 %v2688
  %v2690 = vpop.f32.mrf.mxu0
  %v2691 = vadd.f32 %v1462, %v2690
  %v2692 = vand.u32 %v141, 4294901760
  %2693 = vmatmul.f32.gmra.mxu0 %v2692
  %v2694 = vpop.f32.mrf.mxu0
  %v2695 = vadd.f32 %v1470, %v2694
  %v2696 = vand.u32 %v143, 4294901760
  %2697 = vmatmul.f32.gmra.mxu0 %v2696
  %v2698 = vpop.f32.mrf.mxu0
  %v2699 = vadd.f32 %v1478, %v2698
  %v2700 = vand.u32 %v145, 4294901760
  %2701 = vmatmul.f32.gmra.mxu0 %v2700
  %v2702 = vpop.f32.mrf.mxu0
  %v2703 = vadd.f32 %v1486, %v2702
  %v2704 = vand.u32 %v147, 4294901760
  %2705 = vmatmul.f32.gmra.mxu0 %v2704
  %v2706 = vpop.f32.mrf.mxu0
  %v2707 = vadd.f32 %v1494, %v2706
  %v2708 = vand.u32 %v149, 4294901760
  %2709 = vmatmul.f32.gmra.mxu0 %v2708
  %v2710 = vpop.f32.mrf.mxu0
  %v2711 = vadd.f32 %v1502, %v2710
  %v2712 = vand.u32 %v151, 4294901760
  %2713 = vmatmul.f32.gmra.mxu0 %v2712
  %v2714 = vpop.f32.mrf.mxu0
  %v2715 = vadd.f32 %v1510, %v2714
  %v2716 = vand.u32 %v153, 4294901760
  %2717 = vmatmul.f32.gmra.mxu0 %v2716
  %v2718 = vpop.f32.mrf.mxu0
  %v2719 = vadd.f32 %v1518, %v2718
  %v2720 = vand.u32 %v155, 4294901760
  %2721 = vmatmul.f32.gmra.mxu0 %v2720
  %v2722 = vpop.f32.mrf.mxu0
  %v2723 = vadd.f32 %v1526, %v2722
  %v2724 = vand.u32 %v157, 4294901760
  %2725 = vmatmul.f32.gmra.mxu0 %v2724
  %v2726 = vpop.f32.mrf.mxu0
  %v2727 = vadd.f32 %v1534, %v2726
  %v2728 = vand.u32 %v159, 4294901760
  %2729 = vmatmul.f32.gmra.mxu0 %v2728
  %v2730 = vpop.f32.mrf.mxu0
  %v2731 = vadd.f32 %v1542, %v2730
  %v2732 = vand.u32 %v161, 4294901760
  %2733 = vmatmul.f32.gmra.mxu0 %v2732
  %v2734 = vpop.f32.mrf.mxu0
  %v2735 = vadd.f32 %v1550, %v2734
  %v2736 = vand.u32 %v163, 4294901760
  %2737 = vmatmul.f32.gmra.mxu0 %v2736
  %v2738 = vpop.f32.mrf.mxu0
  %v2739 = vadd.f32 %v1558, %v2738
  %v2740 = vand.u32 %v165, 4294901760
  %2741 = vmatmul.f32.gmra.mxu0 %v2740
  %v2742 = vpop.f32.mrf.mxu0
  %v2743 = vadd.f32 %v1566, %v2742
  %v2744 = vand.u32 %v167, 4294901760
  %2745 = vmatmul.f32.gmra.mxu0 %v2744
  %v2746 = vpop.f32.mrf.mxu0
  %v2747 = vadd.f32 %v1574, %v2746
  %v2748 = vand.u32 %v169, 4294901760
  %2749 = vmatmul.f32.gmra.mxu0 %v2748
  %v2750 = vpop.f32.mrf.mxu0
  %v2751 = vadd.f32 %v1582, %v2750
  %v2752 = vand.u32 %v171, 4294901760
  %2753 = vmatmul.f32.gmra.mxu0 %v2752
  %v2754 = vpop.f32.mrf.mxu0
  %v2755 = vadd.f32 %v1590, %v2754
  %v2756 = vand.u32 %v173, 4294901760
  %2757 = vmatmul.f32.gmra.mxu0 %v2756
  %v2758 = vpop.f32.mrf.mxu0
  %v2759 = vadd.f32 %v1598, %v2758
  %v2760 = vand.u32 %v175, 4294901760
  %2761 = vmatmul.f32.gmra.mxu0 %v2760
  %v2762 = vpop.f32.mrf.mxu0
  %v2763 = vadd.f32 %v1606, %v2762
  %v2764 = vand.u32 %v177, 4294901760
  %2765 = vmatmul.f32.gmra.mxu0 %v2764
  %v2766 = vpop.f32.mrf.mxu0
  %v2767 = vadd.f32 %v1614, %v2766
  %v2768 = vand.u32 %v179, 4294901760
  %2769 = vmatmul.f32.gmra.mxu0 %v2768
  %v2770 = vpop.f32.mrf.mxu0
  %v2771 = vadd.f32 %v1622, %v2770
  %v2772 = vand.u32 %v181, 4294901760
  %2773 = vmatmul.f32.gmra.mxu0 %v2772
  %v2774 = vpop.f32.mrf.mxu0
  %v2775 = vadd.f32 %v1630, %v2774
  %v2776 = vand.u32 %v183, 4294901760
  %2777 = vmatmul.f32.gmra.mxu0 %v2776
  %v2778 = vpop.f32.mrf.mxu0
  %v2779 = vadd.f32 %v1638, %v2778
  %v2780 = vand.u32 %v185, 4294901760
  %2781 = vmatmul.f32.gmra.mxu0 %v2780
  %v2782 = vpop.f32.mrf.mxu0
  %v2783 = vadd.f32 %v1646, %v2782
  %v2784 = vand.u32 %v187, 4294901760
  %2785 = vmatmul.f32.gmra.mxu0 %v2784
  %v2786 = vpop.f32.mrf.mxu0
  %v2787 = vadd.f32 %v1654, %v2786
  %v2788 = vand.u32 %v189, 4294901760
  %2789 = vmatmul.f32.gmra.mxu0 %v2788
  %v2790 = vpop.f32.mrf.mxu0
  %v2791 = vadd.f32 %v1662, %v2790
  %v2792 = vand.u32 %v191, 4294901760
  %2793 = vmatmul.f32.gmra.mxu0 %v2792
  %v2794 = vpop.f32.mrf.mxu0
  %v2795 = vadd.f32 %v1670, %v2794
  %v2796 = vand.u32 %v193, 4294901760
  %2797 = vmatmul.f32.gmra.mxu0 %v2796
  %v2798 = vpop.f32.mrf.mxu0
  %v2799 = vadd.f32 %v1678, %v2798
  %v2800 = vand.u32 %v195, 4294901760
  %2801 = vmatmul.f32.gmra.mxu0 %v2800
  %v2802 = vpop.f32.mrf.mxu0
  %v2803 = vadd.f32 %v1686, %v2802
  %v2804 = vand.u32 %v197, 4294901760
  %2805 = vmatmul.f32.gmra.mxu0 %v2804
  %v2806 = vpop.f32.mrf.mxu0
  %v2807 = vadd.f32 %v1694, %v2806
  %v2808 = vand.u32 %v199, 4294901760
  %2809 = vmatmul.f32.gmra.mxu0 %v2808
  %v2810 = vpop.f32.mrf.mxu0
  %v2811 = vadd.f32 %v1702, %v2810
  %v2812 = vand.u32 %v201, 4294901760
  %2813 = vmatmul.f32.gmra.mxu0 %v2812
  %v2814 = vpop.f32.mrf.mxu0
  %v2815 = vadd.f32 %v1710, %v2814
  %v2816 = vand.u32 %v203, 4294901760
  %2817 = vmatmul.f32.gmra.mxu0 %v2816
  %v2818 = vpop.f32.mrf.mxu0
  %v2819 = vadd.f32 %v1718, %v2818
  %v2820 = vand.u32 %v205, 4294901760
  %2821 = vmatmul.f32.gmra.mxu0 %v2820
  %v2822 = vpop.f32.mrf.mxu0
  %v2823 = vadd.f32 %v1726, %v2822
  %v2824 = vand.u32 %v207, 4294901760
  %2825 = vmatmul.f32.gmra.mxu0 %v2824
  %v2826 = vpop.f32.mrf.mxu0
  %v2827 = vadd.f32 %v1734, %v2826
  %v2828 = vand.u32 %v209, 4294901760
  %2829 = vmatmul.f32.gmra.mxu0 %v2828
  %v2830 = vpop.f32.mrf.mxu0
  %v2831 = vadd.f32 %v1742, %v2830
  %v2832 = vand.u32 %v211, 4294901760
  %2833 = vmatmul.f32.gmra.mxu0 %v2832
  %v2834 = vpop.f32.mrf.mxu0
  %v2835 = vadd.f32 %v1750, %v2834
  %v2836 = vand.u32 %v213, 4294901760
  %2837 = vmatmul.f32.gmra.mxu0 %v2836
  %v2838 = vpop.f32.mrf.mxu0
  %v2839 = vadd.f32 %v1758, %v2838
  %v2840 = vand.u32 %v215, 4294901760
  %2841 = vmatmul.f32.gmra.mxu0 %v2840
  %v2842 = vpop.f32.mrf.mxu0
  %v2843 = vadd.f32 %v1766, %v2842
  %v2844 = vand.u32 %v217, 4294901760
  %2845 = vmatmul.f32.gmra.mxu0 %v2844
  %v2846 = vpop.f32.mrf.mxu0
  %v2847 = vadd.f32 %v1774, %v2846
  %v2848 = vand.u32 %v219, 4294901760
  %2849 = vmatmul.f32.gmra.mxu0 %v2848
  %v2850 = vpop.f32.mrf.mxu0
  %v2851 = vadd.f32 %v1782, %v2850
  %v2852 = vand.u32 %v221, 4294901760
  %2853 = vmatmul.f32.gmra.mxu0 %v2852
  %v2854 = vpop.f32.mrf.mxu0
  %v2855 = vadd.f32 %v1790, %v2854
  %v2856 = vand.u32 %v223, 4294901760
  %2857 = vmatmul.f32.gmra.mxu0 %v2856
  %v2858 = vpop.f32.mrf.mxu0
  %v2859 = vadd.f32 %v1798, %v2858
  %v2860 = vand.u32 %v225, 4294901760
  %2861 = vmatmul.f32.gmra.mxu0 %v2860
  %v2862 = vpop.f32.mrf.mxu0
  %v2863 = vadd.f32 %v1806, %v2862
  %v2864 = vand.u32 %v227, 4294901760
  %2865 = vmatmul.f32.gmra.mxu0 %v2864
  %v2866 = vpop.f32.mrf.mxu0
  %v2867 = vadd.f32 %v1814, %v2866
  %v2868 = vand.u32 %v229, 4294901760
  %2869 = vmatmul.f32.gmra.mxu0 %v2868
  %v2870 = vpop.f32.mrf.mxu0
  %v2871 = vadd.f32 %v1822, %v2870
  %v2872 = vand.u32 %v231, 4294901760
  %2873 = vmatmul.f32.gmra.mxu0 %v2872
  %v2874 = vpop.f32.mrf.mxu0
  %v2875 = vadd.f32 %v1830, %v2874
  %v2876 = vand.u32 %v233, 4294901760
  %2877 = vmatmul.f32.gmra.mxu0 %v2876
  %v2878 = vpop.f32.mrf.mxu0
  %v2879 = vadd.f32 %v1838, %v2878
  %v2880 = vand.u32 %v235, 4294901760
  %2881 = vmatmul.f32.gmra.mxu0 %v2880
  %v2882 = vpop.f32.mrf.mxu0
  %v2883 = vadd.f32 %v1846, %v2882
  %v2884 = vand.u32 %v237, 4294901760
  %2885 = vmatmul.f32.gmra.mxu0 %v2884
  %v2886 = vpop.f32.mrf.mxu0
  %v2887 = vadd.f32 %v1854, %v2886
  %v2888 = vand.u32 %v239, 4294901760
  %2889 = vmatmul.f32.gmra.mxu0 %v2888
  %v2890 = vpop.f32.mrf.mxu0
  %v2891 = vadd.f32 %v1862, %v2890
  %v2892 = vand.u32 %v241, 4294901760
  %2893 = vmatmul.f32.gmra.mxu0 %v2892
  %v2894 = vpop.f32.mrf.mxu0
  %v2895 = vadd.f32 %v1870, %v2894
  %v2896 = vand.u32 %v243, 4294901760
  %2897 = vmatmul.f32.gmra.mxu0 %v2896
  %v2898 = vpop.f32.mrf.mxu0
  %v2899 = vadd.f32 %v1878, %v2898
  %v2900 = vand.u32 %v245, 4294901760
  %2901 = vmatmul.f32.gmra.mxu0 %v2900
  %v2902 = vpop.f32.mrf.mxu0
  %v2903 = vadd.f32 %v1886, %v2902
  %v2904 = vand.u32 %v247, 4294901760
  %2905 = vmatmul.f32.gmra.mxu0 %v2904
  %v2906 = vpop.f32.mrf.mxu0
  %v2907 = vadd.f32 %v1894, %v2906
  %v2908 = vand.u32 %v249, 4294901760
  %2909 = vmatmul.f32.gmra.mxu0 %v2908
  %v2910 = vpop.f32.mrf.mxu0
  %v2911 = vadd.f32 %v1902, %v2910
  %v2912 = vand.u32 %v251, 4294901760
  %2913 = vmatmul.f32.gmra.mxu0 %v2912
  %v2914 = vpop.f32.mrf.mxu0
  %v2915 = vadd.f32 %v1910, %v2914
  %v2916 = vand.u32 %v253, 4294901760
  %2917 = vmatmul.f32.gmra.mxu0 %v2916
  %v2918 = vpop.f32.mrf.mxu0
  %v2919 = vadd.f32 %v1918, %v2918
  %v2920 = vand.u32 %v255, 4294901760
  %2921 = vmatmul.f32.gmra.mxu0 %v2920
  %v2922 = vpop.f32.mrf.mxu0
  %v2923 = vadd.f32 %v1926, %v2922
  %v2924 = vand.u32 %v257, 4294901760
  %2925 = vmatmul.f32.gmra.mxu0 %v2924
  %v2926 = vpop.f32.mrf.mxu0
  %v2927 = vadd.f32 %v1934, %v2926
  %v2928 = vand.u32 %v259, 4294901760
  %2929 = vmatmul.f32.gmra.mxu0 %v2928
  %v2930 = vpop.f32.mrf.mxu0
  %v2931 = vadd.f32 %v1942, %v2930
  %v2932 = vand.u32 %v261, 4294901760
  %2933 = vmatmul.f32.gmra.mxu0 %v2932
  %v2934 = vpop.f32.mrf.mxu0
  %v2935 = vadd.f32 %v1950, %v2934
  %v2936 = vand.u32 %v263, 4294901760
  %2937 = vmatmul.f32.gmra.mxu0 %v2936
  %v2938 = vpop.f32.mrf.mxu0
  %v2939 = vadd.f32 %v1958, %v2938
  %v2940 = vand.u32 %v265, 4294901760
  %2941 = vmatmul.f32.gmra.mxu0 %v2940
  %v2942 = vpop.f32.mrf.mxu0
  %v2943 = vadd.f32 %v1966, %v2942
  %v2944 = vand.u32 %v267, 4294901760
  %2945 = vmatmul.f32.gmra.mxu0 %v2944
  %v2946 = vpop.f32.mrf.mxu0
  %v2947 = vadd.f32 %v1974, %v2946
  %v2948 = vand.u32 %v269, 4294901760
  %2949 = vmatmul.f32.gmra.mxu0 %v2948
  %v2950 = vpop.f32.mrf.mxu0
  %v2951 = vadd.f32 %v1982, %v2950
  %v2952 = vand.u32 %v271, 4294901760
  %2953 = vmatmul.f32.gmra.mxu0 %v2952
  %v2954 = vpop.f32.mrf.mxu0
  %v2955 = vadd.f32 %v1990, %v2954
  %v2956 = vand.u32 %v273, 4294901760
  %2957 = vmatmul.f32.gmra.mxu0 %v2956
  %v2958 = vpop.f32.mrf.mxu0
  %v2959 = vadd.f32 %v1998, %v2958
  %v2960 = vand.u32 %v275, 4294901760
  %2961 = vmatmul.f32.gmra.mxu0 %v2960
  %v2962 = vpop.f32.mrf.mxu0
  %v2963 = vadd.f32 %v2006, %v2962
  %v2964 = vand.u32 %v277, 4294901760
  %2965 = vmatmul.f32.gmra.mxu0 %v2964
  %v2966 = vpop.f32.mrf.mxu0
  %v2967 = vadd.f32 %v2014, %v2966
  %v2968 = vand.u32 %v279, 4294901760
  %2969 = vmatmul.f32.gmra.mxu0 %v2968
  %v2970 = vpop.f32.mrf.mxu0
  %v2971 = vadd.f32 %v2022, %v2970
  %v2972 = vand.u32 %v281, 4294901760
  %2973 = vmatmul.f32.gmra.mxu0 %v2972
  %v2974 = vpop.f32.mrf.mxu0
  %v2975 = vadd.f32 %v2030, %v2974
  %v2976 = vand.u32 %v283, 4294901760
  %2977 = vmatmul.f32.gmra.mxu0 %v2976
  %v2978 = vpop.f32.mrf.mxu0
  %v2979 = vadd.f32 %v2038, %v2978
  %v2980 = vand.u32 %v285, 4294901760
  %2981 = vmatmul.f32.gmra.mxu0 %v2980
  %v2982 = vpop.f32.mrf.mxu0
  %v2983 = vadd.f32 %v2046, %v2982
  %v2984 = vand.u32 %v287, 4294901760
  %2985 = vmatmul.f32.gmra.mxu0 %v2984
  %v2986 = vpop.f32.mrf.mxu0
  %v2987 = vadd.f32 %v2054, %v2986
  %v2988 = vand.u32 %v289, 4294901760
  %2989 = vmatmul.f32.gmra.mxu0 %v2988
  %v2990 = vpop.f32.mrf.mxu0
  %v2991 = vadd.f32 %v2062, %v2990
  %v2992 = vand.u32 %v291, 4294901760
  %2993 = vmatmul.f32.gmra.mxu0 %v2992
  %v2994 = vpop.f32.mrf.mxu0
  %v2995 = vadd.f32 %v2070, %v2994
  %v2996 = vand.u32 %v293, 4294901760
  %2997 = vmatmul.f32.gmra.mxu0 %v2996
  %v2998 = vpop.f32.mrf.mxu0
  %v2999 = vadd.f32 %v2078, %v2998
  %v3000 = vand.u32 %v295, 4294901760
  %3001 = vmatmul.f32.gmra.mxu0 %v3000
  %v3002 = vpop.f32.mrf.mxu0
  %v3003 = vadd.f32 %v2086, %v3002
  %v3004 = vand.u32 %v297, 4294901760
  %3005 = vmatmul.f32.gmra.mxu0 %v3004
  %v3006 = vpop.f32.mrf.mxu0
  %v3007 = vadd.f32 %v2094, %v3006
  %v3008 = vand.u32 %v299, 4294901760
  %3009 = vmatmul.f32.gmra.mxu0 %v3008
  %v3010 = vpop.f32.mrf.mxu0
  %v3011 = vadd.f32 %v2102, %v3010
  %v3012 = vand.u32 %v301, 4294901760
  %3013 = vmatmul.f32.gmra.mxu0 %v3012
  %v3014 = vpop.f32.mrf.mxu0
  %v3015 = vadd.f32 %v2110, %v3014
  %v3016 = vand.u32 %v303, 4294901760
  %3017 = vmatmul.f32.gmra.mxu0 %v3016
  %v3018 = vpop.f32.mrf.mxu0
  %v3019 = vadd.f32 %v2118, %v3018
  %v3020 = vand.u32 %v305, 4294901760
  %3021 = vmatmul.f32.gmra.mxu0 %v3020
  %v3022 = vpop.f32.mrf.mxu0
  %v3023 = vadd.f32 %v2126, %v3022
  %v3024 = vand.u32 %v307, 4294901760
  %3025 = vmatmul.f32.gmra.mxu0 %v3024
  %v3026 = vpop.f32.mrf.mxu0
  %v3027 = vadd.f32 %v2134, %v3026
  %v3028 = vand.u32 %v309, 4294901760
  %3029 = vmatmul.f32.gmra.mxu0 %v3028
  %v3030 = vpop.f32.mrf.mxu0
  %v3031 = vadd.f32 %v2142, %v3030
  %v3032 = vand.u32 %v311, 4294901760
  %3033 = vmatmul.f32.gmra.mxu0 %v3032
  %v3034 = vpop.f32.mrf.mxu0
  %v3035 = vadd.f32 %v2150, %v3034
  %v3036 = vand.u32 %v313, 4294901760
  %3037 = vmatmul.f32.gmra.mxu0 %v3036
  %v3038 = vpop.f32.mrf.mxu0
  %v3039 = vadd.f32 %v2158, %v3038
  %v3040 = vand.u32 %v315, 4294901760
  %3041 = vmatmul.f32.gmra.mxu0 %v3040
  %v3042 = vpop.f32.mrf.mxu0
  %v3043 = vadd.f32 %v2166, %v3042
  %v3044 = vand.u32 %v317, 4294901760
  %3045 = vmatmul.f32.gmra.mxu0 %v3044
  %v3046 = vpop.f32.mrf.mxu0
  %v3047 = vadd.f32 %v2174, %v3046
  %v3048 = vand.u32 %v319, 4294901760
  %3049 = vmatmul.f32.gmra.mxu0 %v3048
  %v3050 = vpop.f32.mrf.mxu0
  %v3051 = vadd.f32 %v2182, %v3050
  %v3052 = vand.u32 %v321, 4294901760
  %3053 = vmatmul.f32.gmra.mxu0 %v3052
  %v3054 = vpop.f32.mrf.mxu0
  %v3055 = vadd.f32 %v2190, %v3054
  %v3056 = vand.u32 %v323, 4294901760
  %3057 = vmatmul.f32.gmra.mxu0 %v3056
  %v3058 = vpop.f32.mrf.mxu0
  %v3059 = vadd.f32 %v2198, %v3058
  %v3060 = vand.u32 %v325, 4294901760
  %3061 = vmatmul.f32.gmra.mxu0 %v3060
  %v3062 = vpop.f32.mrf.mxu0
  %v3063 = vadd.f32 %v2206, %v3062
  %v3064 = vand.u32 %v327, 4294901760
  %3065 = vmatmul.f32.gmra.mxu0 %v3064
  %v3066 = vpop.f32.mrf.mxu0
  %v3067 = vadd.f32 %v2214, %v3066
  %v3068 = vand.u32 %v329, 4294901760
  %3069 = vmatmul.f32.gmra.mxu0 %v3068
  %v3070 = vpop.f32.mrf.mxu0
  %v3071 = vadd.f32 %v2222, %v3070
  %v3072 = vand.u32 %v331, 4294901760
  %3073 = vmatmul.f32.gmra.mxu0 %v3072
  %v3074 = vpop.f32.mrf.mxu0
  %v3075 = vadd.f32 %v2230, %v3074
  %v3076 = vand.u32 %v333, 4294901760
  %3077 = vmatmul.f32.gmra.mxu0 %v3076
  %v3078 = vpop.f32.mrf.mxu0
  %v3079 = vadd.f32 %v2238, %v3078
  %v3080 = vand.u32 %v335, 4294901760
  %3081 = vmatmul.f32.gmra.mxu0 %v3080
  %v3082 = vpop.f32.mrf.mxu0
  %v3083 = vadd.f32 %v2246, %v3082
  %v3084 = vand.u32 %v337, 4294901760
  %3085 = vmatmul.f32.gmra.mxu0 %v3084
  %v3086 = vpop.f32.mrf.mxu0
  %v3087 = vadd.f32 %v2254, %v3086
  %v3088 = vand.u32 %v339, 4294901760
  %3089 = vmatmul.f32.gmra.mxu0 %v3088
  %v3090 = vpop.f32.mrf.mxu0
  %v3091 = vadd.f32 %v2262, %v3090
  %v3092 = vand.u32 %v341, 4294901760
  %3093 = vmatmul.f32.gmra.mxu0 %v3092
  %v3094 = vpop.f32.mrf.mxu0
  %v3095 = vadd.f32 %v2270, %v3094
  %v3096 = vand.u32 %v343, 4294901760
  %3097 = vmatmul.f32.gmra.mxu0 %v3096
  %v3098 = vpop.f32.mrf.mxu0
  %v3099 = vadd.f32 %v2278, %v3098
  %v3100 = vand.u32 %v345, 4294901760
  %3101 = vmatmul.f32.gmra.mxu0 %v3100
  %v3102 = vpop.f32.mrf.mxu0
  %v3103 = vadd.f32 %v2286, %v3102
  %v3104 = vand.u32 %v347, 4294901760
  %3105 = vmatmul.f32.gmra.mxu0 %v3104
  %v3106 = vpop.f32.mrf.mxu0
  %v3107 = vadd.f32 %v2294, %v3106
  %v3108 = vand.u32 %v349, 4294901760
  %3109 = vmatmul.f32.gmra.mxu0 %v3108
  %v3110 = vpop.f32.mrf.mxu0
  %v3111 = vadd.f32 %v2302, %v3110
  %v3112 = vand.u32 %v351, 4294901760
  %3113 = vmatmul.f32.gmra.mxu0 %v3112
  %v3114 = vpop.f32.mrf.mxu0
  %v3115 = vadd.f32 %v2310, %v3114
  %v3116 = vand.u32 %v353, 4294901760
  %3117 = vmatmul.f32.gmra.mxu0 %v3116
  %v3118 = vpop.f32.mrf.mxu0
  %v3119 = vadd.f32 %v2318, %v3118
  %v3120 = vand.u32 %v355, 4294901760
  %3121 = vmatmul.f32.gmra.mxu0 %v3120
  %v3122 = vpop.f32.mrf.mxu0
  %v3123 = vadd.f32 %v2326, %v3122
  %v3124 = vand.u32 %v357, 4294901760
  %3125 = vmatmul.f32.gmra.mxu0 %v3124
  %v3126 = vpop.f32.mrf.mxu0
  %v3127 = vadd.f32 %v2334, %v3126
  %3128 = vdwg.mxu0
  %v3129 = vand.u32 %v374, 4294901760
  %v3130 = vsub.f32 %v374, %v3129
  %3131 = vmatpush.msra.mxu0 %v3130
  %v3132 = vand.u32 %v373, 4294901760
  %v3133 = vsub.f32 %v373, %v3132
  %3134 = vmatpush.msra.mxu0 %v3133
  %v3135 = vand.u32 %v372, 4294901760
  %v3136 = vsub.f32 %v372, %v3135
  %3137 = vmatpush.msra.mxu0 %v3136
  %v3138 = vand.u32 %v371, 4294901760
  %v3139 = vsub.f32 %v371, %v3138
  %3140 = vmatpush.msra.mxu0 %v3139
  %v3141 = vand.u32 %v370, 4294901760
  %v3142 = vsub.f32 %v370, %v3141
  %3143 = vmatpush.msra.mxu0 %v3142
  %v3144 = vand.u32 %v369, 4294901760
  %v3145 = vsub.f32 %v369, %v3144
  %3146 = vmatpush.msra.mxu0 %v3145
  %v3147 = vand.u32 %v368, 4294901760
  %v3148 = vsub.f32 %v368, %v3147
  %3149 = vmatpush.msra.mxu0 %v3148
  %v3150 = vand.u32 %v367, 4294901760
  %v3151 = vsub.f32 %v367, %v3150
  %3152 = vmatpush.msra.mxu0 %v3151
  %v3153 = vand.u32 %v366, 4294901760
  %v3154 = vsub.f32 %v366, %v3153
  %3155 = vmatpush.msra.mxu0 %v3154
  %v3156 = vand.u32 %v365, 4294901760
  %v3157 = vsub.f32 %v365, %v3156
  %3158 = vmatpush.msra.mxu0 %v3157
  %v3159 = vand.u32 %v364, 4294901760
  %v3160 = vsub.f32 %v364, %v3159
  %3161 = vmatpush.msra.mxu0 %v3160
  %v3162 = vand.u32 %v363, 4294901760
  %v3163 = vsub.f32 %v363, %v3162
  %3164 = vmatpush.msra.mxu0 %v3163
  %v3165 = vand.u32 %v362, 4294901760
  %v3166 = vsub.f32 %v362, %v3165
  %3167 = vmatpush.msra.mxu0 %v3166
  %v3168 = vand.u32 %v361, 4294901760
  %v3169 = vsub.f32 %v361, %v3168
  %3170 = vmatpush.msra.mxu0 %v3169
  %v3171 = vand.u32 %v360, 4294901760
  %v3172 = vsub.f32 %v360, %v3171
  %3173 = vmatpush.msra.mxu0 %v3172
  %v3174 = vand.u32 %v359, 4294901760
  %v3175 = vsub.f32 %v359, %v3174
  %3176 = vmatpush.msra.mxu0 %v3175
  %v3177 = vand.u32 %v11, 4294901760
  %v3178 = vsub.f32 %v11, %v3177
  %3179 = vmatmul.f32.gmra.mxu0 %v3178
  %v3180 = vpop.f32.mrf.mxu0
  %v3181 = vadd.f32 %v2435, %v3180
  %v3182 = vand.u32 %v13, 4294901760
  %v3183 = vsub.f32 %v13, %v3182
  %3184 = vmatmul.f32.gmra.mxu0 %v3183
  %v3185 = vpop.f32.mrf.mxu0
  %v3186 = vadd.f32 %v2439, %v3185
  %v3187 = vand.u32 %v15, 4294901760
  %v3188 = vsub.f32 %v15, %v3187
  %3189 = vmatmul.f32.gmra.mxu0 %v3188
  %v3190 = vpop.f32.mrf.mxu0
  %v3191 = vadd.f32 %v2443, %v3190
  %v3192 = vand.u32 %v17, 4294901760
  %v3193 = vsub.f32 %v17, %v3192
  %3194 = vmatmul.f32.gmra.mxu0 %v3193
  %v3195 = vpop.f32.mrf.mxu0
  %v3196 = vadd.f32 %v2447, %v3195
  %v3197 = vand.u32 %v19, 4294901760
  %v3198 = vsub.f32 %v19, %v3197
  %3199 = vmatmul.f32.gmra.mxu0 %v3198
  %v3200 = vpop.f32.mrf.mxu0
  %v3201 = vadd.f32 %v2451, %v3200
  %v3202 = vand.u32 %v21, 4294901760
  %v3203 = vsub.f32 %v21, %v3202
  %3204 = vmatmul.f32.gmra.mxu0 %v3203
  %v3205 = vpop.f32.mrf.mxu0
  %v3206 = vadd.f32 %v2455, %v3205
  %v3207 = vand.u32 %v23, 4294901760
  %v3208 = vsub.f32 %v23, %v3207
  %3209 = vmatmul.f32.gmra.mxu0 %v3208
  %v3210 = vpop.f32.mrf.mxu0
  %v3211 = vadd.f32 %v2459, %v3210
  %v3212 = vand.u32 %v25, 4294901760
  %v3213 = vsub.f32 %v25, %v3212
  %3214 = vmatmul.f32.gmra.mxu0 %v3213
  %v3215 = vpop.f32.mrf.mxu0
  %v3216 = vadd.f32 %v2463, %v3215
  %v3217 = vand.u32 %v27, 4294901760
  %v3218 = vsub.f32 %v27, %v3217
  %3219 = vmatmul.f32.gmra.mxu0 %v3218
  %v3220 = vpop.f32.mrf.mxu0
  %v3221 = vadd.f32 %v2467, %v3220
  %v3222 = vand.u32 %v29, 4294901760
  %v3223 = vsub.f32 %v29, %v3222
  %3224 = vmatmul.f32.gmra.mxu0 %v3223
  %v3225 = vpop.f32.mrf.mxu0
  %v3226 = vadd.f32 %v2471, %v3225
  %v3227 = vand.u32 %v31, 4294901760
  %v3228 = vsub.f32 %v31, %v3227
  %3229 = vmatmul.f32.gmra.mxu0 %v3228
  %v3230 = vpop.f32.mrf.mxu0
  %v3231 = vadd.f32 %v2475, %v3230
  %v3232 = vand.u32 %v33, 4294901760
  %v3233 = vsub.f32 %v33, %v3232
  %3234 = vmatmul.f32.gmra.mxu0 %v3233
  %v3235 = vpop.f32.mrf.mxu0
  %v3236 = vadd.f32 %v2479, %v3235
  %v3237 = vand.u32 %v35, 4294901760
  %v3238 = vsub.f32 %v35, %v3237
  %3239 = vmatmul.f32.gmra.mxu0 %v3238
  %v3240 = vpop.f32.mrf.mxu0
  %v3241 = vadd.f32 %v2483, %v3240
  %v3242 = vand.u32 %v37, 4294901760
  %v3243 = vsub.f32 %v37, %v3242
  %3244 = vmatmul.f32.gmra.mxu0 %v3243
  %v3245 = vpop.f32.mrf.mxu0
  %v3246 = vadd.f32 %v2487, %v3245
  %v3247 = vand.u32 %v39, 4294901760
  %v3248 = vsub.f32 %v39, %v3247
  %3249 = vmatmul.f32.gmra.mxu0 %v3248
  %v3250 = vpop.f32.mrf.mxu0
  %v3251 = vadd.f32 %v2491, %v3250
  %v3252 = vand.u32 %v41, 4294901760
  %v3253 = vsub.f32 %v41, %v3252
  %3254 = vmatmul.f32.gmra.mxu0 %v3253
  %v3255 = vpop.f32.mrf.mxu0
  %v3256 = vadd.f32 %v2495, %v3255
  %v3257 = vand.u32 %v43, 4294901760
  %v3258 = vsub.f32 %v43, %v3257
  %3259 = vmatmul.f32.gmra.mxu0 %v3258
  %v3260 = vpop.f32.mrf.mxu0
  %v3261 = vadd.f32 %v2499, %v3260
  %v3262 = vand.u32 %v45, 4294901760
  %v3263 = vsub.f32 %v45, %v3262
  %3264 = vmatmul.f32.gmra.mxu0 %v3263
  %v3265 = vpop.f32.mrf.mxu0
  %v3266 = vadd.f32 %v2503, %v3265
  %v3267 = vand.u32 %v47, 4294901760
  %v3268 = vsub.f32 %v47, %v3267
  %3269 = vmatmul.f32.gmra.mxu0 %v3268
  %v3270 = vpop.f32.mrf.mxu0
  %v3271 = vadd.f32 %v2507, %v3270
  %v3272 = vand.u32 %v49, 4294901760
  %v3273 = vsub.f32 %v49, %v3272
  %3274 = vmatmul.f32.gmra.mxu0 %v3273
  %v3275 = vpop.f32.mrf.mxu0
  %v3276 = vadd.f32 %v2511, %v3275
  %v3277 = vand.u32 %v51, 4294901760
  %v3278 = vsub.f32 %v51, %v3277
  %3279 = vmatmul.f32.gmra.mxu0 %v3278
  %v3280 = vpop.f32.mrf.mxu0
  %v3281 = vadd.f32 %v2515, %v3280
  %v3282 = vand.u32 %v53, 4294901760
  %v3283 = vsub.f32 %v53, %v3282
  %3284 = vmatmul.f32.gmra.mxu0 %v3283
  %v3285 = vpop.f32.mrf.mxu0
  %v3286 = vadd.f32 %v2519, %v3285
  %v3287 = vand.u32 %v55, 4294901760
  %v3288 = vsub.f32 %v55, %v3287
  %3289 = vmatmul.f32.gmra.mxu0 %v3288
  %v3290 = vpop.f32.mrf.mxu0
  %v3291 = vadd.f32 %v2523, %v3290
  %v3292 = vand.u32 %v57, 4294901760
  %v3293 = vsub.f32 %v57, %v3292
  %3294 = vmatmul.f32.gmra.mxu0 %v3293
  %v3295 = vpop.f32.mrf.mxu0
  %v3296 = vadd.f32 %v2527, %v3295
  %v3297 = vand.u32 %v59, 4294901760
  %v3298 = vsub.f32 %v59, %v3297
  %3299 = vmatmul.f32.gmra.mxu0 %v3298
  %v3300 = vpop.f32.mrf.mxu0
  %v3301 = vadd.f32 %v2531, %v3300
  %v3302 = vand.u32 %v61, 4294901760
  %v3303 = vsub.f32 %v61, %v3302
  %3304 = vmatmul.f32.gmra.mxu0 %v3303
  %v3305 = vpop.f32.mrf.mxu0
  %v3306 = vadd.f32 %v2535, %v3305
  %v3307 = vand.u32 %v63, 4294901760
  %v3308 = vsub.f32 %v63, %v3307
  %3309 = vmatmul.f32.gmra.mxu0 %v3308
  %v3310 = vpop.f32.mrf.mxu0
  %v3311 = vadd.f32 %v2539, %v3310
  %v3312 = vand.u32 %v65, 4294901760
  %v3313 = vsub.f32 %v65, %v3312
  %3314 = vmatmul.f32.gmra.mxu0 %v3313
  %v3315 = vpop.f32.mrf.mxu0
  %v3316 = vadd.f32 %v2543, %v3315
  %v3317 = vand.u32 %v67, 4294901760
  %v3318 = vsub.f32 %v67, %v3317
  %3319 = vmatmul.f32.gmra.mxu0 %v3318
  %v3320 = vpop.f32.mrf.mxu0
  %v3321 = vadd.f32 %v2547, %v3320
  %v3322 = vand.u32 %v69, 4294901760
  %v3323 = vsub.f32 %v69, %v3322
  %3324 = vmatmul.f32.gmra.mxu0 %v3323
  %v3325 = vpop.f32.mrf.mxu0
  %v3326 = vadd.f32 %v2551, %v3325
  %v3327 = vand.u32 %v71, 4294901760
  %v3328 = vsub.f32 %v71, %v3327
  %3329 = vmatmul.f32.gmra.mxu0 %v3328
  %v3330 = vpop.f32.mrf.mxu0
  %v3331 = vadd.f32 %v2555, %v3330
  %v3332 = vand.u32 %v73, 4294901760
  %v3333 = vsub.f32 %v73, %v3332
  %3334 = vmatmul.f32.gmra.mxu0 %v3333
  %v3335 = vpop.f32.mrf.mxu0
  %v3336 = vadd.f32 %v2559, %v3335
  %v3337 = vand.u32 %v75, 4294901760
  %v3338 = vsub.f32 %v75, %v3337
  %3339 = vmatmul.f32.gmra.mxu0 %v3338
  %v3340 = vpop.f32.mrf.mxu0
  %v3341 = vadd.f32 %v2563, %v3340
  %v3342 = vand.u32 %v77, 4294901760
  %v3343 = vsub.f32 %v77, %v3342
  %3344 = vmatmul.f32.gmra.mxu0 %v3343
  %v3345 = vpop.f32.mrf.mxu0
  %v3346 = vadd.f32 %v2567, %v3345
  %v3347 = vand.u32 %v79, 4294901760
  %v3348 = vsub.f32 %v79, %v3347
  %3349 = vmatmul.f32.gmra.mxu0 %v3348
  %v3350 = vpop.f32.mrf.mxu0
  %v3351 = vadd.f32 %v2571, %v3350
  %v3352 = vand.u32 %v81, 4294901760
  %v3353 = vsub.f32 %v81, %v3352
  %3354 = vmatmul.f32.gmra.mxu0 %v3353
  %v3355 = vpop.f32.mrf.mxu0
  %v3356 = vadd.f32 %v2575, %v3355
  %v3357 = vand.u32 %v83, 4294901760
  %v3358 = vsub.f32 %v83, %v3357
  %3359 = vmatmul.f32.gmra.mxu0 %v3358
  %v3360 = vpop.f32.mrf.mxu0
  %v3361 = vadd.f32 %v2579, %v3360
  %v3362 = vand.u32 %v85, 4294901760
  %v3363 = vsub.f32 %v85, %v3362
  %3364 = vmatmul.f32.gmra.mxu0 %v3363
  %v3365 = vpop.f32.mrf.mxu0
  %v3366 = vadd.f32 %v2583, %v3365
  %v3367 = vand.u32 %v87, 4294901760
  %v3368 = vsub.f32 %v87, %v3367
  %3369 = vmatmul.f32.gmra.mxu0 %v3368
  %v3370 = vpop.f32.mrf.mxu0
  %v3371 = vadd.f32 %v2587, %v3370
  %v3372 = vand.u32 %v89, 4294901760
  %v3373 = vsub.f32 %v89, %v3372
  %3374 = vmatmul.f32.gmra.mxu0 %v3373
  %v3375 = vpop.f32.mrf.mxu0
  %v3376 = vadd.f32 %v2591, %v3375
  %v3377 = vand.u32 %v91, 4294901760
  %v3378 = vsub.f32 %v91, %v3377
  %3379 = vmatmul.f32.gmra.mxu0 %v3378
  %v3380 = vpop.f32.mrf.mxu0
  %v3381 = vadd.f32 %v2595, %v3380
  %v3382 = vand.u32 %v93, 4294901760
  %v3383 = vsub.f32 %v93, %v3382
  %3384 = vmatmul.f32.gmra.mxu0 %v3383
  %v3385 = vpop.f32.mrf.mxu0
  %v3386 = vadd.f32 %v2599, %v3385
  %v3387 = vand.u32 %v95, 4294901760
  %v3388 = vsub.f32 %v95, %v3387
  %3389 = vmatmul.f32.gmra.mxu0 %v3388
  %v3390 = vpop.f32.mrf.mxu0
  %v3391 = vadd.f32 %v2603, %v3390
  %v3392 = vand.u32 %v97, 4294901760
  %v3393 = vsub.f32 %v97, %v3392
  %3394 = vmatmul.f32.gmra.mxu0 %v3393
  %v3395 = vpop.f32.mrf.mxu0
  %v3396 = vadd.f32 %v2607, %v3395
  %v3397 = vand.u32 %v99, 4294901760
  %v3398 = vsub.f32 %v99, %v3397
  %3399 = vmatmul.f32.gmra.mxu0 %v3398
  %v3400 = vpop.f32.mrf.mxu0
  %v3401 = vadd.f32 %v2611, %v3400
  %v3402 = vand.u32 %v101, 4294901760
  %v3403 = vsub.f32 %v101, %v3402
  %3404 = vmatmul.f32.gmra.mxu0 %v3403
  %v3405 = vpop.f32.mrf.mxu0
  %v3406 = vadd.f32 %v2615, %v3405
  %v3407 = vand.u32 %v103, 4294901760
  %v3408 = vsub.f32 %v103, %v3407
  %3409 = vmatmul.f32.gmra.mxu0 %v3408
  %v3410 = vpop.f32.mrf.mxu0
  %v3411 = vadd.f32 %v2619, %v3410
  %v3412 = vand.u32 %v105, 4294901760
  %v3413 = vsub.f32 %v105, %v3412
  %3414 = vmatmul.f32.gmra.mxu0 %v3413
  %v3415 = vpop.f32.mrf.mxu0
  %v3416 = vadd.f32 %v2623, %v3415
  %v3417 = vand.u32 %v107, 4294901760
  %v3418 = vsub.f32 %v107, %v3417
  %3419 = vmatmul.f32.gmra.mxu0 %v3418
  %v3420 = vpop.f32.mrf.mxu0
  %v3421 = vadd.f32 %v2627, %v3420
  %v3422 = vand.u32 %v109, 4294901760
  %v3423 = vsub.f32 %v109, %v3422
  %3424 = vmatmul.f32.gmra.mxu0 %v3423
  %v3425 = vpop.f32.mrf.mxu0
  %v3426 = vadd.f32 %v2631, %v3425
  %v3427 = vand.u32 %v111, 4294901760
  %v3428 = vsub.f32 %v111, %v3427
  %3429 = vmatmul.f32.gmra.mxu0 %v3428
  %v3430 = vpop.f32.mrf.mxu0
  %v3431 = vadd.f32 %v2635, %v3430
  %v3432 = vand.u32 %v113, 4294901760
  %v3433 = vsub.f32 %v113, %v3432
  %3434 = vmatmul.f32.gmra.mxu0 %v3433
  %v3435 = vpop.f32.mrf.mxu0
  %v3436 = vadd.f32 %v2639, %v3435
  %v3437 = vand.u32 %v115, 4294901760
  %v3438 = vsub.f32 %v115, %v3437
  %3439 = vmatmul.f32.gmra.mxu0 %v3438
  %v3440 = vpop.f32.mrf.mxu0
  %v3441 = vadd.f32 %v2643, %v3440
  %v3442 = vand.u32 %v117, 4294901760
  %v3443 = vsub.f32 %v117, %v3442
  %3444 = vmatmul.f32.gmra.mxu0 %v3443
  %v3445 = vpop.f32.mrf.mxu0
  %v3446 = vadd.f32 %v2647, %v3445
  %v3447 = vand.u32 %v119, 4294901760
  %v3448 = vsub.f32 %v119, %v3447
  %3449 = vmatmul.f32.gmra.mxu0 %v3448
  %v3450 = vpop.f32.mrf.mxu0
  %v3451 = vadd.f32 %v2651, %v3450
  %v3452 = vand.u32 %v121, 4294901760
  %v3453 = vsub.f32 %v121, %v3452
  %3454 = vmatmul.f32.gmra.mxu0 %v3453
  %v3455 = vpop.f32.mrf.mxu0
  %v3456 = vadd.f32 %v2655, %v3455
  %v3457 = vand.u32 %v123, 4294901760
  %v3458 = vsub.f32 %v123, %v3457
  %3459 = vmatmul.f32.gmra.mxu0 %v3458
  %v3460 = vpop.f32.mrf.mxu0
  %v3461 = vadd.f32 %v2659, %v3460
  %v3462 = vand.u32 %v125, 4294901760
  %v3463 = vsub.f32 %v125, %v3462
  %3464 = vmatmul.f32.gmra.mxu0 %v3463
  %v3465 = vpop.f32.mrf.mxu0
  %v3466 = vadd.f32 %v2663, %v3465
  %v3467 = vand.u32 %v127, 4294901760
  %v3468 = vsub.f32 %v127, %v3467
  %3469 = vmatmul.f32.gmra.mxu0 %v3468
  %v3470 = vpop.f32.mrf.mxu0
  %v3471 = vadd.f32 %v2667, %v3470
  %v3472 = vand.u32 %v129, 4294901760
  %v3473 = vsub.f32 %v129, %v3472
  %3474 = vmatmul.f32.gmra.mxu0 %v3473
  %v3475 = vpop.f32.mrf.mxu0
  %v3476 = vadd.f32 %v2671, %v3475
  %v3477 = vand.u32 %v131, 4294901760
  %v3478 = vsub.f32 %v131, %v3477
  %3479 = vmatmul.f32.gmra.mxu0 %v3478
  %v3480 = vpop.f32.mrf.mxu0
  %v3481 = vadd.f32 %v2675, %v3480
  %v3482 = vand.u32 %v133, 4294901760
  %v3483 = vsub.f32 %v133, %v3482
  %3484 = vmatmul.f32.gmra.mxu0 %v3483
  %v3485 = vpop.f32.mrf.mxu0
  %v3486 = vadd.f32 %v2679, %v3485
  %v3487 = vand.u32 %v135, 4294901760
  %v3488 = vsub.f32 %v135, %v3487
  %3489 = vmatmul.f32.gmra.mxu0 %v3488
  %v3490 = vpop.f32.mrf.mxu0
  %v3491 = vadd.f32 %v2683, %v3490
  %v3492 = vand.u32 %v137, 4294901760
  %v3493 = vsub.f32 %v137, %v3492
  %3494 = vmatmul.f32.gmra.mxu0 %v3493
  %v3495 = vpop.f32.mrf.mxu0
  %v3496 = vadd.f32 %v2687, %v3495
  %v3497 = vand.u32 %v139, 4294901760
  %v3498 = vsub.f32 %v139, %v3497
  %3499 = vmatmul.f32.gmra.mxu0 %v3498
  %v3500 = vpop.f32.mrf.mxu0
  %v3501 = vadd.f32 %v2691, %v3500
  %v3502 = vand.u32 %v141, 4294901760
  %v3503 = vsub.f32 %v141, %v3502
  %3504 = vmatmul.f32.gmra.mxu0 %v3503
  %v3505 = vpop.f32.mrf.mxu0
  %v3506 = vadd.f32 %v2695, %v3505
  %v3507 = vand.u32 %v143, 4294901760
  %v3508 = vsub.f32 %v143, %v3507
  %3509 = vmatmul.f32.gmra.mxu0 %v3508
  %v3510 = vpop.f32.mrf.mxu0
  %v3511 = vadd.f32 %v2699, %v3510
  %v3512 = vand.u32 %v145, 4294901760
  %v3513 = vsub.f32 %v145, %v3512
  %3514 = vmatmul.f32.gmra.mxu0 %v3513
  %v3515 = vpop.f32.mrf.mxu0
  %v3516 = vadd.f32 %v2703, %v3515
  %v3517 = vand.u32 %v147, 4294901760
  %v3518 = vsub.f32 %v147, %v3517
  %3519 = vmatmul.f32.gmra.mxu0 %v3518
  %v3520 = vpop.f32.mrf.mxu0
  %v3521 = vadd.f32 %v2707, %v3520
  %v3522 = vand.u32 %v149, 4294901760
  %v3523 = vsub.f32 %v149, %v3522
  %3524 = vmatmul.f32.gmra.mxu0 %v3523
  %v3525 = vpop.f32.mrf.mxu0
  %v3526 = vadd.f32 %v2711, %v3525
  %v3527 = vand.u32 %v151, 4294901760
  %v3528 = vsub.f32 %v151, %v3527
  %3529 = vmatmul.f32.gmra.mxu0 %v3528
  %v3530 = vpop.f32.mrf.mxu0
  %v3531 = vadd.f32 %v2715, %v3530
  %v3532 = vand.u32 %v153, 4294901760
  %v3533 = vsub.f32 %v153, %v3532
  %3534 = vmatmul.f32.gmra.mxu0 %v3533
  %v3535 = vpop.f32.mrf.mxu0
  %v3536 = vadd.f32 %v2719, %v3535
  %v3537 = vand.u32 %v155, 4294901760
  %v3538 = vsub.f32 %v155, %v3537
  %3539 = vmatmul.f32.gmra.mxu0 %v3538
  %v3540 = vpop.f32.mrf.mxu0
  %v3541 = vadd.f32 %v2723, %v3540
  %v3542 = vand.u32 %v157, 4294901760
  %v3543 = vsub.f32 %v157, %v3542
  %3544 = vmatmul.f32.gmra.mxu0 %v3543
  %v3545 = vpop.f32.mrf.mxu0
  %v3546 = vadd.f32 %v2727, %v3545
  %v3547 = vand.u32 %v159, 4294901760
  %v3548 = vsub.f32 %v159, %v3547
  %3549 = vmatmul.f32.gmra.mxu0 %v3548
  %v3550 = vpop.f32.mrf.mxu0
  %v3551 = vadd.f32 %v2731, %v3550
  %v3552 = vand.u32 %v161, 4294901760
  %v3553 = vsub.f32 %v161, %v3552
  %3554 = vmatmul.f32.gmra.mxu0 %v3553
  %v3555 = vpop.f32.mrf.mxu0
  %v3556 = vadd.f32 %v2735, %v3555
  %v3557 = vand.u32 %v163, 4294901760
  %v3558 = vsub.f32 %v163, %v3557
  %3559 = vmatmul.f32.gmra.mxu0 %v3558
  %v3560 = vpop.f32.mrf.mxu0
  %v3561 = vadd.f32 %v2739, %v3560
  %v3562 = vand.u32 %v165, 4294901760
  %v3563 = vsub.f32 %v165, %v3562
  %3564 = vmatmul.f32.gmra.mxu0 %v3563
  %v3565 = vpop.f32.mrf.mxu0
  %v3566 = vadd.f32 %v2743, %v3565
  %v3567 = vand.u32 %v167, 4294901760
  %v3568 = vsub.f32 %v167, %v3567
  %3569 = vmatmul.f32.gmra.mxu0 %v3568
  %v3570 = vpop.f32.mrf.mxu0
  %v3571 = vadd.f32 %v2747, %v3570
  %v3572 = vand.u32 %v169, 4294901760
  %v3573 = vsub.f32 %v169, %v3572
  %3574 = vmatmul.f32.gmra.mxu0 %v3573
  %v3575 = vpop.f32.mrf.mxu0
  %v3576 = vadd.f32 %v2751, %v3575
  %v3577 = vand.u32 %v171, 4294901760
  %v3578 = vsub.f32 %v171, %v3577
  %3579 = vmatmul.f32.gmra.mxu0 %v3578
  %v3580 = vpop.f32.mrf.mxu0
  %v3581 = vadd.f32 %v2755, %v3580
  %v3582 = vand.u32 %v173, 4294901760
  %v3583 = vsub.f32 %v173, %v3582
  %3584 = vmatmul.f32.gmra.mxu0 %v3583
  %v3585 = vpop.f32.mrf.mxu0
  %v3586 = vadd.f32 %v2759, %v3585
  %v3587 = vand.u32 %v175, 4294901760
  %v3588 = vsub.f32 %v175, %v3587
  %3589 = vmatmul.f32.gmra.mxu0 %v3588
  %v3590 = vpop.f32.mrf.mxu0
  %v3591 = vadd.f32 %v2763, %v3590
  %v3592 = vand.u32 %v177, 4294901760
  %v3593 = vsub.f32 %v177, %v3592
  %3594 = vmatmul.f32.gmra.mxu0 %v3593
  %v3595 = vpop.f32.mrf.mxu0
  %v3596 = vadd.f32 %v2767, %v3595
  %v3597 = vand.u32 %v179, 4294901760
  %v3598 = vsub.f32 %v179, %v3597
  %3599 = vmatmul.f32.gmra.mxu0 %v3598
  %v3600 = vpop.f32.mrf.mxu0
  %v3601 = vadd.f32 %v2771, %v3600
  %v3602 = vand.u32 %v181, 4294901760
  %v3603 = vsub.f32 %v181, %v3602
  %3604 = vmatmul.f32.gmra.mxu0 %v3603
  %v3605 = vpop.f32.mrf.mxu0
  %v3606 = vadd.f32 %v2775, %v3605
  %v3607 = vand.u32 %v183, 4294901760
  %v3608 = vsub.f32 %v183, %v3607
  %3609 = vmatmul.f32.gmra.mxu0 %v3608
  %v3610 = vpop.f32.mrf.mxu0
  %v3611 = vadd.f32 %v2779, %v3610
  %v3612 = vand.u32 %v185, 4294901760
  %v3613 = vsub.f32 %v185, %v3612
  %3614 = vmatmul.f32.gmra.mxu0 %v3613
  %v3615 = vpop.f32.mrf.mxu0
  %v3616 = vadd.f32 %v2783, %v3615
  %v3617 = vand.u32 %v187, 4294901760
  %v3618 = vsub.f32 %v187, %v3617
  %3619 = vmatmul.f32.gmra.mxu0 %v3618
  %v3620 = vpop.f32.mrf.mxu0
  %v3621 = vadd.f32 %v2787, %v3620
  %v3622 = vand.u32 %v189, 4294901760
  %v3623 = vsub.f32 %v189, %v3622
  %3624 = vmatmul.f32.gmra.mxu0 %v3623
  %v3625 = vpop.f32.mrf.mxu0
  %v3626 = vadd.f32 %v2791, %v3625
  %v3627 = vand.u32 %v191, 4294901760
  %v3628 = vsub.f32 %v191, %v3627
  %3629 = vmatmul.f32.gmra.mxu0 %v3628
  %v3630 = vpop.f32.mrf.mxu0
  %v3631 = vadd.f32 %v2795, %v3630
  %v3632 = vand.u32 %v193, 4294901760
  %v3633 = vsub.f32 %v193, %v3632
  %3634 = vmatmul.f32.gmra.mxu0 %v3633
  %v3635 = vpop.f32.mrf.mxu0
  %v3636 = vadd.f32 %v2799, %v3635
  %v3637 = vand.u32 %v195, 4294901760
  %v3638 = vsub.f32 %v195, %v3637
  %3639 = vmatmul.f32.gmra.mxu0 %v3638
  %v3640 = vpop.f32.mrf.mxu0
  %v3641 = vadd.f32 %v2803, %v3640
  %v3642 = vand.u32 %v197, 4294901760
  %v3643 = vsub.f32 %v197, %v3642
  %3644 = vmatmul.f32.gmra.mxu0 %v3643
  %v3645 = vpop.f32.mrf.mxu0
  %v3646 = vadd.f32 %v2807, %v3645
  %v3647 = vand.u32 %v199, 4294901760
  %v3648 = vsub.f32 %v199, %v3647
  %3649 = vmatmul.f32.gmra.mxu0 %v3648
  %v3650 = vpop.f32.mrf.mxu0
  %v3651 = vadd.f32 %v2811, %v3650
  %v3652 = vand.u32 %v201, 4294901760
  %v3653 = vsub.f32 %v201, %v3652
  %3654 = vmatmul.f32.gmra.mxu0 %v3653
  %v3655 = vpop.f32.mrf.mxu0
  %v3656 = vadd.f32 %v2815, %v3655
  %v3657 = vand.u32 %v203, 4294901760
  %v3658 = vsub.f32 %v203, %v3657
  %3659 = vmatmul.f32.gmra.mxu0 %v3658
  %v3660 = vpop.f32.mrf.mxu0
  %v3661 = vadd.f32 %v2819, %v3660
  %v3662 = vand.u32 %v205, 4294901760
  %v3663 = vsub.f32 %v205, %v3662
  %3664 = vmatmul.f32.gmra.mxu0 %v3663
  %v3665 = vpop.f32.mrf.mxu0
  %v3666 = vadd.f32 %v2823, %v3665
  %v3667 = vand.u32 %v207, 4294901760
  %v3668 = vsub.f32 %v207, %v3667
  %3669 = vmatmul.f32.gmra.mxu0 %v3668
  %v3670 = vpop.f32.mrf.mxu0
  %v3671 = vadd.f32 %v2827, %v3670
  %v3672 = vand.u32 %v209, 4294901760
  %v3673 = vsub.f32 %v209, %v3672
  %3674 = vmatmul.f32.gmra.mxu0 %v3673
  %v3675 = vpop.f32.mrf.mxu0
  %v3676 = vadd.f32 %v2831, %v3675
  %v3677 = vand.u32 %v211, 4294901760
  %v3678 = vsub.f32 %v211, %v3677
  %3679 = vmatmul.f32.gmra.mxu0 %v3678
  %v3680 = vpop.f32.mrf.mxu0
  %v3681 = vadd.f32 %v2835, %v3680
  %v3682 = vand.u32 %v213, 4294901760
  %v3683 = vsub.f32 %v213, %v3682
  %3684 = vmatmul.f32.gmra.mxu0 %v3683
  %v3685 = vpop.f32.mrf.mxu0
  %v3686 = vadd.f32 %v2839, %v3685
  %v3687 = vand.u32 %v215, 4294901760
  %v3688 = vsub.f32 %v215, %v3687
  %3689 = vmatmul.f32.gmra.mxu0 %v3688
  %v3690 = vpop.f32.mrf.mxu0
  %v3691 = vadd.f32 %v2843, %v3690
  %v3692 = vand.u32 %v217, 4294901760
  %v3693 = vsub.f32 %v217, %v3692
  %3694 = vmatmul.f32.gmra.mxu0 %v3693
  %v3695 = vpop.f32.mrf.mxu0
  %v3696 = vadd.f32 %v2847, %v3695
  %v3697 = vand.u32 %v219, 4294901760
  %v3698 = vsub.f32 %v219, %v3697
  %3699 = vmatmul.f32.gmra.mxu0 %v3698
  %v3700 = vpop.f32.mrf.mxu0
  %v3701 = vadd.f32 %v2851, %v3700
  %v3702 = vand.u32 %v221, 4294901760
  %v3703 = vsub.f32 %v221, %v3702
  %3704 = vmatmul.f32.gmra.mxu0 %v3703
  %v3705 = vpop.f32.mrf.mxu0
  %v3706 = vadd.f32 %v2855, %v3705
  %v3707 = vand.u32 %v223, 4294901760
  %v3708 = vsub.f32 %v223, %v3707
  %3709 = vmatmul.f32.gmra.mxu0 %v3708
  %v3710 = vpop.f32.mrf.mxu0
  %v3711 = vadd.f32 %v2859, %v3710
  %v3712 = vand.u32 %v225, 4294901760
  %v3713 = vsub.f32 %v225, %v3712
  %3714 = vmatmul.f32.gmra.mxu0 %v3713
  %v3715 = vpop.f32.mrf.mxu0
  %v3716 = vadd.f32 %v2863, %v3715
  %v3717 = vand.u32 %v227, 4294901760
  %v3718 = vsub.f32 %v227, %v3717
  %3719 = vmatmul.f32.gmra.mxu0 %v3718
  %v3720 = vpop.f32.mrf.mxu0
  %v3721 = vadd.f32 %v2867, %v3720
  %v3722 = vand.u32 %v229, 4294901760
  %v3723 = vsub.f32 %v229, %v3722
  %3724 = vmatmul.f32.gmra.mxu0 %v3723
  %v3725 = vpop.f32.mrf.mxu0
  %v3726 = vadd.f32 %v2871, %v3725
  %v3727 = vand.u32 %v231, 4294901760
  %v3728 = vsub.f32 %v231, %v3727
  %3729 = vmatmul.f32.gmra.mxu0 %v3728
  %v3730 = vpop.f32.mrf.mxu0
  %v3731 = vadd.f32 %v2875, %v3730
  %v3732 = vand.u32 %v233, 4294901760
  %v3733 = vsub.f32 %v233, %v3732
  %3734 = vmatmul.f32.gmra.mxu0 %v3733
  %v3735 = vpop.f32.mrf.mxu0
  %v3736 = vadd.f32 %v2879, %v3735
  %v3737 = vand.u32 %v235, 4294901760
  %v3738 = vsub.f32 %v235, %v3737
  %3739 = vmatmul.f32.gmra.mxu0 %v3738
  %v3740 = vpop.f32.mrf.mxu0
  %v3741 = vadd.f32 %v2883, %v3740
  %v3742 = vand.u32 %v237, 4294901760
  %v3743 = vsub.f32 %v237, %v3742
  %3744 = vmatmul.f32.gmra.mxu0 %v3743
  %v3745 = vpop.f32.mrf.mxu0
  %v3746 = vadd.f32 %v2887, %v3745
  %v3747 = vand.u32 %v239, 4294901760
  %v3748 = vsub.f32 %v239, %v3747
  %3749 = vmatmul.f32.gmra.mxu0 %v3748
  %v3750 = vpop.f32.mrf.mxu0
  %v3751 = vadd.f32 %v2891, %v3750
  %v3752 = vand.u32 %v241, 4294901760
  %v3753 = vsub.f32 %v241, %v3752
  %3754 = vmatmul.f32.gmra.mxu0 %v3753
  %v3755 = vpop.f32.mrf.mxu0
  %v3756 = vadd.f32 %v2895, %v3755
  %v3757 = vand.u32 %v243, 4294901760
  %v3758 = vsub.f32 %v243, %v3757
  %3759 = vmatmul.f32.gmra.mxu0 %v3758
  %v3760 = vpop.f32.mrf.mxu0
  %v3761 = vadd.f32 %v2899, %v3760
  %v3762 = vand.u32 %v245, 4294901760
  %v3763 = vsub.f32 %v245, %v3762
  %3764 = vmatmul.f32.gmra.mxu0 %v3763
  %v3765 = vpop.f32.mrf.mxu0
  %v3766 = vadd.f32 %v2903, %v3765
  %v3767 = vand.u32 %v247, 4294901760
  %v3768 = vsub.f32 %v247, %v3767
  %3769 = vmatmul.f32.gmra.mxu0 %v3768
  %v3770 = vpop.f32.mrf.mxu0
  %v3771 = vadd.f32 %v2907, %v3770
  %v3772 = vand.u32 %v249, 4294901760
  %v3773 = vsub.f32 %v249, %v3772
  %3774 = vmatmul.f32.gmra.mxu0 %v3773
  %v3775 = vpop.f32.mrf.mxu0
  %v3776 = vadd.f32 %v2911, %v3775
  %v3777 = vand.u32 %v251, 4294901760
  %v3778 = vsub.f32 %v251, %v3777
  %3779 = vmatmul.f32.gmra.mxu0 %v3778
  %v3780 = vpop.f32.mrf.mxu0
  %v3781 = vadd.f32 %v2915, %v3780
  %v3782 = vand.u32 %v253, 4294901760
  %v3783 = vsub.f32 %v253, %v3782
  %3784 = vmatmul.f32.gmra.mxu0 %v3783
  %v3785 = vpop.f32.mrf.mxu0
  %v3786 = vadd.f32 %v2919, %v3785
  %v3787 = vand.u32 %v255, 4294901760
  %v3788 = vsub.f32 %v255, %v3787
  %3789 = vmatmul.f32.gmra.mxu0 %v3788
  %v3790 = vpop.f32.mrf.mxu0
  %v3791 = vadd.f32 %v2923, %v3790
  %v3792 = vand.u32 %v257, 4294901760
  %v3793 = vsub.f32 %v257, %v3792
  %3794 = vmatmul.f32.gmra.mxu0 %v3793
  %v3795 = vpop.f32.mrf.mxu0
  %v3796 = vadd.f32 %v2927, %v3795
  %v3797 = vand.u32 %v259, 4294901760
  %v3798 = vsub.f32 %v259, %v3797
  %3799 = vmatmul.f32.gmra.mxu0 %v3798
  %v3800 = vpop.f32.mrf.mxu0
  %v3801 = vadd.f32 %v2931, %v3800
  %v3802 = vand.u32 %v261, 4294901760
  %v3803 = vsub.f32 %v261, %v3802
  %3804 = vmatmul.f32.gmra.mxu0 %v3803
  %v3805 = vpop.f32.mrf.mxu0
  %v3806 = vadd.f32 %v2935, %v3805
  %v3807 = vand.u32 %v263, 4294901760
  %v3808 = vsub.f32 %v263, %v3807
  %3809 = vmatmul.f32.gmra.mxu0 %v3808
  %v3810 = vpop.f32.mrf.mxu0
  %v3811 = vadd.f32 %v2939, %v3810
  %v3812 = vand.u32 %v265, 4294901760
  %v3813 = vsub.f32 %v265, %v3812
  %3814 = vmatmul.f32.gmra.mxu0 %v3813
  %v3815 = vpop.f32.mrf.mxu0
  %v3816 = vadd.f32 %v2943, %v3815
  %v3817 = vand.u32 %v267, 4294901760
  %v3818 = vsub.f32 %v267, %v3817
  %3819 = vmatmul.f32.gmra.mxu0 %v3818
  %v3820 = vpop.f32.mrf.mxu0
  %v3821 = vadd.f32 %v2947, %v3820
  %v3822 = vand.u32 %v269, 4294901760
  %v3823 = vsub.f32 %v269, %v3822
  %3824 = vmatmul.f32.gmra.mxu0 %v3823
  %v3825 = vpop.f32.mrf.mxu0
  %v3826 = vadd.f32 %v2951, %v3825
  %v3827 = vand.u32 %v271, 4294901760
  %v3828 = vsub.f32 %v271, %v3827
  %3829 = vmatmul.f32.gmra.mxu0 %v3828
  %v3830 = vpop.f32.mrf.mxu0
  %v3831 = vadd.f32 %v2955, %v3830
  %v3832 = vand.u32 %v273, 4294901760
  %v3833 = vsub.f32 %v273, %v3832
  %3834 = vmatmul.f32.gmra.mxu0 %v3833
  %v3835 = vpop.f32.mrf.mxu0
  %v3836 = vadd.f32 %v2959, %v3835
  %v3837 = vand.u32 %v275, 4294901760
  %v3838 = vsub.f32 %v275, %v3837
  %3839 = vmatmul.f32.gmra.mxu0 %v3838
  %v3840 = vpop.f32.mrf.mxu0
  %v3841 = vadd.f32 %v2963, %v3840
  %v3842 = vand.u32 %v277, 4294901760
  %v3843 = vsub.f32 %v277, %v3842
  %3844 = vmatmul.f32.gmra.mxu0 %v3843
  %v3845 = vpop.f32.mrf.mxu0
  %v3846 = vadd.f32 %v2967, %v3845
  %v3847 = vand.u32 %v279, 4294901760
  %v3848 = vsub.f32 %v279, %v3847
  %3849 = vmatmul.f32.gmra.mxu0 %v3848
  %v3850 = vpop.f32.mrf.mxu0
  %v3851 = vadd.f32 %v2971, %v3850
  %v3852 = vand.u32 %v281, 4294901760
  %v3853 = vsub.f32 %v281, %v3852
  %3854 = vmatmul.f32.gmra.mxu0 %v3853
  %v3855 = vpop.f32.mrf.mxu0
  %v3856 = vadd.f32 %v2975, %v3855
  %v3857 = vand.u32 %v283, 4294901760
  %v3858 = vsub.f32 %v283, %v3857
  %3859 = vmatmul.f32.gmra.mxu0 %v3858
  %v3860 = vpop.f32.mrf.mxu0
  %v3861 = vadd.f32 %v2979, %v3860
  %v3862 = vand.u32 %v285, 4294901760
  %v3863 = vsub.f32 %v285, %v3862
  %3864 = vmatmul.f32.gmra.mxu0 %v3863
  %v3865 = vpop.f32.mrf.mxu0
  %v3866 = vadd.f32 %v2983, %v3865
  %v3867 = vand.u32 %v287, 4294901760
  %v3868 = vsub.f32 %v287, %v3867
  %3869 = vmatmul.f32.gmra.mxu0 %v3868
  %v3870 = vpop.f32.mrf.mxu0
  %v3871 = vadd.f32 %v2987, %v3870
  %v3872 = vand.u32 %v289, 4294901760
  %v3873 = vsub.f32 %v289, %v3872
  %3874 = vmatmul.f32.gmra.mxu0 %v3873
  %v3875 = vpop.f32.mrf.mxu0
  %v3876 = vadd.f32 %v2991, %v3875
  %v3877 = vand.u32 %v291, 4294901760
  %v3878 = vsub.f32 %v291, %v3877
  %3879 = vmatmul.f32.gmra.mxu0 %v3878
  %v3880 = vpop.f32.mrf.mxu0
  %v3881 = vadd.f32 %v2995, %v3880
  %v3882 = vand.u32 %v293, 4294901760
  %v3883 = vsub.f32 %v293, %v3882
  %3884 = vmatmul.f32.gmra.mxu0 %v3883
  %v3885 = vpop.f32.mrf.mxu0
  %v3886 = vadd.f32 %v2999, %v3885
  %v3887 = vand.u32 %v295, 4294901760
  %v3888 = vsub.f32 %v295, %v3887
  %3889 = vmatmul.f32.gmra.mxu0 %v3888
  %v3890 = vpop.f32.mrf.mxu0
  %v3891 = vadd.f32 %v3003, %v3890
  %v3892 = vand.u32 %v297, 4294901760
  %v3893 = vsub.f32 %v297, %v3892
  %3894 = vmatmul.f32.gmra.mxu0 %v3893
  %v3895 = vpop.f32.mrf.mxu0
  %v3896 = vadd.f32 %v3007, %v3895
  %v3897 = vand.u32 %v299, 4294901760
  %v3898 = vsub.f32 %v299, %v3897
  %3899 = vmatmul.f32.gmra.mxu0 %v3898
  %v3900 = vpop.f32.mrf.mxu0
  %v3901 = vadd.f32 %v3011, %v3900
  %v3902 = vand.u32 %v301, 4294901760
  %v3903 = vsub.f32 %v301, %v3902
  %3904 = vmatmul.f32.gmra.mxu0 %v3903
  %v3905 = vpop.f32.mrf.mxu0
  %v3906 = vadd.f32 %v3015, %v3905
  %v3907 = vand.u32 %v303, 4294901760
  %v3908 = vsub.f32 %v303, %v3907
  %3909 = vmatmul.f32.gmra.mxu0 %v3908
  %v3910 = vpop.f32.mrf.mxu0
  %v3911 = vadd.f32 %v3019, %v3910
  %v3912 = vand.u32 %v305, 4294901760
  %v3913 = vsub.f32 %v305, %v3912
  %3914 = vmatmul.f32.gmra.mxu0 %v3913
  %v3915 = vpop.f32.mrf.mxu0
  %v3916 = vadd.f32 %v3023, %v3915
  %v3917 = vand.u32 %v307, 4294901760
  %v3918 = vsub.f32 %v307, %v3917
  %3919 = vmatmul.f32.gmra.mxu0 %v3918
  %v3920 = vpop.f32.mrf.mxu0
  %v3921 = vadd.f32 %v3027, %v3920
  %v3922 = vand.u32 %v309, 4294901760
  %v3923 = vsub.f32 %v309, %v3922
  %3924 = vmatmul.f32.gmra.mxu0 %v3923
  %v3925 = vpop.f32.mrf.mxu0
  %v3926 = vadd.f32 %v3031, %v3925
  %v3927 = vand.u32 %v311, 4294901760
  %v3928 = vsub.f32 %v311, %v3927
  %3929 = vmatmul.f32.gmra.mxu0 %v3928
  %v3930 = vpop.f32.mrf.mxu0
  %v3931 = vadd.f32 %v3035, %v3930
  %v3932 = vand.u32 %v313, 4294901760
  %v3933 = vsub.f32 %v313, %v3932
  %3934 = vmatmul.f32.gmra.mxu0 %v3933
  %v3935 = vpop.f32.mrf.mxu0
  %v3936 = vadd.f32 %v3039, %v3935
  %v3937 = vand.u32 %v315, 4294901760
  %v3938 = vsub.f32 %v315, %v3937
  %3939 = vmatmul.f32.gmra.mxu0 %v3938
  %v3940 = vpop.f32.mrf.mxu0
  %v3941 = vadd.f32 %v3043, %v3940
  %v3942 = vand.u32 %v317, 4294901760
  %v3943 = vsub.f32 %v317, %v3942
  %3944 = vmatmul.f32.gmra.mxu0 %v3943
  %v3945 = vpop.f32.mrf.mxu0
  %v3946 = vadd.f32 %v3047, %v3945
  %v3947 = vand.u32 %v319, 4294901760
  %v3948 = vsub.f32 %v319, %v3947
  %3949 = vmatmul.f32.gmra.mxu0 %v3948
  %v3950 = vpop.f32.mrf.mxu0
  %v3951 = vadd.f32 %v3051, %v3950
  %v3952 = vand.u32 %v321, 4294901760
  %v3953 = vsub.f32 %v321, %v3952
  %3954 = vmatmul.f32.gmra.mxu0 %v3953
  %v3955 = vpop.f32.mrf.mxu0
  %v3956 = vadd.f32 %v3055, %v3955
  %v3957 = vand.u32 %v323, 4294901760
  %v3958 = vsub.f32 %v323, %v3957
  %3959 = vmatmul.f32.gmra.mxu0 %v3958
  %v3960 = vpop.f32.mrf.mxu0
  %v3961 = vadd.f32 %v3059, %v3960
  %v3962 = vand.u32 %v325, 4294901760
  %v3963 = vsub.f32 %v325, %v3962
  %3964 = vmatmul.f32.gmra.mxu0 %v3963
  %v3965 = vpop.f32.mrf.mxu0
  %v3966 = vadd.f32 %v3063, %v3965
  %v3967 = vand.u32 %v327, 4294901760
  %v3968 = vsub.f32 %v327, %v3967
  %3969 = vmatmul.f32.gmra.mxu0 %v3968
  %v3970 = vpop.f32.mrf.mxu0
  %v3971 = vadd.f32 %v3067, %v3970
  %v3972 = vand.u32 %v329, 4294901760
  %v3973 = vsub.f32 %v329, %v3972
  %3974 = vmatmul.f32.gmra.mxu0 %v3973
  %v3975 = vpop.f32.mrf.mxu0
  %v3976 = vadd.f32 %v3071, %v3975
  %v3977 = vand.u32 %v331, 4294901760
  %v3978 = vsub.f32 %v331, %v3977
  %3979 = vmatmul.f32.gmra.mxu0 %v3978
  %v3980 = vpop.f32.mrf.mxu0
  %v3981 = vadd.f32 %v3075, %v3980
  %v3982 = vand.u32 %v333, 4294901760
  %v3983 = vsub.f32 %v333, %v3982
  %3984 = vmatmul.f32.gmra.mxu0 %v3983
  %v3985 = vpop.f32.mrf.mxu0
  %v3986 = vadd.f32 %v3079, %v3985
  %v3987 = vand.u32 %v335, 4294901760
  %v3988 = vsub.f32 %v335, %v3987
  %3989 = vmatmul.f32.gmra.mxu0 %v3988
  %v3990 = vpop.f32.mrf.mxu0
  %v3991 = vadd.f32 %v3083, %v3990
  %v3992 = vand.u32 %v337, 4294901760
  %v3993 = vsub.f32 %v337, %v3992
  %3994 = vmatmul.f32.gmra.mxu0 %v3993
  %v3995 = vpop.f32.mrf.mxu0
  %v3996 = vadd.f32 %v3087, %v3995
  %v3997 = vand.u32 %v339, 4294901760
  %v3998 = vsub.f32 %v339, %v3997
  %3999 = vmatmul.f32.gmra.mxu0 %v3998
  %v4000 = vpop.f32.mrf.mxu0
  %v4001 = vadd.f32 %v3091, %v4000
  %v4002 = vand.u32 %v341, 4294901760
  %v4003 = vsub.f32 %v341, %v4002
  %4004 = vmatmul.f32.gmra.mxu0 %v4003
  %v4005 = vpop.f32.mrf.mxu0
  %v4006 = vadd.f32 %v3095, %v4005
  %v4007 = vand.u32 %v343, 4294901760
  %v4008 = vsub.f32 %v343, %v4007
  %4009 = vmatmul.f32.gmra.mxu0 %v4008
  %v4010 = vpop.f32.mrf.mxu0
  %v4011 = vadd.f32 %v3099, %v4010
  %v4012 = vand.u32 %v345, 4294901760
  %v4013 = vsub.f32 %v345, %v4012
  %4014 = vmatmul.f32.gmra.mxu0 %v4013
  %v4015 = vpop.f32.mrf.mxu0
  %v4016 = vadd.f32 %v3103, %v4015
  %v4017 = vand.u32 %v347, 4294901760
  %v4018 = vsub.f32 %v347, %v4017
  %4019 = vmatmul.f32.gmra.mxu0 %v4018
  %v4020 = vpop.f32.mrf.mxu0
  %v4021 = vadd.f32 %v3107, %v4020
  %v4022 = vand.u32 %v349, 4294901760
  %v4023 = vsub.f32 %v349, %v4022
  %4024 = vmatmul.f32.gmra.mxu0 %v4023
  %v4025 = vpop.f32.mrf.mxu0
  %v4026 = vadd.f32 %v3111, %v4025
  %v4027 = vand.u32 %v351, 4294901760
  %v4028 = vsub.f32 %v351, %v4027
  %4029 = vmatmul.f32.gmra.mxu0 %v4028
  %v4030 = vpop.f32.mrf.mxu0
  %v4031 = vadd.f32 %v3115, %v4030
  %v4032 = vand.u32 %v353, 4294901760
  %v4033 = vsub.f32 %v353, %v4032
  %4034 = vmatmul.f32.gmra.mxu0 %v4033
  %v4035 = vpop.f32.mrf.mxu0
  %v4036 = vadd.f32 %v3119, %v4035
  %v4037 = vand.u32 %v355, 4294901760
  %v4038 = vsub.f32 %v355, %v4037
  %4039 = vmatmul.f32.gmra.mxu0 %v4038
  %v4040 = vpop.f32.mrf.mxu0
  %v4041 = vadd.f32 %v3123, %v4040
  %v4042 = vand.u32 %v357, 4294901760
  %v4043 = vsub.f32 %v357, %v4042
  %4044 = vmatmul.f32.gmra.mxu0 %v4043
  %v4045 = vpop.f32.mrf.mxu0
  %v4046 = vadd.f32 %v3127, %v4045
  %4047 = vdwg.mxu0
  %v4048 = vand.u32 %v374, 4294901760
  %4049 = vmatpush.msra.mxu0 %v4048
  %v4050 = vand.u32 %v373, 4294901760
  %4051 = vmatpush.msra.mxu0 %v4050
  %v4052 = vand.u32 %v372, 4294901760
  %4053 = vmatpush.msra.mxu0 %v4052
  %v4054 = vand.u32 %v371, 4294901760
  %4055 = vmatpush.msra.mxu0 %v4054
  %v4056 = vand.u32 %v370, 4294901760
  %4057 = vmatpush.msra.mxu0 %v4056
  %v4058 = vand.u32 %v369, 4294901760
  %4059 = vmatpush.msra.mxu0 %v4058
  %v4060 = vand.u32 %v368, 4294901760
  %4061 = vmatpush.msra.mxu0 %v4060
  %v4062 = vand.u32 %v367, 4294901760
  %4063 = vmatpush.msra.mxu0 %v4062
  %v4064 = vand.u32 %v366, 4294901760
  %4065 = vmatpush.msra.mxu0 %v4064
  %v4066 = vand.u32 %v365, 4294901760
  %4067 = vmatpush.msra.mxu0 %v4066
  %v4068 = vand.u32 %v364, 4294901760
  %4069 = vmatpush.msra.mxu0 %v4068
  %v4070 = vand.u32 %v363, 4294901760
  %4071 = vmatpush.msra.mxu0 %v4070
  %v4072 = vand.u32 %v362, 4294901760
  %4073 = vmatpush.msra.mxu0 %v4072
  %v4074 = vand.u32 %v361, 4294901760
  %4075 = vmatpush.msra.mxu0 %v4074
  %v4076 = vand.u32 %v360, 4294901760
  %4077 = vmatpush.msra.mxu0 %v4076
  %v4078 = vand.u32 %v359, 4294901760
  %4079 = vmatpush.msra.mxu0 %v4078
  %v4080 = vand.u32 %v11, 4294901760
  %v4081 = vsub.f32 %v11, %v4080
  %v4082 = vand.u32 %v4081, 4294901760
  %4083 = vmatmul.f32.gmra.mxu0 %v4082
  %v4084 = vpop.f32.mrf.mxu0
  %v4085 = vadd.f32 %v3181, %v4084
  %v4086 = vand.u32 %v13, 4294901760
  %v4087 = vsub.f32 %v13, %v4086
  %v4088 = vand.u32 %v4087, 4294901760
  %4089 = vmatmul.f32.gmra.mxu0 %v4088
  %v4090 = vpop.f32.mrf.mxu0
  %v4091 = vadd.f32 %v3186, %v4090
  %v4092 = vand.u32 %v15, 4294901760
  %v4093 = vsub.f32 %v15, %v4092
  %v4094 = vand.u32 %v4093, 4294901760
  %4095 = vmatmul.f32.gmra.mxu0 %v4094
  %v4096 = vpop.f32.mrf.mxu0
  %v4097 = vadd.f32 %v3191, %v4096
  %v4098 = vand.u32 %v17, 4294901760
  %v4099 = vsub.f32 %v17, %v4098
  %v4100 = vand.u32 %v4099, 4294901760
  %4101 = vmatmul.f32.gmra.mxu0 %v4100
  %v4102 = vpop.f32.mrf.mxu0
  %v4103 = vadd.f32 %v3196, %v4102
  %v4104 = vand.u32 %v19, 4294901760
  %v4105 = vsub.f32 %v19, %v4104
  %v4106 = vand.u32 %v4105, 4294901760
  %4107 = vmatmul.f32.gmra.mxu0 %v4106
  %v4108 = vpop.f32.mrf.mxu0
  %v4109 = vadd.f32 %v3201, %v4108
  %v4110 = vand.u32 %v21, 4294901760
  %v4111 = vsub.f32 %v21, %v4110
  %v4112 = vand.u32 %v4111, 4294901760
  %4113 = vmatmul.f32.gmra.mxu0 %v4112
  %v4114 = vpop.f32.mrf.mxu0
  %v4115 = vadd.f32 %v3206, %v4114
  %v4116 = vand.u32 %v23, 4294901760
  %v4117 = vsub.f32 %v23, %v4116
  %v4118 = vand.u32 %v4117, 4294901760
  %4119 = vmatmul.f32.gmra.mxu0 %v4118
  %v4120 = vpop.f32.mrf.mxu0
  %v4121 = vadd.f32 %v3211, %v4120
  %v4122 = vand.u32 %v25, 4294901760
  %v4123 = vsub.f32 %v25, %v4122
  %v4124 = vand.u32 %v4123, 4294901760
  %4125 = vmatmul.f32.gmra.mxu0 %v4124
  %v4126 = vpop.f32.mrf.mxu0
  %v4127 = vadd.f32 %v3216, %v4126
  %v4128 = vand.u32 %v27, 4294901760
  %v4129 = vsub.f32 %v27, %v4128
  %v4130 = vand.u32 %v4129, 4294901760
  %4131 = vmatmul.f32.gmra.mxu0 %v4130
  %v4132 = vpop.f32.mrf.mxu0
  %v4133 = vadd.f32 %v3221, %v4132
  %v4134 = vand.u32 %v29, 4294901760
  %v4135 = vsub.f32 %v29, %v4134
  %v4136 = vand.u32 %v4135, 4294901760
  %4137 = vmatmul.f32.gmra.mxu0 %v4136
  %v4138 = vpop.f32.mrf.mxu0
  %v4139 = vadd.f32 %v3226, %v4138
  %v4140 = vand.u32 %v31, 4294901760
  %v4141 = vsub.f32 %v31, %v4140
  %v4142 = vand.u32 %v4141, 4294901760
  %4143 = vmatmul.f32.gmra.mxu0 %v4142
  %v4144 = vpop.f32.mrf.mxu0
  %v4145 = vadd.f32 %v3231, %v4144
  %v4146 = vand.u32 %v33, 4294901760
  %v4147 = vsub.f32 %v33, %v4146
  %v4148 = vand.u32 %v4147, 4294901760
  %4149 = vmatmul.f32.gmra.mxu0 %v4148
  %v4150 = vpop.f32.mrf.mxu0
  %v4151 = vadd.f32 %v3236, %v4150
  %v4152 = vand.u32 %v35, 4294901760
  %v4153 = vsub.f32 %v35, %v4152
  %v4154 = vand.u32 %v4153, 4294901760
  %4155 = vmatmul.f32.gmra.mxu0 %v4154
  %v4156 = vpop.f32.mrf.mxu0
  %v4157 = vadd.f32 %v3241, %v4156
  %v4158 = vand.u32 %v37, 4294901760
  %v4159 = vsub.f32 %v37, %v4158
  %v4160 = vand.u32 %v4159, 4294901760
  %4161 = vmatmul.f32.gmra.mxu0 %v4160
  %v4162 = vpop.f32.mrf.mxu0
  %v4163 = vadd.f32 %v3246, %v4162
  %v4164 = vand.u32 %v39, 4294901760
  %v4165 = vsub.f32 %v39, %v4164
  %v4166 = vand.u32 %v4165, 4294901760
  %4167 = vmatmul.f32.gmra.mxu0 %v4166
  %v4168 = vpop.f32.mrf.mxu0
  %v4169 = vadd.f32 %v3251, %v4168
  %v4170 = vand.u32 %v41, 4294901760
  %v4171 = vsub.f32 %v41, %v4170
  %v4172 = vand.u32 %v4171, 4294901760
  %4173 = vmatmul.f32.gmra.mxu0 %v4172
  %v4174 = vpop.f32.mrf.mxu0
  %v4175 = vadd.f32 %v3256, %v4174
  %v4176 = vand.u32 %v43, 4294901760
  %v4177 = vsub.f32 %v43, %v4176
  %v4178 = vand.u32 %v4177, 4294901760
  %4179 = vmatmul.f32.gmra.mxu0 %v4178
  %v4180 = vpop.f32.mrf.mxu0
  %v4181 = vadd.f32 %v3261, %v4180
  %v4182 = vand.u32 %v45, 4294901760
  %v4183 = vsub.f32 %v45, %v4182
  %v4184 = vand.u32 %v4183, 4294901760
  %4185 = vmatmul.f32.gmra.mxu0 %v4184
  %v4186 = vpop.f32.mrf.mxu0
  %v4187 = vadd.f32 %v3266, %v4186
  %v4188 = vand.u32 %v47, 4294901760
  %v4189 = vsub.f32 %v47, %v4188
  %v4190 = vand.u32 %v4189, 4294901760
  %4191 = vmatmul.f32.gmra.mxu0 %v4190
  %v4192 = vpop.f32.mrf.mxu0
  %v4193 = vadd.f32 %v3271, %v4192
  %v4194 = vand.u32 %v49, 4294901760
  %v4195 = vsub.f32 %v49, %v4194
  %v4196 = vand.u32 %v4195, 4294901760
  %4197 = vmatmul.f32.gmra.mxu0 %v4196
  %v4198 = vpop.f32.mrf.mxu0
  %v4199 = vadd.f32 %v3276, %v4198
  %v4200 = vand.u32 %v51, 4294901760
  %v4201 = vsub.f32 %v51, %v4200
  %v4202 = vand.u32 %v4201, 4294901760
  %4203 = vmatmul.f32.gmra.mxu0 %v4202
  %v4204 = vpop.f32.mrf.mxu0
  %v4205 = vadd.f32 %v3281, %v4204
  %v4206 = vand.u32 %v53, 4294901760
  %v4207 = vsub.f32 %v53, %v4206
  %v4208 = vand.u32 %v4207, 4294901760
  %4209 = vmatmul.f32.gmra.mxu0 %v4208
  %v4210 = vpop.f32.mrf.mxu0
  %v4211 = vadd.f32 %v3286, %v4210
  %v4212 = vand.u32 %v55, 4294901760
  %v4213 = vsub.f32 %v55, %v4212
  %v4214 = vand.u32 %v4213, 4294901760
  %4215 = vmatmul.f32.gmra.mxu0 %v4214
  %v4216 = vpop.f32.mrf.mxu0
  %v4217 = vadd.f32 %v3291, %v4216
  %v4218 = vand.u32 %v57, 4294901760
  %v4219 = vsub.f32 %v57, %v4218
  %v4220 = vand.u32 %v4219, 4294901760
  %4221 = vmatmul.f32.gmra.mxu0 %v4220
  %v4222 = vpop.f32.mrf.mxu0
  %v4223 = vadd.f32 %v3296, %v4222
  %v4224 = vand.u32 %v59, 4294901760
  %v4225 = vsub.f32 %v59, %v4224
  %v4226 = vand.u32 %v4225, 4294901760
  %4227 = vmatmul.f32.gmra.mxu0 %v4226
  %v4228 = vpop.f32.mrf.mxu0
  %v4229 = vadd.f32 %v3301, %v4228
  %v4230 = vand.u32 %v61, 4294901760
  %v4231 = vsub.f32 %v61, %v4230
  %v4232 = vand.u32 %v4231, 4294901760
  %4233 = vmatmul.f32.gmra.mxu0 %v4232
  %v4234 = vpop.f32.mrf.mxu0
  %v4235 = vadd.f32 %v3306, %v4234
  %v4236 = vand.u32 %v63, 4294901760
  %v4237 = vsub.f32 %v63, %v4236
  %v4238 = vand.u32 %v4237, 4294901760
  %4239 = vmatmul.f32.gmra.mxu0 %v4238
  %v4240 = vpop.f32.mrf.mxu0
  %v4241 = vadd.f32 %v3311, %v4240
  %v4242 = vand.u32 %v65, 4294901760
  %v4243 = vsub.f32 %v65, %v4242
  %v4244 = vand.u32 %v4243, 4294901760
  %4245 = vmatmul.f32.gmra.mxu0 %v4244
  %v4246 = vpop.f32.mrf.mxu0
  %v4247 = vadd.f32 %v3316, %v4246
  %v4248 = vand.u32 %v67, 4294901760
  %v4249 = vsub.f32 %v67, %v4248
  %v4250 = vand.u32 %v4249, 4294901760
  %4251 = vmatmul.f32.gmra.mxu0 %v4250
  %v4252 = vpop.f32.mrf.mxu0
  %v4253 = vadd.f32 %v3321, %v4252
  %v4254 = vand.u32 %v69, 4294901760
  %v4255 = vsub.f32 %v69, %v4254
  %v4256 = vand.u32 %v4255, 4294901760
  %4257 = vmatmul.f32.gmra.mxu0 %v4256
  %v4258 = vpop.f32.mrf.mxu0
  %v4259 = vadd.f32 %v3326, %v4258
  %v4260 = vand.u32 %v71, 4294901760
  %v4261 = vsub.f32 %v71, %v4260
  %v4262 = vand.u32 %v4261, 4294901760
  %4263 = vmatmul.f32.gmra.mxu0 %v4262
  %v4264 = vpop.f32.mrf.mxu0
  %v4265 = vadd.f32 %v3331, %v4264
  %v4266 = vand.u32 %v73, 4294901760
  %v4267 = vsub.f32 %v73, %v4266
  %v4268 = vand.u32 %v4267, 4294901760
  %4269 = vmatmul.f32.gmra.mxu0 %v4268
  %v4270 = vpop.f32.mrf.mxu0
  %v4271 = vadd.f32 %v3336, %v4270
  %v4272 = vand.u32 %v75, 4294901760
  %v4273 = vsub.f32 %v75, %v4272
  %v4274 = vand.u32 %v4273, 4294901760
  %4275 = vmatmul.f32.gmra.mxu0 %v4274
  %v4276 = vpop.f32.mrf.mxu0
  %v4277 = vadd.f32 %v3341, %v4276
  %v4278 = vand.u32 %v77, 4294901760
  %v4279 = vsub.f32 %v77, %v4278
  %v4280 = vand.u32 %v4279, 4294901760
  %4281 = vmatmul.f32.gmra.mxu0 %v4280
  %v4282 = vpop.f32.mrf.mxu0
  %v4283 = vadd.f32 %v3346, %v4282
  %v4284 = vand.u32 %v79, 4294901760
  %v4285 = vsub.f32 %v79, %v4284
  %v4286 = vand.u32 %v4285, 4294901760
  %4287 = vmatmul.f32.gmra.mxu0 %v4286
  %v4288 = vpop.f32.mrf.mxu0
  %v4289 = vadd.f32 %v3351, %v4288
  %v4290 = vand.u32 %v81, 4294901760
  %v4291 = vsub.f32 %v81, %v4290
  %v4292 = vand.u32 %v4291, 4294901760
  %4293 = vmatmul.f32.gmra.mxu0 %v4292
  %v4294 = vpop.f32.mrf.mxu0
  %v4295 = vadd.f32 %v3356, %v4294
  %v4296 = vand.u32 %v83, 4294901760
  %v4297 = vsub.f32 %v83, %v4296
  %v4298 = vand.u32 %v4297, 4294901760
  %4299 = vmatmul.f32.gmra.mxu0 %v4298
  %v4300 = vpop.f32.mrf.mxu0
  %v4301 = vadd.f32 %v3361, %v4300
  %v4302 = vand.u32 %v85, 4294901760
  %v4303 = vsub.f32 %v85, %v4302
  %v4304 = vand.u32 %v4303, 4294901760
  %4305 = vmatmul.f32.gmra.mxu0 %v4304
  %v4306 = vpop.f32.mrf.mxu0
  %v4307 = vadd.f32 %v3366, %v4306
  %v4308 = vand.u32 %v87, 4294901760
  %v4309 = vsub.f32 %v87, %v4308
  %v4310 = vand.u32 %v4309, 4294901760
  %4311 = vmatmul.f32.gmra.mxu0 %v4310
  %v4312 = vpop.f32.mrf.mxu0
  %v4313 = vadd.f32 %v3371, %v4312
  %v4314 = vand.u32 %v89, 4294901760
  %v4315 = vsub.f32 %v89, %v4314
  %v4316 = vand.u32 %v4315, 4294901760
  %4317 = vmatmul.f32.gmra.mxu0 %v4316
  %v4318 = vpop.f32.mrf.mxu0
  %v4319 = vadd.f32 %v3376, %v4318
  %v4320 = vand.u32 %v91, 4294901760
  %v4321 = vsub.f32 %v91, %v4320
  %v4322 = vand.u32 %v4321, 4294901760
  %4323 = vmatmul.f32.gmra.mxu0 %v4322
  %v4324 = vpop.f32.mrf.mxu0
  %v4325 = vadd.f32 %v3381, %v4324
  %v4326 = vand.u32 %v93, 4294901760
  %v4327 = vsub.f32 %v93, %v4326
  %v4328 = vand.u32 %v4327, 4294901760
  %4329 = vmatmul.f32.gmra.mxu0 %v4328
  %v4330 = vpop.f32.mrf.mxu0
  %v4331 = vadd.f32 %v3386, %v4330
  %v4332 = vand.u32 %v95, 4294901760
  %v4333 = vsub.f32 %v95, %v4332
  %v4334 = vand.u32 %v4333, 4294901760
  %4335 = vmatmul.f32.gmra.mxu0 %v4334
  %v4336 = vpop.f32.mrf.mxu0
  %v4337 = vadd.f32 %v3391, %v4336
  %v4338 = vand.u32 %v97, 4294901760
  %v4339 = vsub.f32 %v97, %v4338
  %v4340 = vand.u32 %v4339, 4294901760
  %4341 = vmatmul.f32.gmra.mxu0 %v4340
  %v4342 = vpop.f32.mrf.mxu0
  %v4343 = vadd.f32 %v3396, %v4342
  %v4344 = vand.u32 %v99, 4294901760
  %v4345 = vsub.f32 %v99, %v4344
  %v4346 = vand.u32 %v4345, 4294901760
  %4347 = vmatmul.f32.gmra.mxu0 %v4346
  %v4348 = vpop.f32.mrf.mxu0
  %v4349 = vadd.f32 %v3401, %v4348
  %v4350 = vand.u32 %v101, 4294901760
  %v4351 = vsub.f32 %v101, %v4350
  %v4352 = vand.u32 %v4351, 4294901760
  %4353 = vmatmul.f32.gmra.mxu0 %v4352
  %v4354 = vpop.f32.mrf.mxu0
  %v4355 = vadd.f32 %v3406, %v4354
  %v4356 = vand.u32 %v103, 4294901760
  %v4357 = vsub.f32 %v103, %v4356
  %v4358 = vand.u32 %v4357, 4294901760
  %4359 = vmatmul.f32.gmra.mxu0 %v4358
  %v4360 = vpop.f32.mrf.mxu0
  %v4361 = vadd.f32 %v3411, %v4360
  %v4362 = vand.u32 %v105, 4294901760
  %v4363 = vsub.f32 %v105, %v4362
  %v4364 = vand.u32 %v4363, 4294901760
  %4365 = vmatmul.f32.gmra.mxu0 %v4364
  %v4366 = vpop.f32.mrf.mxu0
  %v4367 = vadd.f32 %v3416, %v4366
  %v4368 = vand.u32 %v107, 4294901760
  %v4369 = vsub.f32 %v107, %v4368
  %v4370 = vand.u32 %v4369, 4294901760
  %4371 = vmatmul.f32.gmra.mxu0 %v4370
  %v4372 = vpop.f32.mrf.mxu0
  %v4373 = vadd.f32 %v3421, %v4372
  %v4374 = vand.u32 %v109, 4294901760
  %v4375 = vsub.f32 %v109, %v4374
  %v4376 = vand.u32 %v4375, 4294901760
  %4377 = vmatmul.f32.gmra.mxu0 %v4376
  %v4378 = vpop.f32.mrf.mxu0
  %v4379 = vadd.f32 %v3426, %v4378
  %v4380 = vand.u32 %v111, 4294901760
  %v4381 = vsub.f32 %v111, %v4380
  %v4382 = vand.u32 %v4381, 4294901760
  %4383 = vmatmul.f32.gmra.mxu0 %v4382
  %v4384 = vpop.f32.mrf.mxu0
  %v4385 = vadd.f32 %v3431, %v4384
  %v4386 = vand.u32 %v113, 4294901760
  %v4387 = vsub.f32 %v113, %v4386
  %v4388 = vand.u32 %v4387, 4294901760
  %4389 = vmatmul.f32.gmra.mxu0 %v4388
  %v4390 = vpop.f32.mrf.mxu0
  %v4391 = vadd.f32 %v3436, %v4390
  %v4392 = vand.u32 %v115, 4294901760
  %v4393 = vsub.f32 %v115, %v4392
  %v4394 = vand.u32 %v4393, 4294901760
  %4395 = vmatmul.f32.gmra.mxu0 %v4394
  %v4396 = vpop.f32.mrf.mxu0
  %v4397 = vadd.f32 %v3441, %v4396
  %v4398 = vand.u32 %v117, 4294901760
  %v4399 = vsub.f32 %v117, %v4398
  %v4400 = vand.u32 %v4399, 4294901760
  %4401 = vmatmul.f32.gmra.mxu0 %v4400
  %v4402 = vpop.f32.mrf.mxu0
  %v4403 = vadd.f32 %v3446, %v4402
  %v4404 = vand.u32 %v119, 4294901760
  %v4405 = vsub.f32 %v119, %v4404
  %v4406 = vand.u32 %v4405, 4294901760
  %4407 = vmatmul.f32.gmra.mxu0 %v4406
  %v4408 = vpop.f32.mrf.mxu0
  %v4409 = vadd.f32 %v3451, %v4408
  %v4410 = vand.u32 %v121, 4294901760
  %v4411 = vsub.f32 %v121, %v4410
  %v4412 = vand.u32 %v4411, 4294901760
  %4413 = vmatmul.f32.gmra.mxu0 %v4412
  %v4414 = vpop.f32.mrf.mxu0
  %v4415 = vadd.f32 %v3456, %v4414
  %v4416 = vand.u32 %v123, 4294901760
  %v4417 = vsub.f32 %v123, %v4416
  %v4418 = vand.u32 %v4417, 4294901760
  %4419 = vmatmul.f32.gmra.mxu0 %v4418
  %v4420 = vpop.f32.mrf.mxu0
  %v4421 = vadd.f32 %v3461, %v4420
  %v4422 = vand.u32 %v125, 4294901760
  %v4423 = vsub.f32 %v125, %v4422
  %v4424 = vand.u32 %v4423, 4294901760
  %4425 = vmatmul.f32.gmra.mxu0 %v4424
  %v4426 = vpop.f32.mrf.mxu0
  %v4427 = vadd.f32 %v3466, %v4426
  %v4428 = vand.u32 %v127, 4294901760
  %v4429 = vsub.f32 %v127, %v4428
  %v4430 = vand.u32 %v4429, 4294901760
  %4431 = vmatmul.f32.gmra.mxu0 %v4430
  %v4432 = vpop.f32.mrf.mxu0
  %v4433 = vadd.f32 %v3471, %v4432
  %v4434 = vand.u32 %v129, 4294901760
  %v4435 = vsub.f32 %v129, %v4434
  %v4436 = vand.u32 %v4435, 4294901760
  %4437 = vmatmul.f32.gmra.mxu0 %v4436
  %v4438 = vpop.f32.mrf.mxu0
  %v4439 = vadd.f32 %v3476, %v4438
  %v4440 = vand.u32 %v131, 4294901760
  %v4441 = vsub.f32 %v131, %v4440
  %v4442 = vand.u32 %v4441, 4294901760
  %4443 = vmatmul.f32.gmra.mxu0 %v4442
  %v4444 = vpop.f32.mrf.mxu0
  %v4445 = vadd.f32 %v3481, %v4444
  %v4446 = vand.u32 %v133, 4294901760
  %v4447 = vsub.f32 %v133, %v4446
  %v4448 = vand.u32 %v4447, 4294901760
  %4449 = vmatmul.f32.gmra.mxu0 %v4448
  %v4450 = vpop.f32.mrf.mxu0
  %v4451 = vadd.f32 %v3486, %v4450
  %v4452 = vand.u32 %v135, 4294901760
  %v4453 = vsub.f32 %v135, %v4452
  %v4454 = vand.u32 %v4453, 4294901760
  %4455 = vmatmul.f32.gmra.mxu0 %v4454
  %v4456 = vpop.f32.mrf.mxu0
  %v4457 = vadd.f32 %v3491, %v4456
  %v4458 = vand.u32 %v137, 4294901760
  %v4459 = vsub.f32 %v137, %v4458
  %v4460 = vand.u32 %v4459, 4294901760
  %4461 = vmatmul.f32.gmra.mxu0 %v4460
  %v4462 = vpop.f32.mrf.mxu0
  %v4463 = vadd.f32 %v3496, %v4462
  %v4464 = vand.u32 %v139, 4294901760
  %v4465 = vsub.f32 %v139, %v4464
  %v4466 = vand.u32 %v4465, 4294901760
  %4467 = vmatmul.f32.gmra.mxu0 %v4466
  %v4468 = vpop.f32.mrf.mxu0
  %v4469 = vadd.f32 %v3501, %v4468
  %v4470 = vand.u32 %v141, 4294901760
  %v4471 = vsub.f32 %v141, %v4470
  %v4472 = vand.u32 %v4471, 4294901760
  %4473 = vmatmul.f32.gmra.mxu0 %v4472
  %v4474 = vpop.f32.mrf.mxu0
  %v4475 = vadd.f32 %v3506, %v4474
  %v4476 = vand.u32 %v143, 4294901760
  %v4477 = vsub.f32 %v143, %v4476
  %v4478 = vand.u32 %v4477, 4294901760
  %4479 = vmatmul.f32.gmra.mxu0 %v4478
  %v4480 = vpop.f32.mrf.mxu0
  %v4481 = vadd.f32 %v3511, %v4480
  %v4482 = vand.u32 %v145, 4294901760
  %v4483 = vsub.f32 %v145, %v4482
  %v4484 = vand.u32 %v4483, 4294901760
  %4485 = vmatmul.f32.gmra.mxu0 %v4484
  %v4486 = vpop.f32.mrf.mxu0
  %v4487 = vadd.f32 %v3516, %v4486
  %v4488 = vand.u32 %v147, 4294901760
  %v4489 = vsub.f32 %v147, %v4488
  %v4490 = vand.u32 %v4489, 4294901760
  %4491 = vmatmul.f32.gmra.mxu0 %v4490
  %v4492 = vpop.f32.mrf.mxu0
  %v4493 = vadd.f32 %v3521, %v4492
  %v4494 = vand.u32 %v149, 4294901760
  %v4495 = vsub.f32 %v149, %v4494
  %v4496 = vand.u32 %v4495, 4294901760
  %4497 = vmatmul.f32.gmra.mxu0 %v4496
  %v4498 = vpop.f32.mrf.mxu0
  %v4499 = vadd.f32 %v3526, %v4498
  %v4500 = vand.u32 %v151, 4294901760
  %v4501 = vsub.f32 %v151, %v4500
  %v4502 = vand.u32 %v4501, 4294901760
  %4503 = vmatmul.f32.gmra.mxu0 %v4502
  %v4504 = vpop.f32.mrf.mxu0
  %v4505 = vadd.f32 %v3531, %v4504
  %v4506 = vand.u32 %v153, 4294901760
  %v4507 = vsub.f32 %v153, %v4506
  %v4508 = vand.u32 %v4507, 4294901760
  %4509 = vmatmul.f32.gmra.mxu0 %v4508
  %v4510 = vpop.f32.mrf.mxu0
  %v4511 = vadd.f32 %v3536, %v4510
  %v4512 = vand.u32 %v155, 4294901760
  %v4513 = vsub.f32 %v155, %v4512
  %v4514 = vand.u32 %v4513, 4294901760
  %4515 = vmatmul.f32.gmra.mxu0 %v4514
  %v4516 = vpop.f32.mrf.mxu0
  %v4517 = vadd.f32 %v3541, %v4516
  %v4518 = vand.u32 %v157, 4294901760
  %v4519 = vsub.f32 %v157, %v4518
  %v4520 = vand.u32 %v4519, 4294901760
  %4521 = vmatmul.f32.gmra.mxu0 %v4520
  %v4522 = vpop.f32.mrf.mxu0
  %v4523 = vadd.f32 %v3546, %v4522
  %v4524 = vand.u32 %v159, 4294901760
  %v4525 = vsub.f32 %v159, %v4524
  %v4526 = vand.u32 %v4525, 4294901760
  %4527 = vmatmul.f32.gmra.mxu0 %v4526
  %v4528 = vpop.f32.mrf.mxu0
  %v4529 = vadd.f32 %v3551, %v4528
  %v4530 = vand.u32 %v161, 4294901760
  %v4531 = vsub.f32 %v161, %v4530
  %v4532 = vand.u32 %v4531, 4294901760
  %4533 = vmatmul.f32.gmra.mxu0 %v4532
  %v4534 = vpop.f32.mrf.mxu0
  %v4535 = vadd.f32 %v3556, %v4534
  %v4536 = vand.u32 %v163, 4294901760
  %v4537 = vsub.f32 %v163, %v4536
  %v4538 = vand.u32 %v4537, 4294901760
  %4539 = vmatmul.f32.gmra.mxu0 %v4538
  %v4540 = vpop.f32.mrf.mxu0
  %v4541 = vadd.f32 %v3561, %v4540
  %v4542 = vand.u32 %v165, 4294901760
  %v4543 = vsub.f32 %v165, %v4542
  %v4544 = vand.u32 %v4543, 4294901760
  %4545 = vmatmul.f32.gmra.mxu0 %v4544
  %v4546 = vpop.f32.mrf.mxu0
  %v4547 = vadd.f32 %v3566, %v4546
  %v4548 = vand.u32 %v167, 4294901760
  %v4549 = vsub.f32 %v167, %v4548
  %v4550 = vand.u32 %v4549, 4294901760
  %4551 = vmatmul.f32.gmra.mxu0 %v4550
  %v4552 = vpop.f32.mrf.mxu0
  %v4553 = vadd.f32 %v3571, %v4552
  %v4554 = vand.u32 %v169, 4294901760
  %v4555 = vsub.f32 %v169, %v4554
  %v4556 = vand.u32 %v4555, 4294901760
  %4557 = vmatmul.f32.gmra.mxu0 %v4556
  %v4558 = vpop.f32.mrf.mxu0
  %v4559 = vadd.f32 %v3576, %v4558
  %v4560 = vand.u32 %v171, 4294901760
  %v4561 = vsub.f32 %v171, %v4560
  %v4562 = vand.u32 %v4561, 4294901760
  %4563 = vmatmul.f32.gmra.mxu0 %v4562
  %v4564 = vpop.f32.mrf.mxu0
  %v4565 = vadd.f32 %v3581, %v4564
  %v4566 = vand.u32 %v173, 4294901760
  %v4567 = vsub.f32 %v173, %v4566
  %v4568 = vand.u32 %v4567, 4294901760
  %4569 = vmatmul.f32.gmra.mxu0 %v4568
  %v4570 = vpop.f32.mrf.mxu0
  %v4571 = vadd.f32 %v3586, %v4570
  %v4572 = vand.u32 %v175, 4294901760
  %v4573 = vsub.f32 %v175, %v4572
  %v4574 = vand.u32 %v4573, 4294901760
  %4575 = vmatmul.f32.gmra.mxu0 %v4574
  %v4576 = vpop.f32.mrf.mxu0
  %v4577 = vadd.f32 %v3591, %v4576
  %v4578 = vand.u32 %v177, 4294901760
  %v4579 = vsub.f32 %v177, %v4578
  %v4580 = vand.u32 %v4579, 4294901760
  %4581 = vmatmul.f32.gmra.mxu0 %v4580
  %v4582 = vpop.f32.mrf.mxu0
  %v4583 = vadd.f32 %v3596, %v4582
  %v4584 = vand.u32 %v179, 4294901760
  %v4585 = vsub.f32 %v179, %v4584
  %v4586 = vand.u32 %v4585, 4294901760
  %4587 = vmatmul.f32.gmra.mxu0 %v4586
  %v4588 = vpop.f32.mrf.mxu0
  %v4589 = vadd.f32 %v3601, %v4588
  %v4590 = vand.u32 %v181, 4294901760
  %v4591 = vsub.f32 %v181, %v4590
  %v4592 = vand.u32 %v4591, 4294901760
  %4593 = vmatmul.f32.gmra.mxu0 %v4592
  %v4594 = vpop.f32.mrf.mxu0
  %v4595 = vadd.f32 %v3606, %v4594
  %v4596 = vand.u32 %v183, 4294901760
  %v4597 = vsub.f32 %v183, %v4596
  %v4598 = vand.u32 %v4597, 4294901760
  %4599 = vmatmul.f32.gmra.mxu0 %v4598
  %v4600 = vpop.f32.mrf.mxu0
  %v4601 = vadd.f32 %v3611, %v4600
  %v4602 = vand.u32 %v185, 4294901760
  %v4603 = vsub.f32 %v185, %v4602
  %v4604 = vand.u32 %v4603, 4294901760
  %4605 = vmatmul.f32.gmra.mxu0 %v4604
  %v4606 = vpop.f32.mrf.mxu0
  %v4607 = vadd.f32 %v3616, %v4606
  %v4608 = vand.u32 %v187, 4294901760
  %v4609 = vsub.f32 %v187, %v4608
  %v4610 = vand.u32 %v4609, 4294901760
  %4611 = vmatmul.f32.gmra.mxu0 %v4610
  %v4612 = vpop.f32.mrf.mxu0
  %v4613 = vadd.f32 %v3621, %v4612
  %v4614 = vand.u32 %v189, 4294901760
  %v4615 = vsub.f32 %v189, %v4614
  %v4616 = vand.u32 %v4615, 4294901760
  %4617 = vmatmul.f32.gmra.mxu0 %v4616
  %v4618 = vpop.f32.mrf.mxu0
  %v4619 = vadd.f32 %v3626, %v4618
  %v4620 = vand.u32 %v191, 4294901760
  %v4621 = vsub.f32 %v191, %v4620
  %v4622 = vand.u32 %v4621, 4294901760
  %4623 = vmatmul.f32.gmra.mxu0 %v4622
  %v4624 = vpop.f32.mrf.mxu0
  %v4625 = vadd.f32 %v3631, %v4624
  %v4626 = vand.u32 %v193, 4294901760
  %v4627 = vsub.f32 %v193, %v4626
  %v4628 = vand.u32 %v4627, 4294901760
  %4629 = vmatmul.f32.gmra.mxu0 %v4628
  %v4630 = vpop.f32.mrf.mxu0
  %v4631 = vadd.f32 %v3636, %v4630
  %v4632 = vand.u32 %v195, 4294901760
  %v4633 = vsub.f32 %v195, %v4632
  %v4634 = vand.u32 %v4633, 4294901760
  %4635 = vmatmul.f32.gmra.mxu0 %v4634
  %v4636 = vpop.f32.mrf.mxu0
  %v4637 = vadd.f32 %v3641, %v4636
  %v4638 = vand.u32 %v197, 4294901760
  %v4639 = vsub.f32 %v197, %v4638
  %v4640 = vand.u32 %v4639, 4294901760
  %4641 = vmatmul.f32.gmra.mxu0 %v4640
  %v4642 = vpop.f32.mrf.mxu0
  %v4643 = vadd.f32 %v3646, %v4642
  %v4644 = vand.u32 %v199, 4294901760
  %v4645 = vsub.f32 %v199, %v4644
  %v4646 = vand.u32 %v4645, 4294901760
  %4647 = vmatmul.f32.gmra.mxu0 %v4646
  %v4648 = vpop.f32.mrf.mxu0
  %v4649 = vadd.f32 %v3651, %v4648
  %v4650 = vand.u32 %v201, 4294901760
  %v4651 = vsub.f32 %v201, %v4650
  %v4652 = vand.u32 %v4651, 4294901760
  %4653 = vmatmul.f32.gmra.mxu0 %v4652
  %v4654 = vpop.f32.mrf.mxu0
  %v4655 = vadd.f32 %v3656, %v4654
  %v4656 = vand.u32 %v203, 4294901760
  %v4657 = vsub.f32 %v203, %v4656
  %v4658 = vand.u32 %v4657, 4294901760
  %4659 = vmatmul.f32.gmra.mxu0 %v4658
  %v4660 = vpop.f32.mrf.mxu0
  %v4661 = vadd.f32 %v3661, %v4660
  %v4662 = vand.u32 %v205, 4294901760
  %v4663 = vsub.f32 %v205, %v4662
  %v4664 = vand.u32 %v4663, 4294901760
  %4665 = vmatmul.f32.gmra.mxu0 %v4664
  %v4666 = vpop.f32.mrf.mxu0
  %v4667 = vadd.f32 %v3666, %v4666
  %v4668 = vand.u32 %v207, 4294901760
  %v4669 = vsub.f32 %v207, %v4668
  %v4670 = vand.u32 %v4669, 4294901760
  %4671 = vmatmul.f32.gmra.mxu0 %v4670
  %v4672 = vpop.f32.mrf.mxu0
  %v4673 = vadd.f32 %v3671, %v4672
  %v4674 = vand.u32 %v209, 4294901760
  %v4675 = vsub.f32 %v209, %v4674
  %v4676 = vand.u32 %v4675, 4294901760
  %4677 = vmatmul.f32.gmra.mxu0 %v4676
  %v4678 = vpop.f32.mrf.mxu0
  %v4679 = vadd.f32 %v3676, %v4678
  %v4680 = vand.u32 %v211, 4294901760
  %v4681 = vsub.f32 %v211, %v4680
  %v4682 = vand.u32 %v4681, 4294901760
  %4683 = vmatmul.f32.gmra.mxu0 %v4682
  %v4684 = vpop.f32.mrf.mxu0
  %v4685 = vadd.f32 %v3681, %v4684
  %v4686 = vand.u32 %v213, 4294901760
  %v4687 = vsub.f32 %v213, %v4686
  %v4688 = vand.u32 %v4687, 4294901760
  %4689 = vmatmul.f32.gmra.mxu0 %v4688
  %v4690 = vpop.f32.mrf.mxu0
  %v4691 = vadd.f32 %v3686, %v4690
  %v4692 = vand.u32 %v215, 4294901760
  %v4693 = vsub.f32 %v215, %v4692
  %v4694 = vand.u32 %v4693, 4294901760
  %4695 = vmatmul.f32.gmra.mxu0 %v4694
  %v4696 = vpop.f32.mrf.mxu0
  %v4697 = vadd.f32 %v3691, %v4696
  %v4698 = vand.u32 %v217, 4294901760
  %v4699 = vsub.f32 %v217, %v4698
  %v4700 = vand.u32 %v4699, 4294901760
  %4701 = vmatmul.f32.gmra.mxu0 %v4700
  %v4702 = vpop.f32.mrf.mxu0
  %v4703 = vadd.f32 %v3696, %v4702
  %v4704 = vand.u32 %v219, 4294901760
  %v4705 = vsub.f32 %v219, %v4704
  %v4706 = vand.u32 %v4705, 4294901760
  %4707 = vmatmul.f32.gmra.mxu0 %v4706
  %v4708 = vpop.f32.mrf.mxu0
  %v4709 = vadd.f32 %v3701, %v4708
  %v4710 = vand.u32 %v221, 4294901760
  %v4711 = vsub.f32 %v221, %v4710
  %v4712 = vand.u32 %v4711, 4294901760
  %4713 = vmatmul.f32.gmra.mxu0 %v4712
  %v4714 = vpop.f32.mrf.mxu0
  %v4715 = vadd.f32 %v3706, %v4714
  %v4716 = vand.u32 %v223, 4294901760
  %v4717 = vsub.f32 %v223, %v4716
  %v4718 = vand.u32 %v4717, 4294901760
  %4719 = vmatmul.f32.gmra.mxu0 %v4718
  %v4720 = vpop.f32.mrf.mxu0
  %v4721 = vadd.f32 %v3711, %v4720
  %v4722 = vand.u32 %v225, 4294901760
  %v4723 = vsub.f32 %v225, %v4722
  %v4724 = vand.u32 %v4723, 4294901760
  %4725 = vmatmul.f32.gmra.mxu0 %v4724
  %v4726 = vpop.f32.mrf.mxu0
  %v4727 = vadd.f32 %v3716, %v4726
  %v4728 = vand.u32 %v227, 4294901760
  %v4729 = vsub.f32 %v227, %v4728
  %v4730 = vand.u32 %v4729, 4294901760
  %4731 = vmatmul.f32.gmra.mxu0 %v4730
  %v4732 = vpop.f32.mrf.mxu0
  %v4733 = vadd.f32 %v3721, %v4732
  %v4734 = vand.u32 %v229, 4294901760
  %v4735 = vsub.f32 %v229, %v4734
  %v4736 = vand.u32 %v4735, 4294901760
  %4737 = vmatmul.f32.gmra.mxu0 %v4736
  %v4738 = vpop.f32.mrf.mxu0
  %v4739 = vadd.f32 %v3726, %v4738
  %v4740 = vand.u32 %v231, 4294901760
  %v4741 = vsub.f32 %v231, %v4740
  %v4742 = vand.u32 %v4741, 4294901760
  %4743 = vmatmul.f32.gmra.mxu0 %v4742
  %v4744 = vpop.f32.mrf.mxu0
  %v4745 = vadd.f32 %v3731, %v4744
  %v4746 = vand.u32 %v233, 4294901760
  %v4747 = vsub.f32 %v233, %v4746
  %v4748 = vand.u32 %v4747, 4294901760
  %4749 = vmatmul.f32.gmra.mxu0 %v4748
  %v4750 = vpop.f32.mrf.mxu0
  %v4751 = vadd.f32 %v3736, %v4750
  %v4752 = vand.u32 %v235, 4294901760
  %v4753 = vsub.f32 %v235, %v4752
  %v4754 = vand.u32 %v4753, 4294901760
  %4755 = vmatmul.f32.gmra.mxu0 %v4754
  %v4756 = vpop.f32.mrf.mxu0
  %v4757 = vadd.f32 %v3741, %v4756
  %v4758 = vand.u32 %v237, 4294901760
  %v4759 = vsub.f32 %v237, %v4758
  %v4760 = vand.u32 %v4759, 4294901760
  %4761 = vmatmul.f32.gmra.mxu0 %v4760
  %v4762 = vpop.f32.mrf.mxu0
  %v4763 = vadd.f32 %v3746, %v4762
  %v4764 = vand.u32 %v239, 4294901760
  %v4765 = vsub.f32 %v239, %v4764
  %v4766 = vand.u32 %v4765, 4294901760
  %4767 = vmatmul.f32.gmra.mxu0 %v4766
  %v4768 = vpop.f32.mrf.mxu0
  %v4769 = vadd.f32 %v3751, %v4768
  %v4770 = vand.u32 %v241, 4294901760
  %v4771 = vsub.f32 %v241, %v4770
  %v4772 = vand.u32 %v4771, 4294901760
  %4773 = vmatmul.f32.gmra.mxu0 %v4772
  %v4774 = vpop.f32.mrf.mxu0
  %v4775 = vadd.f32 %v3756, %v4774
  %v4776 = vand.u32 %v243, 4294901760
  %v4777 = vsub.f32 %v243, %v4776
  %v4778 = vand.u32 %v4777, 4294901760
  %4779 = vmatmul.f32.gmra.mxu0 %v4778
  %v4780 = vpop.f32.mrf.mxu0
  %v4781 = vadd.f32 %v3761, %v4780
  %v4782 = vand.u32 %v245, 4294901760
  %v4783 = vsub.f32 %v245, %v4782
  %v4784 = vand.u32 %v4783, 4294901760
  %4785 = vmatmul.f32.gmra.mxu0 %v4784
  %v4786 = vpop.f32.mrf.mxu0
  %v4787 = vadd.f32 %v3766, %v4786
  %v4788 = vand.u32 %v247, 4294901760
  %v4789 = vsub.f32 %v247, %v4788
  %v4790 = vand.u32 %v4789, 4294901760
  %4791 = vmatmul.f32.gmra.mxu0 %v4790
  %v4792 = vpop.f32.mrf.mxu0
  %v4793 = vadd.f32 %v3771, %v4792
  %v4794 = vand.u32 %v249, 4294901760
  %v4795 = vsub.f32 %v249, %v4794
  %v4796 = vand.u32 %v4795, 4294901760
  %4797 = vmatmul.f32.gmra.mxu0 %v4796
  %v4798 = vpop.f32.mrf.mxu0
  %v4799 = vadd.f32 %v3776, %v4798
  %v4800 = vand.u32 %v251, 4294901760
  %v4801 = vsub.f32 %v251, %v4800
  %v4802 = vand.u32 %v4801, 4294901760
  %4803 = vmatmul.f32.gmra.mxu0 %v4802
  %v4804 = vpop.f32.mrf.mxu0
  %v4805 = vadd.f32 %v3781, %v4804
  %v4806 = vand.u32 %v253, 4294901760
  %v4807 = vsub.f32 %v253, %v4806
  %v4808 = vand.u32 %v4807, 4294901760
  %4809 = vmatmul.f32.gmra.mxu0 %v4808
  %v4810 = vpop.f32.mrf.mxu0
  %v4811 = vadd.f32 %v3786, %v4810
  %v4812 = vand.u32 %v255, 4294901760
  %v4813 = vsub.f32 %v255, %v4812
  %v4814 = vand.u32 %v4813, 4294901760
  %4815 = vmatmul.f32.gmra.mxu0 %v4814
  %v4816 = vpop.f32.mrf.mxu0
  %v4817 = vadd.f32 %v3791, %v4816
  %v4818 = vand.u32 %v257, 4294901760
  %v4819 = vsub.f32 %v257, %v4818
  %v4820 = vand.u32 %v4819, 4294901760
  %4821 = vmatmul.f32.gmra.mxu0 %v4820
  %v4822 = vpop.f32.mrf.mxu0
  %v4823 = vadd.f32 %v3796, %v4822
  %v4824 = vand.u32 %v259, 4294901760
  %v4825 = vsub.f32 %v259, %v4824
  %v4826 = vand.u32 %v4825, 4294901760
  %4827 = vmatmul.f32.gmra.mxu0 %v4826
  %v4828 = vpop.f32.mrf.mxu0
  %v4829 = vadd.f32 %v3801, %v4828
  %v4830 = vand.u32 %v261, 4294901760
  %v4831 = vsub.f32 %v261, %v4830
  %v4832 = vand.u32 %v4831, 4294901760
  %4833 = vmatmul.f32.gmra.mxu0 %v4832
  %v4834 = vpop.f32.mrf.mxu0
  %v4835 = vadd.f32 %v3806, %v4834
  %v4836 = vand.u32 %v263, 4294901760
  %v4837 = vsub.f32 %v263, %v4836
  %v4838 = vand.u32 %v4837, 4294901760
  %4839 = vmatmul.f32.gmra.mxu0 %v4838
  %v4840 = vpop.f32.mrf.mxu0
  %v4841 = vadd.f32 %v3811, %v4840
  %v4842 = vand.u32 %v265, 4294901760
  %v4843 = vsub.f32 %v265, %v4842
  %v4844 = vand.u32 %v4843, 4294901760
  %4845 = vmatmul.f32.gmra.mxu0 %v4844
  %v4846 = vpop.f32.mrf.mxu0
  %v4847 = vadd.f32 %v3816, %v4846
  %v4848 = vand.u32 %v267, 4294901760
  %v4849 = vsub.f32 %v267, %v4848
  %v4850 = vand.u32 %v4849, 4294901760
  %4851 = vmatmul.f32.gmra.mxu0 %v4850
  %v4852 = vpop.f32.mrf.mxu0
  %v4853 = vadd.f32 %v3821, %v4852
  %v4854 = vand.u32 %v269, 4294901760
  %v4855 = vsub.f32 %v269, %v4854
  %v4856 = vand.u32 %v4855, 4294901760
  %4857 = vmatmul.f32.gmra.mxu0 %v4856
  %v4858 = vpop.f32.mrf.mxu0
  %v4859 = vadd.f32 %v3826, %v4858
  %v4860 = vand.u32 %v271, 4294901760
  %v4861 = vsub.f32 %v271, %v4860
  %v4862 = vand.u32 %v4861, 4294901760
  %4863 = vmatmul.f32.gmra.mxu0 %v4862
  %v4864 = vpop.f32.mrf.mxu0
  %v4865 = vadd.f32 %v3831, %v4864
  %v4866 = vand.u32 %v273, 4294901760
  %v4867 = vsub.f32 %v273, %v4866
  %v4868 = vand.u32 %v4867, 4294901760
  %4869 = vmatmul.f32.gmra.mxu0 %v4868
  %v4870 = vpop.f32.mrf.mxu0
  %v4871 = vadd.f32 %v3836, %v4870
  %v4872 = vand.u32 %v275, 4294901760
  %v4873 = vsub.f32 %v275, %v4872
  %v4874 = vand.u32 %v4873, 4294901760
  %4875 = vmatmul.f32.gmra.mxu0 %v4874
  %v4876 = vpop.f32.mrf.mxu0
  %v4877 = vadd.f32 %v3841, %v4876
  %v4878 = vand.u32 %v277, 4294901760
  %v4879 = vsub.f32 %v277, %v4878
  %v4880 = vand.u32 %v4879, 4294901760
  %4881 = vmatmul.f32.gmra.mxu0 %v4880
  %v4882 = vpop.f32.mrf.mxu0
  %v4883 = vadd.f32 %v3846, %v4882
  %v4884 = vand.u32 %v279, 4294901760
  %v4885 = vsub.f32 %v279, %v4884
  %v4886 = vand.u32 %v4885, 4294901760
  %4887 = vmatmul.f32.gmra.mxu0 %v4886
  %v4888 = vpop.f32.mrf.mxu0
  %v4889 = vadd.f32 %v3851, %v4888
  %v4890 = vand.u32 %v281, 4294901760
  %v4891 = vsub.f32 %v281, %v4890
  %v4892 = vand.u32 %v4891, 4294901760
  %4893 = vmatmul.f32.gmra.mxu0 %v4892
  %v4894 = vpop.f32.mrf.mxu0
  %v4895 = vadd.f32 %v3856, %v4894
  %v4896 = vand.u32 %v283, 4294901760
  %v4897 = vsub.f32 %v283, %v4896
  %v4898 = vand.u32 %v4897, 4294901760
  %4899 = vmatmul.f32.gmra.mxu0 %v4898
  %v4900 = vpop.f32.mrf.mxu0
  %v4901 = vadd.f32 %v3861, %v4900
  %v4902 = vand.u32 %v285, 4294901760
  %v4903 = vsub.f32 %v285, %v4902
  %v4904 = vand.u32 %v4903, 4294901760
  %4905 = vmatmul.f32.gmra.mxu0 %v4904
  %v4906 = vpop.f32.mrf.mxu0
  %v4907 = vadd.f32 %v3866, %v4906
  %v4908 = vand.u32 %v287, 4294901760
  %v4909 = vsub.f32 %v287, %v4908
  %v4910 = vand.u32 %v4909, 4294901760
  %4911 = vmatmul.f32.gmra.mxu0 %v4910
  %v4912 = vpop.f32.mrf.mxu0
  %v4913 = vadd.f32 %v3871, %v4912
  %v4914 = vand.u32 %v289, 4294901760
  %v4915 = vsub.f32 %v289, %v4914
  %v4916 = vand.u32 %v4915, 4294901760
  %4917 = vmatmul.f32.gmra.mxu0 %v4916
  %v4918 = vpop.f32.mrf.mxu0
  %v4919 = vadd.f32 %v3876, %v4918
  %v4920 = vand.u32 %v291, 4294901760
  %v4921 = vsub.f32 %v291, %v4920
  %v4922 = vand.u32 %v4921, 4294901760
  %4923 = vmatmul.f32.gmra.mxu0 %v4922
  %v4924 = vpop.f32.mrf.mxu0
  %v4925 = vadd.f32 %v3881, %v4924
  %v4926 = vand.u32 %v293, 4294901760
  %v4927 = vsub.f32 %v293, %v4926
  %v4928 = vand.u32 %v4927, 4294901760
  %4929 = vmatmul.f32.gmra.mxu0 %v4928
  %v4930 = vpop.f32.mrf.mxu0
  %v4931 = vadd.f32 %v3886, %v4930
  %v4932 = vand.u32 %v295, 4294901760
  %v4933 = vsub.f32 %v295, %v4932
  %v4934 = vand.u32 %v4933, 4294901760
  %4935 = vmatmul.f32.gmra.mxu0 %v4934
  %v4936 = vpop.f32.mrf.mxu0
  %v4937 = vadd.f32 %v3891, %v4936
  %v4938 = vand.u32 %v297, 4294901760
  %v4939 = vsub.f32 %v297, %v4938
  %v4940 = vand.u32 %v4939, 4294901760
  %4941 = vmatmul.f32.gmra.mxu0 %v4940
  %v4942 = vpop.f32.mrf.mxu0
  %v4943 = vadd.f32 %v3896, %v4942
  %v4944 = vand.u32 %v299, 4294901760
  %v4945 = vsub.f32 %v299, %v4944
  %v4946 = vand.u32 %v4945, 4294901760
  %4947 = vmatmul.f32.gmra.mxu0 %v4946
  %v4948 = vpop.f32.mrf.mxu0
  %v4949 = vadd.f32 %v3901, %v4948
  %v4950 = vand.u32 %v301, 4294901760
  %v4951 = vsub.f32 %v301, %v4950
  %v4952 = vand.u32 %v4951, 4294901760
  %4953 = vmatmul.f32.gmra.mxu0 %v4952
  %v4954 = vpop.f32.mrf.mxu0
  %v4955 = vadd.f32 %v3906, %v4954
  %v4956 = vand.u32 %v303, 4294901760
  %v4957 = vsub.f32 %v303, %v4956
  %v4958 = vand.u32 %v4957, 4294901760
  %4959 = vmatmul.f32.gmra.mxu0 %v4958
  %v4960 = vpop.f32.mrf.mxu0
  %v4961 = vadd.f32 %v3911, %v4960
  %v4962 = vand.u32 %v305, 4294901760
  %v4963 = vsub.f32 %v305, %v4962
  %v4964 = vand.u32 %v4963, 4294901760
  %4965 = vmatmul.f32.gmra.mxu0 %v4964
  %v4966 = vpop.f32.mrf.mxu0
  %v4967 = vadd.f32 %v3916, %v4966
  %v4968 = vand.u32 %v307, 4294901760
  %v4969 = vsub.f32 %v307, %v4968
  %v4970 = vand.u32 %v4969, 4294901760
  %4971 = vmatmul.f32.gmra.mxu0 %v4970
  %v4972 = vpop.f32.mrf.mxu0
  %v4973 = vadd.f32 %v3921, %v4972
  %v4974 = vand.u32 %v309, 4294901760
  %v4975 = vsub.f32 %v309, %v4974
  %v4976 = vand.u32 %v4975, 4294901760
  %4977 = vmatmul.f32.gmra.mxu0 %v4976
  %v4978 = vpop.f32.mrf.mxu0
  %v4979 = vadd.f32 %v3926, %v4978
  %v4980 = vand.u32 %v311, 4294901760
  %v4981 = vsub.f32 %v311, %v4980
  %v4982 = vand.u32 %v4981, 4294901760
  %4983 = vmatmul.f32.gmra.mxu0 %v4982
  %v4984 = vpop.f32.mrf.mxu0
  %v4985 = vadd.f32 %v3931, %v4984
  %v4986 = vand.u32 %v313, 4294901760
  %v4987 = vsub.f32 %v313, %v4986
  %v4988 = vand.u32 %v4987, 4294901760
  %4989 = vmatmul.f32.gmra.mxu0 %v4988
  %v4990 = vpop.f32.mrf.mxu0
  %v4991 = vadd.f32 %v3936, %v4990
  %v4992 = vand.u32 %v315, 4294901760
  %v4993 = vsub.f32 %v315, %v4992
  %v4994 = vand.u32 %v4993, 4294901760
  %4995 = vmatmul.f32.gmra.mxu0 %v4994
  %v4996 = vpop.f32.mrf.mxu0
  %v4997 = vadd.f32 %v3941, %v4996
  %v4998 = vand.u32 %v317, 4294901760
  %v4999 = vsub.f32 %v317, %v4998
  %v5000 = vand.u32 %v4999, 4294901760
  %5001 = vmatmul.f32.gmra.mxu0 %v5000
  %v5002 = vpop.f32.mrf.mxu0
  %v5003 = vadd.f32 %v3946, %v5002
  %v5004 = vand.u32 %v319, 4294901760
  %v5005 = vsub.f32 %v319, %v5004
  %v5006 = vand.u32 %v5005, 4294901760
  %5007 = vmatmul.f32.gmra.mxu0 %v5006
  %v5008 = vpop.f32.mrf.mxu0
  %v5009 = vadd.f32 %v3951, %v5008
  %v5010 = vand.u32 %v321, 4294901760
  %v5011 = vsub.f32 %v321, %v5010
  %v5012 = vand.u32 %v5011, 4294901760
  %5013 = vmatmul.f32.gmra.mxu0 %v5012
  %v5014 = vpop.f32.mrf.mxu0
  %v5015 = vadd.f32 %v3956, %v5014
  %v5016 = vand.u32 %v323, 4294901760
  %v5017 = vsub.f32 %v323, %v5016
  %v5018 = vand.u32 %v5017, 4294901760
  %5019 = vmatmul.f32.gmra.mxu0 %v5018
  %v5020 = vpop.f32.mrf.mxu0
  %v5021 = vadd.f32 %v3961, %v5020
  %v5022 = vand.u32 %v325, 4294901760
  %v5023 = vsub.f32 %v325, %v5022
  %v5024 = vand.u32 %v5023, 4294901760
  %5025 = vmatmul.f32.gmra.mxu0 %v5024
  %v5026 = vpop.f32.mrf.mxu0
  %v5027 = vadd.f32 %v3966, %v5026
  %v5028 = vand.u32 %v327, 4294901760
  %v5029 = vsub.f32 %v327, %v5028
  %v5030 = vand.u32 %v5029, 4294901760
  %5031 = vmatmul.f32.gmra.mxu0 %v5030
  %v5032 = vpop.f32.mrf.mxu0
  %v5033 = vadd.f32 %v3971, %v5032
  %v5034 = vand.u32 %v329, 4294901760
  %v5035 = vsub.f32 %v329, %v5034
  %v5036 = vand.u32 %v5035, 4294901760
  %5037 = vmatmul.f32.gmra.mxu0 %v5036
  %v5038 = vpop.f32.mrf.mxu0
  %v5039 = vadd.f32 %v3976, %v5038
  %v5040 = vand.u32 %v331, 4294901760
  %v5041 = vsub.f32 %v331, %v5040
  %v5042 = vand.u32 %v5041, 4294901760
  %5043 = vmatmul.f32.gmra.mxu0 %v5042
  %v5044 = vpop.f32.mrf.mxu0
  %v5045 = vadd.f32 %v3981, %v5044
  %v5046 = vand.u32 %v333, 4294901760
  %v5047 = vsub.f32 %v333, %v5046
  %v5048 = vand.u32 %v5047, 4294901760
  %5049 = vmatmul.f32.gmra.mxu0 %v5048
  %v5050 = vpop.f32.mrf.mxu0
  %v5051 = vadd.f32 %v3986, %v5050
  %v5052 = vand.u32 %v335, 4294901760
  %v5053 = vsub.f32 %v335, %v5052
  %v5054 = vand.u32 %v5053, 4294901760
  %5055 = vmatmul.f32.gmra.mxu0 %v5054
  %v5056 = vpop.f32.mrf.mxu0
  %v5057 = vadd.f32 %v3991, %v5056
  %v5058 = vand.u32 %v337, 4294901760
  %v5059 = vsub.f32 %v337, %v5058
  %v5060 = vand.u32 %v5059, 4294901760
  %5061 = vmatmul.f32.gmra.mxu0 %v5060
  %v5062 = vpop.f32.mrf.mxu0
  %v5063 = vadd.f32 %v3996, %v5062
  %v5064 = vand.u32 %v339, 4294901760
  %v5065 = vsub.f32 %v339, %v5064
  %v5066 = vand.u32 %v5065, 4294901760
  %5067 = vmatmul.f32.gmra.mxu0 %v5066
  %v5068 = vpop.f32.mrf.mxu0
  %v5069 = vadd.f32 %v4001, %v5068
  %v5070 = vand.u32 %v341, 4294901760
  %v5071 = vsub.f32 %v341, %v5070
  %v5072 = vand.u32 %v5071, 4294901760
  %5073 = vmatmul.f32.gmra.mxu0 %v5072
  %v5074 = vpop.f32.mrf.mxu0
  %v5075 = vadd.f32 %v4006, %v5074
  %v5076 = vand.u32 %v343, 4294901760
  %v5077 = vsub.f32 %v343, %v5076
  %v5078 = vand.u32 %v5077, 4294901760
  %5079 = vmatmul.f32.gmra.mxu0 %v5078
  %v5080 = vpop.f32.mrf.mxu0
  %v5081 = vadd.f32 %v4011, %v5080
  %v5082 = vand.u32 %v345, 4294901760
  %v5083 = vsub.f32 %v345, %v5082
  %v5084 = vand.u32 %v5083, 4294901760
  %5085 = vmatmul.f32.gmra.mxu0 %v5084
  %v5086 = vpop.f32.mrf.mxu0
  %v5087 = vadd.f32 %v4016, %v5086
  %v5088 = vand.u32 %v347, 4294901760
  %v5089 = vsub.f32 %v347, %v5088
  %v5090 = vand.u32 %v5089, 4294901760
  %5091 = vmatmul.f32.gmra.mxu0 %v5090
  %v5092 = vpop.f32.mrf.mxu0
  %v5093 = vadd.f32 %v4021, %v5092
  %v5094 = vand.u32 %v349, 4294901760
  %v5095 = vsub.f32 %v349, %v5094
  %v5096 = vand.u32 %v5095, 4294901760
  %5097 = vmatmul.f32.gmra.mxu0 %v5096
  %v5098 = vpop.f32.mrf.mxu0
  %v5099 = vadd.f32 %v4026, %v5098
  %v5100 = vand.u32 %v351, 4294901760
  %v5101 = vsub.f32 %v351, %v5100
  %v5102 = vand.u32 %v5101, 4294901760
  %5103 = vmatmul.f32.gmra.mxu0 %v5102
  %v5104 = vpop.f32.mrf.mxu0
  %v5105 = vadd.f32 %v4031, %v5104
  %v5106 = vand.u32 %v353, 4294901760
  %v5107 = vsub.f32 %v353, %v5106
  %v5108 = vand.u32 %v5107, 4294901760
  %5109 = vmatmul.f32.gmra.mxu0 %v5108
  %v5110 = vpop.f32.mrf.mxu0
  %v5111 = vadd.f32 %v4036, %v5110
  %v5112 = vand.u32 %v355, 4294901760
  %v5113 = vsub.f32 %v355, %v5112
  %v5114 = vand.u32 %v5113, 4294901760
  %5115 = vmatmul.f32.gmra.mxu0 %v5114
  %v5116 = vpop.f32.mrf.mxu0
  %v5117 = vadd.f32 %v4041, %v5116
  %v5118 = vand.u32 %v357, 4294901760
  %v5119 = vsub.f32 %v357, %v5118
  %v5120 = vand.u32 %v5119, 4294901760
  %5121 = vmatmul.f32.gmra.mxu0 %v5120
  %v5122 = vpop.f32.mrf.mxu0
  %v5123 = vadd.f32 %v4046, %v5122
  %5124 = vdwg.mxu0
  %v5125 = vand.u32 %v374, 4294901760
  %v5126 = vsub.f32 %v374, %v5125
  %v5127 = vand.u32 %v5126, 4294901760
  %5128 = vmatpush.msra.mxu0 %v5127
  %v5129 = vand.u32 %v373, 4294901760
  %v5130 = vsub.f32 %v373, %v5129
  %v5131 = vand.u32 %v5130, 4294901760
  %5132 = vmatpush.msra.mxu0 %v5131
  %v5133 = vand.u32 %v372, 4294901760
  %v5134 = vsub.f32 %v372, %v5133
  %v5135 = vand.u32 %v5134, 4294901760
  %5136 = vmatpush.msra.mxu0 %v5135
  %v5137 = vand.u32 %v371, 4294901760
  %v5138 = vsub.f32 %v371, %v5137
  %v5139 = vand.u32 %v5138, 4294901760
  %5140 = vmatpush.msra.mxu0 %v5139
  %v5141 = vand.u32 %v370, 4294901760
  %v5142 = vsub.f32 %v370, %v5141
  %v5143 = vand.u32 %v5142, 4294901760
  %5144 = vmatpush.msra.mxu0 %v5143
  %v5145 = vand.u32 %v369, 4294901760
  %v5146 = vsub.f32 %v369, %v5145
  %v5147 = vand.u32 %v5146, 4294901760
  %5148 = vmatpush.msra.mxu0 %v5147
  %v5149 = vand.u32 %v368, 4294901760
  %v5150 = vsub.f32 %v368, %v5149
  %v5151 = vand.u32 %v5150, 4294901760
  %5152 = vmatpush.msra.mxu0 %v5151
  %v5153 = vand.u32 %v367, 4294901760
  %v5154 = vsub.f32 %v367, %v5153
  %v5155 = vand.u32 %v5154, 4294901760
  %5156 = vmatpush.msra.mxu0 %v5155
  %v5157 = vand.u32 %v366, 4294901760
  %v5158 = vsub.f32 %v366, %v5157
  %v5159 = vand.u32 %v5158, 4294901760
  %5160 = vmatpush.msra.mxu0 %v5159
  %v5161 = vand.u32 %v365, 4294901760
  %v5162 = vsub.f32 %v365, %v5161
  %v5163 = vand.u32 %v5162, 4294901760
  %5164 = vmatpush.msra.mxu0 %v5163
  %v5165 = vand.u32 %v364, 4294901760
  %v5166 = vsub.f32 %v364, %v5165
  %v5167 = vand.u32 %v5166, 4294901760
  %5168 = vmatpush.msra.mxu0 %v5167
  %v5169 = vand.u32 %v363, 4294901760
  %v5170 = vsub.f32 %v363, %v5169
  %v5171 = vand.u32 %v5170, 4294901760
  %5172 = vmatpush.msra.mxu0 %v5171
  %v5173 = vand.u32 %v362, 4294901760
  %v5174 = vsub.f32 %v362, %v5173
  %v5175 = vand.u32 %v5174, 4294901760
  %5176 = vmatpush.msra.mxu0 %v5175
  %v5177 = vand.u32 %v361, 4294901760
  %v5178 = vsub.f32 %v361, %v5177
  %v5179 = vand.u32 %v5178, 4294901760
  %5180 = vmatpush.msra.mxu0 %v5179
  %v5181 = vand.u32 %v360, 4294901760
  %v5182 = vsub.f32 %v360, %v5181
  %v5183 = vand.u32 %v5182, 4294901760
  %5184 = vmatpush.msra.mxu0 %v5183
  %v5185 = vand.u32 %v359, 4294901760
  %v5186 = vsub.f32 %v359, %v5185
  %v5187 = vand.u32 %v5186, 4294901760
  %5188 = vmatpush.msra.mxu0 %v5187
  %v5189 = vand.u32 %v11, 4294901760
  %5190 = vmatmul.f32.gmra.mxu0 %v5189
  %v5191 = vpop.f32.mrf.mxu0
  %v5192 = vadd.f32 %v4085, %v5191
  %v5193 = vand.u32 %v13, 4294901760
  %5194 = vmatmul.f32.gmra.mxu0 %v5193
  %v5195 = vpop.f32.mrf.mxu0
  %v5196 = vadd.f32 %v4091, %v5195
  %v5197 = vand.u32 %v15, 4294901760
  %5198 = vmatmul.f32.gmra.mxu0 %v5197
  %v5199 = vpop.f32.mrf.mxu0
  %v5200 = vadd.f32 %v4097, %v5199
  %v5201 = vand.u32 %v17, 4294901760
  %5202 = vmatmul.f32.gmra.mxu0 %v5201
  %v5203 = vpop.f32.mrf.mxu0
  %v5204 = vadd.f32 %v4103, %v5203
  %v5205 = vand.u32 %v19, 4294901760
  %5206 = vmatmul.f32.gmra.mxu0 %v5205
  %v5207 = vpop.f32.mrf.mxu0
  %v5208 = vadd.f32 %v4109, %v5207
  %v5209 = vand.u32 %v21, 4294901760
  %5210 = vmatmul.f32.gmra.mxu0 %v5209
  %v5211 = vpop.f32.mrf.mxu0
  %v5212 = vadd.f32 %v4115, %v5211
  %v5213 = vand.u32 %v23, 4294901760
  %5214 = vmatmul.f32.gmra.mxu0 %v5213
  %v5215 = vpop.f32.mrf.mxu0
  %v5216 = vadd.f32 %v4121, %v5215
  %v5217 = vand.u32 %v25, 4294901760
  %5218 = vmatmul.f32.gmra.mxu0 %v5217
  %v5219 = vpop.f32.mrf.mxu0
  %v5220 = vadd.f32 %v4127, %v5219
  %v5221 = vand.u32 %v27, 4294901760
  %5222 = vmatmul.f32.gmra.mxu0 %v5221
  %v5223 = vpop.f32.mrf.mxu0
  %v5224 = vadd.f32 %v4133, %v5223
  %v5225 = vand.u32 %v29, 4294901760
  %5226 = vmatmul.f32.gmra.mxu0 %v5225
  %v5227 = vpop.f32.mrf.mxu0
  %v5228 = vadd.f32 %v4139, %v5227
  %v5229 = vand.u32 %v31, 4294901760
  %5230 = vmatmul.f32.gmra.mxu0 %v5229
  %v5231 = vpop.f32.mrf.mxu0
  %v5232 = vadd.f32 %v4145, %v5231
  %v5233 = vand.u32 %v33, 4294901760
  %5234 = vmatmul.f32.gmra.mxu0 %v5233
  %v5235 = vpop.f32.mrf.mxu0
  %v5236 = vadd.f32 %v4151, %v5235
  %v5237 = vand.u32 %v35, 4294901760
  %5238 = vmatmul.f32.gmra.mxu0 %v5237
  %v5239 = vpop.f32.mrf.mxu0
  %v5240 = vadd.f32 %v4157, %v5239
  %v5241 = vand.u32 %v37, 4294901760
  %5242 = vmatmul.f32.gmra.mxu0 %v5241
  %v5243 = vpop.f32.mrf.mxu0
  %v5244 = vadd.f32 %v4163, %v5243
  %v5245 = vand.u32 %v39, 4294901760
  %5246 = vmatmul.f32.gmra.mxu0 %v5245
  %v5247 = vpop.f32.mrf.mxu0
  %v5248 = vadd.f32 %v4169, %v5247
  %v5249 = vand.u32 %v41, 4294901760
  %5250 = vmatmul.f32.gmra.mxu0 %v5249
  %v5251 = vpop.f32.mrf.mxu0
  %v5252 = vadd.f32 %v4175, %v5251
  %v5253 = vand.u32 %v43, 4294901760
  %5254 = vmatmul.f32.gmra.mxu0 %v5253
  %v5255 = vpop.f32.mrf.mxu0
  %v5256 = vadd.f32 %v4181, %v5255
  %v5257 = vand.u32 %v45, 4294901760
  %5258 = vmatmul.f32.gmra.mxu0 %v5257
  %v5259 = vpop.f32.mrf.mxu0
  %v5260 = vadd.f32 %v4187, %v5259
  %v5261 = vand.u32 %v47, 4294901760
  %5262 = vmatmul.f32.gmra.mxu0 %v5261
  %v5263 = vpop.f32.mrf.mxu0
  %v5264 = vadd.f32 %v4193, %v5263
  %v5265 = vand.u32 %v49, 4294901760
  %5266 = vmatmul.f32.gmra.mxu0 %v5265
  %v5267 = vpop.f32.mrf.mxu0
  %v5268 = vadd.f32 %v4199, %v5267
  %v5269 = vand.u32 %v51, 4294901760
  %5270 = vmatmul.f32.gmra.mxu0 %v5269
  %v5271 = vpop.f32.mrf.mxu0
  %v5272 = vadd.f32 %v4205, %v5271
  %v5273 = vand.u32 %v53, 4294901760
  %5274 = vmatmul.f32.gmra.mxu0 %v5273
  %v5275 = vpop.f32.mrf.mxu0
  %v5276 = vadd.f32 %v4211, %v5275
  %v5277 = vand.u32 %v55, 4294901760
  %5278 = vmatmul.f32.gmra.mxu0 %v5277
  %v5279 = vpop.f32.mrf.mxu0
  %v5280 = vadd.f32 %v4217, %v5279
  %v5281 = vand.u32 %v57, 4294901760
  %5282 = vmatmul.f32.gmra.mxu0 %v5281
  %v5283 = vpop.f32.mrf.mxu0
  %v5284 = vadd.f32 %v4223, %v5283
  %v5285 = vand.u32 %v59, 4294901760
  %5286 = vmatmul.f32.gmra.mxu0 %v5285
  %v5287 = vpop.f32.mrf.mxu0
  %v5288 = vadd.f32 %v4229, %v5287
  %v5289 = vand.u32 %v61, 4294901760
  %5290 = vmatmul.f32.gmra.mxu0 %v5289
  %v5291 = vpop.f32.mrf.mxu0
  %v5292 = vadd.f32 %v4235, %v5291
  %v5293 = vand.u32 %v63, 4294901760
  %5294 = vmatmul.f32.gmra.mxu0 %v5293
  %v5295 = vpop.f32.mrf.mxu0
  %v5296 = vadd.f32 %v4241, %v5295
  %v5297 = vand.u32 %v65, 4294901760
  %5298 = vmatmul.f32.gmra.mxu0 %v5297
  %v5299 = vpop.f32.mrf.mxu0
  %v5300 = vadd.f32 %v4247, %v5299
  %v5301 = vand.u32 %v67, 4294901760
  %5302 = vmatmul.f32.gmra.mxu0 %v5301
  %v5303 = vpop.f32.mrf.mxu0
  %v5304 = vadd.f32 %v4253, %v5303
  %v5305 = vand.u32 %v69, 4294901760
  %5306 = vmatmul.f32.gmra.mxu0 %v5305
  %v5307 = vpop.f32.mrf.mxu0
  %v5308 = vadd.f32 %v4259, %v5307
  %v5309 = vand.u32 %v71, 4294901760
  %5310 = vmatmul.f32.gmra.mxu0 %v5309
  %v5311 = vpop.f32.mrf.mxu0
  %v5312 = vadd.f32 %v4265, %v5311
  %v5313 = vand.u32 %v73, 4294901760
  %5314 = vmatmul.f32.gmra.mxu0 %v5313
  %v5315 = vpop.f32.mrf.mxu0
  %v5316 = vadd.f32 %v4271, %v5315
  %v5317 = vand.u32 %v75, 4294901760
  %5318 = vmatmul.f32.gmra.mxu0 %v5317
  %v5319 = vpop.f32.mrf.mxu0
  %v5320 = vadd.f32 %v4277, %v5319
  %v5321 = vand.u32 %v77, 4294901760
  %5322 = vmatmul.f32.gmra.mxu0 %v5321
  %v5323 = vpop.f32.mrf.mxu0
  %v5324 = vadd.f32 %v4283, %v5323
  %v5325 = vand.u32 %v79, 4294901760
  %5326 = vmatmul.f32.gmra.mxu0 %v5325
  %v5327 = vpop.f32.mrf.mxu0
  %v5328 = vadd.f32 %v4289, %v5327
  %v5329 = vand.u32 %v81, 4294901760
  %5330 = vmatmul.f32.gmra.mxu0 %v5329
  %v5331 = vpop.f32.mrf.mxu0
  %v5332 = vadd.f32 %v4295, %v5331
  %v5333 = vand.u32 %v83, 4294901760
  %5334 = vmatmul.f32.gmra.mxu0 %v5333
  %v5335 = vpop.f32.mrf.mxu0
  %v5336 = vadd.f32 %v4301, %v5335
  %v5337 = vand.u32 %v85, 4294901760
  %5338 = vmatmul.f32.gmra.mxu0 %v5337
  %v5339 = vpop.f32.mrf.mxu0
  %v5340 = vadd.f32 %v4307, %v5339
  %v5341 = vand.u32 %v87, 4294901760
  %5342 = vmatmul.f32.gmra.mxu0 %v5341
  %v5343 = vpop.f32.mrf.mxu0
  %v5344 = vadd.f32 %v4313, %v5343
  %v5345 = vand.u32 %v89, 4294901760
  %5346 = vmatmul.f32.gmra.mxu0 %v5345
  %v5347 = vpop.f32.mrf.mxu0
  %v5348 = vadd.f32 %v4319, %v5347
  %v5349 = vand.u32 %v91, 4294901760
  %5350 = vmatmul.f32.gmra.mxu0 %v5349
  %v5351 = vpop.f32.mrf.mxu0
  %v5352 = vadd.f32 %v4325, %v5351
  %v5353 = vand.u32 %v93, 4294901760
  %5354 = vmatmul.f32.gmra.mxu0 %v5353
  %v5355 = vpop.f32.mrf.mxu0
  %v5356 = vadd.f32 %v4331, %v5355
  %v5357 = vand.u32 %v95, 4294901760
  %5358 = vmatmul.f32.gmra.mxu0 %v5357
  %v5359 = vpop.f32.mrf.mxu0
  %v5360 = vadd.f32 %v4337, %v5359
  %v5361 = vand.u32 %v97, 4294901760
  %5362 = vmatmul.f32.gmra.mxu0 %v5361
  %v5363 = vpop.f32.mrf.mxu0
  %v5364 = vadd.f32 %v4343, %v5363
  %v5365 = vand.u32 %v99, 4294901760
  %5366 = vmatmul.f32.gmra.mxu0 %v5365
  %v5367 = vpop.f32.mrf.mxu0
  %v5368 = vadd.f32 %v4349, %v5367
  %v5369 = vand.u32 %v101, 4294901760
  %5370 = vmatmul.f32.gmra.mxu0 %v5369
  %v5371 = vpop.f32.mrf.mxu0
  %v5372 = vadd.f32 %v4355, %v5371
  %v5373 = vand.u32 %v103, 4294901760
  %5374 = vmatmul.f32.gmra.mxu0 %v5373
  %v5375 = vpop.f32.mrf.mxu0
  %v5376 = vadd.f32 %v4361, %v5375
  %v5377 = vand.u32 %v105, 4294901760
  %5378 = vmatmul.f32.gmra.mxu0 %v5377
  %v5379 = vpop.f32.mrf.mxu0
  %v5380 = vadd.f32 %v4367, %v5379
  %v5381 = vand.u32 %v107, 4294901760
  %5382 = vmatmul.f32.gmra.mxu0 %v5381
  %v5383 = vpop.f32.mrf.mxu0
  %v5384 = vadd.f32 %v4373, %v5383
  %v5385 = vand.u32 %v109, 4294901760
  %5386 = vmatmul.f32.gmra.mxu0 %v5385
  %v5387 = vpop.f32.mrf.mxu0
  %v5388 = vadd.f32 %v4379, %v5387
  %v5389 = vand.u32 %v111, 4294901760
  %5390 = vmatmul.f32.gmra.mxu0 %v5389
  %v5391 = vpop.f32.mrf.mxu0
  %v5392 = vadd.f32 %v4385, %v5391
  %v5393 = vand.u32 %v113, 4294901760
  %5394 = vmatmul.f32.gmra.mxu0 %v5393
  %v5395 = vpop.f32.mrf.mxu0
  %v5396 = vadd.f32 %v4391, %v5395
  %v5397 = vand.u32 %v115, 4294901760
  %5398 = vmatmul.f32.gmra.mxu0 %v5397
  %v5399 = vpop.f32.mrf.mxu0
  %v5400 = vadd.f32 %v4397, %v5399
  %v5401 = vand.u32 %v117, 4294901760
  %5402 = vmatmul.f32.gmra.mxu0 %v5401
  %v5403 = vpop.f32.mrf.mxu0
  %v5404 = vadd.f32 %v4403, %v5403
  %v5405 = vand.u32 %v119, 4294901760
  %5406 = vmatmul.f32.gmra.mxu0 %v5405
  %v5407 = vpop.f32.mrf.mxu0
  %v5408 = vadd.f32 %v4409, %v5407
  %v5409 = vand.u32 %v121, 4294901760
  %5410 = vmatmul.f32.gmra.mxu0 %v5409
  %v5411 = vpop.f32.mrf.mxu0
  %v5412 = vadd.f32 %v4415, %v5411
  %v5413 = vand.u32 %v123, 4294901760
  %5414 = vmatmul.f32.gmra.mxu0 %v5413
  %v5415 = vpop.f32.mrf.mxu0
  %v5416 = vadd.f32 %v4421, %v5415
  %v5417 = vand.u32 %v125, 4294901760
  %5418 = vmatmul.f32.gmra.mxu0 %v5417
  %v5419 = vpop.f32.mrf.mxu0
  %v5420 = vadd.f32 %v4427, %v5419
  %v5421 = vand.u32 %v127, 4294901760
  %5422 = vmatmul.f32.gmra.mxu0 %v5421
  %v5423 = vpop.f32.mrf.mxu0
  %v5424 = vadd.f32 %v4433, %v5423
  %v5425 = vand.u32 %v129, 4294901760
  %5426 = vmatmul.f32.gmra.mxu0 %v5425
  %v5427 = vpop.f32.mrf.mxu0
  %v5428 = vadd.f32 %v4439, %v5427
  %v5429 = vand.u32 %v131, 4294901760
  %5430 = vmatmul.f32.gmra.mxu0 %v5429
  %v5431 = vpop.f32.mrf.mxu0
  %v5432 = vadd.f32 %v4445, %v5431
  %v5433 = vand.u32 %v133, 4294901760
  %5434 = vmatmul.f32.gmra.mxu0 %v5433
  %v5435 = vpop.f32.mrf.mxu0
  %v5436 = vadd.f32 %v4451, %v5435
  %v5437 = vand.u32 %v135, 4294901760
  %5438 = vmatmul.f32.gmra.mxu0 %v5437
  %v5439 = vpop.f32.mrf.mxu0
  %v5440 = vadd.f32 %v4457, %v5439
  %v5441 = vand.u32 %v137, 4294901760
  %5442 = vmatmul.f32.gmra.mxu0 %v5441
  %v5443 = vpop.f32.mrf.mxu0
  %v5444 = vadd.f32 %v4463, %v5443
  %v5445 = vand.u32 %v139, 4294901760
  %5446 = vmatmul.f32.gmra.mxu0 %v5445
  %v5447 = vpop.f32.mrf.mxu0
  %v5448 = vadd.f32 %v4469, %v5447
  %v5449 = vand.u32 %v141, 4294901760
  %5450 = vmatmul.f32.gmra.mxu0 %v5449
  %v5451 = vpop.f32.mrf.mxu0
  %v5452 = vadd.f32 %v4475, %v5451
  %v5453 = vand.u32 %v143, 4294901760
  %5454 = vmatmul.f32.gmra.mxu0 %v5453
  %v5455 = vpop.f32.mrf.mxu0
  %v5456 = vadd.f32 %v4481, %v5455
  %v5457 = vand.u32 %v145, 4294901760
  %5458 = vmatmul.f32.gmra.mxu0 %v5457
  %v5459 = vpop.f32.mrf.mxu0
  %v5460 = vadd.f32 %v4487, %v5459
  %v5461 = vand.u32 %v147, 4294901760
  %5462 = vmatmul.f32.gmra.mxu0 %v5461
  %v5463 = vpop.f32.mrf.mxu0
  %v5464 = vadd.f32 %v4493, %v5463
  %v5465 = vand.u32 %v149, 4294901760
  %5466 = vmatmul.f32.gmra.mxu0 %v5465
  %v5467 = vpop.f32.mrf.mxu0
  %v5468 = vadd.f32 %v4499, %v5467
  %v5469 = vand.u32 %v151, 4294901760
  %5470 = vmatmul.f32.gmra.mxu0 %v5469
  %v5471 = vpop.f32.mrf.mxu0
  %v5472 = vadd.f32 %v4505, %v5471
  %v5473 = vand.u32 %v153, 4294901760
  %5474 = vmatmul.f32.gmra.mxu0 %v5473
  %v5475 = vpop.f32.mrf.mxu0
  %v5476 = vadd.f32 %v4511, %v5475
  %v5477 = vand.u32 %v155, 4294901760
  %5478 = vmatmul.f32.gmra.mxu0 %v5477
  %v5479 = vpop.f32.mrf.mxu0
  %v5480 = vadd.f32 %v4517, %v5479
  %v5481 = vand.u32 %v157, 4294901760
  %5482 = vmatmul.f32.gmra.mxu0 %v5481
  %v5483 = vpop.f32.mrf.mxu0
  %v5484 = vadd.f32 %v4523, %v5483
  %v5485 = vand.u32 %v159, 4294901760
  %5486 = vmatmul.f32.gmra.mxu0 %v5485
  %v5487 = vpop.f32.mrf.mxu0
  %v5488 = vadd.f32 %v4529, %v5487
  %v5489 = vand.u32 %v161, 4294901760
  %5490 = vmatmul.f32.gmra.mxu0 %v5489
  %v5491 = vpop.f32.mrf.mxu0
  %v5492 = vadd.f32 %v4535, %v5491
  %v5493 = vand.u32 %v163, 4294901760
  %5494 = vmatmul.f32.gmra.mxu0 %v5493
  %v5495 = vpop.f32.mrf.mxu0
  %v5496 = vadd.f32 %v4541, %v5495
  %v5497 = vand.u32 %v165, 4294901760
  %5498 = vmatmul.f32.gmra.mxu0 %v5497
  %v5499 = vpop.f32.mrf.mxu0
  %v5500 = vadd.f32 %v4547, %v5499
  %v5501 = vand.u32 %v167, 4294901760
  %5502 = vmatmul.f32.gmra.mxu0 %v5501
  %v5503 = vpop.f32.mrf.mxu0
  %v5504 = vadd.f32 %v4553, %v5503
  %v5505 = vand.u32 %v169, 4294901760
  %5506 = vmatmul.f32.gmra.mxu0 %v5505
  %v5507 = vpop.f32.mrf.mxu0
  %v5508 = vadd.f32 %v4559, %v5507
  %v5509 = vand.u32 %v171, 4294901760
  %5510 = vmatmul.f32.gmra.mxu0 %v5509
  %v5511 = vpop.f32.mrf.mxu0
  %v5512 = vadd.f32 %v4565, %v5511
  %v5513 = vand.u32 %v173, 4294901760
  %5514 = vmatmul.f32.gmra.mxu0 %v5513
  %v5515 = vpop.f32.mrf.mxu0
  %v5516 = vadd.f32 %v4571, %v5515
  %v5517 = vand.u32 %v175, 4294901760
  %5518 = vmatmul.f32.gmra.mxu0 %v5517
  %v5519 = vpop.f32.mrf.mxu0
  %v5520 = vadd.f32 %v4577, %v5519
  %v5521 = vand.u32 %v177, 4294901760
  %5522 = vmatmul.f32.gmra.mxu0 %v5521
  %v5523 = vpop.f32.mrf.mxu0
  %v5524 = vadd.f32 %v4583, %v5523
  %v5525 = vand.u32 %v179, 4294901760
  %5526 = vmatmul.f32.gmra.mxu0 %v5525
  %v5527 = vpop.f32.mrf.mxu0
  %v5528 = vadd.f32 %v4589, %v5527
  %v5529 = vand.u32 %v181, 4294901760
  %5530 = vmatmul.f32.gmra.mxu0 %v5529
  %v5531 = vpop.f32.mrf.mxu0
  %v5532 = vadd.f32 %v4595, %v5531
  %v5533 = vand.u32 %v183, 4294901760
  %5534 = vmatmul.f32.gmra.mxu0 %v5533
  %v5535 = vpop.f32.mrf.mxu0
  %v5536 = vadd.f32 %v4601, %v5535
  %v5537 = vand.u32 %v185, 4294901760
  %5538 = vmatmul.f32.gmra.mxu0 %v5537
  %v5539 = vpop.f32.mrf.mxu0
  %v5540 = vadd.f32 %v4607, %v5539
  %v5541 = vand.u32 %v187, 4294901760
  %5542 = vmatmul.f32.gmra.mxu0 %v5541
  %v5543 = vpop.f32.mrf.mxu0
  %v5544 = vadd.f32 %v4613, %v5543
  %v5545 = vand.u32 %v189, 4294901760
  %5546 = vmatmul.f32.gmra.mxu0 %v5545
  %v5547 = vpop.f32.mrf.mxu0
  %v5548 = vadd.f32 %v4619, %v5547
  %v5549 = vand.u32 %v191, 4294901760
  %5550 = vmatmul.f32.gmra.mxu0 %v5549
  %v5551 = vpop.f32.mrf.mxu0
  %v5552 = vadd.f32 %v4625, %v5551
  %v5553 = vand.u32 %v193, 4294901760
  %5554 = vmatmul.f32.gmra.mxu0 %v5553
  %v5555 = vpop.f32.mrf.mxu0
  %v5556 = vadd.f32 %v4631, %v5555
  %v5557 = vand.u32 %v195, 4294901760
  %5558 = vmatmul.f32.gmra.mxu0 %v5557
  %v5559 = vpop.f32.mrf.mxu0
  %v5560 = vadd.f32 %v4637, %v5559
  %v5561 = vand.u32 %v197, 4294901760
  %5562 = vmatmul.f32.gmra.mxu0 %v5561
  %v5563 = vpop.f32.mrf.mxu0
  %v5564 = vadd.f32 %v4643, %v5563
  %v5565 = vand.u32 %v199, 4294901760
  %5566 = vmatmul.f32.gmra.mxu0 %v5565
  %v5567 = vpop.f32.mrf.mxu0
  %v5568 = vadd.f32 %v4649, %v5567
  %v5569 = vand.u32 %v201, 4294901760
  %5570 = vmatmul.f32.gmra.mxu0 %v5569
  %v5571 = vpop.f32.mrf.mxu0
  %v5572 = vadd.f32 %v4655, %v5571
  %v5573 = vand.u32 %v203, 4294901760
  %5574 = vmatmul.f32.gmra.mxu0 %v5573
  %v5575 = vpop.f32.mrf.mxu0
  %v5576 = vadd.f32 %v4661, %v5575
  %v5577 = vand.u32 %v205, 4294901760
  %5578 = vmatmul.f32.gmra.mxu0 %v5577
  %v5579 = vpop.f32.mrf.mxu0
  %v5580 = vadd.f32 %v4667, %v5579
  %v5581 = vand.u32 %v207, 4294901760
  %5582 = vmatmul.f32.gmra.mxu0 %v5581
  %v5583 = vpop.f32.mrf.mxu0
  %v5584 = vadd.f32 %v4673, %v5583
  %v5585 = vand.u32 %v209, 4294901760
  %5586 = vmatmul.f32.gmra.mxu0 %v5585
  %v5587 = vpop.f32.mrf.mxu0
  %v5588 = vadd.f32 %v4679, %v5587
  %v5589 = vand.u32 %v211, 4294901760
  %5590 = vmatmul.f32.gmra.mxu0 %v5589
  %v5591 = vpop.f32.mrf.mxu0
  %v5592 = vadd.f32 %v4685, %v5591
  %v5593 = vand.u32 %v213, 4294901760
  %5594 = vmatmul.f32.gmra.mxu0 %v5593
  %v5595 = vpop.f32.mrf.mxu0
  %v5596 = vadd.f32 %v4691, %v5595
  %v5597 = vand.u32 %v215, 4294901760
  %5598 = vmatmul.f32.gmra.mxu0 %v5597
  %v5599 = vpop.f32.mrf.mxu0
  %v5600 = vadd.f32 %v4697, %v5599
  %v5601 = vand.u32 %v217, 4294901760
  %5602 = vmatmul.f32.gmra.mxu0 %v5601
  %v5603 = vpop.f32.mrf.mxu0
  %v5604 = vadd.f32 %v4703, %v5603
  %v5605 = vand.u32 %v219, 4294901760
  %5606 = vmatmul.f32.gmra.mxu0 %v5605
  %v5607 = vpop.f32.mrf.mxu0
  %v5608 = vadd.f32 %v4709, %v5607
  %v5609 = vand.u32 %v221, 4294901760
  %5610 = vmatmul.f32.gmra.mxu0 %v5609
  %v5611 = vpop.f32.mrf.mxu0
  %v5612 = vadd.f32 %v4715, %v5611
  %v5613 = vand.u32 %v223, 4294901760
  %5614 = vmatmul.f32.gmra.mxu0 %v5613
  %v5615 = vpop.f32.mrf.mxu0
  %v5616 = vadd.f32 %v4721, %v5615
  %v5617 = vand.u32 %v225, 4294901760
  %5618 = vmatmul.f32.gmra.mxu0 %v5617
  %v5619 = vpop.f32.mrf.mxu0
  %v5620 = vadd.f32 %v4727, %v5619
  %v5621 = vand.u32 %v227, 4294901760
  %5622 = vmatmul.f32.gmra.mxu0 %v5621
  %v5623 = vpop.f32.mrf.mxu0
  %v5624 = vadd.f32 %v4733, %v5623
  %v5625 = vand.u32 %v229, 4294901760
  %5626 = vmatmul.f32.gmra.mxu0 %v5625
  %v5627 = vpop.f32.mrf.mxu0
  %v5628 = vadd.f32 %v4739, %v5627
  %v5629 = vand.u32 %v231, 4294901760
  %5630 = vmatmul.f32.gmra.mxu0 %v5629
  %v5631 = vpop.f32.mrf.mxu0
  %v5632 = vadd.f32 %v4745, %v5631
  %v5633 = vand.u32 %v233, 4294901760
  %5634 = vmatmul.f32.gmra.mxu0 %v5633
  %v5635 = vpop.f32.mrf.mxu0
  %v5636 = vadd.f32 %v4751, %v5635
  %v5637 = vand.u32 %v235, 4294901760
  %5638 = vmatmul.f32.gmra.mxu0 %v5637
  %v5639 = vpop.f32.mrf.mxu0
  %v5640 = vadd.f32 %v4757, %v5639
  %v5641 = vand.u32 %v237, 4294901760
  %5642 = vmatmul.f32.gmra.mxu0 %v5641
  %v5643 = vpop.f32.mrf.mxu0
  %v5644 = vadd.f32 %v4763, %v5643
  %v5645 = vand.u32 %v239, 4294901760
  %5646 = vmatmul.f32.gmra.mxu0 %v5645
  %v5647 = vpop.f32.mrf.mxu0
  %v5648 = vadd.f32 %v4769, %v5647
  %v5649 = vand.u32 %v241, 4294901760
  %5650 = vmatmul.f32.gmra.mxu0 %v5649
  %v5651 = vpop.f32.mrf.mxu0
  %v5652 = vadd.f32 %v4775, %v5651
  %v5653 = vand.u32 %v243, 4294901760
  %5654 = vmatmul.f32.gmra.mxu0 %v5653
  %v5655 = vpop.f32.mrf.mxu0
  %v5656 = vadd.f32 %v4781, %v5655
  %v5657 = vand.u32 %v245, 4294901760
  %5658 = vmatmul.f32.gmra.mxu0 %v5657
  %v5659 = vpop.f32.mrf.mxu0
  %v5660 = vadd.f32 %v4787, %v5659
  %v5661 = vand.u32 %v247, 4294901760
  %5662 = vmatmul.f32.gmra.mxu0 %v5661
  %v5663 = vpop.f32.mrf.mxu0
  %v5664 = vadd.f32 %v4793, %v5663
  %v5665 = vand.u32 %v249, 4294901760
  %5666 = vmatmul.f32.gmra.mxu0 %v5665
  %v5667 = vpop.f32.mrf.mxu0
  %v5668 = vadd.f32 %v4799, %v5667
  %v5669 = vand.u32 %v251, 4294901760
  %5670 = vmatmul.f32.gmra.mxu0 %v5669
  %v5671 = vpop.f32.mrf.mxu0
  %v5672 = vadd.f32 %v4805, %v5671
  %v5673 = vand.u32 %v253, 4294901760
  %5674 = vmatmul.f32.gmra.mxu0 %v5673
  %v5675 = vpop.f32.mrf.mxu0
  %v5676 = vadd.f32 %v4811, %v5675
  %v5677 = vand.u32 %v255, 4294901760
  %5678 = vmatmul.f32.gmra.mxu0 %v5677
  %v5679 = vpop.f32.mrf.mxu0
  %v5680 = vadd.f32 %v4817, %v5679
  %v5681 = vand.u32 %v257, 4294901760
  %5682 = vmatmul.f32.gmra.mxu0 %v5681
  %v5683 = vpop.f32.mrf.mxu0
  %v5684 = vadd.f32 %v4823, %v5683
  %v5685 = vand.u32 %v259, 4294901760
  %5686 = vmatmul.f32.gmra.mxu0 %v5685
  %v5687 = vpop.f32.mrf.mxu0
  %v5688 = vadd.f32 %v4829, %v5687
  %v5689 = vand.u32 %v261, 4294901760
  %5690 = vmatmul.f32.gmra.mxu0 %v5689
  %v5691 = vpop.f32.mrf.mxu0
  %v5692 = vadd.f32 %v4835, %v5691
  %v5693 = vand.u32 %v263, 4294901760
  %5694 = vmatmul.f32.gmra.mxu0 %v5693
  %v5695 = vpop.f32.mrf.mxu0
  %v5696 = vadd.f32 %v4841, %v5695
  %v5697 = vand.u32 %v265, 4294901760
  %5698 = vmatmul.f32.gmra.mxu0 %v5697
  %v5699 = vpop.f32.mrf.mxu0
  %v5700 = vadd.f32 %v4847, %v5699
  %v5701 = vand.u32 %v267, 4294901760
  %5702 = vmatmul.f32.gmra.mxu0 %v5701
  %v5703 = vpop.f32.mrf.mxu0
  %v5704 = vadd.f32 %v4853, %v5703
  %v5705 = vand.u32 %v269, 4294901760
  %5706 = vmatmul.f32.gmra.mxu0 %v5705
  %v5707 = vpop.f32.mrf.mxu0
  %v5708 = vadd.f32 %v4859, %v5707
  %v5709 = vand.u32 %v271, 4294901760
  %5710 = vmatmul.f32.gmra.mxu0 %v5709
  %v5711 = vpop.f32.mrf.mxu0
  %v5712 = vadd.f32 %v4865, %v5711
  %v5713 = vand.u32 %v273, 4294901760
  %5714 = vmatmul.f32.gmra.mxu0 %v5713
  %v5715 = vpop.f32.mrf.mxu0
  %v5716 = vadd.f32 %v4871, %v5715
  %v5717 = vand.u32 %v275, 4294901760
  %5718 = vmatmul.f32.gmra.mxu0 %v5717
  %v5719 = vpop.f32.mrf.mxu0
  %v5720 = vadd.f32 %v4877, %v5719
  %v5721 = vand.u32 %v277, 4294901760
  %5722 = vmatmul.f32.gmra.mxu0 %v5721
  %v5723 = vpop.f32.mrf.mxu0
  %v5724 = vadd.f32 %v4883, %v5723
  %v5725 = vand.u32 %v279, 4294901760
  %5726 = vmatmul.f32.gmra.mxu0 %v5725
  %v5727 = vpop.f32.mrf.mxu0
  %v5728 = vadd.f32 %v4889, %v5727
  %v5729 = vand.u32 %v281, 4294901760
  %5730 = vmatmul.f32.gmra.mxu0 %v5729
  %v5731 = vpop.f32.mrf.mxu0
  %v5732 = vadd.f32 %v4895, %v5731
  %v5733 = vand.u32 %v283, 4294901760
  %5734 = vmatmul.f32.gmra.mxu0 %v5733
  %v5735 = vpop.f32.mrf.mxu0
  %v5736 = vadd.f32 %v4901, %v5735
  %v5737 = vand.u32 %v285, 4294901760
  %5738 = vmatmul.f32.gmra.mxu0 %v5737
  %v5739 = vpop.f32.mrf.mxu0
  %v5740 = vadd.f32 %v4907, %v5739
  %v5741 = vand.u32 %v287, 4294901760
  %5742 = vmatmul.f32.gmra.mxu0 %v5741
  %v5743 = vpop.f32.mrf.mxu0
  %v5744 = vadd.f32 %v4913, %v5743
  %v5745 = vand.u32 %v289, 4294901760
  %5746 = vmatmul.f32.gmra.mxu0 %v5745
  %v5747 = vpop.f32.mrf.mxu0
  %v5748 = vadd.f32 %v4919, %v5747
  %v5749 = vand.u32 %v291, 4294901760
  %5750 = vmatmul.f32.gmra.mxu0 %v5749
  %v5751 = vpop.f32.mrf.mxu0
  %v5752 = vadd.f32 %v4925, %v5751
  %v5753 = vand.u32 %v293, 4294901760
  %5754 = vmatmul.f32.gmra.mxu0 %v5753
  %v5755 = vpop.f32.mrf.mxu0
  %v5756 = vadd.f32 %v4931, %v5755
  %v5757 = vand.u32 %v295, 4294901760
  %5758 = vmatmul.f32.gmra.mxu0 %v5757
  %v5759 = vpop.f32.mrf.mxu0
  %v5760 = vadd.f32 %v4937, %v5759
  %v5761 = vand.u32 %v297, 4294901760
  %5762 = vmatmul.f32.gmra.mxu0 %v5761
  %v5763 = vpop.f32.mrf.mxu0
  %v5764 = vadd.f32 %v4943, %v5763
  %v5765 = vand.u32 %v299, 4294901760
  %5766 = vmatmul.f32.gmra.mxu0 %v5765
  %v5767 = vpop.f32.mrf.mxu0
  %v5768 = vadd.f32 %v4949, %v5767
  %v5769 = vand.u32 %v301, 4294901760
  %5770 = vmatmul.f32.gmra.mxu0 %v5769
  %v5771 = vpop.f32.mrf.mxu0
  %v5772 = vadd.f32 %v4955, %v5771
  %v5773 = vand.u32 %v303, 4294901760
  %5774 = vmatmul.f32.gmra.mxu0 %v5773
  %v5775 = vpop.f32.mrf.mxu0
  %v5776 = vadd.f32 %v4961, %v5775
  %v5777 = vand.u32 %v305, 4294901760
  %5778 = vmatmul.f32.gmra.mxu0 %v5777
  %v5779 = vpop.f32.mrf.mxu0
  %v5780 = vadd.f32 %v4967, %v5779
  %v5781 = vand.u32 %v307, 4294901760
  %5782 = vmatmul.f32.gmra.mxu0 %v5781
  %v5783 = vpop.f32.mrf.mxu0
  %v5784 = vadd.f32 %v4973, %v5783
  %v5785 = vand.u32 %v309, 4294901760
  %5786 = vmatmul.f32.gmra.mxu0 %v5785
  %v5787 = vpop.f32.mrf.mxu0
  %v5788 = vadd.f32 %v4979, %v5787
  %v5789 = vand.u32 %v311, 4294901760
  %5790 = vmatmul.f32.gmra.mxu0 %v5789
  %v5791 = vpop.f32.mrf.mxu0
  %v5792 = vadd.f32 %v4985, %v5791
  %v5793 = vand.u32 %v313, 4294901760
  %5794 = vmatmul.f32.gmra.mxu0 %v5793
  %v5795 = vpop.f32.mrf.mxu0
  %v5796 = vadd.f32 %v4991, %v5795
  %v5797 = vand.u32 %v315, 4294901760
  %5798 = vmatmul.f32.gmra.mxu0 %v5797
  %v5799 = vpop.f32.mrf.mxu0
  %v5800 = vadd.f32 %v4997, %v5799
  %v5801 = vand.u32 %v317, 4294901760
  %5802 = vmatmul.f32.gmra.mxu0 %v5801
  %v5803 = vpop.f32.mrf.mxu0
  %v5804 = vadd.f32 %v5003, %v5803
  %v5805 = vand.u32 %v319, 4294901760
  %5806 = vmatmul.f32.gmra.mxu0 %v5805
  %v5807 = vpop.f32.mrf.mxu0
  %v5808 = vadd.f32 %v5009, %v5807
  %v5809 = vand.u32 %v321, 4294901760
  %5810 = vmatmul.f32.gmra.mxu0 %v5809
  %v5811 = vpop.f32.mrf.mxu0
  %v5812 = vadd.f32 %v5015, %v5811
  %v5813 = vand.u32 %v323, 4294901760
  %5814 = vmatmul.f32.gmra.mxu0 %v5813
  %v5815 = vpop.f32.mrf.mxu0
  %v5816 = vadd.f32 %v5021, %v5815
  %v5817 = vand.u32 %v325, 4294901760
  %5818 = vmatmul.f32.gmra.mxu0 %v5817
  %v5819 = vpop.f32.mrf.mxu0
  %v5820 = vadd.f32 %v5027, %v5819
  %v5821 = vand.u32 %v327, 4294901760
  %5822 = vmatmul.f32.gmra.mxu0 %v5821
  %v5823 = vpop.f32.mrf.mxu0
  %v5824 = vadd.f32 %v5033, %v5823
  %v5825 = vand.u32 %v329, 4294901760
  %5826 = vmatmul.f32.gmra.mxu0 %v5825
  %v5827 = vpop.f32.mrf.mxu0
  %v5828 = vadd.f32 %v5039, %v5827
  %v5829 = vand.u32 %v331, 4294901760
  %5830 = vmatmul.f32.gmra.mxu0 %v5829
  %v5831 = vpop.f32.mrf.mxu0
  %v5832 = vadd.f32 %v5045, %v5831
  %v5833 = vand.u32 %v333, 4294901760
  %5834 = vmatmul.f32.gmra.mxu0 %v5833
  %v5835 = vpop.f32.mrf.mxu0
  %v5836 = vadd.f32 %v5051, %v5835
  %v5837 = vand.u32 %v335, 4294901760
  %5838 = vmatmul.f32.gmra.mxu0 %v5837
  %v5839 = vpop.f32.mrf.mxu0
  %v5840 = vadd.f32 %v5057, %v5839
  %v5841 = vand.u32 %v337, 4294901760
  %5842 = vmatmul.f32.gmra.mxu0 %v5841
  %v5843 = vpop.f32.mrf.mxu0
  %v5844 = vadd.f32 %v5063, %v5843
  %v5845 = vand.u32 %v339, 4294901760
  %5846 = vmatmul.f32.gmra.mxu0 %v5845
  %v5847 = vpop.f32.mrf.mxu0
  %v5848 = vadd.f32 %v5069, %v5847
  %v5849 = vand.u32 %v341, 4294901760
  %5850 = vmatmul.f32.gmra.mxu0 %v5849
  %v5851 = vpop.f32.mrf.mxu0
  %v5852 = vadd.f32 %v5075, %v5851
  %v5853 = vand.u32 %v343, 4294901760
  %5854 = vmatmul.f32.gmra.mxu0 %v5853
  %v5855 = vpop.f32.mrf.mxu0
  %v5856 = vadd.f32 %v5081, %v5855
  %v5857 = vand.u32 %v345, 4294901760
  %5858 = vmatmul.f32.gmra.mxu0 %v5857
  %v5859 = vpop.f32.mrf.mxu0
  %v5860 = vadd.f32 %v5087, %v5859
  %v5861 = vand.u32 %v347, 4294901760
  %5862 = vmatmul.f32.gmra.mxu0 %v5861
  %v5863 = vpop.f32.mrf.mxu0
  %v5864 = vadd.f32 %v5093, %v5863
  %v5865 = vand.u32 %v349, 4294901760
  %5866 = vmatmul.f32.gmra.mxu0 %v5865
  %v5867 = vpop.f32.mrf.mxu0
  %v5868 = vadd.f32 %v5099, %v5867
  %v5869 = vand.u32 %v351, 4294901760
  %5870 = vmatmul.f32.gmra.mxu0 %v5869
  %v5871 = vpop.f32.mrf.mxu0
  %v5872 = vadd.f32 %v5105, %v5871
  %v5873 = vand.u32 %v353, 4294901760
  %5874 = vmatmul.f32.gmra.mxu0 %v5873
  %v5875 = vpop.f32.mrf.mxu0
  %v5876 = vadd.f32 %v5111, %v5875
  %v5877 = vand.u32 %v355, 4294901760
  %5878 = vmatmul.f32.gmra.mxu0 %v5877
  %v5879 = vpop.f32.mrf.mxu0
  %v5880 = vadd.f32 %v5117, %v5879
  %v5881 = vand.u32 %v357, 4294901760
  %5882 = vmatmul.f32.gmra.mxu0 %v5881
  %v5883 = vpop.f32.mrf.mxu0
  %v5884 = vadd.f32 %v5123, %v5883
  %5885 = vdwg.mxu0
  %v5886 = vand.u32 %v374, 4294901760
  %5887 = vmatpush.msra.mxu0 %v5886
  %v5888 = vand.u32 %v373, 4294901760
  %5889 = vmatpush.msra.mxu0 %v5888
  %v5890 = vand.u32 %v372, 4294901760
  %5891 = vmatpush.msra.mxu0 %v5890
  %v5892 = vand.u32 %v371, 4294901760
  %5893 = vmatpush.msra.mxu0 %v5892
  %v5894 = vand.u32 %v370, 4294901760
  %5895 = vmatpush.msra.mxu0 %v5894
  %v5896 = vand.u32 %v369, 4294901760
  %5897 = vmatpush.msra.mxu0 %v5896
  %v5898 = vand.u32 %v368, 4294901760
  %5899 = vmatpush.msra.mxu0 %v5898
  %v5900 = vand.u32 %v367, 4294901760
  %5901 = vmatpush.msra.mxu0 %v5900
  %v5902 = vand.u32 %v366, 4294901760
  %5903 = vmatpush.msra.mxu0 %v5902
  %v5904 = vand.u32 %v365, 4294901760
  %5905 = vmatpush.msra.mxu0 %v5904
  %v5906 = vand.u32 %v364, 4294901760
  %5907 = vmatpush.msra.mxu0 %v5906
  %v5908 = vand.u32 %v363, 4294901760
  %5909 = vmatpush.msra.mxu0 %v5908
  %v5910 = vand.u32 %v362, 4294901760
  %5911 = vmatpush.msra.mxu0 %v5910
  %v5912 = vand.u32 %v361, 4294901760
  %5913 = vmatpush.msra.mxu0 %v5912
  %v5914 = vand.u32 %v360, 4294901760
  %5915 = vmatpush.msra.mxu0 %v5914
  %v5916 = vand.u32 %v359, 4294901760
  %5917 = vmatpush.msra.mxu0 %v5916
  %v5918 = vand.u32 %v11, 4294901760
  %5919 = vmatmul.f32.gmra.mxu0 %v5918
  %v5920 = vpop.f32.mrf.mxu0
  %v5921 = vadd.f32 %v5192, %v5920
  %v5922 = vand.u32 %v13, 4294901760
  %5923 = vmatmul.f32.gmra.mxu0 %v5922
  %v5924 = vpop.f32.mrf.mxu0
  %v5925 = vadd.f32 %v5196, %v5924
  %v5926 = vand.u32 %v15, 4294901760
  %5927 = vmatmul.f32.gmra.mxu0 %v5926
  %v5928 = vpop.f32.mrf.mxu0
  %v5929 = vadd.f32 %v5200, %v5928
  %v5930 = vand.u32 %v17, 4294901760
  %5931 = vmatmul.f32.gmra.mxu0 %v5930
  %v5932 = vpop.f32.mrf.mxu0
  %v5933 = vadd.f32 %v5204, %v5932
  %v5934 = vand.u32 %v19, 4294901760
  %5935 = vmatmul.f32.gmra.mxu0 %v5934
  %v5936 = vpop.f32.mrf.mxu0
  %v5937 = vadd.f32 %v5208, %v5936
  %v5938 = vand.u32 %v21, 4294901760
  %5939 = vmatmul.f32.gmra.mxu0 %v5938
  %v5940 = vpop.f32.mrf.mxu0
  %v5941 = vadd.f32 %v5212, %v5940
  %v5942 = vand.u32 %v23, 4294901760
  %5943 = vmatmul.f32.gmra.mxu0 %v5942
  %v5944 = vpop.f32.mrf.mxu0
  %v5945 = vadd.f32 %v5216, %v5944
  %v5946 = vand.u32 %v25, 4294901760
  %5947 = vmatmul.f32.gmra.mxu0 %v5946
  %v5948 = vpop.f32.mrf.mxu0
  %v5949 = vadd.f32 %v5220, %v5948
  %v5950 = vand.u32 %v27, 4294901760
  %5951 = vmatmul.f32.gmra.mxu0 %v5950
  %v5952 = vpop.f32.mrf.mxu0
  %v5953 = vadd.f32 %v5224, %v5952
  %v5954 = vand.u32 %v29, 4294901760
  %5955 = vmatmul.f32.gmra.mxu0 %v5954
  %v5956 = vpop.f32.mrf.mxu0
  %v5957 = vadd.f32 %v5228, %v5956
  %v5958 = vand.u32 %v31, 4294901760
  %5959 = vmatmul.f32.gmra.mxu0 %v5958
  %v5960 = vpop.f32.mrf.mxu0
  %v5961 = vadd.f32 %v5232, %v5960
  %v5962 = vand.u32 %v33, 4294901760
  %5963 = vmatmul.f32.gmra.mxu0 %v5962
  %v5964 = vpop.f32.mrf.mxu0
  %v5965 = vadd.f32 %v5236, %v5964
  %v5966 = vand.u32 %v35, 4294901760
  %5967 = vmatmul.f32.gmra.mxu0 %v5966
  %v5968 = vpop.f32.mrf.mxu0
  %v5969 = vadd.f32 %v5240, %v5968
  %v5970 = vand.u32 %v37, 4294901760
  %5971 = vmatmul.f32.gmra.mxu0 %v5970
  %v5972 = vpop.f32.mrf.mxu0
  %v5973 = vadd.f32 %v5244, %v5972
  %v5974 = vand.u32 %v39, 4294901760
  %5975 = vmatmul.f32.gmra.mxu0 %v5974
  %v5976 = vpop.f32.mrf.mxu0
  %v5977 = vadd.f32 %v5248, %v5976
  %v5978 = vand.u32 %v41, 4294901760
  %5979 = vmatmul.f32.gmra.mxu0 %v5978
  %v5980 = vpop.f32.mrf.mxu0
  %v5981 = vadd.f32 %v5252, %v5980
  %v5982 = vand.u32 %v43, 4294901760
  %5983 = vmatmul.f32.gmra.mxu0 %v5982
  %v5984 = vpop.f32.mrf.mxu0
  %v5985 = vadd.f32 %v5256, %v5984
  %v5986 = vand.u32 %v45, 4294901760
  %5987 = vmatmul.f32.gmra.mxu0 %v5986
  %v5988 = vpop.f32.mrf.mxu0
  %v5989 = vadd.f32 %v5260, %v5988
  %v5990 = vand.u32 %v47, 4294901760
  %5991 = vmatmul.f32.gmra.mxu0 %v5990
  %v5992 = vpop.f32.mrf.mxu0
  %v5993 = vadd.f32 %v5264, %v5992
  %v5994 = vand.u32 %v49, 4294901760
  %5995 = vmatmul.f32.gmra.mxu0 %v5994
  %v5996 = vpop.f32.mrf.mxu0
  %v5997 = vadd.f32 %v5268, %v5996
  %v5998 = vand.u32 %v51, 4294901760
  %5999 = vmatmul.f32.gmra.mxu0 %v5998
  %v6000 = vpop.f32.mrf.mxu0
  %v6001 = vadd.f32 %v5272, %v6000
  %v6002 = vand.u32 %v53, 4294901760
  %6003 = vmatmul.f32.gmra.mxu0 %v6002
  %v6004 = vpop.f32.mrf.mxu0
  %v6005 = vadd.f32 %v5276, %v6004
  %v6006 = vand.u32 %v55, 4294901760
  %6007 = vmatmul.f32.gmra.mxu0 %v6006
  %v6008 = vpop.f32.mrf.mxu0
  %v6009 = vadd.f32 %v5280, %v6008
  %v6010 = vand.u32 %v57, 4294901760
  %6011 = vmatmul.f32.gmra.mxu0 %v6010
  %v6012 = vpop.f32.mrf.mxu0
  %v6013 = vadd.f32 %v5284, %v6012
  %v6014 = vand.u32 %v59, 4294901760
  %6015 = vmatmul.f32.gmra.mxu0 %v6014
  %v6016 = vpop.f32.mrf.mxu0
  %v6017 = vadd.f32 %v5288, %v6016
  %v6018 = vand.u32 %v61, 4294901760
  %6019 = vmatmul.f32.gmra.mxu0 %v6018
  %v6020 = vpop.f32.mrf.mxu0
  %v6021 = vadd.f32 %v5292, %v6020
  %v6022 = vand.u32 %v63, 4294901760
  %6023 = vmatmul.f32.gmra.mxu0 %v6022
  %v6024 = vpop.f32.mrf.mxu0
  %v6025 = vadd.f32 %v5296, %v6024
  %v6026 = vand.u32 %v65, 4294901760
  %6027 = vmatmul.f32.gmra.mxu0 %v6026
  %v6028 = vpop.f32.mrf.mxu0
  %v6029 = vadd.f32 %v5300, %v6028
  %v6030 = vand.u32 %v67, 4294901760
  %6031 = vmatmul.f32.gmra.mxu0 %v6030
  %v6032 = vpop.f32.mrf.mxu0
  %v6033 = vadd.f32 %v5304, %v6032
  %v6034 = vand.u32 %v69, 4294901760
  %6035 = vmatmul.f32.gmra.mxu0 %v6034
  %v6036 = vpop.f32.mrf.mxu0
  %v6037 = vadd.f32 %v5308, %v6036
  %v6038 = vand.u32 %v71, 4294901760
  %6039 = vmatmul.f32.gmra.mxu0 %v6038
  %v6040 = vpop.f32.mrf.mxu0
  %v6041 = vadd.f32 %v5312, %v6040
  %v6042 = vand.u32 %v73, 4294901760
  %6043 = vmatmul.f32.gmra.mxu0 %v6042
  %v6044 = vpop.f32.mrf.mxu0
  %v6045 = vadd.f32 %v5316, %v6044
  %v6046 = vand.u32 %v75, 4294901760
  %6047 = vmatmul.f32.gmra.mxu0 %v6046
  %v6048 = vpop.f32.mrf.mxu0
  %v6049 = vadd.f32 %v5320, %v6048
  %v6050 = vand.u32 %v77, 4294901760
  %6051 = vmatmul.f32.gmra.mxu0 %v6050
  %v6052 = vpop.f32.mrf.mxu0
  %v6053 = vadd.f32 %v5324, %v6052
  %v6054 = vand.u32 %v79, 4294901760
  %6055 = vmatmul.f32.gmra.mxu0 %v6054
  %v6056 = vpop.f32.mrf.mxu0
  %v6057 = vadd.f32 %v5328, %v6056
  %v6058 = vand.u32 %v81, 4294901760
  %6059 = vmatmul.f32.gmra.mxu0 %v6058
  %v6060 = vpop.f32.mrf.mxu0
  %v6061 = vadd.f32 %v5332, %v6060
  %v6062 = vand.u32 %v83, 4294901760
  %6063 = vmatmul.f32.gmra.mxu0 %v6062
  %v6064 = vpop.f32.mrf.mxu0
  %v6065 = vadd.f32 %v5336, %v6064
  %v6066 = vand.u32 %v85, 4294901760
  %6067 = vmatmul.f32.gmra.mxu0 %v6066
  %v6068 = vpop.f32.mrf.mxu0
  %v6069 = vadd.f32 %v5340, %v6068
  %v6070 = vand.u32 %v87, 4294901760
  %6071 = vmatmul.f32.gmra.mxu0 %v6070
  %v6072 = vpop.f32.mrf.mxu0
  %v6073 = vadd.f32 %v5344, %v6072
  %v6074 = vand.u32 %v89, 4294901760
  %6075 = vmatmul.f32.gmra.mxu0 %v6074
  %v6076 = vpop.f32.mrf.mxu0
  %v6077 = vadd.f32 %v5348, %v6076
  %v6078 = vand.u32 %v91, 4294901760
  %6079 = vmatmul.f32.gmra.mxu0 %v6078
  %v6080 = vpop.f32.mrf.mxu0
  %v6081 = vadd.f32 %v5352, %v6080
  %v6082 = vand.u32 %v93, 4294901760
  %6083 = vmatmul.f32.gmra.mxu0 %v6082
  %v6084 = vpop.f32.mrf.mxu0
  %v6085 = vadd.f32 %v5356, %v6084
  %v6086 = vand.u32 %v95, 4294901760
  %6087 = vmatmul.f32.gmra.mxu0 %v6086
  %v6088 = vpop.f32.mrf.mxu0
  %v6089 = vadd.f32 %v5360, %v6088
  %v6090 = vand.u32 %v97, 4294901760
  %6091 = vmatmul.f32.gmra.mxu0 %v6090
  %v6092 = vpop.f32.mrf.mxu0
  %v6093 = vadd.f32 %v5364, %v6092
  %v6094 = vand.u32 %v99, 4294901760
  %6095 = vmatmul.f32.gmra.mxu0 %v6094
  %v6096 = vpop.f32.mrf.mxu0
  %v6097 = vadd.f32 %v5368, %v6096
  %v6098 = vand.u32 %v101, 4294901760
  %6099 = vmatmul.f32.gmra.mxu0 %v6098
  %v6100 = vpop.f32.mrf.mxu0
  %v6101 = vadd.f32 %v5372, %v6100
  %v6102 = vand.u32 %v103, 4294901760
  %6103 = vmatmul.f32.gmra.mxu0 %v6102
  %v6104 = vpop.f32.mrf.mxu0
  %v6105 = vadd.f32 %v5376, %v6104
  %v6106 = vand.u32 %v105, 4294901760
  %6107 = vmatmul.f32.gmra.mxu0 %v6106
  %v6108 = vpop.f32.mrf.mxu0
  %v6109 = vadd.f32 %v5380, %v6108
  %v6110 = vand.u32 %v107, 4294901760
  %6111 = vmatmul.f32.gmra.mxu0 %v6110
  %v6112 = vpop.f32.mrf.mxu0
  %v6113 = vadd.f32 %v5384, %v6112
  %v6114 = vand.u32 %v109, 4294901760
  %6115 = vmatmul.f32.gmra.mxu0 %v6114
  %v6116 = vpop.f32.mrf.mxu0
  %v6117 = vadd.f32 %v5388, %v6116
  %v6118 = vand.u32 %v111, 4294901760
  %6119 = vmatmul.f32.gmra.mxu0 %v6118
  %v6120 = vpop.f32.mrf.mxu0
  %v6121 = vadd.f32 %v5392, %v6120
  %v6122 = vand.u32 %v113, 4294901760
  %6123 = vmatmul.f32.gmra.mxu0 %v6122
  %v6124 = vpop.f32.mrf.mxu0
  %v6125 = vadd.f32 %v5396, %v6124
  %v6126 = vand.u32 %v115, 4294901760
  %6127 = vmatmul.f32.gmra.mxu0 %v6126
  %v6128 = vpop.f32.mrf.mxu0
  %v6129 = vadd.f32 %v5400, %v6128
  %v6130 = vand.u32 %v117, 4294901760
  %6131 = vmatmul.f32.gmra.mxu0 %v6130
  %v6132 = vpop.f32.mrf.mxu0
  %v6133 = vadd.f32 %v5404, %v6132
  %v6134 = vand.u32 %v119, 4294901760
  %6135 = vmatmul.f32.gmra.mxu0 %v6134
  %v6136 = vpop.f32.mrf.mxu0
  %v6137 = vadd.f32 %v5408, %v6136
  %v6138 = vand.u32 %v121, 4294901760
  %6139 = vmatmul.f32.gmra.mxu0 %v6138
  %v6140 = vpop.f32.mrf.mxu0
  %v6141 = vadd.f32 %v5412, %v6140
  %v6142 = vand.u32 %v123, 4294901760
  %6143 = vmatmul.f32.gmra.mxu0 %v6142
  %v6144 = vpop.f32.mrf.mxu0
  %v6145 = vadd.f32 %v5416, %v6144
  %v6146 = vand.u32 %v125, 4294901760
  %6147 = vmatmul.f32.gmra.mxu0 %v6146
  %v6148 = vpop.f32.mrf.mxu0
  %v6149 = vadd.f32 %v5420, %v6148
  %v6150 = vand.u32 %v127, 4294901760
  %6151 = vmatmul.f32.gmra.mxu0 %v6150
  %v6152 = vpop.f32.mrf.mxu0
  %v6153 = vadd.f32 %v5424, %v6152
  %v6154 = vand.u32 %v129, 4294901760
  %6155 = vmatmul.f32.gmra.mxu0 %v6154
  %v6156 = vpop.f32.mrf.mxu0
  %v6157 = vadd.f32 %v5428, %v6156
  %v6158 = vand.u32 %v131, 4294901760
  %6159 = vmatmul.f32.gmra.mxu0 %v6158
  %v6160 = vpop.f32.mrf.mxu0
  %v6161 = vadd.f32 %v5432, %v6160
  %v6162 = vand.u32 %v133, 4294901760
  %6163 = vmatmul.f32.gmra.mxu0 %v6162
  %v6164 = vpop.f32.mrf.mxu0
  %v6165 = vadd.f32 %v5436, %v6164
  %v6166 = vand.u32 %v135, 4294901760
  %6167 = vmatmul.f32.gmra.mxu0 %v6166
  %v6168 = vpop.f32.mrf.mxu0
  %v6169 = vadd.f32 %v5440, %v6168
  %v6170 = vand.u32 %v137, 4294901760
  %6171 = vmatmul.f32.gmra.mxu0 %v6170
  %v6172 = vpop.f32.mrf.mxu0
  %v6173 = vadd.f32 %v5444, %v6172
  %v6174 = vand.u32 %v139, 4294901760
  %6175 = vmatmul.f32.gmra.mxu0 %v6174
  %v6176 = vpop.f32.mrf.mxu0
  %v6177 = vadd.f32 %v5448, %v6176
  %v6178 = vand.u32 %v141, 4294901760
  %6179 = vmatmul.f32.gmra.mxu0 %v6178
  %v6180 = vpop.f32.mrf.mxu0
  %v6181 = vadd.f32 %v5452, %v6180
  %v6182 = vand.u32 %v143, 4294901760
  %6183 = vmatmul.f32.gmra.mxu0 %v6182
  %v6184 = vpop.f32.mrf.mxu0
  %v6185 = vadd.f32 %v5456, %v6184
  %v6186 = vand.u32 %v145, 4294901760
  %6187 = vmatmul.f32.gmra.mxu0 %v6186
  %v6188 = vpop.f32.mrf.mxu0
  %v6189 = vadd.f32 %v5460, %v6188
  %v6190 = vand.u32 %v147, 4294901760
  %6191 = vmatmul.f32.gmra.mxu0 %v6190
  %v6192 = vpop.f32.mrf.mxu0
  %v6193 = vadd.f32 %v5464, %v6192
  %v6194 = vand.u32 %v149, 4294901760
  %6195 = vmatmul.f32.gmra.mxu0 %v6194
  %v6196 = vpop.f32.mrf.mxu0
  %v6197 = vadd.f32 %v5468, %v6196
  %v6198 = vand.u32 %v151, 4294901760
  %6199 = vmatmul.f32.gmra.mxu0 %v6198
  %v6200 = vpop.f32.mrf.mxu0
  %v6201 = vadd.f32 %v5472, %v6200
  %v6202 = vand.u32 %v153, 4294901760
  %6203 = vmatmul.f32.gmra.mxu0 %v6202
  %v6204 = vpop.f32.mrf.mxu0
  %v6205 = vadd.f32 %v5476, %v6204
  %v6206 = vand.u32 %v155, 4294901760
  %6207 = vmatmul.f32.gmra.mxu0 %v6206
  %v6208 = vpop.f32.mrf.mxu0
  %v6209 = vadd.f32 %v5480, %v6208
  %v6210 = vand.u32 %v157, 4294901760
  %6211 = vmatmul.f32.gmra.mxu0 %v6210
  %v6212 = vpop.f32.mrf.mxu0
  %v6213 = vadd.f32 %v5484, %v6212
  %v6214 = vand.u32 %v159, 4294901760
  %6215 = vmatmul.f32.gmra.mxu0 %v6214
  %v6216 = vpop.f32.mrf.mxu0
  %v6217 = vadd.f32 %v5488, %v6216
  %v6218 = vand.u32 %v161, 4294901760
  %6219 = vmatmul.f32.gmra.mxu0 %v6218
  %v6220 = vpop.f32.mrf.mxu0
  %v6221 = vadd.f32 %v5492, %v6220
  %v6222 = vand.u32 %v163, 4294901760
  %6223 = vmatmul.f32.gmra.mxu0 %v6222
  %v6224 = vpop.f32.mrf.mxu0
  %v6225 = vadd.f32 %v5496, %v6224
  %v6226 = vand.u32 %v165, 4294901760
  %6227 = vmatmul.f32.gmra.mxu0 %v6226
  %v6228 = vpop.f32.mrf.mxu0
  %v6229 = vadd.f32 %v5500, %v6228
  %v6230 = vand.u32 %v167, 4294901760
  %6231 = vmatmul.f32.gmra.mxu0 %v6230
  %v6232 = vpop.f32.mrf.mxu0
  %v6233 = vadd.f32 %v5504, %v6232
  %v6234 = vand.u32 %v169, 4294901760
  %6235 = vmatmul.f32.gmra.mxu0 %v6234
  %v6236 = vpop.f32.mrf.mxu0
  %v6237 = vadd.f32 %v5508, %v6236
  %v6238 = vand.u32 %v171, 4294901760
  %6239 = vmatmul.f32.gmra.mxu0 %v6238
  %v6240 = vpop.f32.mrf.mxu0
  %v6241 = vadd.f32 %v5512, %v6240
  %v6242 = vand.u32 %v173, 4294901760
  %6243 = vmatmul.f32.gmra.mxu0 %v6242
  %v6244 = vpop.f32.mrf.mxu0
  %v6245 = vadd.f32 %v5516, %v6244
  %v6246 = vand.u32 %v175, 4294901760
  %6247 = vmatmul.f32.gmra.mxu0 %v6246
  %v6248 = vpop.f32.mrf.mxu0
  %v6249 = vadd.f32 %v5520, %v6248
  %v6250 = vand.u32 %v177, 4294901760
  %6251 = vmatmul.f32.gmra.mxu0 %v6250
  %v6252 = vpop.f32.mrf.mxu0
  %v6253 = vadd.f32 %v5524, %v6252
  %v6254 = vand.u32 %v179, 4294901760
  %6255 = vmatmul.f32.gmra.mxu0 %v6254
  %v6256 = vpop.f32.mrf.mxu0
  %v6257 = vadd.f32 %v5528, %v6256
  %v6258 = vand.u32 %v181, 4294901760
  %6259 = vmatmul.f32.gmra.mxu0 %v6258
  %v6260 = vpop.f32.mrf.mxu0
  %v6261 = vadd.f32 %v5532, %v6260
  %v6262 = vand.u32 %v183, 4294901760
  %6263 = vmatmul.f32.gmra.mxu0 %v6262
  %v6264 = vpop.f32.mrf.mxu0
  %v6265 = vadd.f32 %v5536, %v6264
  %v6266 = vand.u32 %v185, 4294901760
  %6267 = vmatmul.f32.gmra.mxu0 %v6266
  %v6268 = vpop.f32.mrf.mxu0
  %v6269 = vadd.f32 %v5540, %v6268
  %v6270 = vand.u32 %v187, 4294901760
  %6271 = vmatmul.f32.gmra.mxu0 %v6270
  %v6272 = vpop.f32.mrf.mxu0
  %v6273 = vadd.f32 %v5544, %v6272
  %v6274 = vand.u32 %v189, 4294901760
  %6275 = vmatmul.f32.gmra.mxu0 %v6274
  %v6276 = vpop.f32.mrf.mxu0
  %v6277 = vadd.f32 %v5548, %v6276
  %v6278 = vand.u32 %v191, 4294901760
  %6279 = vmatmul.f32.gmra.mxu0 %v6278
  %v6280 = vpop.f32.mrf.mxu0
  %v6281 = vadd.f32 %v5552, %v6280
  %v6282 = vand.u32 %v193, 4294901760
  %6283 = vmatmul.f32.gmra.mxu0 %v6282
  %v6284 = vpop.f32.mrf.mxu0
  %v6285 = vadd.f32 %v5556, %v6284
  %v6286 = vand.u32 %v195, 4294901760
  %6287 = vmatmul.f32.gmra.mxu0 %v6286
  %v6288 = vpop.f32.mrf.mxu0
  %v6289 = vadd.f32 %v5560, %v6288
  %v6290 = vand.u32 %v197, 4294901760
  %6291 = vmatmul.f32.gmra.mxu0 %v6290
  %v6292 = vpop.f32.mrf.mxu0
  %v6293 = vadd.f32 %v5564, %v6292
  %v6294 = vand.u32 %v199, 4294901760
  %6295 = vmatmul.f32.gmra.mxu0 %v6294
  %v6296 = vpop.f32.mrf.mxu0
  %v6297 = vadd.f32 %v5568, %v6296
  %v6298 = vand.u32 %v201, 4294901760
  %6299 = vmatmul.f32.gmra.mxu0 %v6298
  %v6300 = vpop.f32.mrf.mxu0
  %v6301 = vadd.f32 %v5572, %v6300
  %v6302 = vand.u32 %v203, 4294901760
  %6303 = vmatmul.f32.gmra.mxu0 %v6302
  %v6304 = vpop.f32.mrf.mxu0
  %v6305 = vadd.f32 %v5576, %v6304
  %v6306 = vand.u32 %v205, 4294901760
  %6307 = vmatmul.f32.gmra.mxu0 %v6306
  %v6308 = vpop.f32.mrf.mxu0
  %v6309 = vadd.f32 %v5580, %v6308
  %v6310 = vand.u32 %v207, 4294901760
  %6311 = vmatmul.f32.gmra.mxu0 %v6310
  %v6312 = vpop.f32.mrf.mxu0
  %v6313 = vadd.f32 %v5584, %v6312
  %v6314 = vand.u32 %v209, 4294901760
  %6315 = vmatmul.f32.gmra.mxu0 %v6314
  %v6316 = vpop.f32.mrf.mxu0
  %v6317 = vadd.f32 %v5588, %v6316
  %v6318 = vand.u32 %v211, 4294901760
  %6319 = vmatmul.f32.gmra.mxu0 %v6318
  %v6320 = vpop.f32.mrf.mxu0
  %v6321 = vadd.f32 %v5592, %v6320
  %v6322 = vand.u32 %v213, 4294901760
  %6323 = vmatmul.f32.gmra.mxu0 %v6322
  %v6324 = vpop.f32.mrf.mxu0
  %v6325 = vadd.f32 %v5596, %v6324
  %v6326 = vand.u32 %v215, 4294901760
  %6327 = vmatmul.f32.gmra.mxu0 %v6326
  %v6328 = vpop.f32.mrf.mxu0
  %v6329 = vadd.f32 %v5600, %v6328
  %v6330 = vand.u32 %v217, 4294901760
  %6331 = vmatmul.f32.gmra.mxu0 %v6330
  %v6332 = vpop.f32.mrf.mxu0
  %v6333 = vadd.f32 %v5604, %v6332
  %v6334 = vand.u32 %v219, 4294901760
  %6335 = vmatmul.f32.gmra.mxu0 %v6334
  %v6336 = vpop.f32.mrf.mxu0
  %v6337 = vadd.f32 %v5608, %v6336
  %v6338 = vand.u32 %v221, 4294901760
  %6339 = vmatmul.f32.gmra.mxu0 %v6338
  %v6340 = vpop.f32.mrf.mxu0
  %v6341 = vadd.f32 %v5612, %v6340
  %v6342 = vand.u32 %v223, 4294901760
  %6343 = vmatmul.f32.gmra.mxu0 %v6342
  %v6344 = vpop.f32.mrf.mxu0
  %v6345 = vadd.f32 %v5616, %v6344
  %v6346 = vand.u32 %v225, 4294901760
  %6347 = vmatmul.f32.gmra.mxu0 %v6346
  %v6348 = vpop.f32.mrf.mxu0
  %v6349 = vadd.f32 %v5620, %v6348
  %v6350 = vand.u32 %v227, 4294901760
  %6351 = vmatmul.f32.gmra.mxu0 %v6350
  %v6352 = vpop.f32.mrf.mxu0
  %v6353 = vadd.f32 %v5624, %v6352
  %v6354 = vand.u32 %v229, 4294901760
  %6355 = vmatmul.f32.gmra.mxu0 %v6354
  %v6356 = vpop.f32.mrf.mxu0
  %v6357 = vadd.f32 %v5628, %v6356
  %v6358 = vand.u32 %v231, 4294901760
  %6359 = vmatmul.f32.gmra.mxu0 %v6358
  %v6360 = vpop.f32.mrf.mxu0
  %v6361 = vadd.f32 %v5632, %v6360
  %v6362 = vand.u32 %v233, 4294901760
  %6363 = vmatmul.f32.gmra.mxu0 %v6362
  %v6364 = vpop.f32.mrf.mxu0
  %v6365 = vadd.f32 %v5636, %v6364
  %v6366 = vand.u32 %v235, 4294901760
  %6367 = vmatmul.f32.gmra.mxu0 %v6366
  %v6368 = vpop.f32.mrf.mxu0
  %v6369 = vadd.f32 %v5640, %v6368
  %v6370 = vand.u32 %v237, 4294901760
  %6371 = vmatmul.f32.gmra.mxu0 %v6370
  %v6372 = vpop.f32.mrf.mxu0
  %v6373 = vadd.f32 %v5644, %v6372
  %v6374 = vand.u32 %v239, 4294901760
  %6375 = vmatmul.f32.gmra.mxu0 %v6374
  %v6376 = vpop.f32.mrf.mxu0
  %v6377 = vadd.f32 %v5648, %v6376
  %v6378 = vand.u32 %v241, 4294901760
  %6379 = vmatmul.f32.gmra.mxu0 %v6378
  %v6380 = vpop.f32.mrf.mxu0
  %v6381 = vadd.f32 %v5652, %v6380
  %v6382 = vand.u32 %v243, 4294901760
  %6383 = vmatmul.f32.gmra.mxu0 %v6382
  %v6384 = vpop.f32.mrf.mxu0
  %v6385 = vadd.f32 %v5656, %v6384
  %v6386 = vand.u32 %v245, 4294901760
  %6387 = vmatmul.f32.gmra.mxu0 %v6386
  %v6388 = vpop.f32.mrf.mxu0
  %v6389 = vadd.f32 %v5660, %v6388
  %v6390 = vand.u32 %v247, 4294901760
  %6391 = vmatmul.f32.gmra.mxu0 %v6390
  %v6392 = vpop.f32.mrf.mxu0
  %v6393 = vadd.f32 %v5664, %v6392
  %v6394 = vand.u32 %v249, 4294901760
  %6395 = vmatmul.f32.gmra.mxu0 %v6394
  %v6396 = vpop.f32.mrf.mxu0
  %v6397 = vadd.f32 %v5668, %v6396
  %v6398 = vand.u32 %v251, 4294901760
  %6399 = vmatmul.f32.gmra.mxu0 %v6398
  %v6400 = vpop.f32.mrf.mxu0
  %v6401 = vadd.f32 %v5672, %v6400
  %v6402 = vand.u32 %v253, 4294901760
  %6403 = vmatmul.f32.gmra.mxu0 %v6402
  %v6404 = vpop.f32.mrf.mxu0
  %v6405 = vadd.f32 %v5676, %v6404
  %v6406 = vand.u32 %v255, 4294901760
  %6407 = vmatmul.f32.gmra.mxu0 %v6406
  %v6408 = vpop.f32.mrf.mxu0
  %v6409 = vadd.f32 %v5680, %v6408
  %v6410 = vand.u32 %v257, 4294901760
  %6411 = vmatmul.f32.gmra.mxu0 %v6410
  %v6412 = vpop.f32.mrf.mxu0
  %v6413 = vadd.f32 %v5684, %v6412
  %v6414 = vand.u32 %v259, 4294901760
  %6415 = vmatmul.f32.gmra.mxu0 %v6414
  %v6416 = vpop.f32.mrf.mxu0
  %v6417 = vadd.f32 %v5688, %v6416
  %v6418 = vand.u32 %v261, 4294901760
  %6419 = vmatmul.f32.gmra.mxu0 %v6418
  %v6420 = vpop.f32.mrf.mxu0
  %v6421 = vadd.f32 %v5692, %v6420
  %v6422 = vand.u32 %v263, 4294901760
  %6423 = vmatmul.f32.gmra.mxu0 %v6422
  %v6424 = vpop.f32.mrf.mxu0
  %v6425 = vadd.f32 %v5696, %v6424
  %v6426 = vand.u32 %v265, 4294901760
  %6427 = vmatmul.f32.gmra.mxu0 %v6426
  %v6428 = vpop.f32.mrf.mxu0
  %v6429 = vadd.f32 %v5700, %v6428
  %v6430 = vand.u32 %v267, 4294901760
  %6431 = vmatmul.f32.gmra.mxu0 %v6430
  %v6432 = vpop.f32.mrf.mxu0
  %v6433 = vadd.f32 %v5704, %v6432
  %v6434 = vand.u32 %v269, 4294901760
  %6435 = vmatmul.f32.gmra.mxu0 %v6434
  %v6436 = vpop.f32.mrf.mxu0
  %v6437 = vadd.f32 %v5708, %v6436
  %v6438 = vand.u32 %v271, 4294901760
  %6439 = vmatmul.f32.gmra.mxu0 %v6438
  %v6440 = vpop.f32.mrf.mxu0
  %v6441 = vadd.f32 %v5712, %v6440
  %v6442 = vand.u32 %v273, 4294901760
  %6443 = vmatmul.f32.gmra.mxu0 %v6442
  %v6444 = vpop.f32.mrf.mxu0
  %v6445 = vadd.f32 %v5716, %v6444
  %v6446 = vand.u32 %v275, 4294901760
  %6447 = vmatmul.f32.gmra.mxu0 %v6446
  %v6448 = vpop.f32.mrf.mxu0
  %v6449 = vadd.f32 %v5720, %v6448
  %v6450 = vand.u32 %v277, 4294901760
  %6451 = vmatmul.f32.gmra.mxu0 %v6450
  %v6452 = vpop.f32.mrf.mxu0
  %v6453 = vadd.f32 %v5724, %v6452
  %v6454 = vand.u32 %v279, 4294901760
  %6455 = vmatmul.f32.gmra.mxu0 %v6454
  %v6456 = vpop.f32.mrf.mxu0
  %v6457 = vadd.f32 %v5728, %v6456
  %v6458 = vand.u32 %v281, 4294901760
  %6459 = vmatmul.f32.gmra.mxu0 %v6458
  %v6460 = vpop.f32.mrf.mxu0
  %v6461 = vadd.f32 %v5732, %v6460
  %v6462 = vand.u32 %v283, 4294901760
  %6463 = vmatmul.f32.gmra.mxu0 %v6462
  %v6464 = vpop.f32.mrf.mxu0
  %v6465 = vadd.f32 %v5736, %v6464
  %v6466 = vand.u32 %v285, 4294901760
  %6467 = vmatmul.f32.gmra.mxu0 %v6466
  %v6468 = vpop.f32.mrf.mxu0
  %v6469 = vadd.f32 %v5740, %v6468
  %v6470 = vand.u32 %v287, 4294901760
  %6471 = vmatmul.f32.gmra.mxu0 %v6470
  %v6472 = vpop.f32.mrf.mxu0
  %v6473 = vadd.f32 %v5744, %v6472
  %v6474 = vand.u32 %v289, 4294901760
  %6475 = vmatmul.f32.gmra.mxu0 %v6474
  %v6476 = vpop.f32.mrf.mxu0
  %v6477 = vadd.f32 %v5748, %v6476
  %v6478 = vand.u32 %v291, 4294901760
  %6479 = vmatmul.f32.gmra.mxu0 %v6478
  %v6480 = vpop.f32.mrf.mxu0
  %v6481 = vadd.f32 %v5752, %v6480
  %v6482 = vand.u32 %v293, 4294901760
  %6483 = vmatmul.f32.gmra.mxu0 %v6482
  %v6484 = vpop.f32.mrf.mxu0
  %v6485 = vadd.f32 %v5756, %v6484
  %v6486 = vand.u32 %v295, 4294901760
  %6487 = vmatmul.f32.gmra.mxu0 %v6486
  %v6488 = vpop.f32.mrf.mxu0
  %v6489 = vadd.f32 %v5760, %v6488
  %v6490 = vand.u32 %v297, 4294901760
  %6491 = vmatmul.f32.gmra.mxu0 %v6490
  %v6492 = vpop.f32.mrf.mxu0
  %v6493 = vadd.f32 %v5764, %v6492
  %v6494 = vand.u32 %v299, 4294901760
  %6495 = vmatmul.f32.gmra.mxu0 %v6494
  %v6496 = vpop.f32.mrf.mxu0
  %v6497 = vadd.f32 %v5768, %v6496
  %v6498 = vand.u32 %v301, 4294901760
  %6499 = vmatmul.f32.gmra.mxu0 %v6498
  %v6500 = vpop.f32.mrf.mxu0
  %v6501 = vadd.f32 %v5772, %v6500
  %v6502 = vand.u32 %v303, 4294901760
  %6503 = vmatmul.f32.gmra.mxu0 %v6502
  %v6504 = vpop.f32.mrf.mxu0
  %v6505 = vadd.f32 %v5776, %v6504
  %v6506 = vand.u32 %v305, 4294901760
  %6507 = vmatmul.f32.gmra.mxu0 %v6506
  %v6508 = vpop.f32.mrf.mxu0
  %v6509 = vadd.f32 %v5780, %v6508
  %v6510 = vand.u32 %v307, 4294901760
  %6511 = vmatmul.f32.gmra.mxu0 %v6510
  %v6512 = vpop.f32.mrf.mxu0
  %v6513 = vadd.f32 %v5784, %v6512
  %v6514 = vand.u32 %v309, 4294901760
  %6515 = vmatmul.f32.gmra.mxu0 %v6514
  %v6516 = vpop.f32.mrf.mxu0
  %v6517 = vadd.f32 %v5788, %v6516
  %v6518 = vand.u32 %v311, 4294901760
  %6519 = vmatmul.f32.gmra.mxu0 %v6518
  %v6520 = vpop.f32.mrf.mxu0
  %v6521 = vadd.f32 %v5792, %v6520
  %v6522 = vand.u32 %v313, 4294901760
  %6523 = vmatmul.f32.gmra.mxu0 %v6522
  %v6524 = vpop.f32.mrf.mxu0
  %v6525 = vadd.f32 %v5796, %v6524
  %v6526 = vand.u32 %v315, 4294901760
  %6527 = vmatmul.f32.gmra.mxu0 %v6526
  %v6528 = vpop.f32.mrf.mxu0
  %v6529 = vadd.f32 %v5800, %v6528
  %v6530 = vand.u32 %v317, 4294901760
  %6531 = vmatmul.f32.gmra.mxu0 %v6530
  %v6532 = vpop.f32.mrf.mxu0
  %v6533 = vadd.f32 %v5804, %v6532
  %v6534 = vand.u32 %v319, 4294901760
  %6535 = vmatmul.f32.gmra.mxu0 %v6534
  %v6536 = vpop.f32.mrf.mxu0
  %v6537 = vadd.f32 %v5808, %v6536
  %v6538 = vand.u32 %v321, 4294901760
  %6539 = vmatmul.f32.gmra.mxu0 %v6538
  %v6540 = vpop.f32.mrf.mxu0
  %v6541 = vadd.f32 %v5812, %v6540
  %v6542 = vand.u32 %v323, 4294901760
  %6543 = vmatmul.f32.gmra.mxu0 %v6542
  %v6544 = vpop.f32.mrf.mxu0
  %v6545 = vadd.f32 %v5816, %v6544
  %v6546 = vand.u32 %v325, 4294901760
  %6547 = vmatmul.f32.gmra.mxu0 %v6546
  %v6548 = vpop.f32.mrf.mxu0
  %v6549 = vadd.f32 %v5820, %v6548
  %v6550 = vand.u32 %v327, 4294901760
  %6551 = vmatmul.f32.gmra.mxu0 %v6550
  %v6552 = vpop.f32.mrf.mxu0
  %v6553 = vadd.f32 %v5824, %v6552
  %v6554 = vand.u32 %v329, 4294901760
  %6555 = vmatmul.f32.gmra.mxu0 %v6554
  %v6556 = vpop.f32.mrf.mxu0
  %v6557 = vadd.f32 %v5828, %v6556
  %v6558 = vand.u32 %v331, 4294901760
  %6559 = vmatmul.f32.gmra.mxu0 %v6558
  %v6560 = vpop.f32.mrf.mxu0
  %v6561 = vadd.f32 %v5832, %v6560
  %v6562 = vand.u32 %v333, 4294901760
  %6563 = vmatmul.f32.gmra.mxu0 %v6562
  %v6564 = vpop.f32.mrf.mxu0
  %v6565 = vadd.f32 %v5836, %v6564
  %v6566 = vand.u32 %v335, 4294901760
  %6567 = vmatmul.f32.gmra.mxu0 %v6566
  %v6568 = vpop.f32.mrf.mxu0
  %v6569 = vadd.f32 %v5840, %v6568
  %v6570 = vand.u32 %v337, 4294901760
  %6571 = vmatmul.f32.gmra.mxu0 %v6570
  %v6572 = vpop.f32.mrf.mxu0
  %v6573 = vadd.f32 %v5844, %v6572
  %v6574 = vand.u32 %v339, 4294901760
  %6575 = vmatmul.f32.gmra.mxu0 %v6574
  %v6576 = vpop.f32.mrf.mxu0
  %v6577 = vadd.f32 %v5848, %v6576
  %v6578 = vand.u32 %v341, 4294901760
  %6579 = vmatmul.f32.gmra.mxu0 %v6578
  %v6580 = vpop.f32.mrf.mxu0
  %v6581 = vadd.f32 %v5852, %v6580
  %v6582 = vand.u32 %v343, 4294901760
  %6583 = vmatmul.f32.gmra.mxu0 %v6582
  %v6584 = vpop.f32.mrf.mxu0
  %v6585 = vadd.f32 %v5856, %v6584
  %v6586 = vand.u32 %v345, 4294901760
  %6587 = vmatmul.f32.gmra.mxu0 %v6586
  %v6588 = vpop.f32.mrf.mxu0
  %v6589 = vadd.f32 %v5860, %v6588
  %v6590 = vand.u32 %v347, 4294901760
  %6591 = vmatmul.f32.gmra.mxu0 %v6590
  %v6592 = vpop.f32.mrf.mxu0
  %v6593 = vadd.f32 %v5864, %v6592
  %v6594 = vand.u32 %v349, 4294901760
  %6595 = vmatmul.f32.gmra.mxu0 %v6594
  %v6596 = vpop.f32.mrf.mxu0
  %v6597 = vadd.f32 %v5868, %v6596
  %v6598 = vand.u32 %v351, 4294901760
  %6599 = vmatmul.f32.gmra.mxu0 %v6598
  %v6600 = vpop.f32.mrf.mxu0
  %v6601 = vadd.f32 %v5872, %v6600
  %v6602 = vand.u32 %v353, 4294901760
  %6603 = vmatmul.f32.gmra.mxu0 %v6602
  %v6604 = vpop.f32.mrf.mxu0
  %v6605 = vadd.f32 %v5876, %v6604
  %v6606 = vand.u32 %v355, 4294901760
  %6607 = vmatmul.f32.gmra.mxu0 %v6606
  %v6608 = vpop.f32.mrf.mxu0
  %v6609 = vadd.f32 %v5880, %v6608
  %v6610 = vand.u32 %v357, 4294901760
  %6611 = vmatmul.f32.gmra.mxu0 %v6610
  %v6612 = vpop.f32.mrf.mxu0
  %v6613 = vadd.f32 %v5884, %v6612
  %6614 = vdwg.mxu0
  %6615 = vmatpush.msra.mxu0 0.0
  %6616 = vmatpush.msra.mxu0 0.0
  %6617 = vmatpush.msra.mxu0 0.0
  %v6618 = vand.u32 %v387, 4294901760
  %6619 = vmatpush.msra.mxu0 %v6618
  %v6620 = vand.u32 %v386, 4294901760
  %6621 = vmatpush.msra.mxu0 %v6620
  %v6622 = vand.u32 %v385, 4294901760
  %6623 = vmatpush.msra.mxu0 %v6622
  %v6624 = vand.u32 %v384, 4294901760
  %6625 = vmatpush.msra.mxu0 %v6624
  %v6626 = vand.u32 %v383, 4294901760
  %6627 = vmatpush.msra.mxu0 %v6626
  %v6628 = vand.u32 %v382, 4294901760
  %6629 = vmatpush.msra.mxu0 %v6628
  %v6630 = vand.u32 %v381, 4294901760
  %6631 = vmatpush.msra.mxu0 %v6630
  %v6632 = vand.u32 %v380, 4294901760
  %6633 = vmatpush.msra.mxu0 %v6632
  %v6634 = vand.u32 %v379, 4294901760
  %6635 = vmatpush.msra.mxu0 %v6634
  %v6636 = vand.u32 %v378, 4294901760
  %6637 = vmatpush.msra.mxu0 %v6636
  %v6638 = vand.u32 %v377, 4294901760
  %6639 = vmatpush.msra.mxu0 %v6638
  %v6640 = vand.u32 %v376, 4294901760
  %6641 = vmatpush.msra.mxu0 %v6640
  %v6642 = vand.u32 %v375, 4294901760
  %6643 = vmatpush.msra.mxu0 %v6642
  %v6644 = vand.u32 %v390, 4294901760
  %v6645 = vsub.f32 %v390, %v6644
  %v6646 = vand.u32 %v6645, 4294901760
  %v6647 = vsub.f32 %v6645, %v6646
  %v6648 = vand.u32 %v6647, 4294901760
  %6649 = vmatmul.f32.gmra.mxu0 %v6648
  %v6650 = vpop.f32.mrf.mxu0
  %v6651 = vadd.f32 %v5921, %v6650
  %v6652 = vand.u32 %v393, 4294901760
  %v6653 = vsub.f32 %v393, %v6652
  %v6654 = vand.u32 %v6653, 4294901760
  %v6655 = vsub.f32 %v6653, %v6654
  %v6656 = vand.u32 %v6655, 4294901760
  %6657 = vmatmul.f32.gmra.mxu0 %v6656
  %v6658 = vpop.f32.mrf.mxu0
  %v6659 = vadd.f32 %v5925, %v6658
  %v6660 = vand.u32 %v396, 4294901760
  %v6661 = vsub.f32 %v396, %v6660
  %v6662 = vand.u32 %v6661, 4294901760
  %v6663 = vsub.f32 %v6661, %v6662
  %v6664 = vand.u32 %v6663, 4294901760
  %6665 = vmatmul.f32.gmra.mxu0 %v6664
  %v6666 = vpop.f32.mrf.mxu0
  %v6667 = vadd.f32 %v5929, %v6666
  %v6668 = vand.u32 %v399, 4294901760
  %v6669 = vsub.f32 %v399, %v6668
  %v6670 = vand.u32 %v6669, 4294901760
  %v6671 = vsub.f32 %v6669, %v6670
  %v6672 = vand.u32 %v6671, 4294901760
  %6673 = vmatmul.f32.gmra.mxu0 %v6672
  %v6674 = vpop.f32.mrf.mxu0
  %v6675 = vadd.f32 %v5933, %v6674
  %v6676 = vand.u32 %v402, 4294901760
  %v6677 = vsub.f32 %v402, %v6676
  %v6678 = vand.u32 %v6677, 4294901760
  %v6679 = vsub.f32 %v6677, %v6678
  %v6680 = vand.u32 %v6679, 4294901760
  %6681 = vmatmul.f32.gmra.mxu0 %v6680
  %v6682 = vpop.f32.mrf.mxu0
  %v6683 = vadd.f32 %v5937, %v6682
  %v6684 = vand.u32 %v405, 4294901760
  %v6685 = vsub.f32 %v405, %v6684
  %v6686 = vand.u32 %v6685, 4294901760
  %v6687 = vsub.f32 %v6685, %v6686
  %v6688 = vand.u32 %v6687, 4294901760
  %6689 = vmatmul.f32.gmra.mxu0 %v6688
  %v6690 = vpop.f32.mrf.mxu0
  %v6691 = vadd.f32 %v5941, %v6690
  %v6692 = vand.u32 %v408, 4294901760
  %v6693 = vsub.f32 %v408, %v6692
  %v6694 = vand.u32 %v6693, 4294901760
  %v6695 = vsub.f32 %v6693, %v6694
  %v6696 = vand.u32 %v6695, 4294901760
  %6697 = vmatmul.f32.gmra.mxu0 %v6696
  %v6698 = vpop.f32.mrf.mxu0
  %v6699 = vadd.f32 %v5945, %v6698
  %v6700 = vand.u32 %v411, 4294901760
  %v6701 = vsub.f32 %v411, %v6700
  %v6702 = vand.u32 %v6701, 4294901760
  %v6703 = vsub.f32 %v6701, %v6702
  %v6704 = vand.u32 %v6703, 4294901760
  %6705 = vmatmul.f32.gmra.mxu0 %v6704
  %v6706 = vpop.f32.mrf.mxu0
  %v6707 = vadd.f32 %v5949, %v6706
  %v6708 = vand.u32 %v414, 4294901760
  %v6709 = vsub.f32 %v414, %v6708
  %v6710 = vand.u32 %v6709, 4294901760
  %v6711 = vsub.f32 %v6709, %v6710
  %v6712 = vand.u32 %v6711, 4294901760
  %6713 = vmatmul.f32.gmra.mxu0 %v6712
  %v6714 = vpop.f32.mrf.mxu0
  %v6715 = vadd.f32 %v5953, %v6714
  %v6716 = vand.u32 %v417, 4294901760
  %v6717 = vsub.f32 %v417, %v6716
  %v6718 = vand.u32 %v6717, 4294901760
  %v6719 = vsub.f32 %v6717, %v6718
  %v6720 = vand.u32 %v6719, 4294901760
  %6721 = vmatmul.f32.gmra.mxu0 %v6720
  %v6722 = vpop.f32.mrf.mxu0
  %v6723 = vadd.f32 %v5957, %v6722
  %v6724 = vand.u32 %v420, 4294901760
  %v6725 = vsub.f32 %v420, %v6724
  %v6726 = vand.u32 %v6725, 4294901760
  %v6727 = vsub.f32 %v6725, %v6726
  %v6728 = vand.u32 %v6727, 4294901760
  %6729 = vmatmul.f32.gmra.mxu0 %v6728
  %v6730 = vpop.f32.mrf.mxu0
  %v6731 = vadd.f32 %v5961, %v6730
  %v6732 = vand.u32 %v423, 4294901760
  %v6733 = vsub.f32 %v423, %v6732
  %v6734 = vand.u32 %v6733, 4294901760
  %v6735 = vsub.f32 %v6733, %v6734
  %v6736 = vand.u32 %v6735, 4294901760
  %6737 = vmatmul.f32.gmra.mxu0 %v6736
  %v6738 = vpop.f32.mrf.mxu0
  %v6739 = vadd.f32 %v5965, %v6738
  %v6740 = vand.u32 %v426, 4294901760
  %v6741 = vsub.f32 %v426, %v6740
  %v6742 = vand.u32 %v6741, 4294901760
  %v6743 = vsub.f32 %v6741, %v6742
  %v6744 = vand.u32 %v6743, 4294901760
  %6745 = vmatmul.f32.gmra.mxu0 %v6744
  %v6746 = vpop.f32.mrf.mxu0
  %v6747 = vadd.f32 %v5969, %v6746
  %v6748 = vand.u32 %v429, 4294901760
  %v6749 = vsub.f32 %v429, %v6748
  %v6750 = vand.u32 %v6749, 4294901760
  %v6751 = vsub.f32 %v6749, %v6750
  %v6752 = vand.u32 %v6751, 4294901760
  %6753 = vmatmul.f32.gmra.mxu0 %v6752
  %v6754 = vpop.f32.mrf.mxu0
  %v6755 = vadd.f32 %v5973, %v6754
  %v6756 = vand.u32 %v432, 4294901760
  %v6757 = vsub.f32 %v432, %v6756
  %v6758 = vand.u32 %v6757, 4294901760
  %v6759 = vsub.f32 %v6757, %v6758
  %v6760 = vand.u32 %v6759, 4294901760
  %6761 = vmatmul.f32.gmra.mxu0 %v6760
  %v6762 = vpop.f32.mrf.mxu0
  %v6763 = vadd.f32 %v5977, %v6762
  %v6764 = vand.u32 %v435, 4294901760
  %v6765 = vsub.f32 %v435, %v6764
  %v6766 = vand.u32 %v6765, 4294901760
  %v6767 = vsub.f32 %v6765, %v6766
  %v6768 = vand.u32 %v6767, 4294901760
  %6769 = vmatmul.f32.gmra.mxu0 %v6768
  %v6770 = vpop.f32.mrf.mxu0
  %v6771 = vadd.f32 %v5981, %v6770
  %v6772 = vand.u32 %v438, 4294901760
  %v6773 = vsub.f32 %v438, %v6772
  %v6774 = vand.u32 %v6773, 4294901760
  %v6775 = vsub.f32 %v6773, %v6774
  %v6776 = vand.u32 %v6775, 4294901760
  %6777 = vmatmul.f32.gmra.mxu0 %v6776
  %v6778 = vpop.f32.mrf.mxu0
  %v6779 = vadd.f32 %v5985, %v6778
  %v6780 = vand.u32 %v441, 4294901760
  %v6781 = vsub.f32 %v441, %v6780
  %v6782 = vand.u32 %v6781, 4294901760
  %v6783 = vsub.f32 %v6781, %v6782
  %v6784 = vand.u32 %v6783, 4294901760
  %6785 = vmatmul.f32.gmra.mxu0 %v6784
  %v6786 = vpop.f32.mrf.mxu0
  %v6787 = vadd.f32 %v5989, %v6786
  %v6788 = vand.u32 %v444, 4294901760
  %v6789 = vsub.f32 %v444, %v6788
  %v6790 = vand.u32 %v6789, 4294901760
  %v6791 = vsub.f32 %v6789, %v6790
  %v6792 = vand.u32 %v6791, 4294901760
  %6793 = vmatmul.f32.gmra.mxu0 %v6792
  %v6794 = vpop.f32.mrf.mxu0
  %v6795 = vadd.f32 %v5993, %v6794
  %v6796 = vand.u32 %v447, 4294901760
  %v6797 = vsub.f32 %v447, %v6796
  %v6798 = vand.u32 %v6797, 4294901760
  %v6799 = vsub.f32 %v6797, %v6798
  %v6800 = vand.u32 %v6799, 4294901760
  %6801 = vmatmul.f32.gmra.mxu0 %v6800
  %v6802 = vpop.f32.mrf.mxu0
  %v6803 = vadd.f32 %v5997, %v6802
  %v6804 = vand.u32 %v450, 4294901760
  %v6805 = vsub.f32 %v450, %v6804
  %v6806 = vand.u32 %v6805, 4294901760
  %v6807 = vsub.f32 %v6805, %v6806
  %v6808 = vand.u32 %v6807, 4294901760
  %6809 = vmatmul.f32.gmra.mxu0 %v6808
  %v6810 = vpop.f32.mrf.mxu0
  %v6811 = vadd.f32 %v6001, %v6810
  %v6812 = vand.u32 %v453, 4294901760
  %v6813 = vsub.f32 %v453, %v6812
  %v6814 = vand.u32 %v6813, 4294901760
  %v6815 = vsub.f32 %v6813, %v6814
  %v6816 = vand.u32 %v6815, 4294901760
  %6817 = vmatmul.f32.gmra.mxu0 %v6816
  %v6818 = vpop.f32.mrf.mxu0
  %v6819 = vadd.f32 %v6005, %v6818
  %v6820 = vand.u32 %v456, 4294901760
  %v6821 = vsub.f32 %v456, %v6820
  %v6822 = vand.u32 %v6821, 4294901760
  %v6823 = vsub.f32 %v6821, %v6822
  %v6824 = vand.u32 %v6823, 4294901760
  %6825 = vmatmul.f32.gmra.mxu0 %v6824
  %v6826 = vpop.f32.mrf.mxu0
  %v6827 = vadd.f32 %v6009, %v6826
  %v6828 = vand.u32 %v459, 4294901760
  %v6829 = vsub.f32 %v459, %v6828
  %v6830 = vand.u32 %v6829, 4294901760
  %v6831 = vsub.f32 %v6829, %v6830
  %v6832 = vand.u32 %v6831, 4294901760
  %6833 = vmatmul.f32.gmra.mxu0 %v6832
  %v6834 = vpop.f32.mrf.mxu0
  %v6835 = vadd.f32 %v6013, %v6834
  %v6836 = vand.u32 %v462, 4294901760
  %v6837 = vsub.f32 %v462, %v6836
  %v6838 = vand.u32 %v6837, 4294901760
  %v6839 = vsub.f32 %v6837, %v6838
  %v6840 = vand.u32 %v6839, 4294901760
  %6841 = vmatmul.f32.gmra.mxu0 %v6840
  %v6842 = vpop.f32.mrf.mxu0
  %v6843 = vadd.f32 %v6017, %v6842
  %v6844 = vand.u32 %v465, 4294901760
  %v6845 = vsub.f32 %v465, %v6844
  %v6846 = vand.u32 %v6845, 4294901760
  %v6847 = vsub.f32 %v6845, %v6846
  %v6848 = vand.u32 %v6847, 4294901760
  %6849 = vmatmul.f32.gmra.mxu0 %v6848
  %v6850 = vpop.f32.mrf.mxu0
  %v6851 = vadd.f32 %v6021, %v6850
  %v6852 = vand.u32 %v468, 4294901760
  %v6853 = vsub.f32 %v468, %v6852
  %v6854 = vand.u32 %v6853, 4294901760
  %v6855 = vsub.f32 %v6853, %v6854
  %v6856 = vand.u32 %v6855, 4294901760
  %6857 = vmatmul.f32.gmra.mxu0 %v6856
  %v6858 = vpop.f32.mrf.mxu0
  %v6859 = vadd.f32 %v6025, %v6858
  %v6860 = vand.u32 %v471, 4294901760
  %v6861 = vsub.f32 %v471, %v6860
  %v6862 = vand.u32 %v6861, 4294901760
  %v6863 = vsub.f32 %v6861, %v6862
  %v6864 = vand.u32 %v6863, 4294901760
  %6865 = vmatmul.f32.gmra.mxu0 %v6864
  %v6866 = vpop.f32.mrf.mxu0
  %v6867 = vadd.f32 %v6029, %v6866
  %v6868 = vand.u32 %v474, 4294901760
  %v6869 = vsub.f32 %v474, %v6868
  %v6870 = vand.u32 %v6869, 4294901760
  %v6871 = vsub.f32 %v6869, %v6870
  %v6872 = vand.u32 %v6871, 4294901760
  %6873 = vmatmul.f32.gmra.mxu0 %v6872
  %v6874 = vpop.f32.mrf.mxu0
  %v6875 = vadd.f32 %v6033, %v6874
  %v6876 = vand.u32 %v477, 4294901760
  %v6877 = vsub.f32 %v477, %v6876
  %v6878 = vand.u32 %v6877, 4294901760
  %v6879 = vsub.f32 %v6877, %v6878
  %v6880 = vand.u32 %v6879, 4294901760
  %6881 = vmatmul.f32.gmra.mxu0 %v6880
  %v6882 = vpop.f32.mrf.mxu0
  %v6883 = vadd.f32 %v6037, %v6882
  %v6884 = vand.u32 %v480, 4294901760
  %v6885 = vsub.f32 %v480, %v6884
  %v6886 = vand.u32 %v6885, 4294901760
  %v6887 = vsub.f32 %v6885, %v6886
  %v6888 = vand.u32 %v6887, 4294901760
  %6889 = vmatmul.f32.gmra.mxu0 %v6888
  %v6890 = vpop.f32.mrf.mxu0
  %v6891 = vadd.f32 %v6041, %v6890
  %v6892 = vand.u32 %v483, 4294901760
  %v6893 = vsub.f32 %v483, %v6892
  %v6894 = vand.u32 %v6893, 4294901760
  %v6895 = vsub.f32 %v6893, %v6894
  %v6896 = vand.u32 %v6895, 4294901760
  %6897 = vmatmul.f32.gmra.mxu0 %v6896
  %v6898 = vpop.f32.mrf.mxu0
  %v6899 = vadd.f32 %v6045, %v6898
  %v6900 = vand.u32 %v486, 4294901760
  %v6901 = vsub.f32 %v486, %v6900
  %v6902 = vand.u32 %v6901, 4294901760
  %v6903 = vsub.f32 %v6901, %v6902
  %v6904 = vand.u32 %v6903, 4294901760
  %6905 = vmatmul.f32.gmra.mxu0 %v6904
  %v6906 = vpop.f32.mrf.mxu0
  %v6907 = vadd.f32 %v6049, %v6906
  %v6908 = vand.u32 %v489, 4294901760
  %v6909 = vsub.f32 %v489, %v6908
  %v6910 = vand.u32 %v6909, 4294901760
  %v6911 = vsub.f32 %v6909, %v6910
  %v6912 = vand.u32 %v6911, 4294901760
  %6913 = vmatmul.f32.gmra.mxu0 %v6912
  %v6914 = vpop.f32.mrf.mxu0
  %v6915 = vadd.f32 %v6053, %v6914
  %v6916 = vand.u32 %v492, 4294901760
  %v6917 = vsub.f32 %v492, %v6916
  %v6918 = vand.u32 %v6917, 4294901760
  %v6919 = vsub.f32 %v6917, %v6918
  %v6920 = vand.u32 %v6919, 4294901760
  %6921 = vmatmul.f32.gmra.mxu0 %v6920
  %v6922 = vpop.f32.mrf.mxu0
  %v6923 = vadd.f32 %v6057, %v6922
  %v6924 = vand.u32 %v495, 4294901760
  %v6925 = vsub.f32 %v495, %v6924
  %v6926 = vand.u32 %v6925, 4294901760
  %v6927 = vsub.f32 %v6925, %v6926
  %v6928 = vand.u32 %v6927, 4294901760
  %6929 = vmatmul.f32.gmra.mxu0 %v6928
  %v6930 = vpop.f32.mrf.mxu0
  %v6931 = vadd.f32 %v6061, %v6930
  %v6932 = vand.u32 %v498, 4294901760
  %v6933 = vsub.f32 %v498, %v6932
  %v6934 = vand.u32 %v6933, 4294901760
  %v6935 = vsub.f32 %v6933, %v6934
  %v6936 = vand.u32 %v6935, 4294901760
  %6937 = vmatmul.f32.gmra.mxu0 %v6936
  %v6938 = vpop.f32.mrf.mxu0
  %v6939 = vadd.f32 %v6065, %v6938
  %v6940 = vand.u32 %v501, 4294901760
  %v6941 = vsub.f32 %v501, %v6940
  %v6942 = vand.u32 %v6941, 4294901760
  %v6943 = vsub.f32 %v6941, %v6942
  %v6944 = vand.u32 %v6943, 4294901760
  %6945 = vmatmul.f32.gmra.mxu0 %v6944
  %v6946 = vpop.f32.mrf.mxu0
  %v6947 = vadd.f32 %v6069, %v6946
  %v6948 = vand.u32 %v504, 4294901760
  %v6949 = vsub.f32 %v504, %v6948
  %v6950 = vand.u32 %v6949, 4294901760
  %v6951 = vsub.f32 %v6949, %v6950
  %v6952 = vand.u32 %v6951, 4294901760
  %6953 = vmatmul.f32.gmra.mxu0 %v6952
  %v6954 = vpop.f32.mrf.mxu0
  %v6955 = vadd.f32 %v6073, %v6954
  %v6956 = vand.u32 %v507, 4294901760
  %v6957 = vsub.f32 %v507, %v6956
  %v6958 = vand.u32 %v6957, 4294901760
  %v6959 = vsub.f32 %v6957, %v6958
  %v6960 = vand.u32 %v6959, 4294901760
  %6961 = vmatmul.f32.gmra.mxu0 %v6960
  %v6962 = vpop.f32.mrf.mxu0
  %v6963 = vadd.f32 %v6077, %v6962
  %v6964 = vand.u32 %v510, 4294901760
  %v6965 = vsub.f32 %v510, %v6964
  %v6966 = vand.u32 %v6965, 4294901760
  %v6967 = vsub.f32 %v6965, %v6966
  %v6968 = vand.u32 %v6967, 4294901760
  %6969 = vmatmul.f32.gmra.mxu0 %v6968
  %v6970 = vpop.f32.mrf.mxu0
  %v6971 = vadd.f32 %v6081, %v6970
  %v6972 = vand.u32 %v513, 4294901760
  %v6973 = vsub.f32 %v513, %v6972
  %v6974 = vand.u32 %v6973, 4294901760
  %v6975 = vsub.f32 %v6973, %v6974
  %v6976 = vand.u32 %v6975, 4294901760
  %6977 = vmatmul.f32.gmra.mxu0 %v6976
  %v6978 = vpop.f32.mrf.mxu0
  %v6979 = vadd.f32 %v6085, %v6978
  %v6980 = vand.u32 %v516, 4294901760
  %v6981 = vsub.f32 %v516, %v6980
  %v6982 = vand.u32 %v6981, 4294901760
  %v6983 = vsub.f32 %v6981, %v6982
  %v6984 = vand.u32 %v6983, 4294901760
  %6985 = vmatmul.f32.gmra.mxu0 %v6984
  %v6986 = vpop.f32.mrf.mxu0
  %v6987 = vadd.f32 %v6089, %v6986
  %v6988 = vand.u32 %v519, 4294901760
  %v6989 = vsub.f32 %v519, %v6988
  %v6990 = vand.u32 %v6989, 4294901760
  %v6991 = vsub.f32 %v6989, %v6990
  %v6992 = vand.u32 %v6991, 4294901760
  %6993 = vmatmul.f32.gmra.mxu0 %v6992
  %v6994 = vpop.f32.mrf.mxu0
  %v6995 = vadd.f32 %v6093, %v6994
  %v6996 = vand.u32 %v522, 4294901760
  %v6997 = vsub.f32 %v522, %v6996
  %v6998 = vand.u32 %v6997, 4294901760
  %v6999 = vsub.f32 %v6997, %v6998
  %v7000 = vand.u32 %v6999, 4294901760
  %7001 = vmatmul.f32.gmra.mxu0 %v7000
  %v7002 = vpop.f32.mrf.mxu0
  %v7003 = vadd.f32 %v6097, %v7002
  %v7004 = vand.u32 %v525, 4294901760
  %v7005 = vsub.f32 %v525, %v7004
  %v7006 = vand.u32 %v7005, 4294901760
  %v7007 = vsub.f32 %v7005, %v7006
  %v7008 = vand.u32 %v7007, 4294901760
  %7009 = vmatmul.f32.gmra.mxu0 %v7008
  %v7010 = vpop.f32.mrf.mxu0
  %v7011 = vadd.f32 %v6101, %v7010
  %v7012 = vand.u32 %v528, 4294901760
  %v7013 = vsub.f32 %v528, %v7012
  %v7014 = vand.u32 %v7013, 4294901760
  %v7015 = vsub.f32 %v7013, %v7014
  %v7016 = vand.u32 %v7015, 4294901760
  %7017 = vmatmul.f32.gmra.mxu0 %v7016
  %v7018 = vpop.f32.mrf.mxu0
  %v7019 = vadd.f32 %v6105, %v7018
  %v7020 = vand.u32 %v531, 4294901760
  %v7021 = vsub.f32 %v531, %v7020
  %v7022 = vand.u32 %v7021, 4294901760
  %v7023 = vsub.f32 %v7021, %v7022
  %v7024 = vand.u32 %v7023, 4294901760
  %7025 = vmatmul.f32.gmra.mxu0 %v7024
  %v7026 = vpop.f32.mrf.mxu0
  %v7027 = vadd.f32 %v6109, %v7026
  %v7028 = vand.u32 %v534, 4294901760
  %v7029 = vsub.f32 %v534, %v7028
  %v7030 = vand.u32 %v7029, 4294901760
  %v7031 = vsub.f32 %v7029, %v7030
  %v7032 = vand.u32 %v7031, 4294901760
  %7033 = vmatmul.f32.gmra.mxu0 %v7032
  %v7034 = vpop.f32.mrf.mxu0
  %v7035 = vadd.f32 %v6113, %v7034
  %v7036 = vand.u32 %v537, 4294901760
  %v7037 = vsub.f32 %v537, %v7036
  %v7038 = vand.u32 %v7037, 4294901760
  %v7039 = vsub.f32 %v7037, %v7038
  %v7040 = vand.u32 %v7039, 4294901760
  %7041 = vmatmul.f32.gmra.mxu0 %v7040
  %v7042 = vpop.f32.mrf.mxu0
  %v7043 = vadd.f32 %v6117, %v7042
  %v7044 = vand.u32 %v540, 4294901760
  %v7045 = vsub.f32 %v540, %v7044
  %v7046 = vand.u32 %v7045, 4294901760
  %v7047 = vsub.f32 %v7045, %v7046
  %v7048 = vand.u32 %v7047, 4294901760
  %7049 = vmatmul.f32.gmra.mxu0 %v7048
  %v7050 = vpop.f32.mrf.mxu0
  %v7051 = vadd.f32 %v6121, %v7050
  %v7052 = vand.u32 %v543, 4294901760
  %v7053 = vsub.f32 %v543, %v7052
  %v7054 = vand.u32 %v7053, 4294901760
  %v7055 = vsub.f32 %v7053, %v7054
  %v7056 = vand.u32 %v7055, 4294901760
  %7057 = vmatmul.f32.gmra.mxu0 %v7056
  %v7058 = vpop.f32.mrf.mxu0
  %v7059 = vadd.f32 %v6125, %v7058
  %v7060 = vand.u32 %v546, 4294901760
  %v7061 = vsub.f32 %v546, %v7060
  %v7062 = vand.u32 %v7061, 4294901760
  %v7063 = vsub.f32 %v7061, %v7062
  %v7064 = vand.u32 %v7063, 4294901760
  %7065 = vmatmul.f32.gmra.mxu0 %v7064
  %v7066 = vpop.f32.mrf.mxu0
  %v7067 = vadd.f32 %v6129, %v7066
  %v7068 = vand.u32 %v549, 4294901760
  %v7069 = vsub.f32 %v549, %v7068
  %v7070 = vand.u32 %v7069, 4294901760
  %v7071 = vsub.f32 %v7069, %v7070
  %v7072 = vand.u32 %v7071, 4294901760
  %7073 = vmatmul.f32.gmra.mxu0 %v7072
  %v7074 = vpop.f32.mrf.mxu0
  %v7075 = vadd.f32 %v6133, %v7074
  %v7076 = vand.u32 %v552, 4294901760
  %v7077 = vsub.f32 %v552, %v7076
  %v7078 = vand.u32 %v7077, 4294901760
  %v7079 = vsub.f32 %v7077, %v7078
  %v7080 = vand.u32 %v7079, 4294901760
  %7081 = vmatmul.f32.gmra.mxu0 %v7080
  %v7082 = vpop.f32.mrf.mxu0
  %v7083 = vadd.f32 %v6137, %v7082
  %v7084 = vand.u32 %v555, 4294901760
  %v7085 = vsub.f32 %v555, %v7084
  %v7086 = vand.u32 %v7085, 4294901760
  %v7087 = vsub.f32 %v7085, %v7086
  %v7088 = vand.u32 %v7087, 4294901760
  %7089 = vmatmul.f32.gmra.mxu0 %v7088
  %v7090 = vpop.f32.mrf.mxu0
  %v7091 = vadd.f32 %v6141, %v7090
  %v7092 = vand.u32 %v558, 4294901760
  %v7093 = vsub.f32 %v558, %v7092
  %v7094 = vand.u32 %v7093, 4294901760
  %v7095 = vsub.f32 %v7093, %v7094
  %v7096 = vand.u32 %v7095, 4294901760
  %7097 = vmatmul.f32.gmra.mxu0 %v7096
  %v7098 = vpop.f32.mrf.mxu0
  %v7099 = vadd.f32 %v6145, %v7098
  %v7100 = vand.u32 %v561, 4294901760
  %v7101 = vsub.f32 %v561, %v7100
  %v7102 = vand.u32 %v7101, 4294901760
  %v7103 = vsub.f32 %v7101, %v7102
  %v7104 = vand.u32 %v7103, 4294901760
  %7105 = vmatmul.f32.gmra.mxu0 %v7104
  %v7106 = vpop.f32.mrf.mxu0
  %v7107 = vadd.f32 %v6149, %v7106
  %v7108 = vand.u32 %v564, 4294901760
  %v7109 = vsub.f32 %v564, %v7108
  %v7110 = vand.u32 %v7109, 4294901760
  %v7111 = vsub.f32 %v7109, %v7110
  %v7112 = vand.u32 %v7111, 4294901760
  %7113 = vmatmul.f32.gmra.mxu0 %v7112
  %v7114 = vpop.f32.mrf.mxu0
  %v7115 = vadd.f32 %v6153, %v7114
  %v7116 = vand.u32 %v567, 4294901760
  %v7117 = vsub.f32 %v567, %v7116
  %v7118 = vand.u32 %v7117, 4294901760
  %v7119 = vsub.f32 %v7117, %v7118
  %v7120 = vand.u32 %v7119, 4294901760
  %7121 = vmatmul.f32.gmra.mxu0 %v7120
  %v7122 = vpop.f32.mrf.mxu0
  %v7123 = vadd.f32 %v6157, %v7122
  %v7124 = vand.u32 %v570, 4294901760
  %v7125 = vsub.f32 %v570, %v7124
  %v7126 = vand.u32 %v7125, 4294901760
  %v7127 = vsub.f32 %v7125, %v7126
  %v7128 = vand.u32 %v7127, 4294901760
  %7129 = vmatmul.f32.gmra.mxu0 %v7128
  %v7130 = vpop.f32.mrf.mxu0
  %v7131 = vadd.f32 %v6161, %v7130
  %v7132 = vand.u32 %v573, 4294901760
  %v7133 = vsub.f32 %v573, %v7132
  %v7134 = vand.u32 %v7133, 4294901760
  %v7135 = vsub.f32 %v7133, %v7134
  %v7136 = vand.u32 %v7135, 4294901760
  %7137 = vmatmul.f32.gmra.mxu0 %v7136
  %v7138 = vpop.f32.mrf.mxu0
  %v7139 = vadd.f32 %v6165, %v7138
  %v7140 = vand.u32 %v576, 4294901760
  %v7141 = vsub.f32 %v576, %v7140
  %v7142 = vand.u32 %v7141, 4294901760
  %v7143 = vsub.f32 %v7141, %v7142
  %v7144 = vand.u32 %v7143, 4294901760
  %7145 = vmatmul.f32.gmra.mxu0 %v7144
  %v7146 = vpop.f32.mrf.mxu0
  %v7147 = vadd.f32 %v6169, %v7146
  %v7148 = vand.u32 %v579, 4294901760
  %v7149 = vsub.f32 %v579, %v7148
  %v7150 = vand.u32 %v7149, 4294901760
  %v7151 = vsub.f32 %v7149, %v7150
  %v7152 = vand.u32 %v7151, 4294901760
  %7153 = vmatmul.f32.gmra.mxu0 %v7152
  %v7154 = vpop.f32.mrf.mxu0
  %v7155 = vadd.f32 %v6173, %v7154
  %v7156 = vand.u32 %v582, 4294901760
  %v7157 = vsub.f32 %v582, %v7156
  %v7158 = vand.u32 %v7157, 4294901760
  %v7159 = vsub.f32 %v7157, %v7158
  %v7160 = vand.u32 %v7159, 4294901760
  %7161 = vmatmul.f32.gmra.mxu0 %v7160
  %v7162 = vpop.f32.mrf.mxu0
  %v7163 = vadd.f32 %v6177, %v7162
  %v7164 = vand.u32 %v585, 4294901760
  %v7165 = vsub.f32 %v585, %v7164
  %v7166 = vand.u32 %v7165, 4294901760
  %v7167 = vsub.f32 %v7165, %v7166
  %v7168 = vand.u32 %v7167, 4294901760
  %7169 = vmatmul.f32.gmra.mxu0 %v7168
  %v7170 = vpop.f32.mrf.mxu0
  %v7171 = vadd.f32 %v6181, %v7170
  %v7172 = vand.u32 %v588, 4294901760
  %v7173 = vsub.f32 %v588, %v7172
  %v7174 = vand.u32 %v7173, 4294901760
  %v7175 = vsub.f32 %v7173, %v7174
  %v7176 = vand.u32 %v7175, 4294901760
  %7177 = vmatmul.f32.gmra.mxu0 %v7176
  %v7178 = vpop.f32.mrf.mxu0
  %v7179 = vadd.f32 %v6185, %v7178
  %v7180 = vand.u32 %v591, 4294901760
  %v7181 = vsub.f32 %v591, %v7180
  %v7182 = vand.u32 %v7181, 4294901760
  %v7183 = vsub.f32 %v7181, %v7182
  %v7184 = vand.u32 %v7183, 4294901760
  %7185 = vmatmul.f32.gmra.mxu0 %v7184
  %v7186 = vpop.f32.mrf.mxu0
  %v7187 = vadd.f32 %v6189, %v7186
  %v7188 = vand.u32 %v594, 4294901760
  %v7189 = vsub.f32 %v594, %v7188
  %v7190 = vand.u32 %v7189, 4294901760
  %v7191 = vsub.f32 %v7189, %v7190
  %v7192 = vand.u32 %v7191, 4294901760
  %7193 = vmatmul.f32.gmra.mxu0 %v7192
  %v7194 = vpop.f32.mrf.mxu0
  %v7195 = vadd.f32 %v6193, %v7194
  %v7196 = vand.u32 %v597, 4294901760
  %v7197 = vsub.f32 %v597, %v7196
  %v7198 = vand.u32 %v7197, 4294901760
  %v7199 = vsub.f32 %v7197, %v7198
  %v7200 = vand.u32 %v7199, 4294901760
  %7201 = vmatmul.f32.gmra.mxu0 %v7200
  %v7202 = vpop.f32.mrf.mxu0
  %v7203 = vadd.f32 %v6197, %v7202
  %v7204 = vand.u32 %v600, 4294901760
  %v7205 = vsub.f32 %v600, %v7204
  %v7206 = vand.u32 %v7205, 4294901760
  %v7207 = vsub.f32 %v7205, %v7206
  %v7208 = vand.u32 %v7207, 4294901760
  %7209 = vmatmul.f32.gmra.mxu0 %v7208
  %v7210 = vpop.f32.mrf.mxu0
  %v7211 = vadd.f32 %v6201, %v7210
  %v7212 = vand.u32 %v603, 4294901760
  %v7213 = vsub.f32 %v603, %v7212
  %v7214 = vand.u32 %v7213, 4294901760
  %v7215 = vsub.f32 %v7213, %v7214
  %v7216 = vand.u32 %v7215, 4294901760
  %7217 = vmatmul.f32.gmra.mxu0 %v7216
  %v7218 = vpop.f32.mrf.mxu0
  %v7219 = vadd.f32 %v6205, %v7218
  %v7220 = vand.u32 %v606, 4294901760
  %v7221 = vsub.f32 %v606, %v7220
  %v7222 = vand.u32 %v7221, 4294901760
  %v7223 = vsub.f32 %v7221, %v7222
  %v7224 = vand.u32 %v7223, 4294901760
  %7225 = vmatmul.f32.gmra.mxu0 %v7224
  %v7226 = vpop.f32.mrf.mxu0
  %v7227 = vadd.f32 %v6209, %v7226
  %v7228 = vand.u32 %v609, 4294901760
  %v7229 = vsub.f32 %v609, %v7228
  %v7230 = vand.u32 %v7229, 4294901760
  %v7231 = vsub.f32 %v7229, %v7230
  %v7232 = vand.u32 %v7231, 4294901760
  %7233 = vmatmul.f32.gmra.mxu0 %v7232
  %v7234 = vpop.f32.mrf.mxu0
  %v7235 = vadd.f32 %v6213, %v7234
  %v7236 = vand.u32 %v612, 4294901760
  %v7237 = vsub.f32 %v612, %v7236
  %v7238 = vand.u32 %v7237, 4294901760
  %v7239 = vsub.f32 %v7237, %v7238
  %v7240 = vand.u32 %v7239, 4294901760
  %7241 = vmatmul.f32.gmra.mxu0 %v7240
  %v7242 = vpop.f32.mrf.mxu0
  %v7243 = vadd.f32 %v6217, %v7242
  %v7244 = vand.u32 %v615, 4294901760
  %v7245 = vsub.f32 %v615, %v7244
  %v7246 = vand.u32 %v7245, 4294901760
  %v7247 = vsub.f32 %v7245, %v7246
  %v7248 = vand.u32 %v7247, 4294901760
  %7249 = vmatmul.f32.gmra.mxu0 %v7248
  %v7250 = vpop.f32.mrf.mxu0
  %v7251 = vadd.f32 %v6221, %v7250
  %v7252 = vand.u32 %v618, 4294901760
  %v7253 = vsub.f32 %v618, %v7252
  %v7254 = vand.u32 %v7253, 4294901760
  %v7255 = vsub.f32 %v7253, %v7254
  %v7256 = vand.u32 %v7255, 4294901760
  %7257 = vmatmul.f32.gmra.mxu0 %v7256
  %v7258 = vpop.f32.mrf.mxu0
  %v7259 = vadd.f32 %v6225, %v7258
  %v7260 = vand.u32 %v621, 4294901760
  %v7261 = vsub.f32 %v621, %v7260
  %v7262 = vand.u32 %v7261, 4294901760
  %v7263 = vsub.f32 %v7261, %v7262
  %v7264 = vand.u32 %v7263, 4294901760
  %7265 = vmatmul.f32.gmra.mxu0 %v7264
  %v7266 = vpop.f32.mrf.mxu0
  %v7267 = vadd.f32 %v6229, %v7266
  %v7268 = vand.u32 %v624, 4294901760
  %v7269 = vsub.f32 %v624, %v7268
  %v7270 = vand.u32 %v7269, 4294901760
  %v7271 = vsub.f32 %v7269, %v7270
  %v7272 = vand.u32 %v7271, 4294901760
  %7273 = vmatmul.f32.gmra.mxu0 %v7272
  %v7274 = vpop.f32.mrf.mxu0
  %v7275 = vadd.f32 %v6233, %v7274
  %v7276 = vand.u32 %v627, 4294901760
  %v7277 = vsub.f32 %v627, %v7276
  %v7278 = vand.u32 %v7277, 4294901760
  %v7279 = vsub.f32 %v7277, %v7278
  %v7280 = vand.u32 %v7279, 4294901760
  %7281 = vmatmul.f32.gmra.mxu0 %v7280
  %v7282 = vpop.f32.mrf.mxu0
  %v7283 = vadd.f32 %v6237, %v7282
  %v7284 = vand.u32 %v630, 4294901760
  %v7285 = vsub.f32 %v630, %v7284
  %v7286 = vand.u32 %v7285, 4294901760
  %v7287 = vsub.f32 %v7285, %v7286
  %v7288 = vand.u32 %v7287, 4294901760
  %7289 = vmatmul.f32.gmra.mxu0 %v7288
  %v7290 = vpop.f32.mrf.mxu0
  %v7291 = vadd.f32 %v6241, %v7290
  %v7292 = vand.u32 %v633, 4294901760
  %v7293 = vsub.f32 %v633, %v7292
  %v7294 = vand.u32 %v7293, 4294901760
  %v7295 = vsub.f32 %v7293, %v7294
  %v7296 = vand.u32 %v7295, 4294901760
  %7297 = vmatmul.f32.gmra.mxu0 %v7296
  %v7298 = vpop.f32.mrf.mxu0
  %v7299 = vadd.f32 %v6245, %v7298
  %v7300 = vand.u32 %v636, 4294901760
  %v7301 = vsub.f32 %v636, %v7300
  %v7302 = vand.u32 %v7301, 4294901760
  %v7303 = vsub.f32 %v7301, %v7302
  %v7304 = vand.u32 %v7303, 4294901760
  %7305 = vmatmul.f32.gmra.mxu0 %v7304
  %v7306 = vpop.f32.mrf.mxu0
  %v7307 = vadd.f32 %v6249, %v7306
  %v7308 = vand.u32 %v639, 4294901760
  %v7309 = vsub.f32 %v639, %v7308
  %v7310 = vand.u32 %v7309, 4294901760
  %v7311 = vsub.f32 %v7309, %v7310
  %v7312 = vand.u32 %v7311, 4294901760
  %7313 = vmatmul.f32.gmra.mxu0 %v7312
  %v7314 = vpop.f32.mrf.mxu0
  %v7315 = vadd.f32 %v6253, %v7314
  %v7316 = vand.u32 %v642, 4294901760
  %v7317 = vsub.f32 %v642, %v7316
  %v7318 = vand.u32 %v7317, 4294901760
  %v7319 = vsub.f32 %v7317, %v7318
  %v7320 = vand.u32 %v7319, 4294901760
  %7321 = vmatmul.f32.gmra.mxu0 %v7320
  %v7322 = vpop.f32.mrf.mxu0
  %v7323 = vadd.f32 %v6257, %v7322
  %v7324 = vand.u32 %v645, 4294901760
  %v7325 = vsub.f32 %v645, %v7324
  %v7326 = vand.u32 %v7325, 4294901760
  %v7327 = vsub.f32 %v7325, %v7326
  %v7328 = vand.u32 %v7327, 4294901760
  %7329 = vmatmul.f32.gmra.mxu0 %v7328
  %v7330 = vpop.f32.mrf.mxu0
  %v7331 = vadd.f32 %v6261, %v7330
  %v7332 = vand.u32 %v648, 4294901760
  %v7333 = vsub.f32 %v648, %v7332
  %v7334 = vand.u32 %v7333, 4294901760
  %v7335 = vsub.f32 %v7333, %v7334
  %v7336 = vand.u32 %v7335, 4294901760
  %7337 = vmatmul.f32.gmra.mxu0 %v7336
  %v7338 = vpop.f32.mrf.mxu0
  %v7339 = vadd.f32 %v6265, %v7338
  %v7340 = vand.u32 %v651, 4294901760
  %v7341 = vsub.f32 %v651, %v7340
  %v7342 = vand.u32 %v7341, 4294901760
  %v7343 = vsub.f32 %v7341, %v7342
  %v7344 = vand.u32 %v7343, 4294901760
  %7345 = vmatmul.f32.gmra.mxu0 %v7344
  %v7346 = vpop.f32.mrf.mxu0
  %v7347 = vadd.f32 %v6269, %v7346
  %v7348 = vand.u32 %v654, 4294901760
  %v7349 = vsub.f32 %v654, %v7348
  %v7350 = vand.u32 %v7349, 4294901760
  %v7351 = vsub.f32 %v7349, %v7350
  %v7352 = vand.u32 %v7351, 4294901760
  %7353 = vmatmul.f32.gmra.mxu0 %v7352
  %v7354 = vpop.f32.mrf.mxu0
  %v7355 = vadd.f32 %v6273, %v7354
  %v7356 = vand.u32 %v657, 4294901760
  %v7357 = vsub.f32 %v657, %v7356
  %v7358 = vand.u32 %v7357, 4294901760
  %v7359 = vsub.f32 %v7357, %v7358
  %v7360 = vand.u32 %v7359, 4294901760
  %7361 = vmatmul.f32.gmra.mxu0 %v7360
  %v7362 = vpop.f32.mrf.mxu0
  %v7363 = vadd.f32 %v6277, %v7362
  %v7364 = vand.u32 %v660, 4294901760
  %v7365 = vsub.f32 %v660, %v7364
  %v7366 = vand.u32 %v7365, 4294901760
  %v7367 = vsub.f32 %v7365, %v7366
  %v7368 = vand.u32 %v7367, 4294901760
  %7369 = vmatmul.f32.gmra.mxu0 %v7368
  %v7370 = vpop.f32.mrf.mxu0
  %v7371 = vadd.f32 %v6281, %v7370
  %v7372 = vand.u32 %v663, 4294901760
  %v7373 = vsub.f32 %v663, %v7372
  %v7374 = vand.u32 %v7373, 4294901760
  %v7375 = vsub.f32 %v7373, %v7374
  %v7376 = vand.u32 %v7375, 4294901760
  %7377 = vmatmul.f32.gmra.mxu0 %v7376
  %v7378 = vpop.f32.mrf.mxu0
  %v7379 = vadd.f32 %v6285, %v7378
  %v7380 = vand.u32 %v666, 4294901760
  %v7381 = vsub.f32 %v666, %v7380
  %v7382 = vand.u32 %v7381, 4294901760
  %v7383 = vsub.f32 %v7381, %v7382
  %v7384 = vand.u32 %v7383, 4294901760
  %7385 = vmatmul.f32.gmra.mxu0 %v7384
  %v7386 = vpop.f32.mrf.mxu0
  %v7387 = vadd.f32 %v6289, %v7386
  %v7388 = vand.u32 %v669, 4294901760
  %v7389 = vsub.f32 %v669, %v7388
  %v7390 = vand.u32 %v7389, 4294901760
  %v7391 = vsub.f32 %v7389, %v7390
  %v7392 = vand.u32 %v7391, 4294901760
  %7393 = vmatmul.f32.gmra.mxu0 %v7392
  %v7394 = vpop.f32.mrf.mxu0
  %v7395 = vadd.f32 %v6293, %v7394
  %v7396 = vand.u32 %v672, 4294901760
  %v7397 = vsub.f32 %v672, %v7396
  %v7398 = vand.u32 %v7397, 4294901760
  %v7399 = vsub.f32 %v7397, %v7398
  %v7400 = vand.u32 %v7399, 4294901760
  %7401 = vmatmul.f32.gmra.mxu0 %v7400
  %v7402 = vpop.f32.mrf.mxu0
  %v7403 = vadd.f32 %v6297, %v7402
  %v7404 = vand.u32 %v675, 4294901760
  %v7405 = vsub.f32 %v675, %v7404
  %v7406 = vand.u32 %v7405, 4294901760
  %v7407 = vsub.f32 %v7405, %v7406
  %v7408 = vand.u32 %v7407, 4294901760
  %7409 = vmatmul.f32.gmra.mxu0 %v7408
  %v7410 = vpop.f32.mrf.mxu0
  %v7411 = vadd.f32 %v6301, %v7410
  %v7412 = vand.u32 %v678, 4294901760
  %v7413 = vsub.f32 %v678, %v7412
  %v7414 = vand.u32 %v7413, 4294901760
  %v7415 = vsub.f32 %v7413, %v7414
  %v7416 = vand.u32 %v7415, 4294901760
  %7417 = vmatmul.f32.gmra.mxu0 %v7416
  %v7418 = vpop.f32.mrf.mxu0
  %v7419 = vadd.f32 %v6305, %v7418
  %v7420 = vand.u32 %v681, 4294901760
  %v7421 = vsub.f32 %v681, %v7420
  %v7422 = vand.u32 %v7421, 4294901760
  %v7423 = vsub.f32 %v7421, %v7422
  %v7424 = vand.u32 %v7423, 4294901760
  %7425 = vmatmul.f32.gmra.mxu0 %v7424
  %v7426 = vpop.f32.mrf.mxu0
  %v7427 = vadd.f32 %v6309, %v7426
  %v7428 = vand.u32 %v684, 4294901760
  %v7429 = vsub.f32 %v684, %v7428
  %v7430 = vand.u32 %v7429, 4294901760
  %v7431 = vsub.f32 %v7429, %v7430
  %v7432 = vand.u32 %v7431, 4294901760
  %7433 = vmatmul.f32.gmra.mxu0 %v7432
  %v7434 = vpop.f32.mrf.mxu0
  %v7435 = vadd.f32 %v6313, %v7434
  %v7436 = vand.u32 %v687, 4294901760
  %v7437 = vsub.f32 %v687, %v7436
  %v7438 = vand.u32 %v7437, 4294901760
  %v7439 = vsub.f32 %v7437, %v7438
  %v7440 = vand.u32 %v7439, 4294901760
  %7441 = vmatmul.f32.gmra.mxu0 %v7440
  %v7442 = vpop.f32.mrf.mxu0
  %v7443 = vadd.f32 %v6317, %v7442
  %v7444 = vand.u32 %v690, 4294901760
  %v7445 = vsub.f32 %v690, %v7444
  %v7446 = vand.u32 %v7445, 4294901760
  %v7447 = vsub.f32 %v7445, %v7446
  %v7448 = vand.u32 %v7447, 4294901760
  %7449 = vmatmul.f32.gmra.mxu0 %v7448
  %v7450 = vpop.f32.mrf.mxu0
  %v7451 = vadd.f32 %v6321, %v7450
  %v7452 = vand.u32 %v693, 4294901760
  %v7453 = vsub.f32 %v693, %v7452
  %v7454 = vand.u32 %v7453, 4294901760
  %v7455 = vsub.f32 %v7453, %v7454
  %v7456 = vand.u32 %v7455, 4294901760
  %7457 = vmatmul.f32.gmra.mxu0 %v7456
  %v7458 = vpop.f32.mrf.mxu0
  %v7459 = vadd.f32 %v6325, %v7458
  %v7460 = vand.u32 %v696, 4294901760
  %v7461 = vsub.f32 %v696, %v7460
  %v7462 = vand.u32 %v7461, 4294901760
  %v7463 = vsub.f32 %v7461, %v7462
  %v7464 = vand.u32 %v7463, 4294901760
  %7465 = vmatmul.f32.gmra.mxu0 %v7464
  %v7466 = vpop.f32.mrf.mxu0
  %v7467 = vadd.f32 %v6329, %v7466
  %v7468 = vand.u32 %v699, 4294901760
  %v7469 = vsub.f32 %v699, %v7468
  %v7470 = vand.u32 %v7469, 4294901760
  %v7471 = vsub.f32 %v7469, %v7470
  %v7472 = vand.u32 %v7471, 4294901760
  %7473 = vmatmul.f32.gmra.mxu0 %v7472
  %v7474 = vpop.f32.mrf.mxu0
  %v7475 = vadd.f32 %v6333, %v7474
  %v7476 = vand.u32 %v702, 4294901760
  %v7477 = vsub.f32 %v702, %v7476
  %v7478 = vand.u32 %v7477, 4294901760
  %v7479 = vsub.f32 %v7477, %v7478
  %v7480 = vand.u32 %v7479, 4294901760
  %7481 = vmatmul.f32.gmra.mxu0 %v7480
  %v7482 = vpop.f32.mrf.mxu0
  %v7483 = vadd.f32 %v6337, %v7482
  %v7484 = vand.u32 %v705, 4294901760
  %v7485 = vsub.f32 %v705, %v7484
  %v7486 = vand.u32 %v7485, 4294901760
  %v7487 = vsub.f32 %v7485, %v7486
  %v7488 = vand.u32 %v7487, 4294901760
  %7489 = vmatmul.f32.gmra.mxu0 %v7488
  %v7490 = vpop.f32.mrf.mxu0
  %v7491 = vadd.f32 %v6341, %v7490
  %v7492 = vand.u32 %v708, 4294901760
  %v7493 = vsub.f32 %v708, %v7492
  %v7494 = vand.u32 %v7493, 4294901760
  %v7495 = vsub.f32 %v7493, %v7494
  %v7496 = vand.u32 %v7495, 4294901760
  %7497 = vmatmul.f32.gmra.mxu0 %v7496
  %v7498 = vpop.f32.mrf.mxu0
  %v7499 = vadd.f32 %v6345, %v7498
  %v7500 = vand.u32 %v711, 4294901760
  %v7501 = vsub.f32 %v711, %v7500
  %v7502 = vand.u32 %v7501, 4294901760
  %v7503 = vsub.f32 %v7501, %v7502
  %v7504 = vand.u32 %v7503, 4294901760
  %7505 = vmatmul.f32.gmra.mxu0 %v7504
  %v7506 = vpop.f32.mrf.mxu0
  %v7507 = vadd.f32 %v6349, %v7506
  %v7508 = vand.u32 %v714, 4294901760
  %v7509 = vsub.f32 %v714, %v7508
  %v7510 = vand.u32 %v7509, 4294901760
  %v7511 = vsub.f32 %v7509, %v7510
  %v7512 = vand.u32 %v7511, 4294901760
  %7513 = vmatmul.f32.gmra.mxu0 %v7512
  %v7514 = vpop.f32.mrf.mxu0
  %v7515 = vadd.f32 %v6353, %v7514
  %v7516 = vand.u32 %v717, 4294901760
  %v7517 = vsub.f32 %v717, %v7516
  %v7518 = vand.u32 %v7517, 4294901760
  %v7519 = vsub.f32 %v7517, %v7518
  %v7520 = vand.u32 %v7519, 4294901760
  %7521 = vmatmul.f32.gmra.mxu0 %v7520
  %v7522 = vpop.f32.mrf.mxu0
  %v7523 = vadd.f32 %v6357, %v7522
  %v7524 = vand.u32 %v720, 4294901760
  %v7525 = vsub.f32 %v720, %v7524
  %v7526 = vand.u32 %v7525, 4294901760
  %v7527 = vsub.f32 %v7525, %v7526
  %v7528 = vand.u32 %v7527, 4294901760
  %7529 = vmatmul.f32.gmra.mxu0 %v7528
  %v7530 = vpop.f32.mrf.mxu0
  %v7531 = vadd.f32 %v6361, %v7530
  %v7532 = vand.u32 %v723, 4294901760
  %v7533 = vsub.f32 %v723, %v7532
  %v7534 = vand.u32 %v7533, 4294901760
  %v7535 = vsub.f32 %v7533, %v7534
  %v7536 = vand.u32 %v7535, 4294901760
  %7537 = vmatmul.f32.gmra.mxu0 %v7536
  %v7538 = vpop.f32.mrf.mxu0
  %v7539 = vadd.f32 %v6365, %v7538
  %v7540 = vand.u32 %v726, 4294901760
  %v7541 = vsub.f32 %v726, %v7540
  %v7542 = vand.u32 %v7541, 4294901760
  %v7543 = vsub.f32 %v7541, %v7542
  %v7544 = vand.u32 %v7543, 4294901760
  %7545 = vmatmul.f32.gmra.mxu0 %v7544
  %v7546 = vpop.f32.mrf.mxu0
  %v7547 = vadd.f32 %v6369, %v7546
  %v7548 = vand.u32 %v729, 4294901760
  %v7549 = vsub.f32 %v729, %v7548
  %v7550 = vand.u32 %v7549, 4294901760
  %v7551 = vsub.f32 %v7549, %v7550
  %v7552 = vand.u32 %v7551, 4294901760
  %7553 = vmatmul.f32.gmra.mxu0 %v7552
  %v7554 = vpop.f32.mrf.mxu0
  %v7555 = vadd.f32 %v6373, %v7554
  %v7556 = vand.u32 %v732, 4294901760
  %v7557 = vsub.f32 %v732, %v7556
  %v7558 = vand.u32 %v7557, 4294901760
  %v7559 = vsub.f32 %v7557, %v7558
  %v7560 = vand.u32 %v7559, 4294901760
  %7561 = vmatmul.f32.gmra.mxu0 %v7560
  %v7562 = vpop.f32.mrf.mxu0
  %v7563 = vadd.f32 %v6377, %v7562
  %v7564 = vand.u32 %v735, 4294901760
  %v7565 = vsub.f32 %v735, %v7564
  %v7566 = vand.u32 %v7565, 4294901760
  %v7567 = vsub.f32 %v7565, %v7566
  %v7568 = vand.u32 %v7567, 4294901760
  %7569 = vmatmul.f32.gmra.mxu0 %v7568
  %v7570 = vpop.f32.mrf.mxu0
  %v7571 = vadd.f32 %v6381, %v7570
  %v7572 = vand.u32 %v738, 4294901760
  %v7573 = vsub.f32 %v738, %v7572
  %v7574 = vand.u32 %v7573, 4294901760
  %v7575 = vsub.f32 %v7573, %v7574
  %v7576 = vand.u32 %v7575, 4294901760
  %7577 = vmatmul.f32.gmra.mxu0 %v7576
  %v7578 = vpop.f32.mrf.mxu0
  %v7579 = vadd.f32 %v6385, %v7578
  %v7580 = vand.u32 %v741, 4294901760
  %v7581 = vsub.f32 %v741, %v7580
  %v7582 = vand.u32 %v7581, 4294901760
  %v7583 = vsub.f32 %v7581, %v7582
  %v7584 = vand.u32 %v7583, 4294901760
  %7585 = vmatmul.f32.gmra.mxu0 %v7584
  %v7586 = vpop.f32.mrf.mxu0
  %v7587 = vadd.f32 %v6389, %v7586
  %v7588 = vand.u32 %v744, 4294901760
  %v7589 = vsub.f32 %v744, %v7588
  %v7590 = vand.u32 %v7589, 4294901760
  %v7591 = vsub.f32 %v7589, %v7590
  %v7592 = vand.u32 %v7591, 4294901760
  %7593 = vmatmul.f32.gmra.mxu0 %v7592
  %v7594 = vpop.f32.mrf.mxu0
  %v7595 = vadd.f32 %v6393, %v7594
  %v7596 = vand.u32 %v747, 4294901760
  %v7597 = vsub.f32 %v747, %v7596
  %v7598 = vand.u32 %v7597, 4294901760
  %v7599 = vsub.f32 %v7597, %v7598
  %v7600 = vand.u32 %v7599, 4294901760
  %7601 = vmatmul.f32.gmra.mxu0 %v7600
  %v7602 = vpop.f32.mrf.mxu0
  %v7603 = vadd.f32 %v6397, %v7602
  %v7604 = vand.u32 %v750, 4294901760
  %v7605 = vsub.f32 %v750, %v7604
  %v7606 = vand.u32 %v7605, 4294901760
  %v7607 = vsub.f32 %v7605, %v7606
  %v7608 = vand.u32 %v7607, 4294901760
  %7609 = vmatmul.f32.gmra.mxu0 %v7608
  %v7610 = vpop.f32.mrf.mxu0
  %v7611 = vadd.f32 %v6401, %v7610
  %v7612 = vand.u32 %v753, 4294901760
  %v7613 = vsub.f32 %v753, %v7612
  %v7614 = vand.u32 %v7613, 4294901760
  %v7615 = vsub.f32 %v7613, %v7614
  %v7616 = vand.u32 %v7615, 4294901760
  %7617 = vmatmul.f32.gmra.mxu0 %v7616
  %v7618 = vpop.f32.mrf.mxu0
  %v7619 = vadd.f32 %v6405, %v7618
  %v7620 = vand.u32 %v756, 4294901760
  %v7621 = vsub.f32 %v756, %v7620
  %v7622 = vand.u32 %v7621, 4294901760
  %v7623 = vsub.f32 %v7621, %v7622
  %v7624 = vand.u32 %v7623, 4294901760
  %7625 = vmatmul.f32.gmra.mxu0 %v7624
  %v7626 = vpop.f32.mrf.mxu0
  %v7627 = vadd.f32 %v6409, %v7626
  %v7628 = vand.u32 %v759, 4294901760
  %v7629 = vsub.f32 %v759, %v7628
  %v7630 = vand.u32 %v7629, 4294901760
  %v7631 = vsub.f32 %v7629, %v7630
  %v7632 = vand.u32 %v7631, 4294901760
  %7633 = vmatmul.f32.gmra.mxu0 %v7632
  %v7634 = vpop.f32.mrf.mxu0
  %v7635 = vadd.f32 %v6413, %v7634
  %v7636 = vand.u32 %v762, 4294901760
  %v7637 = vsub.f32 %v762, %v7636
  %v7638 = vand.u32 %v7637, 4294901760
  %v7639 = vsub.f32 %v7637, %v7638
  %v7640 = vand.u32 %v7639, 4294901760
  %7641 = vmatmul.f32.gmra.mxu0 %v7640
  %v7642 = vpop.f32.mrf.mxu0
  %v7643 = vadd.f32 %v6417, %v7642
  %v7644 = vand.u32 %v765, 4294901760
  %v7645 = vsub.f32 %v765, %v7644
  %v7646 = vand.u32 %v7645, 4294901760
  %v7647 = vsub.f32 %v7645, %v7646
  %v7648 = vand.u32 %v7647, 4294901760
  %7649 = vmatmul.f32.gmra.mxu0 %v7648
  %v7650 = vpop.f32.mrf.mxu0
  %v7651 = vadd.f32 %v6421, %v7650
  %v7652 = vand.u32 %v768, 4294901760
  %v7653 = vsub.f32 %v768, %v7652
  %v7654 = vand.u32 %v7653, 4294901760
  %v7655 = vsub.f32 %v7653, %v7654
  %v7656 = vand.u32 %v7655, 4294901760
  %7657 = vmatmul.f32.gmra.mxu0 %v7656
  %v7658 = vpop.f32.mrf.mxu0
  %v7659 = vadd.f32 %v6425, %v7658
  %v7660 = vand.u32 %v771, 4294901760
  %v7661 = vsub.f32 %v771, %v7660
  %v7662 = vand.u32 %v7661, 4294901760
  %v7663 = vsub.f32 %v7661, %v7662
  %v7664 = vand.u32 %v7663, 4294901760
  %7665 = vmatmul.f32.gmra.mxu0 %v7664
  %v7666 = vpop.f32.mrf.mxu0
  %v7667 = vadd.f32 %v6429, %v7666
  %v7668 = vand.u32 %v774, 4294901760
  %v7669 = vsub.f32 %v774, %v7668
  %v7670 = vand.u32 %v7669, 4294901760
  %v7671 = vsub.f32 %v7669, %v7670
  %v7672 = vand.u32 %v7671, 4294901760
  %7673 = vmatmul.f32.gmra.mxu0 %v7672
  %v7674 = vpop.f32.mrf.mxu0
  %v7675 = vadd.f32 %v6433, %v7674
  %v7676 = vand.u32 %v777, 4294901760
  %v7677 = vsub.f32 %v777, %v7676
  %v7678 = vand.u32 %v7677, 4294901760
  %v7679 = vsub.f32 %v7677, %v7678
  %v7680 = vand.u32 %v7679, 4294901760
  %7681 = vmatmul.f32.gmra.mxu0 %v7680
  %v7682 = vpop.f32.mrf.mxu0
  %v7683 = vadd.f32 %v6437, %v7682
  %v7684 = vand.u32 %v780, 4294901760
  %v7685 = vsub.f32 %v780, %v7684
  %v7686 = vand.u32 %v7685, 4294901760
  %v7687 = vsub.f32 %v7685, %v7686
  %v7688 = vand.u32 %v7687, 4294901760
  %7689 = vmatmul.f32.gmra.mxu0 %v7688
  %v7690 = vpop.f32.mrf.mxu0
  %v7691 = vadd.f32 %v6441, %v7690
  %v7692 = vand.u32 %v783, 4294901760
  %v7693 = vsub.f32 %v783, %v7692
  %v7694 = vand.u32 %v7693, 4294901760
  %v7695 = vsub.f32 %v7693, %v7694
  %v7696 = vand.u32 %v7695, 4294901760
  %7697 = vmatmul.f32.gmra.mxu0 %v7696
  %v7698 = vpop.f32.mrf.mxu0
  %v7699 = vadd.f32 %v6445, %v7698
  %v7700 = vand.u32 %v786, 4294901760
  %v7701 = vsub.f32 %v786, %v7700
  %v7702 = vand.u32 %v7701, 4294901760
  %v7703 = vsub.f32 %v7701, %v7702
  %v7704 = vand.u32 %v7703, 4294901760
  %7705 = vmatmul.f32.gmra.mxu0 %v7704
  %v7706 = vpop.f32.mrf.mxu0
  %v7707 = vadd.f32 %v6449, %v7706
  %v7708 = vand.u32 %v789, 4294901760
  %v7709 = vsub.f32 %v789, %v7708
  %v7710 = vand.u32 %v7709, 4294901760
  %v7711 = vsub.f32 %v7709, %v7710
  %v7712 = vand.u32 %v7711, 4294901760
  %7713 = vmatmul.f32.gmra.mxu0 %v7712
  %v7714 = vpop.f32.mrf.mxu0
  %v7715 = vadd.f32 %v6453, %v7714
  %v7716 = vand.u32 %v792, 4294901760
  %v7717 = vsub.f32 %v792, %v7716
  %v7718 = vand.u32 %v7717, 4294901760
  %v7719 = vsub.f32 %v7717, %v7718
  %v7720 = vand.u32 %v7719, 4294901760
  %7721 = vmatmul.f32.gmra.mxu0 %v7720
  %v7722 = vpop.f32.mrf.mxu0
  %v7723 = vadd.f32 %v6457, %v7722
  %v7724 = vand.u32 %v795, 4294901760
  %v7725 = vsub.f32 %v795, %v7724
  %v7726 = vand.u32 %v7725, 4294901760
  %v7727 = vsub.f32 %v7725, %v7726
  %v7728 = vand.u32 %v7727, 4294901760
  %7729 = vmatmul.f32.gmra.mxu0 %v7728
  %v7730 = vpop.f32.mrf.mxu0
  %v7731 = vadd.f32 %v6461, %v7730
  %v7732 = vand.u32 %v798, 4294901760
  %v7733 = vsub.f32 %v798, %v7732
  %v7734 = vand.u32 %v7733, 4294901760
  %v7735 = vsub.f32 %v7733, %v7734
  %v7736 = vand.u32 %v7735, 4294901760
  %7737 = vmatmul.f32.gmra.mxu0 %v7736
  %v7738 = vpop.f32.mrf.mxu0
  %v7739 = vadd.f32 %v6465, %v7738
  %v7740 = vand.u32 %v801, 4294901760
  %v7741 = vsub.f32 %v801, %v7740
  %v7742 = vand.u32 %v7741, 4294901760
  %v7743 = vsub.f32 %v7741, %v7742
  %v7744 = vand.u32 %v7743, 4294901760
  %7745 = vmatmul.f32.gmra.mxu0 %v7744
  %v7746 = vpop.f32.mrf.mxu0
  %v7747 = vadd.f32 %v6469, %v7746
  %v7748 = vand.u32 %v804, 4294901760
  %v7749 = vsub.f32 %v804, %v7748
  %v7750 = vand.u32 %v7749, 4294901760
  %v7751 = vsub.f32 %v7749, %v7750
  %v7752 = vand.u32 %v7751, 4294901760
  %7753 = vmatmul.f32.gmra.mxu0 %v7752
  %v7754 = vpop.f32.mrf.mxu0
  %v7755 = vadd.f32 %v6473, %v7754
  %v7756 = vand.u32 %v807, 4294901760
  %v7757 = vsub.f32 %v807, %v7756
  %v7758 = vand.u32 %v7757, 4294901760
  %v7759 = vsub.f32 %v7757, %v7758
  %v7760 = vand.u32 %v7759, 4294901760
  %7761 = vmatmul.f32.gmra.mxu0 %v7760
  %v7762 = vpop.f32.mrf.mxu0
  %v7763 = vadd.f32 %v6477, %v7762
  %v7764 = vand.u32 %v810, 4294901760
  %v7765 = vsub.f32 %v810, %v7764
  %v7766 = vand.u32 %v7765, 4294901760
  %v7767 = vsub.f32 %v7765, %v7766
  %v7768 = vand.u32 %v7767, 4294901760
  %7769 = vmatmul.f32.gmra.mxu0 %v7768
  %v7770 = vpop.f32.mrf.mxu0
  %v7771 = vadd.f32 %v6481, %v7770
  %v7772 = vand.u32 %v813, 4294901760
  %v7773 = vsub.f32 %v813, %v7772
  %v7774 = vand.u32 %v7773, 4294901760
  %v7775 = vsub.f32 %v7773, %v7774
  %v7776 = vand.u32 %v7775, 4294901760
  %7777 = vmatmul.f32.gmra.mxu0 %v7776
  %v7778 = vpop.f32.mrf.mxu0
  %v7779 = vadd.f32 %v6485, %v7778
  %v7780 = vand.u32 %v816, 4294901760
  %v7781 = vsub.f32 %v816, %v7780
  %v7782 = vand.u32 %v7781, 4294901760
  %v7783 = vsub.f32 %v7781, %v7782
  %v7784 = vand.u32 %v7783, 4294901760
  %7785 = vmatmul.f32.gmra.mxu0 %v7784
  %v7786 = vpop.f32.mrf.mxu0
  %v7787 = vadd.f32 %v6489, %v7786
  %v7788 = vand.u32 %v819, 4294901760
  %v7789 = vsub.f32 %v819, %v7788
  %v7790 = vand.u32 %v7789, 4294901760
  %v7791 = vsub.f32 %v7789, %v7790
  %v7792 = vand.u32 %v7791, 4294901760
  %7793 = vmatmul.f32.gmra.mxu0 %v7792
  %v7794 = vpop.f32.mrf.mxu0
  %v7795 = vadd.f32 %v6493, %v7794
  %v7796 = vand.u32 %v822, 4294901760
  %v7797 = vsub.f32 %v822, %v7796
  %v7798 = vand.u32 %v7797, 4294901760
  %v7799 = vsub.f32 %v7797, %v7798
  %v7800 = vand.u32 %v7799, 4294901760
  %7801 = vmatmul.f32.gmra.mxu0 %v7800
  %v7802 = vpop.f32.mrf.mxu0
  %v7803 = vadd.f32 %v6497, %v7802
  %v7804 = vand.u32 %v825, 4294901760
  %v7805 = vsub.f32 %v825, %v7804
  %v7806 = vand.u32 %v7805, 4294901760
  %v7807 = vsub.f32 %v7805, %v7806
  %v7808 = vand.u32 %v7807, 4294901760
  %7809 = vmatmul.f32.gmra.mxu0 %v7808
  %v7810 = vpop.f32.mrf.mxu0
  %v7811 = vadd.f32 %v6501, %v7810
  %v7812 = vand.u32 %v828, 4294901760
  %v7813 = vsub.f32 %v828, %v7812
  %v7814 = vand.u32 %v7813, 4294901760
  %v7815 = vsub.f32 %v7813, %v7814
  %v7816 = vand.u32 %v7815, 4294901760
  %7817 = vmatmul.f32.gmra.mxu0 %v7816
  %v7818 = vpop.f32.mrf.mxu0
  %v7819 = vadd.f32 %v6505, %v7818
  %v7820 = vand.u32 %v831, 4294901760
  %v7821 = vsub.f32 %v831, %v7820
  %v7822 = vand.u32 %v7821, 4294901760
  %v7823 = vsub.f32 %v7821, %v7822
  %v7824 = vand.u32 %v7823, 4294901760
  %7825 = vmatmul.f32.gmra.mxu0 %v7824
  %v7826 = vpop.f32.mrf.mxu0
  %v7827 = vadd.f32 %v6509, %v7826
  %v7828 = vand.u32 %v834, 4294901760
  %v7829 = vsub.f32 %v834, %v7828
  %v7830 = vand.u32 %v7829, 4294901760
  %v7831 = vsub.f32 %v7829, %v7830
  %v7832 = vand.u32 %v7831, 4294901760
  %7833 = vmatmul.f32.gmra.mxu0 %v7832
  %v7834 = vpop.f32.mrf.mxu0
  %v7835 = vadd.f32 %v6513, %v7834
  %v7836 = vand.u32 %v837, 4294901760
  %v7837 = vsub.f32 %v837, %v7836
  %v7838 = vand.u32 %v7837, 4294901760
  %v7839 = vsub.f32 %v7837, %v7838
  %v7840 = vand.u32 %v7839, 4294901760
  %7841 = vmatmul.f32.gmra.mxu0 %v7840
  %v7842 = vpop.f32.mrf.mxu0
  %v7843 = vadd.f32 %v6517, %v7842
  %v7844 = vand.u32 %v840, 4294901760
  %v7845 = vsub.f32 %v840, %v7844
  %v7846 = vand.u32 %v7845, 4294901760
  %v7847 = vsub.f32 %v7845, %v7846
  %v7848 = vand.u32 %v7847, 4294901760
  %7849 = vmatmul.f32.gmra.mxu0 %v7848
  %v7850 = vpop.f32.mrf.mxu0
  %v7851 = vadd.f32 %v6521, %v7850
  %v7852 = vand.u32 %v843, 4294901760
  %v7853 = vsub.f32 %v843, %v7852
  %v7854 = vand.u32 %v7853, 4294901760
  %v7855 = vsub.f32 %v7853, %v7854
  %v7856 = vand.u32 %v7855, 4294901760
  %7857 = vmatmul.f32.gmra.mxu0 %v7856
  %v7858 = vpop.f32.mrf.mxu0
  %v7859 = vadd.f32 %v6525, %v7858
  %v7860 = vand.u32 %v846, 4294901760
  %v7861 = vsub.f32 %v846, %v7860
  %v7862 = vand.u32 %v7861, 4294901760
  %v7863 = vsub.f32 %v7861, %v7862
  %v7864 = vand.u32 %v7863, 4294901760
  %7865 = vmatmul.f32.gmra.mxu0 %v7864
  %v7866 = vpop.f32.mrf.mxu0
  %v7867 = vadd.f32 %v6529, %v7866
  %v7868 = vand.u32 %v849, 4294901760
  %v7869 = vsub.f32 %v849, %v7868
  %v7870 = vand.u32 %v7869, 4294901760
  %v7871 = vsub.f32 %v7869, %v7870
  %v7872 = vand.u32 %v7871, 4294901760
  %7873 = vmatmul.f32.gmra.mxu0 %v7872
  %v7874 = vpop.f32.mrf.mxu0
  %v7875 = vadd.f32 %v6533, %v7874
  %v7876 = vand.u32 %v852, 4294901760
  %v7877 = vsub.f32 %v852, %v7876
  %v7878 = vand.u32 %v7877, 4294901760
  %v7879 = vsub.f32 %v7877, %v7878
  %v7880 = vand.u32 %v7879, 4294901760
  %7881 = vmatmul.f32.gmra.mxu0 %v7880
  %v7882 = vpop.f32.mrf.mxu0
  %v7883 = vadd.f32 %v6537, %v7882
  %v7884 = vand.u32 %v855, 4294901760
  %v7885 = vsub.f32 %v855, %v7884
  %v7886 = vand.u32 %v7885, 4294901760
  %v7887 = vsub.f32 %v7885, %v7886
  %v7888 = vand.u32 %v7887, 4294901760
  %7889 = vmatmul.f32.gmra.mxu0 %v7888
  %v7890 = vpop.f32.mrf.mxu0
  %v7891 = vadd.f32 %v6541, %v7890
  %v7892 = vand.u32 %v858, 4294901760
  %v7893 = vsub.f32 %v858, %v7892
  %v7894 = vand.u32 %v7893, 4294901760
  %v7895 = vsub.f32 %v7893, %v7894
  %v7896 = vand.u32 %v7895, 4294901760
  %7897 = vmatmul.f32.gmra.mxu0 %v7896
  %v7898 = vpop.f32.mrf.mxu0
  %v7899 = vadd.f32 %v6545, %v7898
  %v7900 = vand.u32 %v861, 4294901760
  %v7901 = vsub.f32 %v861, %v7900
  %v7902 = vand.u32 %v7901, 4294901760
  %v7903 = vsub.f32 %v7901, %v7902
  %v7904 = vand.u32 %v7903, 4294901760
  %7905 = vmatmul.f32.gmra.mxu0 %v7904
  %v7906 = vpop.f32.mrf.mxu0
  %v7907 = vadd.f32 %v6549, %v7906
  %v7908 = vand.u32 %v864, 4294901760
  %v7909 = vsub.f32 %v864, %v7908
  %v7910 = vand.u32 %v7909, 4294901760
  %v7911 = vsub.f32 %v7909, %v7910
  %v7912 = vand.u32 %v7911, 4294901760
  %7913 = vmatmul.f32.gmra.mxu0 %v7912
  %v7914 = vpop.f32.mrf.mxu0
  %v7915 = vadd.f32 %v6553, %v7914
  %v7916 = vand.u32 %v867, 4294901760
  %v7917 = vsub.f32 %v867, %v7916
  %v7918 = vand.u32 %v7917, 4294901760
  %v7919 = vsub.f32 %v7917, %v7918
  %v7920 = vand.u32 %v7919, 4294901760
  %7921 = vmatmul.f32.gmra.mxu0 %v7920
  %v7922 = vpop.f32.mrf.mxu0
  %v7923 = vadd.f32 %v6557, %v7922
  %v7924 = vand.u32 %v870, 4294901760
  %v7925 = vsub.f32 %v870, %v7924
  %v7926 = vand.u32 %v7925, 4294901760
  %v7927 = vsub.f32 %v7925, %v7926
  %v7928 = vand.u32 %v7927, 4294901760
  %7929 = vmatmul.f32.gmra.mxu0 %v7928
  %v7930 = vpop.f32.mrf.mxu0
  %v7931 = vadd.f32 %v6561, %v7930
  %v7932 = vand.u32 %v873, 4294901760
  %v7933 = vsub.f32 %v873, %v7932
  %v7934 = vand.u32 %v7933, 4294901760
  %v7935 = vsub.f32 %v7933, %v7934
  %v7936 = vand.u32 %v7935, 4294901760
  %7937 = vmatmul.f32.gmra.mxu0 %v7936
  %v7938 = vpop.f32.mrf.mxu0
  %v7939 = vadd.f32 %v6565, %v7938
  %v7940 = vand.u32 %v876, 4294901760
  %v7941 = vsub.f32 %v876, %v7940
  %v7942 = vand.u32 %v7941, 4294901760
  %v7943 = vsub.f32 %v7941, %v7942
  %v7944 = vand.u32 %v7943, 4294901760
  %7945 = vmatmul.f32.gmra.mxu0 %v7944
  %v7946 = vpop.f32.mrf.mxu0
  %v7947 = vadd.f32 %v6569, %v7946
  %v7948 = vand.u32 %v879, 4294901760
  %v7949 = vsub.f32 %v879, %v7948
  %v7950 = vand.u32 %v7949, 4294901760
  %v7951 = vsub.f32 %v7949, %v7950
  %v7952 = vand.u32 %v7951, 4294901760
  %7953 = vmatmul.f32.gmra.mxu0 %v7952
  %v7954 = vpop.f32.mrf.mxu0
  %v7955 = vadd.f32 %v6573, %v7954
  %v7956 = vand.u32 %v882, 4294901760
  %v7957 = vsub.f32 %v882, %v7956
  %v7958 = vand.u32 %v7957, 4294901760
  %v7959 = vsub.f32 %v7957, %v7958
  %v7960 = vand.u32 %v7959, 4294901760
  %7961 = vmatmul.f32.gmra.mxu0 %v7960
  %v7962 = vpop.f32.mrf.mxu0
  %v7963 = vadd.f32 %v6577, %v7962
  %v7964 = vand.u32 %v885, 4294901760
  %v7965 = vsub.f32 %v885, %v7964
  %v7966 = vand.u32 %v7965, 4294901760
  %v7967 = vsub.f32 %v7965, %v7966
  %v7968 = vand.u32 %v7967, 4294901760
  %7969 = vmatmul.f32.gmra.mxu0 %v7968
  %v7970 = vpop.f32.mrf.mxu0
  %v7971 = vadd.f32 %v6581, %v7970
  %v7972 = vand.u32 %v888, 4294901760
  %v7973 = vsub.f32 %v888, %v7972
  %v7974 = vand.u32 %v7973, 4294901760
  %v7975 = vsub.f32 %v7973, %v7974
  %v7976 = vand.u32 %v7975, 4294901760
  %7977 = vmatmul.f32.gmra.mxu0 %v7976
  %v7978 = vpop.f32.mrf.mxu0
  %v7979 = vadd.f32 %v6585, %v7978
  %v7980 = vand.u32 %v891, 4294901760
  %v7981 = vsub.f32 %v891, %v7980
  %v7982 = vand.u32 %v7981, 4294901760
  %v7983 = vsub.f32 %v7981, %v7982
  %v7984 = vand.u32 %v7983, 4294901760
  %7985 = vmatmul.f32.gmra.mxu0 %v7984
  %v7986 = vpop.f32.mrf.mxu0
  %v7987 = vadd.f32 %v6589, %v7986
  %v7988 = vand.u32 %v894, 4294901760
  %v7989 = vsub.f32 %v894, %v7988
  %v7990 = vand.u32 %v7989, 4294901760
  %v7991 = vsub.f32 %v7989, %v7990
  %v7992 = vand.u32 %v7991, 4294901760
  %7993 = vmatmul.f32.gmra.mxu0 %v7992
  %v7994 = vpop.f32.mrf.mxu0
  %v7995 = vadd.f32 %v6593, %v7994
  %v7996 = vand.u32 %v897, 4294901760
  %v7997 = vsub.f32 %v897, %v7996
  %v7998 = vand.u32 %v7997, 4294901760
  %v7999 = vsub.f32 %v7997, %v7998
  %v8000 = vand.u32 %v7999, 4294901760
  %8001 = vmatmul.f32.gmra.mxu0 %v8000
  %v8002 = vpop.f32.mrf.mxu0
  %v8003 = vadd.f32 %v6597, %v8002
  %v8004 = vand.u32 %v900, 4294901760
  %v8005 = vsub.f32 %v900, %v8004
  %v8006 = vand.u32 %v8005, 4294901760
  %v8007 = vsub.f32 %v8005, %v8006
  %v8008 = vand.u32 %v8007, 4294901760
  %8009 = vmatmul.f32.gmra.mxu0 %v8008
  %v8010 = vpop.f32.mrf.mxu0
  %v8011 = vadd.f32 %v6601, %v8010
  %v8012 = vand.u32 %v903, 4294901760
  %v8013 = vsub.f32 %v903, %v8012
  %v8014 = vand.u32 %v8013, 4294901760
  %v8015 = vsub.f32 %v8013, %v8014
  %v8016 = vand.u32 %v8015, 4294901760
  %8017 = vmatmul.f32.gmra.mxu0 %v8016
  %v8018 = vpop.f32.mrf.mxu0
  %v8019 = vadd.f32 %v6605, %v8018
  %v8020 = vand.u32 %v906, 4294901760
  %v8021 = vsub.f32 %v906, %v8020
  %v8022 = vand.u32 %v8021, 4294901760
  %v8023 = vsub.f32 %v8021, %v8022
  %v8024 = vand.u32 %v8023, 4294901760
  %8025 = vmatmul.f32.gmra.mxu0 %v8024
  %v8026 = vpop.f32.mrf.mxu0
  %v8027 = vadd.f32 %v6609, %v8026
  %v8028 = vand.u32 %v909, 4294901760
  %v8029 = vsub.f32 %v909, %v8028
  %v8030 = vand.u32 %v8029, 4294901760
  %v8031 = vsub.f32 %v8029, %v8030
  %v8032 = vand.u32 %v8031, 4294901760
  %8033 = vmatmul.f32.gmra.mxu0 %v8032
  %v8034 = vpop.f32.mrf.mxu0
  %v8035 = vadd.f32 %v6613, %v8034
  %8036 = vdwg.mxu0
  %8037 = vmatpush.msra.mxu0 0.0
  %8038 = vmatpush.msra.mxu0 0.0
  %8039 = vmatpush.msra.mxu0 0.0
  %v8040 = vand.u32 %v387, 4294901760
  %v8041 = vsub.f32 %v387, %v8040
  %v8042 = vand.u32 %v8041, 4294901760
  %v8043 = vsub.f32 %v8041, %v8042
  %v8044 = vand.u32 %v8043, 4294901760
  %8045 = vmatpush.msra.mxu0 %v8044
  %v8046 = vand.u32 %v386, 4294901760
  %v8047 = vsub.f32 %v386, %v8046
  %v8048 = vand.u32 %v8047, 4294901760
  %v8049 = vsub.f32 %v8047, %v8048
  %v8050 = vand.u32 %v8049, 4294901760
  %8051 = vmatpush.msra.mxu0 %v8050
  %v8052 = vand.u32 %v385, 4294901760
  %v8053 = vsub.f32 %v385, %v8052
  %v8054 = vand.u32 %v8053, 4294901760
  %v8055 = vsub.f32 %v8053, %v8054
  %v8056 = vand.u32 %v8055, 4294901760
  %8057 = vmatpush.msra.mxu0 %v8056
  %v8058 = vand.u32 %v384, 4294901760
  %v8059 = vsub.f32 %v384, %v8058
  %v8060 = vand.u32 %v8059, 4294901760
  %v8061 = vsub.f32 %v8059, %v8060
  %v8062 = vand.u32 %v8061, 4294901760
  %8063 = vmatpush.msra.mxu0 %v8062
  %v8064 = vand.u32 %v383, 4294901760
  %v8065 = vsub.f32 %v383, %v8064
  %v8066 = vand.u32 %v8065, 4294901760
  %v8067 = vsub.f32 %v8065, %v8066
  %v8068 = vand.u32 %v8067, 4294901760
  %8069 = vmatpush.msra.mxu0 %v8068
  %v8070 = vand.u32 %v382, 4294901760
  %v8071 = vsub.f32 %v382, %v8070
  %v8072 = vand.u32 %v8071, 4294901760
  %v8073 = vsub.f32 %v8071, %v8072
  %v8074 = vand.u32 %v8073, 4294901760
  %8075 = vmatpush.msra.mxu0 %v8074
  %v8076 = vand.u32 %v381, 4294901760
  %v8077 = vsub.f32 %v381, %v8076
  %v8078 = vand.u32 %v8077, 4294901760
  %v8079 = vsub.f32 %v8077, %v8078
  %v8080 = vand.u32 %v8079, 4294901760
  %8081 = vmatpush.msra.mxu0 %v8080
  %v8082 = vand.u32 %v380, 4294901760
  %v8083 = vsub.f32 %v380, %v8082
  %v8084 = vand.u32 %v8083, 4294901760
  %v8085 = vsub.f32 %v8083, %v8084
  %v8086 = vand.u32 %v8085, 4294901760
  %8087 = vmatpush.msra.mxu0 %v8086
  %v8088 = vand.u32 %v379, 4294901760
  %v8089 = vsub.f32 %v379, %v8088
  %v8090 = vand.u32 %v8089, 4294901760
  %v8091 = vsub.f32 %v8089, %v8090
  %v8092 = vand.u32 %v8091, 4294901760
  %8093 = vmatpush.msra.mxu0 %v8092
  %v8094 = vand.u32 %v378, 4294901760
  %v8095 = vsub.f32 %v378, %v8094
  %v8096 = vand.u32 %v8095, 4294901760
  %v8097 = vsub.f32 %v8095, %v8096
  %v8098 = vand.u32 %v8097, 4294901760
  %8099 = vmatpush.msra.mxu0 %v8098
  %v8100 = vand.u32 %v377, 4294901760
  %v8101 = vsub.f32 %v377, %v8100
  %v8102 = vand.u32 %v8101, 4294901760
  %v8103 = vsub.f32 %v8101, %v8102
  %v8104 = vand.u32 %v8103, 4294901760
  %8105 = vmatpush.msra.mxu0 %v8104
  %v8106 = vand.u32 %v376, 4294901760
  %v8107 = vsub.f32 %v376, %v8106
  %v8108 = vand.u32 %v8107, 4294901760
  %v8109 = vsub.f32 %v8107, %v8108
  %v8110 = vand.u32 %v8109, 4294901760
  %8111 = vmatpush.msra.mxu0 %v8110
  %v8112 = vand.u32 %v375, 4294901760
  %v8113 = vsub.f32 %v375, %v8112
  %v8114 = vand.u32 %v8113, 4294901760
  %v8115 = vsub.f32 %v8113, %v8114
  %v8116 = vand.u32 %v8115, 4294901760
  %8117 = vmatpush.msra.mxu0 %v8116
  %v8118 = vand.u32 %v390, 4294901760
  %8119 = vmatmul.f32.gmra.mxu0 %v8118
  %v8120 = vpop.f32.mrf.mxu0
  %v8121 = vadd.f32 %v6651, %v8120
  %v8122 = vand.u32 %v393, 4294901760
  %8123 = vmatmul.f32.gmra.mxu0 %v8122
  %v8124 = vpop.f32.mrf.mxu0
  %v8125 = vadd.f32 %v6659, %v8124
  %v8126 = vand.u32 %v396, 4294901760
  %8127 = vmatmul.f32.gmra.mxu0 %v8126
  %v8128 = vpop.f32.mrf.mxu0
  %v8129 = vadd.f32 %v6667, %v8128
  %v8130 = vand.u32 %v399, 4294901760
  %8131 = vmatmul.f32.gmra.mxu0 %v8130
  %v8132 = vpop.f32.mrf.mxu0
  %v8133 = vadd.f32 %v6675, %v8132
  %v8134 = vand.u32 %v402, 4294901760
  %8135 = vmatmul.f32.gmra.mxu0 %v8134
  %v8136 = vpop.f32.mrf.mxu0
  %v8137 = vadd.f32 %v6683, %v8136
  %v8138 = vand.u32 %v405, 4294901760
  %8139 = vmatmul.f32.gmra.mxu0 %v8138
  %v8140 = vpop.f32.mrf.mxu0
  %v8141 = vadd.f32 %v6691, %v8140
  %v8142 = vand.u32 %v408, 4294901760
  %8143 = vmatmul.f32.gmra.mxu0 %v8142
  %v8144 = vpop.f32.mrf.mxu0
  %v8145 = vadd.f32 %v6699, %v8144
  %v8146 = vand.u32 %v411, 4294901760
  %8147 = vmatmul.f32.gmra.mxu0 %v8146
  %v8148 = vpop.f32.mrf.mxu0
  %v8149 = vadd.f32 %v6707, %v8148
  %v8150 = vand.u32 %v414, 4294901760
  %8151 = vmatmul.f32.gmra.mxu0 %v8150
  %v8152 = vpop.f32.mrf.mxu0
  %v8153 = vadd.f32 %v6715, %v8152
  %v8154 = vand.u32 %v417, 4294901760
  %8155 = vmatmul.f32.gmra.mxu0 %v8154
  %v8156 = vpop.f32.mrf.mxu0
  %v8157 = vadd.f32 %v6723, %v8156
  %v8158 = vand.u32 %v420, 4294901760
  %8159 = vmatmul.f32.gmra.mxu0 %v8158
  %v8160 = vpop.f32.mrf.mxu0
  %v8161 = vadd.f32 %v6731, %v8160
  %v8162 = vand.u32 %v423, 4294901760
  %8163 = vmatmul.f32.gmra.mxu0 %v8162
  %v8164 = vpop.f32.mrf.mxu0
  %v8165 = vadd.f32 %v6739, %v8164
  %v8166 = vand.u32 %v426, 4294901760
  %8167 = vmatmul.f32.gmra.mxu0 %v8166
  %v8168 = vpop.f32.mrf.mxu0
  %v8169 = vadd.f32 %v6747, %v8168
  %v8170 = vand.u32 %v429, 4294901760
  %8171 = vmatmul.f32.gmra.mxu0 %v8170
  %v8172 = vpop.f32.mrf.mxu0
  %v8173 = vadd.f32 %v6755, %v8172
  %v8174 = vand.u32 %v432, 4294901760
  %8175 = vmatmul.f32.gmra.mxu0 %v8174
  %v8176 = vpop.f32.mrf.mxu0
  %v8177 = vadd.f32 %v6763, %v8176
  %v8178 = vand.u32 %v435, 4294901760
  %8179 = vmatmul.f32.gmra.mxu0 %v8178
  %v8180 = vpop.f32.mrf.mxu0
  %v8181 = vadd.f32 %v6771, %v8180
  %v8182 = vand.u32 %v438, 4294901760
  %8183 = vmatmul.f32.gmra.mxu0 %v8182
  %v8184 = vpop.f32.mrf.mxu0
  %v8185 = vadd.f32 %v6779, %v8184
  %v8186 = vand.u32 %v441, 4294901760
  %8187 = vmatmul.f32.gmra.mxu0 %v8186
  %v8188 = vpop.f32.mrf.mxu0
  %v8189 = vadd.f32 %v6787, %v8188
  %v8190 = vand.u32 %v444, 4294901760
  %8191 = vmatmul.f32.gmra.mxu0 %v8190
  %v8192 = vpop.f32.mrf.mxu0
  %v8193 = vadd.f32 %v6795, %v8192
  %v8194 = vand.u32 %v447, 4294901760
  %8195 = vmatmul.f32.gmra.mxu0 %v8194
  %v8196 = vpop.f32.mrf.mxu0
  %v8197 = vadd.f32 %v6803, %v8196
  %v8198 = vand.u32 %v450, 4294901760
  %8199 = vmatmul.f32.gmra.mxu0 %v8198
  %v8200 = vpop.f32.mrf.mxu0
  %v8201 = vadd.f32 %v6811, %v8200
  %v8202 = vand.u32 %v453, 4294901760
  %8203 = vmatmul.f32.gmra.mxu0 %v8202
  %v8204 = vpop.f32.mrf.mxu0
  %v8205 = vadd.f32 %v6819, %v8204
  %v8206 = vand.u32 %v456, 4294901760
  %8207 = vmatmul.f32.gmra.mxu0 %v8206
  %v8208 = vpop.f32.mrf.mxu0
  %v8209 = vadd.f32 %v6827, %v8208
  %v8210 = vand.u32 %v459, 4294901760
  %8211 = vmatmul.f32.gmra.mxu0 %v8210
  %v8212 = vpop.f32.mrf.mxu0
  %v8213 = vadd.f32 %v6835, %v8212
  %v8214 = vand.u32 %v462, 4294901760
  %8215 = vmatmul.f32.gmra.mxu0 %v8214
  %v8216 = vpop.f32.mrf.mxu0
  %v8217 = vadd.f32 %v6843, %v8216
  %v8218 = vand.u32 %v465, 4294901760
  %8219 = vmatmul.f32.gmra.mxu0 %v8218
  %v8220 = vpop.f32.mrf.mxu0
  %v8221 = vadd.f32 %v6851, %v8220
  %v8222 = vand.u32 %v468, 4294901760
  %8223 = vmatmul.f32.gmra.mxu0 %v8222
  %v8224 = vpop.f32.mrf.mxu0
  %v8225 = vadd.f32 %v6859, %v8224
  %v8226 = vand.u32 %v471, 4294901760
  %8227 = vmatmul.f32.gmra.mxu0 %v8226
  %v8228 = vpop.f32.mrf.mxu0
  %v8229 = vadd.f32 %v6867, %v8228
  %v8230 = vand.u32 %v474, 4294901760
  %8231 = vmatmul.f32.gmra.mxu0 %v8230
  %v8232 = vpop.f32.mrf.mxu0
  %v8233 = vadd.f32 %v6875, %v8232
  %v8234 = vand.u32 %v477, 4294901760
  %8235 = vmatmul.f32.gmra.mxu0 %v8234
  %v8236 = vpop.f32.mrf.mxu0
  %v8237 = vadd.f32 %v6883, %v8236
  %v8238 = vand.u32 %v480, 4294901760
  %8239 = vmatmul.f32.gmra.mxu0 %v8238
  %v8240 = vpop.f32.mrf.mxu0
  %v8241 = vadd.f32 %v6891, %v8240
  %v8242 = vand.u32 %v483, 4294901760
  %8243 = vmatmul.f32.gmra.mxu0 %v8242
  %v8244 = vpop.f32.mrf.mxu0
  %v8245 = vadd.f32 %v6899, %v8244
  %v8246 = vand.u32 %v486, 4294901760
  %8247 = vmatmul.f32.gmra.mxu0 %v8246
  %v8248 = vpop.f32.mrf.mxu0
  %v8249 = vadd.f32 %v6907, %v8248
  %v8250 = vand.u32 %v489, 4294901760
  %8251 = vmatmul.f32.gmra.mxu0 %v8250
  %v8252 = vpop.f32.mrf.mxu0
  %v8253 = vadd.f32 %v6915, %v8252
  %v8254 = vand.u32 %v492, 4294901760
  %8255 = vmatmul.f32.gmra.mxu0 %v8254
  %v8256 = vpop.f32.mrf.mxu0
  %v8257 = vadd.f32 %v6923, %v8256
  %v8258 = vand.u32 %v495, 4294901760
  %8259 = vmatmul.f32.gmra.mxu0 %v8258
  %v8260 = vpop.f32.mrf.mxu0
  %v8261 = vadd.f32 %v6931, %v8260
  %v8262 = vand.u32 %v498, 4294901760
  %8263 = vmatmul.f32.gmra.mxu0 %v8262
  %v8264 = vpop.f32.mrf.mxu0
  %v8265 = vadd.f32 %v6939, %v8264
  %v8266 = vand.u32 %v501, 4294901760
  %8267 = vmatmul.f32.gmra.mxu0 %v8266
  %v8268 = vpop.f32.mrf.mxu0
  %v8269 = vadd.f32 %v6947, %v8268
  %v8270 = vand.u32 %v504, 4294901760
  %8271 = vmatmul.f32.gmra.mxu0 %v8270
  %v8272 = vpop.f32.mrf.mxu0
  %v8273 = vadd.f32 %v6955, %v8272
  %v8274 = vand.u32 %v507, 4294901760
  %8275 = vmatmul.f32.gmra.mxu0 %v8274
  %v8276 = vpop.f32.mrf.mxu0
  %v8277 = vadd.f32 %v6963, %v8276
  %v8278 = vand.u32 %v510, 4294901760
  %8279 = vmatmul.f32.gmra.mxu0 %v8278
  %v8280 = vpop.f32.mrf.mxu0
  %v8281 = vadd.f32 %v6971, %v8280
  %v8282 = vand.u32 %v513, 4294901760
  %8283 = vmatmul.f32.gmra.mxu0 %v8282
  %v8284 = vpop.f32.mrf.mxu0
  %v8285 = vadd.f32 %v6979, %v8284
  %v8286 = vand.u32 %v516, 4294901760
  %8287 = vmatmul.f32.gmra.mxu0 %v8286
  %v8288 = vpop.f32.mrf.mxu0
  %v8289 = vadd.f32 %v6987, %v8288
  %v8290 = vand.u32 %v519, 4294901760
  %8291 = vmatmul.f32.gmra.mxu0 %v8290
  %v8292 = vpop.f32.mrf.mxu0
  %v8293 = vadd.f32 %v6995, %v8292
  %v8294 = vand.u32 %v522, 4294901760
  %8295 = vmatmul.f32.gmra.mxu0 %v8294
  %v8296 = vpop.f32.mrf.mxu0
  %v8297 = vadd.f32 %v7003, %v8296
  %v8298 = vand.u32 %v525, 4294901760
  %8299 = vmatmul.f32.gmra.mxu0 %v8298
  %v8300 = vpop.f32.mrf.mxu0
  %v8301 = vadd.f32 %v7011, %v8300
  %v8302 = vand.u32 %v528, 4294901760
  %8303 = vmatmul.f32.gmra.mxu0 %v8302
  %v8304 = vpop.f32.mrf.mxu0
  %v8305 = vadd.f32 %v7019, %v8304
  %v8306 = vand.u32 %v531, 4294901760
  %8307 = vmatmul.f32.gmra.mxu0 %v8306
  %v8308 = vpop.f32.mrf.mxu0
  %v8309 = vadd.f32 %v7027, %v8308
  %v8310 = vand.u32 %v534, 4294901760
  %8311 = vmatmul.f32.gmra.mxu0 %v8310
  %v8312 = vpop.f32.mrf.mxu0
  %v8313 = vadd.f32 %v7035, %v8312
  %v8314 = vand.u32 %v537, 4294901760
  %8315 = vmatmul.f32.gmra.mxu0 %v8314
  %v8316 = vpop.f32.mrf.mxu0
  %v8317 = vadd.f32 %v7043, %v8316
  %v8318 = vand.u32 %v540, 4294901760
  %8319 = vmatmul.f32.gmra.mxu0 %v8318
  %v8320 = vpop.f32.mrf.mxu0
  %v8321 = vadd.f32 %v7051, %v8320
  %v8322 = vand.u32 %v543, 4294901760
  %8323 = vmatmul.f32.gmra.mxu0 %v8322
  %v8324 = vpop.f32.mrf.mxu0
  %v8325 = vadd.f32 %v7059, %v8324
  %v8326 = vand.u32 %v546, 4294901760
  %8327 = vmatmul.f32.gmra.mxu0 %v8326
  %v8328 = vpop.f32.mrf.mxu0
  %v8329 = vadd.f32 %v7067, %v8328
  %v8330 = vand.u32 %v549, 4294901760
  %8331 = vmatmul.f32.gmra.mxu0 %v8330
  %v8332 = vpop.f32.mrf.mxu0
  %v8333 = vadd.f32 %v7075, %v8332
  %v8334 = vand.u32 %v552, 4294901760
  %8335 = vmatmul.f32.gmra.mxu0 %v8334
  %v8336 = vpop.f32.mrf.mxu0
  %v8337 = vadd.f32 %v7083, %v8336
  %v8338 = vand.u32 %v555, 4294901760
  %8339 = vmatmul.f32.gmra.mxu0 %v8338
  %v8340 = vpop.f32.mrf.mxu0
  %v8341 = vadd.f32 %v7091, %v8340
  %v8342 = vand.u32 %v558, 4294901760
  %8343 = vmatmul.f32.gmra.mxu0 %v8342
  %v8344 = vpop.f32.mrf.mxu0
  %v8345 = vadd.f32 %v7099, %v8344
  %v8346 = vand.u32 %v561, 4294901760
  %8347 = vmatmul.f32.gmra.mxu0 %v8346
  %v8348 = vpop.f32.mrf.mxu0
  %v8349 = vadd.f32 %v7107, %v8348
  %v8350 = vand.u32 %v564, 4294901760
  %8351 = vmatmul.f32.gmra.mxu0 %v8350
  %v8352 = vpop.f32.mrf.mxu0
  %v8353 = vadd.f32 %v7115, %v8352
  %v8354 = vand.u32 %v567, 4294901760
  %8355 = vmatmul.f32.gmra.mxu0 %v8354
  %v8356 = vpop.f32.mrf.mxu0
  %v8357 = vadd.f32 %v7123, %v8356
  %v8358 = vand.u32 %v570, 4294901760
  %8359 = vmatmul.f32.gmra.mxu0 %v8358
  %v8360 = vpop.f32.mrf.mxu0
  %v8361 = vadd.f32 %v7131, %v8360
  %v8362 = vand.u32 %v573, 4294901760
  %8363 = vmatmul.f32.gmra.mxu0 %v8362
  %v8364 = vpop.f32.mrf.mxu0
  %v8365 = vadd.f32 %v7139, %v8364
  %v8366 = vand.u32 %v576, 4294901760
  %8367 = vmatmul.f32.gmra.mxu0 %v8366
  %v8368 = vpop.f32.mrf.mxu0
  %v8369 = vadd.f32 %v7147, %v8368
  %v8370 = vand.u32 %v579, 4294901760
  %8371 = vmatmul.f32.gmra.mxu0 %v8370
  %v8372 = vpop.f32.mrf.mxu0
  %v8373 = vadd.f32 %v7155, %v8372
  %v8374 = vand.u32 %v582, 4294901760
  %8375 = vmatmul.f32.gmra.mxu0 %v8374
  %v8376 = vpop.f32.mrf.mxu0
  %v8377 = vadd.f32 %v7163, %v8376
  %v8378 = vand.u32 %v585, 4294901760
  %8379 = vmatmul.f32.gmra.mxu0 %v8378
  %v8380 = vpop.f32.mrf.mxu0
  %v8381 = vadd.f32 %v7171, %v8380
  %v8382 = vand.u32 %v588, 4294901760
  %8383 = vmatmul.f32.gmra.mxu0 %v8382
  %v8384 = vpop.f32.mrf.mxu0
  %v8385 = vadd.f32 %v7179, %v8384
  %v8386 = vand.u32 %v591, 4294901760
  %8387 = vmatmul.f32.gmra.mxu0 %v8386
  %v8388 = vpop.f32.mrf.mxu0
  %v8389 = vadd.f32 %v7187, %v8388
  %v8390 = vand.u32 %v594, 4294901760
  %8391 = vmatmul.f32.gmra.mxu0 %v8390
  %v8392 = vpop.f32.mrf.mxu0
  %v8393 = vadd.f32 %v7195, %v8392
  %v8394 = vand.u32 %v597, 4294901760
  %8395 = vmatmul.f32.gmra.mxu0 %v8394
  %v8396 = vpop.f32.mrf.mxu0
  %v8397 = vadd.f32 %v7203, %v8396
  %v8398 = vand.u32 %v600, 4294901760
  %8399 = vmatmul.f32.gmra.mxu0 %v8398
  %v8400 = vpop.f32.mrf.mxu0
  %v8401 = vadd.f32 %v7211, %v8400
  %v8402 = vand.u32 %v603, 4294901760
  %8403 = vmatmul.f32.gmra.mxu0 %v8402
  %v8404 = vpop.f32.mrf.mxu0
  %v8405 = vadd.f32 %v7219, %v8404
  %v8406 = vand.u32 %v606, 4294901760
  %8407 = vmatmul.f32.gmra.mxu0 %v8406
  %v8408 = vpop.f32.mrf.mxu0
  %v8409 = vadd.f32 %v7227, %v8408
  %v8410 = vand.u32 %v609, 4294901760
  %8411 = vmatmul.f32.gmra.mxu0 %v8410
  %v8412 = vpop.f32.mrf.mxu0
  %v8413 = vadd.f32 %v7235, %v8412
  %v8414 = vand.u32 %v612, 4294901760
  %8415 = vmatmul.f32.gmra.mxu0 %v8414
  %v8416 = vpop.f32.mrf.mxu0
  %v8417 = vadd.f32 %v7243, %v8416
  %v8418 = vand.u32 %v615, 4294901760
  %8419 = vmatmul.f32.gmra.mxu0 %v8418
  %v8420 = vpop.f32.mrf.mxu0
  %v8421 = vadd.f32 %v7251, %v8420
  %v8422 = vand.u32 %v618, 4294901760
  %8423 = vmatmul.f32.gmra.mxu0 %v8422
  %v8424 = vpop.f32.mrf.mxu0
  %v8425 = vadd.f32 %v7259, %v8424
  %v8426 = vand.u32 %v621, 4294901760
  %8427 = vmatmul.f32.gmra.mxu0 %v8426
  %v8428 = vpop.f32.mrf.mxu0
  %v8429 = vadd.f32 %v7267, %v8428
  %v8430 = vand.u32 %v624, 4294901760
  %8431 = vmatmul.f32.gmra.mxu0 %v8430
  %v8432 = vpop.f32.mrf.mxu0
  %v8433 = vadd.f32 %v7275, %v8432
  %v8434 = vand.u32 %v627, 4294901760
  %8435 = vmatmul.f32.gmra.mxu0 %v8434
  %v8436 = vpop.f32.mrf.mxu0
  %v8437 = vadd.f32 %v7283, %v8436
  %v8438 = vand.u32 %v630, 4294901760
  %8439 = vmatmul.f32.gmra.mxu0 %v8438
  %v8440 = vpop.f32.mrf.mxu0
  %v8441 = vadd.f32 %v7291, %v8440
  %v8442 = vand.u32 %v633, 4294901760
  %8443 = vmatmul.f32.gmra.mxu0 %v8442
  %v8444 = vpop.f32.mrf.mxu0
  %v8445 = vadd.f32 %v7299, %v8444
  %v8446 = vand.u32 %v636, 4294901760
  %8447 = vmatmul.f32.gmra.mxu0 %v8446
  %v8448 = vpop.f32.mrf.mxu0
  %v8449 = vadd.f32 %v7307, %v8448
  %v8450 = vand.u32 %v639, 4294901760
  %8451 = vmatmul.f32.gmra.mxu0 %v8450
  %v8452 = vpop.f32.mrf.mxu0
  %v8453 = vadd.f32 %v7315, %v8452
  %v8454 = vand.u32 %v642, 4294901760
  %8455 = vmatmul.f32.gmra.mxu0 %v8454
  %v8456 = vpop.f32.mrf.mxu0
  %v8457 = vadd.f32 %v7323, %v8456
  %v8458 = vand.u32 %v645, 4294901760
  %8459 = vmatmul.f32.gmra.mxu0 %v8458
  %v8460 = vpop.f32.mrf.mxu0
  %v8461 = vadd.f32 %v7331, %v8460
  %v8462 = vand.u32 %v648, 4294901760
  %8463 = vmatmul.f32.gmra.mxu0 %v8462
  %v8464 = vpop.f32.mrf.mxu0
  %v8465 = vadd.f32 %v7339, %v8464
  %v8466 = vand.u32 %v651, 4294901760
  %8467 = vmatmul.f32.gmra.mxu0 %v8466
  %v8468 = vpop.f32.mrf.mxu0
  %v8469 = vadd.f32 %v7347, %v8468
  %v8470 = vand.u32 %v654, 4294901760
  %8471 = vmatmul.f32.gmra.mxu0 %v8470
  %v8472 = vpop.f32.mrf.mxu0
  %v8473 = vadd.f32 %v7355, %v8472
  %v8474 = vand.u32 %v657, 4294901760
  %8475 = vmatmul.f32.gmra.mxu0 %v8474
  %v8476 = vpop.f32.mrf.mxu0
  %v8477 = vadd.f32 %v7363, %v8476
  %v8478 = vand.u32 %v660, 4294901760
  %8479 = vmatmul.f32.gmra.mxu0 %v8478
  %v8480 = vpop.f32.mrf.mxu0
  %v8481 = vadd.f32 %v7371, %v8480
  %v8482 = vand.u32 %v663, 4294901760
  %8483 = vmatmul.f32.gmra.mxu0 %v8482
  %v8484 = vpop.f32.mrf.mxu0
  %v8485 = vadd.f32 %v7379, %v8484
  %v8486 = vand.u32 %v666, 4294901760
  %8487 = vmatmul.f32.gmra.mxu0 %v8486
  %v8488 = vpop.f32.mrf.mxu0
  %v8489 = vadd.f32 %v7387, %v8488
  %v8490 = vand.u32 %v669, 4294901760
  %8491 = vmatmul.f32.gmra.mxu0 %v8490
  %v8492 = vpop.f32.mrf.mxu0
  %v8493 = vadd.f32 %v7395, %v8492
  %v8494 = vand.u32 %v672, 4294901760
  %8495 = vmatmul.f32.gmra.mxu0 %v8494
  %v8496 = vpop.f32.mrf.mxu0
  %v8497 = vadd.f32 %v7403, %v8496
  %v8498 = vand.u32 %v675, 4294901760
  %8499 = vmatmul.f32.gmra.mxu0 %v8498
  %v8500 = vpop.f32.mrf.mxu0
  %v8501 = vadd.f32 %v7411, %v8500
  %v8502 = vand.u32 %v678, 4294901760
  %8503 = vmatmul.f32.gmra.mxu0 %v8502
  %v8504 = vpop.f32.mrf.mxu0
  %v8505 = vadd.f32 %v7419, %v8504
  %v8506 = vand.u32 %v681, 4294901760
  %8507 = vmatmul.f32.gmra.mxu0 %v8506
  %v8508 = vpop.f32.mrf.mxu0
  %v8509 = vadd.f32 %v7427, %v8508
  %v8510 = vand.u32 %v684, 4294901760
  %8511 = vmatmul.f32.gmra.mxu0 %v8510
  %v8512 = vpop.f32.mrf.mxu0
  %v8513 = vadd.f32 %v7435, %v8512
  %v8514 = vand.u32 %v687, 4294901760
  %8515 = vmatmul.f32.gmra.mxu0 %v8514
  %v8516 = vpop.f32.mrf.mxu0
  %v8517 = vadd.f32 %v7443, %v8516
  %v8518 = vand.u32 %v690, 4294901760
  %8519 = vmatmul.f32.gmra.mxu0 %v8518
  %v8520 = vpop.f32.mrf.mxu0
  %v8521 = vadd.f32 %v7451, %v8520
  %v8522 = vand.u32 %v693, 4294901760
  %8523 = vmatmul.f32.gmra.mxu0 %v8522
  %v8524 = vpop.f32.mrf.mxu0
  %v8525 = vadd.f32 %v7459, %v8524
  %v8526 = vand.u32 %v696, 4294901760
  %8527 = vmatmul.f32.gmra.mxu0 %v8526
  %v8528 = vpop.f32.mrf.mxu0
  %v8529 = vadd.f32 %v7467, %v8528
  %v8530 = vand.u32 %v699, 4294901760
  %8531 = vmatmul.f32.gmra.mxu0 %v8530
  %v8532 = vpop.f32.mrf.mxu0
  %v8533 = vadd.f32 %v7475, %v8532
  %v8534 = vand.u32 %v702, 4294901760
  %8535 = vmatmul.f32.gmra.mxu0 %v8534
  %v8536 = vpop.f32.mrf.mxu0
  %v8537 = vadd.f32 %v7483, %v8536
  %v8538 = vand.u32 %v705, 4294901760
  %8539 = vmatmul.f32.gmra.mxu0 %v8538
  %v8540 = vpop.f32.mrf.mxu0
  %v8541 = vadd.f32 %v7491, %v8540
  %v8542 = vand.u32 %v708, 4294901760
  %8543 = vmatmul.f32.gmra.mxu0 %v8542
  %v8544 = vpop.f32.mrf.mxu0
  %v8545 = vadd.f32 %v7499, %v8544
  %v8546 = vand.u32 %v711, 4294901760
  %8547 = vmatmul.f32.gmra.mxu0 %v8546
  %v8548 = vpop.f32.mrf.mxu0
  %v8549 = vadd.f32 %v7507, %v8548
  %v8550 = vand.u32 %v714, 4294901760
  %8551 = vmatmul.f32.gmra.mxu0 %v8550
  %v8552 = vpop.f32.mrf.mxu0
  %v8553 = vadd.f32 %v7515, %v8552
  %v8554 = vand.u32 %v717, 4294901760
  %8555 = vmatmul.f32.gmra.mxu0 %v8554
  %v8556 = vpop.f32.mrf.mxu0
  %v8557 = vadd.f32 %v7523, %v8556
  %v8558 = vand.u32 %v720, 4294901760
  %8559 = vmatmul.f32.gmra.mxu0 %v8558
  %v8560 = vpop.f32.mrf.mxu0
  %v8561 = vadd.f32 %v7531, %v8560
  %v8562 = vand.u32 %v723, 4294901760
  %8563 = vmatmul.f32.gmra.mxu0 %v8562
  %v8564 = vpop.f32.mrf.mxu0
  %v8565 = vadd.f32 %v7539, %v8564
  %v8566 = vand.u32 %v726, 4294901760
  %8567 = vmatmul.f32.gmra.mxu0 %v8566
  %v8568 = vpop.f32.mrf.mxu0
  %v8569 = vadd.f32 %v7547, %v8568
  %v8570 = vand.u32 %v729, 4294901760
  %8571 = vmatmul.f32.gmra.mxu0 %v8570
  %v8572 = vpop.f32.mrf.mxu0
  %v8573 = vadd.f32 %v7555, %v8572
  %v8574 = vand.u32 %v732, 4294901760
  %8575 = vmatmul.f32.gmra.mxu0 %v8574
  %v8576 = vpop.f32.mrf.mxu0
  %v8577 = vadd.f32 %v7563, %v8576
  %v8578 = vand.u32 %v735, 4294901760
  %8579 = vmatmul.f32.gmra.mxu0 %v8578
  %v8580 = vpop.f32.mrf.mxu0
  %v8581 = vadd.f32 %v7571, %v8580
  %v8582 = vand.u32 %v738, 4294901760
  %8583 = vmatmul.f32.gmra.mxu0 %v8582
  %v8584 = vpop.f32.mrf.mxu0
  %v8585 = vadd.f32 %v7579, %v8584
  %v8586 = vand.u32 %v741, 4294901760
  %8587 = vmatmul.f32.gmra.mxu0 %v8586
  %v8588 = vpop.f32.mrf.mxu0
  %v8589 = vadd.f32 %v7587, %v8588
  %v8590 = vand.u32 %v744, 4294901760
  %8591 = vmatmul.f32.gmra.mxu0 %v8590
  %v8592 = vpop.f32.mrf.mxu0
  %v8593 = vadd.f32 %v7595, %v8592
  %v8594 = vand.u32 %v747, 4294901760
  %8595 = vmatmul.f32.gmra.mxu0 %v8594
  %v8596 = vpop.f32.mrf.mxu0
  %v8597 = vadd.f32 %v7603, %v8596
  %v8598 = vand.u32 %v750, 4294901760
  %8599 = vmatmul.f32.gmra.mxu0 %v8598
  %v8600 = vpop.f32.mrf.mxu0
  %v8601 = vadd.f32 %v7611, %v8600
  %v8602 = vand.u32 %v753, 4294901760
  %8603 = vmatmul.f32.gmra.mxu0 %v8602
  %v8604 = vpop.f32.mrf.mxu0
  %v8605 = vadd.f32 %v7619, %v8604
  %v8606 = vand.u32 %v756, 4294901760
  %8607 = vmatmul.f32.gmra.mxu0 %v8606
  %v8608 = vpop.f32.mrf.mxu0
  %v8609 = vadd.f32 %v7627, %v8608
  %v8610 = vand.u32 %v759, 4294901760
  %8611 = vmatmul.f32.gmra.mxu0 %v8610
  %v8612 = vpop.f32.mrf.mxu0
  %v8613 = vadd.f32 %v7635, %v8612
  %v8614 = vand.u32 %v762, 4294901760
  %8615 = vmatmul.f32.gmra.mxu0 %v8614
  %v8616 = vpop.f32.mrf.mxu0
  %v8617 = vadd.f32 %v7643, %v8616
  %v8618 = vand.u32 %v765, 4294901760
  %8619 = vmatmul.f32.gmra.mxu0 %v8618
  %v8620 = vpop.f32.mrf.mxu0
  %v8621 = vadd.f32 %v7651, %v8620
  %v8622 = vand.u32 %v768, 4294901760
  %8623 = vmatmul.f32.gmra.mxu0 %v8622
  %v8624 = vpop.f32.mrf.mxu0
  %v8625 = vadd.f32 %v7659, %v8624
  %v8626 = vand.u32 %v771, 4294901760
  %8627 = vmatmul.f32.gmra.mxu0 %v8626
  %v8628 = vpop.f32.mrf.mxu0
  %v8629 = vadd.f32 %v7667, %v8628
  %v8630 = vand.u32 %v774, 4294901760
  %8631 = vmatmul.f32.gmra.mxu0 %v8630
  %v8632 = vpop.f32.mrf.mxu0
  %v8633 = vadd.f32 %v7675, %v8632
  %v8634 = vand.u32 %v777, 4294901760
  %8635 = vmatmul.f32.gmra.mxu0 %v8634
  %v8636 = vpop.f32.mrf.mxu0
  %v8637 = vadd.f32 %v7683, %v8636
  %v8638 = vand.u32 %v780, 4294901760
  %8639 = vmatmul.f32.gmra.mxu0 %v8638
  %v8640 = vpop.f32.mrf.mxu0
  %v8641 = vadd.f32 %v7691, %v8640
  %v8642 = vand.u32 %v783, 4294901760
  %8643 = vmatmul.f32.gmra.mxu0 %v8642
  %v8644 = vpop.f32.mrf.mxu0
  %v8645 = vadd.f32 %v7699, %v8644
  %v8646 = vand.u32 %v786, 4294901760
  %8647 = vmatmul.f32.gmra.mxu0 %v8646
  %v8648 = vpop.f32.mrf.mxu0
  %v8649 = vadd.f32 %v7707, %v8648
  %v8650 = vand.u32 %v789, 4294901760
  %8651 = vmatmul.f32.gmra.mxu0 %v8650
  %v8652 = vpop.f32.mrf.mxu0
  %v8653 = vadd.f32 %v7715, %v8652
  %v8654 = vand.u32 %v792, 4294901760
  %8655 = vmatmul.f32.gmra.mxu0 %v8654
  %v8656 = vpop.f32.mrf.mxu0
  %v8657 = vadd.f32 %v7723, %v8656
  %v8658 = vand.u32 %v795, 4294901760
  %8659 = vmatmul.f32.gmra.mxu0 %v8658
  %v8660 = vpop.f32.mrf.mxu0
  %v8661 = vadd.f32 %v7731, %v8660
  %v8662 = vand.u32 %v798, 4294901760
  %8663 = vmatmul.f32.gmra.mxu0 %v8662
  %v8664 = vpop.f32.mrf.mxu0
  %v8665 = vadd.f32 %v7739, %v8664
  %v8666 = vand.u32 %v801, 4294901760
  %8667 = vmatmul.f32.gmra.mxu0 %v8666
  %v8668 = vpop.f32.mrf.mxu0
  %v8669 = vadd.f32 %v7747, %v8668
  %v8670 = vand.u32 %v804, 4294901760
  %8671 = vmatmul.f32.gmra.mxu0 %v8670
  %v8672 = vpop.f32.mrf.mxu0
  %v8673 = vadd.f32 %v7755, %v8672
  %v8674 = vand.u32 %v807, 4294901760
  %8675 = vmatmul.f32.gmra.mxu0 %v8674
  %v8676 = vpop.f32.mrf.mxu0
  %v8677 = vadd.f32 %v7763, %v8676
  %v8678 = vand.u32 %v810, 4294901760
  %8679 = vmatmul.f32.gmra.mxu0 %v8678
  %v8680 = vpop.f32.mrf.mxu0
  %v8681 = vadd.f32 %v7771, %v8680
  %v8682 = vand.u32 %v813, 4294901760
  %8683 = vmatmul.f32.gmra.mxu0 %v8682
  %v8684 = vpop.f32.mrf.mxu0
  %v8685 = vadd.f32 %v7779, %v8684
  %v8686 = vand.u32 %v816, 4294901760
  %8687 = vmatmul.f32.gmra.mxu0 %v8686
  %v8688 = vpop.f32.mrf.mxu0
  %v8689 = vadd.f32 %v7787, %v8688
  %v8690 = vand.u32 %v819, 4294901760
  %8691 = vmatmul.f32.gmra.mxu0 %v8690
  %v8692 = vpop.f32.mrf.mxu0
  %v8693 = vadd.f32 %v7795, %v8692
  %v8694 = vand.u32 %v822, 4294901760
  %8695 = vmatmul.f32.gmra.mxu0 %v8694
  %v8696 = vpop.f32.mrf.mxu0
  %v8697 = vadd.f32 %v7803, %v8696
  %v8698 = vand.u32 %v825, 4294901760
  %8699 = vmatmul.f32.gmra.mxu0 %v8698
  %v8700 = vpop.f32.mrf.mxu0
  %v8701 = vadd.f32 %v7811, %v8700
  %v8702 = vand.u32 %v828, 4294901760
  %8703 = vmatmul.f32.gmra.mxu0 %v8702
  %v8704 = vpop.f32.mrf.mxu0
  %v8705 = vadd.f32 %v7819, %v8704
  %v8706 = vand.u32 %v831, 4294901760
  %8707 = vmatmul.f32.gmra.mxu0 %v8706
  %v8708 = vpop.f32.mrf.mxu0
  %v8709 = vadd.f32 %v7827, %v8708
  %v8710 = vand.u32 %v834, 4294901760
  %8711 = vmatmul.f32.gmra.mxu0 %v8710
  %v8712 = vpop.f32.mrf.mxu0
  %v8713 = vadd.f32 %v7835, %v8712
  %v8714 = vand.u32 %v837, 4294901760
  %8715 = vmatmul.f32.gmra.mxu0 %v8714
  %v8716 = vpop.f32.mrf.mxu0
  %v8717 = vadd.f32 %v7843, %v8716
  %v8718 = vand.u32 %v840, 4294901760
  %8719 = vmatmul.f32.gmra.mxu0 %v8718
  %v8720 = vpop.f32.mrf.mxu0
  %v8721 = vadd.f32 %v7851, %v8720
  %v8722 = vand.u32 %v843, 4294901760
  %8723 = vmatmul.f32.gmra.mxu0 %v8722
  %v8724 = vpop.f32.mrf.mxu0
  %v8725 = vadd.f32 %v7859, %v8724
  %v8726 = vand.u32 %v846, 4294901760
  %8727 = vmatmul.f32.gmra.mxu0 %v8726
  %v8728 = vpop.f32.mrf.mxu0
  %v8729 = vadd.f32 %v7867, %v8728
  %v8730 = vand.u32 %v849, 4294901760
  %8731 = vmatmul.f32.gmra.mxu0 %v8730
  %v8732 = vpop.f32.mrf.mxu0
  %v8733 = vadd.f32 %v7875, %v8732
  %v8734 = vand.u32 %v852, 4294901760
  %8735 = vmatmul.f32.gmra.mxu0 %v8734
  %v8736 = vpop.f32.mrf.mxu0
  %v8737 = vadd.f32 %v7883, %v8736
  %v8738 = vand.u32 %v855, 4294901760
  %8739 = vmatmul.f32.gmra.mxu0 %v8738
  %v8740 = vpop.f32.mrf.mxu0
  %v8741 = vadd.f32 %v7891, %v8740
  %v8742 = vand.u32 %v858, 4294901760
  %8743 = vmatmul.f32.gmra.mxu0 %v8742
  %v8744 = vpop.f32.mrf.mxu0
  %v8745 = vadd.f32 %v7899, %v8744
  %v8746 = vand.u32 %v861, 4294901760
  %8747 = vmatmul.f32.gmra.mxu0 %v8746
  %v8748 = vpop.f32.mrf.mxu0
  %v8749 = vadd.f32 %v7907, %v8748
  %v8750 = vand.u32 %v864, 4294901760
  %8751 = vmatmul.f32.gmra.mxu0 %v8750
  %v8752 = vpop.f32.mrf.mxu0
  %v8753 = vadd.f32 %v7915, %v8752
  %v8754 = vand.u32 %v867, 4294901760
  %8755 = vmatmul.f32.gmra.mxu0 %v8754
  %v8756 = vpop.f32.mrf.mxu0
  %v8757 = vadd.f32 %v7923, %v8756
  %v8758 = vand.u32 %v870, 4294901760
  %8759 = vmatmul.f32.gmra.mxu0 %v8758
  %v8760 = vpop.f32.mrf.mxu0
  %v8761 = vadd.f32 %v7931, %v8760
  %v8762 = vand.u32 %v873, 4294901760
  %8763 = vmatmul.f32.gmra.mxu0 %v8762
  %v8764 = vpop.f32.mrf.mxu0
  %v8765 = vadd.f32 %v7939, %v8764
  %v8766 = vand.u32 %v876, 4294901760
  %8767 = vmatmul.f32.gmra.mxu0 %v8766
  %v8768 = vpop.f32.mrf.mxu0
  %v8769 = vadd.f32 %v7947, %v8768
  %v8770 = vand.u32 %v879, 4294901760
  %8771 = vmatmul.f32.gmra.mxu0 %v8770
  %v8772 = vpop.f32.mrf.mxu0
  %v8773 = vadd.f32 %v7955, %v8772
  %v8774 = vand.u32 %v882, 4294901760
  %8775 = vmatmul.f32.gmra.mxu0 %v8774
  %v8776 = vpop.f32.mrf.mxu0
  %v8777 = vadd.f32 %v7963, %v8776
  %v8778 = vand.u32 %v885, 4294901760
  %8779 = vmatmul.f32.gmra.mxu0 %v8778
  %v8780 = vpop.f32.mrf.mxu0
  %v8781 = vadd.f32 %v7971, %v8780
  %v8782 = vand.u32 %v888, 4294901760
  %8783 = vmatmul.f32.gmra.mxu0 %v8782
  %v8784 = vpop.f32.mrf.mxu0
  %v8785 = vadd.f32 %v7979, %v8784
  %v8786 = vand.u32 %v891, 4294901760
  %8787 = vmatmul.f32.gmra.mxu0 %v8786
  %v8788 = vpop.f32.mrf.mxu0
  %v8789 = vadd.f32 %v7987, %v8788
  %v8790 = vand.u32 %v894, 4294901760
  %8791 = vmatmul.f32.gmra.mxu0 %v8790
  %v8792 = vpop.f32.mrf.mxu0
  %v8793 = vadd.f32 %v7995, %v8792
  %v8794 = vand.u32 %v897, 4294901760
  %8795 = vmatmul.f32.gmra.mxu0 %v8794
  %v8796 = vpop.f32.mrf.mxu0
  %v8797 = vadd.f32 %v8003, %v8796
  %v8798 = vand.u32 %v900, 4294901760
  %8799 = vmatmul.f32.gmra.mxu0 %v8798
  %v8800 = vpop.f32.mrf.mxu0
  %v8801 = vadd.f32 %v8011, %v8800
  %v8802 = vand.u32 %v903, 4294901760
  %8803 = vmatmul.f32.gmra.mxu0 %v8802
  %v8804 = vpop.f32.mrf.mxu0
  %v8805 = vadd.f32 %v8019, %v8804
  %v8806 = vand.u32 %v906, 4294901760
  %8807 = vmatmul.f32.gmra.mxu0 %v8806
  %v8808 = vpop.f32.mrf.mxu0
  %v8809 = vadd.f32 %v8027, %v8808
  %v8810 = vand.u32 %v909, 4294901760
  %8811 = vmatmul.f32.gmra.mxu0 %v8810
  %v8812 = vpop.f32.mrf.mxu0
  %v8813 = vadd.f32 %v8035, %v8812
  %8814 = vdwg.mxu0
  %8815 = vmatpush.msra.mxu0 0.0
  %8816 = vmatpush.msra.mxu0 0.0
  %8817 = vmatpush.msra.mxu0 0.0
  %v8818 = vand.u32 %v387, 4294901760
  %v8819 = vsub.f32 %v387, %v8818
  %8820 = vmatpush.msra.mxu0 %v8819
  %v8821 = vand.u32 %v386, 4294901760
  %v8822 = vsub.f32 %v386, %v8821
  %8823 = vmatpush.msra.mxu0 %v8822
  %v8824 = vand.u32 %v385, 4294901760
  %v8825 = vsub.f32 %v385, %v8824
  %8826 = vmatpush.msra.mxu0 %v8825
  %v8827 = vand.u32 %v384, 4294901760
  %v8828 = vsub.f32 %v384, %v8827
  %8829 = vmatpush.msra.mxu0 %v8828
  %v8830 = vand.u32 %v383, 4294901760
  %v8831 = vsub.f32 %v383, %v8830
  %8832 = vmatpush.msra.mxu0 %v8831
  %v8833 = vand.u32 %v382, 4294901760
  %v8834 = vsub.f32 %v382, %v8833
  %8835 = vmatpush.msra.mxu0 %v8834
  %v8836 = vand.u32 %v381, 4294901760
  %v8837 = vsub.f32 %v381, %v8836
  %8838 = vmatpush.msra.mxu0 %v8837
  %v8839 = vand.u32 %v380, 4294901760
  %v8840 = vsub.f32 %v380, %v8839
  %8841 = vmatpush.msra.mxu0 %v8840
  %v8842 = vand.u32 %v379, 4294901760
  %v8843 = vsub.f32 %v379, %v8842
  %8844 = vmatpush.msra.mxu0 %v8843
  %v8845 = vand.u32 %v378, 4294901760
  %v8846 = vsub.f32 %v378, %v8845
  %8847 = vmatpush.msra.mxu0 %v8846
  %v8848 = vand.u32 %v377, 4294901760
  %v8849 = vsub.f32 %v377, %v8848
  %8850 = vmatpush.msra.mxu0 %v8849
  %v8851 = vand.u32 %v376, 4294901760
  %v8852 = vsub.f32 %v376, %v8851
  %8853 = vmatpush.msra.mxu0 %v8852
  %v8854 = vand.u32 %v375, 4294901760
  %v8855 = vsub.f32 %v375, %v8854
  %8856 = vmatpush.msra.mxu0 %v8855
  %v8857 = vand.u32 %v390, 4294901760
  %v8858 = vsub.f32 %v390, %v8857
  %8859 = vmatmul.f32.gmra.mxu0 %v8858
  %v8860 = vpop.f32.mrf.mxu0
  %v8861 = vadd.f32 %v8121, %v8860
  %v8862 = vand.u32 %v393, 4294901760
  %v8863 = vsub.f32 %v393, %v8862
  %8864 = vmatmul.f32.gmra.mxu0 %v8863
  %v8865 = vpop.f32.mrf.mxu0
  %v8866 = vadd.f32 %v8125, %v8865
  %v8867 = vand.u32 %v396, 4294901760
  %v8868 = vsub.f32 %v396, %v8867
  %8869 = vmatmul.f32.gmra.mxu0 %v8868
  %v8870 = vpop.f32.mrf.mxu0
  %v8871 = vadd.f32 %v8129, %v8870
  %v8872 = vand.u32 %v399, 4294901760
  %v8873 = vsub.f32 %v399, %v8872
  %8874 = vmatmul.f32.gmra.mxu0 %v8873
  %v8875 = vpop.f32.mrf.mxu0
  %v8876 = vadd.f32 %v8133, %v8875
  %v8877 = vand.u32 %v402, 4294901760
  %v8878 = vsub.f32 %v402, %v8877
  %8879 = vmatmul.f32.gmra.mxu0 %v8878
  %v8880 = vpop.f32.mrf.mxu0
  %v8881 = vadd.f32 %v8137, %v8880
  %v8882 = vand.u32 %v405, 4294901760
  %v8883 = vsub.f32 %v405, %v8882
  %8884 = vmatmul.f32.gmra.mxu0 %v8883
  %v8885 = vpop.f32.mrf.mxu0
  %v8886 = vadd.f32 %v8141, %v8885
  %v8887 = vand.u32 %v408, 4294901760
  %v8888 = vsub.f32 %v408, %v8887
  %8889 = vmatmul.f32.gmra.mxu0 %v8888
  %v8890 = vpop.f32.mrf.mxu0
  %v8891 = vadd.f32 %v8145, %v8890
  %v8892 = vand.u32 %v411, 4294901760
  %v8893 = vsub.f32 %v411, %v8892
  %8894 = vmatmul.f32.gmra.mxu0 %v8893
  %v8895 = vpop.f32.mrf.mxu0
  %v8896 = vadd.f32 %v8149, %v8895
  %v8897 = vand.u32 %v414, 4294901760
  %v8898 = vsub.f32 %v414, %v8897
  %8899 = vmatmul.f32.gmra.mxu0 %v8898
  %v8900 = vpop.f32.mrf.mxu0
  %v8901 = vadd.f32 %v8153, %v8900
  %v8902 = vand.u32 %v417, 4294901760
  %v8903 = vsub.f32 %v417, %v8902
  %8904 = vmatmul.f32.gmra.mxu0 %v8903
  %v8905 = vpop.f32.mrf.mxu0
  %v8906 = vadd.f32 %v8157, %v8905
  %v8907 = vand.u32 %v420, 4294901760
  %v8908 = vsub.f32 %v420, %v8907
  %8909 = vmatmul.f32.gmra.mxu0 %v8908
  %v8910 = vpop.f32.mrf.mxu0
  %v8911 = vadd.f32 %v8161, %v8910
  %v8912 = vand.u32 %v423, 4294901760
  %v8913 = vsub.f32 %v423, %v8912
  %8914 = vmatmul.f32.gmra.mxu0 %v8913
  %v8915 = vpop.f32.mrf.mxu0
  %v8916 = vadd.f32 %v8165, %v8915
  %v8917 = vand.u32 %v426, 4294901760
  %v8918 = vsub.f32 %v426, %v8917
  %8919 = vmatmul.f32.gmra.mxu0 %v8918
  %v8920 = vpop.f32.mrf.mxu0
  %v8921 = vadd.f32 %v8169, %v8920
  %v8922 = vand.u32 %v429, 4294901760
  %v8923 = vsub.f32 %v429, %v8922
  %8924 = vmatmul.f32.gmra.mxu0 %v8923
  %v8925 = vpop.f32.mrf.mxu0
  %v8926 = vadd.f32 %v8173, %v8925
  %v8927 = vand.u32 %v432, 4294901760
  %v8928 = vsub.f32 %v432, %v8927
  %8929 = vmatmul.f32.gmra.mxu0 %v8928
  %v8930 = vpop.f32.mrf.mxu0
  %v8931 = vadd.f32 %v8177, %v8930
  %v8932 = vand.u32 %v435, 4294901760
  %v8933 = vsub.f32 %v435, %v8932
  %8934 = vmatmul.f32.gmra.mxu0 %v8933
  %v8935 = vpop.f32.mrf.mxu0
  %v8936 = vadd.f32 %v8181, %v8935
  %v8937 = vand.u32 %v438, 4294901760
  %v8938 = vsub.f32 %v438, %v8937
  %8939 = vmatmul.f32.gmra.mxu0 %v8938
  %v8940 = vpop.f32.mrf.mxu0
  %v8941 = vadd.f32 %v8185, %v8940
  %v8942 = vand.u32 %v441, 4294901760
  %v8943 = vsub.f32 %v441, %v8942
  %8944 = vmatmul.f32.gmra.mxu0 %v8943
  %v8945 = vpop.f32.mrf.mxu0
  %v8946 = vadd.f32 %v8189, %v8945
  %v8947 = vand.u32 %v444, 4294901760
  %v8948 = vsub.f32 %v444, %v8947
  %8949 = vmatmul.f32.gmra.mxu0 %v8948
  %v8950 = vpop.f32.mrf.mxu0
  %v8951 = vadd.f32 %v8193, %v8950
  %v8952 = vand.u32 %v447, 4294901760
  %v8953 = vsub.f32 %v447, %v8952
  %8954 = vmatmul.f32.gmra.mxu0 %v8953
  %v8955 = vpop.f32.mrf.mxu0
  %v8956 = vadd.f32 %v8197, %v8955
  %v8957 = vand.u32 %v450, 4294901760
  %v8958 = vsub.f32 %v450, %v8957
  %8959 = vmatmul.f32.gmra.mxu0 %v8958
  %v8960 = vpop.f32.mrf.mxu0
  %v8961 = vadd.f32 %v8201, %v8960
  %v8962 = vand.u32 %v453, 4294901760
  %v8963 = vsub.f32 %v453, %v8962
  %8964 = vmatmul.f32.gmra.mxu0 %v8963
  %v8965 = vpop.f32.mrf.mxu0
  %v8966 = vadd.f32 %v8205, %v8965
  %v8967 = vand.u32 %v456, 4294901760
  %v8968 = vsub.f32 %v456, %v8967
  %8969 = vmatmul.f32.gmra.mxu0 %v8968
  %v8970 = vpop.f32.mrf.mxu0
  %v8971 = vadd.f32 %v8209, %v8970
  %v8972 = vand.u32 %v459, 4294901760
  %v8973 = vsub.f32 %v459, %v8972
  %8974 = vmatmul.f32.gmra.mxu0 %v8973
  %v8975 = vpop.f32.mrf.mxu0
  %v8976 = vadd.f32 %v8213, %v8975
  %v8977 = vand.u32 %v462, 4294901760
  %v8978 = vsub.f32 %v462, %v8977
  %8979 = vmatmul.f32.gmra.mxu0 %v8978
  %v8980 = vpop.f32.mrf.mxu0
  %v8981 = vadd.f32 %v8217, %v8980
  %v8982 = vand.u32 %v465, 4294901760
  %v8983 = vsub.f32 %v465, %v8982
  %8984 = vmatmul.f32.gmra.mxu0 %v8983
  %v8985 = vpop.f32.mrf.mxu0
  %v8986 = vadd.f32 %v8221, %v8985
  %v8987 = vand.u32 %v468, 4294901760
  %v8988 = vsub.f32 %v468, %v8987
  %8989 = vmatmul.f32.gmra.mxu0 %v8988
  %v8990 = vpop.f32.mrf.mxu0
  %v8991 = vadd.f32 %v8225, %v8990
  %v8992 = vand.u32 %v471, 4294901760
  %v8993 = vsub.f32 %v471, %v8992
  %8994 = vmatmul.f32.gmra.mxu0 %v8993
  %v8995 = vpop.f32.mrf.mxu0
  %v8996 = vadd.f32 %v8229, %v8995
  %v8997 = vand.u32 %v474, 4294901760
  %v8998 = vsub.f32 %v474, %v8997
  %8999 = vmatmul.f32.gmra.mxu0 %v8998
  %v9000 = vpop.f32.mrf.mxu0
  %v9001 = vadd.f32 %v8233, %v9000
  %v9002 = vand.u32 %v477, 4294901760
  %v9003 = vsub.f32 %v477, %v9002
  %9004 = vmatmul.f32.gmra.mxu0 %v9003
  %v9005 = vpop.f32.mrf.mxu0
  %v9006 = vadd.f32 %v8237, %v9005
  %v9007 = vand.u32 %v480, 4294901760
  %v9008 = vsub.f32 %v480, %v9007
  %9009 = vmatmul.f32.gmra.mxu0 %v9008
  %v9010 = vpop.f32.mrf.mxu0
  %v9011 = vadd.f32 %v8241, %v9010
  %v9012 = vand.u32 %v483, 4294901760
  %v9013 = vsub.f32 %v483, %v9012
  %9014 = vmatmul.f32.gmra.mxu0 %v9013
  %v9015 = vpop.f32.mrf.mxu0
  %v9016 = vadd.f32 %v8245, %v9015
  %v9017 = vand.u32 %v486, 4294901760
  %v9018 = vsub.f32 %v486, %v9017
  %9019 = vmatmul.f32.gmra.mxu0 %v9018
  %v9020 = vpop.f32.mrf.mxu0
  %v9021 = vadd.f32 %v8249, %v9020
  %v9022 = vand.u32 %v489, 4294901760
  %v9023 = vsub.f32 %v489, %v9022
  %9024 = vmatmul.f32.gmra.mxu0 %v9023
  %v9025 = vpop.f32.mrf.mxu0
  %v9026 = vadd.f32 %v8253, %v9025
  %v9027 = vand.u32 %v492, 4294901760
  %v9028 = vsub.f32 %v492, %v9027
  %9029 = vmatmul.f32.gmra.mxu0 %v9028
  %v9030 = vpop.f32.mrf.mxu0
  %v9031 = vadd.f32 %v8257, %v9030
  %v9032 = vand.u32 %v495, 4294901760
  %v9033 = vsub.f32 %v495, %v9032
  %9034 = vmatmul.f32.gmra.mxu0 %v9033
  %v9035 = vpop.f32.mrf.mxu0
  %v9036 = vadd.f32 %v8261, %v9035
  %v9037 = vand.u32 %v498, 4294901760
  %v9038 = vsub.f32 %v498, %v9037
  %9039 = vmatmul.f32.gmra.mxu0 %v9038
  %v9040 = vpop.f32.mrf.mxu0
  %v9041 = vadd.f32 %v8265, %v9040
  %v9042 = vand.u32 %v501, 4294901760
  %v9043 = vsub.f32 %v501, %v9042
  %9044 = vmatmul.f32.gmra.mxu0 %v9043
  %v9045 = vpop.f32.mrf.mxu0
  %v9046 = vadd.f32 %v8269, %v9045
  %v9047 = vand.u32 %v504, 4294901760
  %v9048 = vsub.f32 %v504, %v9047
  %9049 = vmatmul.f32.gmra.mxu0 %v9048
  %v9050 = vpop.f32.mrf.mxu0
  %v9051 = vadd.f32 %v8273, %v9050
  %v9052 = vand.u32 %v507, 4294901760
  %v9053 = vsub.f32 %v507, %v9052
  %9054 = vmatmul.f32.gmra.mxu0 %v9053
  %v9055 = vpop.f32.mrf.mxu0
  %v9056 = vadd.f32 %v8277, %v9055
  %v9057 = vand.u32 %v510, 4294901760
  %v9058 = vsub.f32 %v510, %v9057
  %9059 = vmatmul.f32.gmra.mxu0 %v9058
  %v9060 = vpop.f32.mrf.mxu0
  %v9061 = vadd.f32 %v8281, %v9060
  %v9062 = vand.u32 %v513, 4294901760
  %v9063 = vsub.f32 %v513, %v9062
  %9064 = vmatmul.f32.gmra.mxu0 %v9063
  %v9065 = vpop.f32.mrf.mxu0
  %v9066 = vadd.f32 %v8285, %v9065
  %v9067 = vand.u32 %v516, 4294901760
  %v9068 = vsub.f32 %v516, %v9067
  %9069 = vmatmul.f32.gmra.mxu0 %v9068
  %v9070 = vpop.f32.mrf.mxu0
  %v9071 = vadd.f32 %v8289, %v9070
  %v9072 = vand.u32 %v519, 4294901760
  %v9073 = vsub.f32 %v519, %v9072
  %9074 = vmatmul.f32.gmra.mxu0 %v9073
  %v9075 = vpop.f32.mrf.mxu0
  %v9076 = vadd.f32 %v8293, %v9075
  %v9077 = vand.u32 %v522, 4294901760
  %v9078 = vsub.f32 %v522, %v9077
  %9079 = vmatmul.f32.gmra.mxu0 %v9078
  %v9080 = vpop.f32.mrf.mxu0
  %v9081 = vadd.f32 %v8297, %v9080
  %v9082 = vand.u32 %v525, 4294901760
  %v9083 = vsub.f32 %v525, %v9082
  %9084 = vmatmul.f32.gmra.mxu0 %v9083
  %v9085 = vpop.f32.mrf.mxu0
  %v9086 = vadd.f32 %v8301, %v9085
  %v9087 = vand.u32 %v528, 4294901760
  %v9088 = vsub.f32 %v528, %v9087
  %9089 = vmatmul.f32.gmra.mxu0 %v9088
  %v9090 = vpop.f32.mrf.mxu0
  %v9091 = vadd.f32 %v8305, %v9090
  %v9092 = vand.u32 %v531, 4294901760
  %v9093 = vsub.f32 %v531, %v9092
  %9094 = vmatmul.f32.gmra.mxu0 %v9093
  %v9095 = vpop.f32.mrf.mxu0
  %v9096 = vadd.f32 %v8309, %v9095
  %v9097 = vand.u32 %v534, 4294901760
  %v9098 = vsub.f32 %v534, %v9097
  %9099 = vmatmul.f32.gmra.mxu0 %v9098
  %v9100 = vpop.f32.mrf.mxu0
  %v9101 = vadd.f32 %v8313, %v9100
  %v9102 = vand.u32 %v537, 4294901760
  %v9103 = vsub.f32 %v537, %v9102
  %9104 = vmatmul.f32.gmra.mxu0 %v9103
  %v9105 = vpop.f32.mrf.mxu0
  %v9106 = vadd.f32 %v8317, %v9105
  %v9107 = vand.u32 %v540, 4294901760
  %v9108 = vsub.f32 %v540, %v9107
  %9109 = vmatmul.f32.gmra.mxu0 %v9108
  %v9110 = vpop.f32.mrf.mxu0
  %v9111 = vadd.f32 %v8321, %v9110
  %v9112 = vand.u32 %v543, 4294901760
  %v9113 = vsub.f32 %v543, %v9112
  %9114 = vmatmul.f32.gmra.mxu0 %v9113
  %v9115 = vpop.f32.mrf.mxu0
  %v9116 = vadd.f32 %v8325, %v9115
  %v9117 = vand.u32 %v546, 4294901760
  %v9118 = vsub.f32 %v546, %v9117
  %9119 = vmatmul.f32.gmra.mxu0 %v9118
  %v9120 = vpop.f32.mrf.mxu0
  %v9121 = vadd.f32 %v8329, %v9120
  %v9122 = vand.u32 %v549, 4294901760
  %v9123 = vsub.f32 %v549, %v9122
  %9124 = vmatmul.f32.gmra.mxu0 %v9123
  %v9125 = vpop.f32.mrf.mxu0
  %v9126 = vadd.f32 %v8333, %v9125
  %v9127 = vand.u32 %v552, 4294901760
  %v9128 = vsub.f32 %v552, %v9127
  %9129 = vmatmul.f32.gmra.mxu0 %v9128
  %v9130 = vpop.f32.mrf.mxu0
  %v9131 = vadd.f32 %v8337, %v9130
  %v9132 = vand.u32 %v555, 4294901760
  %v9133 = vsub.f32 %v555, %v9132
  %9134 = vmatmul.f32.gmra.mxu0 %v9133
  %v9135 = vpop.f32.mrf.mxu0
  %v9136 = vadd.f32 %v8341, %v9135
  %v9137 = vand.u32 %v558, 4294901760
  %v9138 = vsub.f32 %v558, %v9137
  %9139 = vmatmul.f32.gmra.mxu0 %v9138
  %v9140 = vpop.f32.mrf.mxu0
  %v9141 = vadd.f32 %v8345, %v9140
  %v9142 = vand.u32 %v561, 4294901760
  %v9143 = vsub.f32 %v561, %v9142
  %9144 = vmatmul.f32.gmra.mxu0 %v9143
  %v9145 = vpop.f32.mrf.mxu0
  %v9146 = vadd.f32 %v8349, %v9145
  %v9147 = vand.u32 %v564, 4294901760
  %v9148 = vsub.f32 %v564, %v9147
  %9149 = vmatmul.f32.gmra.mxu0 %v9148
  %v9150 = vpop.f32.mrf.mxu0
  %v9151 = vadd.f32 %v8353, %v9150
  %v9152 = vand.u32 %v567, 4294901760
  %v9153 = vsub.f32 %v567, %v9152
  %9154 = vmatmul.f32.gmra.mxu0 %v9153
  %v9155 = vpop.f32.mrf.mxu0
  %v9156 = vadd.f32 %v8357, %v9155
  %v9157 = vand.u32 %v570, 4294901760
  %v9158 = vsub.f32 %v570, %v9157
  %9159 = vmatmul.f32.gmra.mxu0 %v9158
  %v9160 = vpop.f32.mrf.mxu0
  %v9161 = vadd.f32 %v8361, %v9160
  %v9162 = vand.u32 %v573, 4294901760
  %v9163 = vsub.f32 %v573, %v9162
  %9164 = vmatmul.f32.gmra.mxu0 %v9163
  %v9165 = vpop.f32.mrf.mxu0
  %v9166 = vadd.f32 %v8365, %v9165
  %v9167 = vand.u32 %v576, 4294901760
  %v9168 = vsub.f32 %v576, %v9167
  %9169 = vmatmul.f32.gmra.mxu0 %v9168
  %v9170 = vpop.f32.mrf.mxu0
  %v9171 = vadd.f32 %v8369, %v9170
  %v9172 = vand.u32 %v579, 4294901760
  %v9173 = vsub.f32 %v579, %v9172
  %9174 = vmatmul.f32.gmra.mxu0 %v9173
  %v9175 = vpop.f32.mrf.mxu0
  %v9176 = vadd.f32 %v8373, %v9175
  %v9177 = vand.u32 %v582, 4294901760
  %v9178 = vsub.f32 %v582, %v9177
  %9179 = vmatmul.f32.gmra.mxu0 %v9178
  %v9180 = vpop.f32.mrf.mxu0
  %v9181 = vadd.f32 %v8377, %v9180
  %v9182 = vand.u32 %v585, 4294901760
  %v9183 = vsub.f32 %v585, %v9182
  %9184 = vmatmul.f32.gmra.mxu0 %v9183
  %v9185 = vpop.f32.mrf.mxu0
  %v9186 = vadd.f32 %v8381, %v9185
  %v9187 = vand.u32 %v588, 4294901760
  %v9188 = vsub.f32 %v588, %v9187
  %9189 = vmatmul.f32.gmra.mxu0 %v9188
  %v9190 = vpop.f32.mrf.mxu0
  %v9191 = vadd.f32 %v8385, %v9190
  %v9192 = vand.u32 %v591, 4294901760
  %v9193 = vsub.f32 %v591, %v9192
  %9194 = vmatmul.f32.gmra.mxu0 %v9193
  %v9195 = vpop.f32.mrf.mxu0
  %v9196 = vadd.f32 %v8389, %v9195
  %v9197 = vand.u32 %v594, 4294901760
  %v9198 = vsub.f32 %v594, %v9197
  %9199 = vmatmul.f32.gmra.mxu0 %v9198
  %v9200 = vpop.f32.mrf.mxu0
  %v9201 = vadd.f32 %v8393, %v9200
  %v9202 = vand.u32 %v597, 4294901760
  %v9203 = vsub.f32 %v597, %v9202
  %9204 = vmatmul.f32.gmra.mxu0 %v9203
  %v9205 = vpop.f32.mrf.mxu0
  %v9206 = vadd.f32 %v8397, %v9205
  %v9207 = vand.u32 %v600, 4294901760
  %v9208 = vsub.f32 %v600, %v9207
  %9209 = vmatmul.f32.gmra.mxu0 %v9208
  %v9210 = vpop.f32.mrf.mxu0
  %v9211 = vadd.f32 %v8401, %v9210
  %v9212 = vand.u32 %v603, 4294901760
  %v9213 = vsub.f32 %v603, %v9212
  %9214 = vmatmul.f32.gmra.mxu0 %v9213
  %v9215 = vpop.f32.mrf.mxu0
  %v9216 = vadd.f32 %v8405, %v9215
  %v9217 = vand.u32 %v606, 4294901760
  %v9218 = vsub.f32 %v606, %v9217
  %9219 = vmatmul.f32.gmra.mxu0 %v9218
  %v9220 = vpop.f32.mrf.mxu0
  %v9221 = vadd.f32 %v8409, %v9220
  %v9222 = vand.u32 %v609, 4294901760
  %v9223 = vsub.f32 %v609, %v9222
  %9224 = vmatmul.f32.gmra.mxu0 %v9223
  %v9225 = vpop.f32.mrf.mxu0
  %v9226 = vadd.f32 %v8413, %v9225
  %v9227 = vand.u32 %v612, 4294901760
  %v9228 = vsub.f32 %v612, %v9227
  %9229 = vmatmul.f32.gmra.mxu0 %v9228
  %v9230 = vpop.f32.mrf.mxu0
  %v9231 = vadd.f32 %v8417, %v9230
  %v9232 = vand.u32 %v615, 4294901760
  %v9233 = vsub.f32 %v615, %v9232
  %9234 = vmatmul.f32.gmra.mxu0 %v9233
  %v9235 = vpop.f32.mrf.mxu0
  %v9236 = vadd.f32 %v8421, %v9235
  %v9237 = vand.u32 %v618, 4294901760
  %v9238 = vsub.f32 %v618, %v9237
  %9239 = vmatmul.f32.gmra.mxu0 %v9238
  %v9240 = vpop.f32.mrf.mxu0
  %v9241 = vadd.f32 %v8425, %v9240
  %v9242 = vand.u32 %v621, 4294901760
  %v9243 = vsub.f32 %v621, %v9242
  %9244 = vmatmul.f32.gmra.mxu0 %v9243
  %v9245 = vpop.f32.mrf.mxu0
  %v9246 = vadd.f32 %v8429, %v9245
  %v9247 = vand.u32 %v624, 4294901760
  %v9248 = vsub.f32 %v624, %v9247
  %9249 = vmatmul.f32.gmra.mxu0 %v9248
  %v9250 = vpop.f32.mrf.mxu0
  %v9251 = vadd.f32 %v8433, %v9250
  %v9252 = vand.u32 %v627, 4294901760
  %v9253 = vsub.f32 %v627, %v9252
  %9254 = vmatmul.f32.gmra.mxu0 %v9253
  %v9255 = vpop.f32.mrf.mxu0
  %v9256 = vadd.f32 %v8437, %v9255
  %v9257 = vand.u32 %v630, 4294901760
  %v9258 = vsub.f32 %v630, %v9257
  %9259 = vmatmul.f32.gmra.mxu0 %v9258
  %v9260 = vpop.f32.mrf.mxu0
  %v9261 = vadd.f32 %v8441, %v9260
  %v9262 = vand.u32 %v633, 4294901760
  %v9263 = vsub.f32 %v633, %v9262
  %9264 = vmatmul.f32.gmra.mxu0 %v9263
  %v9265 = vpop.f32.mrf.mxu0
  %v9266 = vadd.f32 %v8445, %v9265
  %v9267 = vand.u32 %v636, 4294901760
  %v9268 = vsub.f32 %v636, %v9267
  %9269 = vmatmul.f32.gmra.mxu0 %v9268
  %v9270 = vpop.f32.mrf.mxu0
  %v9271 = vadd.f32 %v8449, %v9270
  %v9272 = vand.u32 %v639, 4294901760
  %v9273 = vsub.f32 %v639, %v9272
  %9274 = vmatmul.f32.gmra.mxu0 %v9273
  %v9275 = vpop.f32.mrf.mxu0
  %v9276 = vadd.f32 %v8453, %v9275
  %v9277 = vand.u32 %v642, 4294901760
  %v9278 = vsub.f32 %v642, %v9277
  %9279 = vmatmul.f32.gmra.mxu0 %v9278
  %v9280 = vpop.f32.mrf.mxu0
  %v9281 = vadd.f32 %v8457, %v9280
  %v9282 = vand.u32 %v645, 4294901760
  %v9283 = vsub.f32 %v645, %v9282
  %9284 = vmatmul.f32.gmra.mxu0 %v9283
  %v9285 = vpop.f32.mrf.mxu0
  %v9286 = vadd.f32 %v8461, %v9285
  %v9287 = vand.u32 %v648, 4294901760
  %v9288 = vsub.f32 %v648, %v9287
  %9289 = vmatmul.f32.gmra.mxu0 %v9288
  %v9290 = vpop.f32.mrf.mxu0
  %v9291 = vadd.f32 %v8465, %v9290
  %v9292 = vand.u32 %v651, 4294901760
  %v9293 = vsub.f32 %v651, %v9292
  %9294 = vmatmul.f32.gmra.mxu0 %v9293
  %v9295 = vpop.f32.mrf.mxu0
  %v9296 = vadd.f32 %v8469, %v9295
  %v9297 = vand.u32 %v654, 4294901760
  %v9298 = vsub.f32 %v654, %v9297
  %9299 = vmatmul.f32.gmra.mxu0 %v9298
  %v9300 = vpop.f32.mrf.mxu0
  %v9301 = vadd.f32 %v8473, %v9300
  %v9302 = vand.u32 %v657, 4294901760
  %v9303 = vsub.f32 %v657, %v9302
  %9304 = vmatmul.f32.gmra.mxu0 %v9303
  %v9305 = vpop.f32.mrf.mxu0
  %v9306 = vadd.f32 %v8477, %v9305
  %v9307 = vand.u32 %v660, 4294901760
  %v9308 = vsub.f32 %v660, %v9307
  %9309 = vmatmul.f32.gmra.mxu0 %v9308
  %v9310 = vpop.f32.mrf.mxu0
  %v9311 = vadd.f32 %v8481, %v9310
  %v9312 = vand.u32 %v663, 4294901760
  %v9313 = vsub.f32 %v663, %v9312
  %9314 = vmatmul.f32.gmra.mxu0 %v9313
  %v9315 = vpop.f32.mrf.mxu0
  %v9316 = vadd.f32 %v8485, %v9315
  %v9317 = vand.u32 %v666, 4294901760
  %v9318 = vsub.f32 %v666, %v9317
  %9319 = vmatmul.f32.gmra.mxu0 %v9318
  %v9320 = vpop.f32.mrf.mxu0
  %v9321 = vadd.f32 %v8489, %v9320
  %v9322 = vand.u32 %v669, 4294901760
  %v9323 = vsub.f32 %v669, %v9322
  %9324 = vmatmul.f32.gmra.mxu0 %v9323
  %v9325 = vpop.f32.mrf.mxu0
  %v9326 = vadd.f32 %v8493, %v9325
  %v9327 = vand.u32 %v672, 4294901760
  %v9328 = vsub.f32 %v672, %v9327
  %9329 = vmatmul.f32.gmra.mxu0 %v9328
  %v9330 = vpop.f32.mrf.mxu0
  %v9331 = vadd.f32 %v8497, %v9330
  %v9332 = vand.u32 %v675, 4294901760
  %v9333 = vsub.f32 %v675, %v9332
  %9334 = vmatmul.f32.gmra.mxu0 %v9333
  %v9335 = vpop.f32.mrf.mxu0
  %v9336 = vadd.f32 %v8501, %v9335
  %v9337 = vand.u32 %v678, 4294901760
  %v9338 = vsub.f32 %v678, %v9337
  %9339 = vmatmul.f32.gmra.mxu0 %v9338
  %v9340 = vpop.f32.mrf.mxu0
  %v9341 = vadd.f32 %v8505, %v9340
  %v9342 = vand.u32 %v681, 4294901760
  %v9343 = vsub.f32 %v681, %v9342
  %9344 = vmatmul.f32.gmra.mxu0 %v9343
  %v9345 = vpop.f32.mrf.mxu0
  %v9346 = vadd.f32 %v8509, %v9345
  %v9347 = vand.u32 %v684, 4294901760
  %v9348 = vsub.f32 %v684, %v9347
  %9349 = vmatmul.f32.gmra.mxu0 %v9348
  %v9350 = vpop.f32.mrf.mxu0
  %v9351 = vadd.f32 %v8513, %v9350
  %v9352 = vand.u32 %v687, 4294901760
  %v9353 = vsub.f32 %v687, %v9352
  %9354 = vmatmul.f32.gmra.mxu0 %v9353
  %v9355 = vpop.f32.mrf.mxu0
  %v9356 = vadd.f32 %v8517, %v9355
  %v9357 = vand.u32 %v690, 4294901760
  %v9358 = vsub.f32 %v690, %v9357
  %9359 = vmatmul.f32.gmra.mxu0 %v9358
  %v9360 = vpop.f32.mrf.mxu0
  %v9361 = vadd.f32 %v8521, %v9360
  %v9362 = vand.u32 %v693, 4294901760
  %v9363 = vsub.f32 %v693, %v9362
  %9364 = vmatmul.f32.gmra.mxu0 %v9363
  %v9365 = vpop.f32.mrf.mxu0
  %v9366 = vadd.f32 %v8525, %v9365
  %v9367 = vand.u32 %v696, 4294901760
  %v9368 = vsub.f32 %v696, %v9367
  %9369 = vmatmul.f32.gmra.mxu0 %v9368
  %v9370 = vpop.f32.mrf.mxu0
  %v9371 = vadd.f32 %v8529, %v9370
  %v9372 = vand.u32 %v699, 4294901760
  %v9373 = vsub.f32 %v699, %v9372
  %9374 = vmatmul.f32.gmra.mxu0 %v9373
  %v9375 = vpop.f32.mrf.mxu0
  %v9376 = vadd.f32 %v8533, %v9375
  %v9377 = vand.u32 %v702, 4294901760
  %v9378 = vsub.f32 %v702, %v9377
  %9379 = vmatmul.f32.gmra.mxu0 %v9378
  %v9380 = vpop.f32.mrf.mxu0
  %v9381 = vadd.f32 %v8537, %v9380
  %v9382 = vand.u32 %v705, 4294901760
  %v9383 = vsub.f32 %v705, %v9382
  %9384 = vmatmul.f32.gmra.mxu0 %v9383
  %v9385 = vpop.f32.mrf.mxu0
  %v9386 = vadd.f32 %v8541, %v9385
  %v9387 = vand.u32 %v708, 4294901760
  %v9388 = vsub.f32 %v708, %v9387
  %9389 = vmatmul.f32.gmra.mxu0 %v9388
  %v9390 = vpop.f32.mrf.mxu0
  %v9391 = vadd.f32 %v8545, %v9390
  %v9392 = vand.u32 %v711, 4294901760
  %v9393 = vsub.f32 %v711, %v9392
  %9394 = vmatmul.f32.gmra.mxu0 %v9393
  %v9395 = vpop.f32.mrf.mxu0
  %v9396 = vadd.f32 %v8549, %v9395
  %v9397 = vand.u32 %v714, 4294901760
  %v9398 = vsub.f32 %v714, %v9397
  %9399 = vmatmul.f32.gmra.mxu0 %v9398
  %v9400 = vpop.f32.mrf.mxu0
  %v9401 = vadd.f32 %v8553, %v9400
  %v9402 = vand.u32 %v717, 4294901760
  %v9403 = vsub.f32 %v717, %v9402
  %9404 = vmatmul.f32.gmra.mxu0 %v9403
  %v9405 = vpop.f32.mrf.mxu0
  %v9406 = vadd.f32 %v8557, %v9405
  %v9407 = vand.u32 %v720, 4294901760
  %v9408 = vsub.f32 %v720, %v9407
  %9409 = vmatmul.f32.gmra.mxu0 %v9408
  %v9410 = vpop.f32.mrf.mxu0
  %v9411 = vadd.f32 %v8561, %v9410
  %v9412 = vand.u32 %v723, 4294901760
  %v9413 = vsub.f32 %v723, %v9412
  %9414 = vmatmul.f32.gmra.mxu0 %v9413
  %v9415 = vpop.f32.mrf.mxu0
  %v9416 = vadd.f32 %v8565, %v9415
  %v9417 = vand.u32 %v726, 4294901760
  %v9418 = vsub.f32 %v726, %v9417
  %9419 = vmatmul.f32.gmra.mxu0 %v9418
  %v9420 = vpop.f32.mrf.mxu0
  %v9421 = vadd.f32 %v8569, %v9420
  %v9422 = vand.u32 %v729, 4294901760
  %v9423 = vsub.f32 %v729, %v9422
  %9424 = vmatmul.f32.gmra.mxu0 %v9423
  %v9425 = vpop.f32.mrf.mxu0
  %v9426 = vadd.f32 %v8573, %v9425
  %v9427 = vand.u32 %v732, 4294901760
  %v9428 = vsub.f32 %v732, %v9427
  %9429 = vmatmul.f32.gmra.mxu0 %v9428
  %v9430 = vpop.f32.mrf.mxu0
  %v9431 = vadd.f32 %v8577, %v9430
  %v9432 = vand.u32 %v735, 4294901760
  %v9433 = vsub.f32 %v735, %v9432
  %9434 = vmatmul.f32.gmra.mxu0 %v9433
  %v9435 = vpop.f32.mrf.mxu0
  %v9436 = vadd.f32 %v8581, %v9435
  %v9437 = vand.u32 %v738, 4294901760
  %v9438 = vsub.f32 %v738, %v9437
  %9439 = vmatmul.f32.gmra.mxu0 %v9438
  %v9440 = vpop.f32.mrf.mxu0
  %v9441 = vadd.f32 %v8585, %v9440
  %v9442 = vand.u32 %v741, 4294901760
  %v9443 = vsub.f32 %v741, %v9442
  %9444 = vmatmul.f32.gmra.mxu0 %v9443
  %v9445 = vpop.f32.mrf.mxu0
  %v9446 = vadd.f32 %v8589, %v9445
  %v9447 = vand.u32 %v744, 4294901760
  %v9448 = vsub.f32 %v744, %v9447
  %9449 = vmatmul.f32.gmra.mxu0 %v9448
  %v9450 = vpop.f32.mrf.mxu0
  %v9451 = vadd.f32 %v8593, %v9450
  %v9452 = vand.u32 %v747, 4294901760
  %v9453 = vsub.f32 %v747, %v9452
  %9454 = vmatmul.f32.gmra.mxu0 %v9453
  %v9455 = vpop.f32.mrf.mxu0
  %v9456 = vadd.f32 %v8597, %v9455
  %v9457 = vand.u32 %v750, 4294901760
  %v9458 = vsub.f32 %v750, %v9457
  %9459 = vmatmul.f32.gmra.mxu0 %v9458
  %v9460 = vpop.f32.mrf.mxu0
  %v9461 = vadd.f32 %v8601, %v9460
  %v9462 = vand.u32 %v753, 4294901760
  %v9463 = vsub.f32 %v753, %v9462
  %9464 = vmatmul.f32.gmra.mxu0 %v9463
  %v9465 = vpop.f32.mrf.mxu0
  %v9466 = vadd.f32 %v8605, %v9465
  %v9467 = vand.u32 %v756, 4294901760
  %v9468 = vsub.f32 %v756, %v9467
  %9469 = vmatmul.f32.gmra.mxu0 %v9468
  %v9470 = vpop.f32.mrf.mxu0
  %v9471 = vadd.f32 %v8609, %v9470
  %v9472 = vand.u32 %v759, 4294901760
  %v9473 = vsub.f32 %v759, %v9472
  %9474 = vmatmul.f32.gmra.mxu0 %v9473
  %v9475 = vpop.f32.mrf.mxu0
  %v9476 = vadd.f32 %v8613, %v9475
  %v9477 = vand.u32 %v762, 4294901760
  %v9478 = vsub.f32 %v762, %v9477
  %9479 = vmatmul.f32.gmra.mxu0 %v9478
  %v9480 = vpop.f32.mrf.mxu0
  %v9481 = vadd.f32 %v8617, %v9480
  %v9482 = vand.u32 %v765, 4294901760
  %v9483 = vsub.f32 %v765, %v9482
  %9484 = vmatmul.f32.gmra.mxu0 %v9483
  %v9485 = vpop.f32.mrf.mxu0
  %v9486 = vadd.f32 %v8621, %v9485
  %v9487 = vand.u32 %v768, 4294901760
  %v9488 = vsub.f32 %v768, %v9487
  %9489 = vmatmul.f32.gmra.mxu0 %v9488
  %v9490 = vpop.f32.mrf.mxu0
  %v9491 = vadd.f32 %v8625, %v9490
  %v9492 = vand.u32 %v771, 4294901760
  %v9493 = vsub.f32 %v771, %v9492
  %9494 = vmatmul.f32.gmra.mxu0 %v9493
  %v9495 = vpop.f32.mrf.mxu0
  %v9496 = vadd.f32 %v8629, %v9495
  %v9497 = vand.u32 %v774, 4294901760
  %v9498 = vsub.f32 %v774, %v9497
  %9499 = vmatmul.f32.gmra.mxu0 %v9498
  %v9500 = vpop.f32.mrf.mxu0
  %v9501 = vadd.f32 %v8633, %v9500
  %v9502 = vand.u32 %v777, 4294901760
  %v9503 = vsub.f32 %v777, %v9502
  %9504 = vmatmul.f32.gmra.mxu0 %v9503
  %v9505 = vpop.f32.mrf.mxu0
  %v9506 = vadd.f32 %v8637, %v9505
  %v9507 = vand.u32 %v780, 4294901760
  %v9508 = vsub.f32 %v780, %v9507
  %9509 = vmatmul.f32.gmra.mxu0 %v9508
  %v9510 = vpop.f32.mrf.mxu0
  %v9511 = vadd.f32 %v8641, %v9510
  %v9512 = vand.u32 %v783, 4294901760
  %v9513 = vsub.f32 %v783, %v9512
  %9514 = vmatmul.f32.gmra.mxu0 %v9513
  %v9515 = vpop.f32.mrf.mxu0
  %v9516 = vadd.f32 %v8645, %v9515
  %v9517 = vand.u32 %v786, 4294901760
  %v9518 = vsub.f32 %v786, %v9517
  %9519 = vmatmul.f32.gmra.mxu0 %v9518
  %v9520 = vpop.f32.mrf.mxu0
  %v9521 = vadd.f32 %v8649, %v9520
  %v9522 = vand.u32 %v789, 4294901760
  %v9523 = vsub.f32 %v789, %v9522
  %9524 = vmatmul.f32.gmra.mxu0 %v9523
  %v9525 = vpop.f32.mrf.mxu0
  %v9526 = vadd.f32 %v8653, %v9525
  %v9527 = vand.u32 %v792, 4294901760
  %v9528 = vsub.f32 %v792, %v9527
  %9529 = vmatmul.f32.gmra.mxu0 %v9528
  %v9530 = vpop.f32.mrf.mxu0
  %v9531 = vadd.f32 %v8657, %v9530
  %v9532 = vand.u32 %v795, 4294901760
  %v9533 = vsub.f32 %v795, %v9532
  %9534 = vmatmul.f32.gmra.mxu0 %v9533
  %v9535 = vpop.f32.mrf.mxu0
  %v9536 = vadd.f32 %v8661, %v9535
  %v9537 = vand.u32 %v798, 4294901760
  %v9538 = vsub.f32 %v798, %v9537
  %9539 = vmatmul.f32.gmra.mxu0 %v9538
  %v9540 = vpop.f32.mrf.mxu0
  %v9541 = vadd.f32 %v8665, %v9540
  %v9542 = vand.u32 %v801, 4294901760
  %v9543 = vsub.f32 %v801, %v9542
  %9544 = vmatmul.f32.gmra.mxu0 %v9543
  %v9545 = vpop.f32.mrf.mxu0
  %v9546 = vadd.f32 %v8669, %v9545
  %v9547 = vand.u32 %v804, 4294901760
  %v9548 = vsub.f32 %v804, %v9547
  %9549 = vmatmul.f32.gmra.mxu0 %v9548
  %v9550 = vpop.f32.mrf.mxu0
  %v9551 = vadd.f32 %v8673, %v9550
  %v9552 = vand.u32 %v807, 4294901760
  %v9553 = vsub.f32 %v807, %v9552
  %9554 = vmatmul.f32.gmra.mxu0 %v9553
  %v9555 = vpop.f32.mrf.mxu0
  %v9556 = vadd.f32 %v8677, %v9555
  %v9557 = vand.u32 %v810, 4294901760
  %v9558 = vsub.f32 %v810, %v9557
  %9559 = vmatmul.f32.gmra.mxu0 %v9558
  %v9560 = vpop.f32.mrf.mxu0
  %v9561 = vadd.f32 %v8681, %v9560
  %v9562 = vand.u32 %v813, 4294901760
  %v9563 = vsub.f32 %v813, %v9562
  %9564 = vmatmul.f32.gmra.mxu0 %v9563
  %v9565 = vpop.f32.mrf.mxu0
  %v9566 = vadd.f32 %v8685, %v9565
  %v9567 = vand.u32 %v816, 4294901760
  %v9568 = vsub.f32 %v816, %v9567
  %9569 = vmatmul.f32.gmra.mxu0 %v9568
  %v9570 = vpop.f32.mrf.mxu0
  %v9571 = vadd.f32 %v8689, %v9570
  %v9572 = vand.u32 %v819, 4294901760
  %v9573 = vsub.f32 %v819, %v9572
  %9574 = vmatmul.f32.gmra.mxu0 %v9573
  %v9575 = vpop.f32.mrf.mxu0
  %v9576 = vadd.f32 %v8693, %v9575
  %v9577 = vand.u32 %v822, 4294901760
  %v9578 = vsub.f32 %v822, %v9577
  %9579 = vmatmul.f32.gmra.mxu0 %v9578
  %v9580 = vpop.f32.mrf.mxu0
  %v9581 = vadd.f32 %v8697, %v9580
  %v9582 = vand.u32 %v825, 4294901760
  %v9583 = vsub.f32 %v825, %v9582
  %9584 = vmatmul.f32.gmra.mxu0 %v9583
  %v9585 = vpop.f32.mrf.mxu0
  %v9586 = vadd.f32 %v8701, %v9585
  %v9587 = vand.u32 %v828, 4294901760
  %v9588 = vsub.f32 %v828, %v9587
  %9589 = vmatmul.f32.gmra.mxu0 %v9588
  %v9590 = vpop.f32.mrf.mxu0
  %v9591 = vadd.f32 %v8705, %v9590
  %v9592 = vand.u32 %v831, 4294901760
  %v9593 = vsub.f32 %v831, %v9592
  %9594 = vmatmul.f32.gmra.mxu0 %v9593
  %v9595 = vpop.f32.mrf.mxu0
  %v9596 = vadd.f32 %v8709, %v9595
  %v9597 = vand.u32 %v834, 4294901760
  %v9598 = vsub.f32 %v834, %v9597
  %9599 = vmatmul.f32.gmra.mxu0 %v9598
  %v9600 = vpop.f32.mrf.mxu0
  %v9601 = vadd.f32 %v8713, %v9600
  %v9602 = vand.u32 %v837, 4294901760
  %v9603 = vsub.f32 %v837, %v9602
  %9604 = vmatmul.f32.gmra.mxu0 %v9603
  %v9605 = vpop.f32.mrf.mxu0
  %v9606 = vadd.f32 %v8717, %v9605
  %v9607 = vand.u32 %v840, 4294901760
  %v9608 = vsub.f32 %v840, %v9607
  %9609 = vmatmul.f32.gmra.mxu0 %v9608
  %v9610 = vpop.f32.mrf.mxu0
  %v9611 = vadd.f32 %v8721, %v9610
  %v9612 = vand.u32 %v843, 4294901760
  %v9613 = vsub.f32 %v843, %v9612
  %9614 = vmatmul.f32.gmra.mxu0 %v9613
  %v9615 = vpop.f32.mrf.mxu0
  %v9616 = vadd.f32 %v8725, %v9615
  %v9617 = vand.u32 %v846, 4294901760
  %v9618 = vsub.f32 %v846, %v9617
  %9619 = vmatmul.f32.gmra.mxu0 %v9618
  %v9620 = vpop.f32.mrf.mxu0
  %v9621 = vadd.f32 %v8729, %v9620
  %v9622 = vand.u32 %v849, 4294901760
  %v9623 = vsub.f32 %v849, %v9622
  %9624 = vmatmul.f32.gmra.mxu0 %v9623
  %v9625 = vpop.f32.mrf.mxu0
  %v9626 = vadd.f32 %v8733, %v9625
  %v9627 = vand.u32 %v852, 4294901760
  %v9628 = vsub.f32 %v852, %v9627
  %9629 = vmatmul.f32.gmra.mxu0 %v9628
  %v9630 = vpop.f32.mrf.mxu0
  %v9631 = vadd.f32 %v8737, %v9630
  %v9632 = vand.u32 %v855, 4294901760
  %v9633 = vsub.f32 %v855, %v9632
  %9634 = vmatmul.f32.gmra.mxu0 %v9633
  %v9635 = vpop.f32.mrf.mxu0
  %v9636 = vadd.f32 %v8741, %v9635
  %v9637 = vand.u32 %v858, 4294901760
  %v9638 = vsub.f32 %v858, %v9637
  %9639 = vmatmul.f32.gmra.mxu0 %v9638
  %v9640 = vpop.f32.mrf.mxu0
  %v9641 = vadd.f32 %v8745, %v9640
  %v9642 = vand.u32 %v861, 4294901760
  %v9643 = vsub.f32 %v861, %v9642
  %9644 = vmatmul.f32.gmra.mxu0 %v9643
  %v9645 = vpop.f32.mrf.mxu0
  %v9646 = vadd.f32 %v8749, %v9645
  %v9647 = vand.u32 %v864, 4294901760
  %v9648 = vsub.f32 %v864, %v9647
  %9649 = vmatmul.f32.gmra.mxu0 %v9648
  %v9650 = vpop.f32.mrf.mxu0
  %v9651 = vadd.f32 %v8753, %v9650
  %v9652 = vand.u32 %v867, 4294901760
  %v9653 = vsub.f32 %v867, %v9652
  %9654 = vmatmul.f32.gmra.mxu0 %v9653
  %v9655 = vpop.f32.mrf.mxu0
  %v9656 = vadd.f32 %v8757, %v9655
  %v9657 = vand.u32 %v870, 4294901760
  %v9658 = vsub.f32 %v870, %v9657
  %9659 = vmatmul.f32.gmra.mxu0 %v9658
  %v9660 = vpop.f32.mrf.mxu0
  %v9661 = vadd.f32 %v8761, %v9660
  %v9662 = vand.u32 %v873, 4294901760
  %v9663 = vsub.f32 %v873, %v9662
  %9664 = vmatmul.f32.gmra.mxu0 %v9663
  %v9665 = vpop.f32.mrf.mxu0
  %v9666 = vadd.f32 %v8765, %v9665
  %v9667 = vand.u32 %v876, 4294901760
  %v9668 = vsub.f32 %v876, %v9667
  %9669 = vmatmul.f32.gmra.mxu0 %v9668
  %v9670 = vpop.f32.mrf.mxu0
  %v9671 = vadd.f32 %v8769, %v9670
  %v9672 = vand.u32 %v879, 4294901760
  %v9673 = vsub.f32 %v879, %v9672
  %9674 = vmatmul.f32.gmra.mxu0 %v9673
  %v9675 = vpop.f32.mrf.mxu0
  %v9676 = vadd.f32 %v8773, %v9675
  %v9677 = vand.u32 %v882, 4294901760
  %v9678 = vsub.f32 %v882, %v9677
  %9679 = vmatmul.f32.gmra.mxu0 %v9678
  %v9680 = vpop.f32.mrf.mxu0
  %v9681 = vadd.f32 %v8777, %v9680
  %v9682 = vand.u32 %v885, 4294901760
  %v9683 = vsub.f32 %v885, %v9682
  %9684 = vmatmul.f32.gmra.mxu0 %v9683
  %v9685 = vpop.f32.mrf.mxu0
  %v9686 = vadd.f32 %v8781, %v9685
  %v9687 = vand.u32 %v888, 4294901760
  %v9688 = vsub.f32 %v888, %v9687
  %9689 = vmatmul.f32.gmra.mxu0 %v9688
  %v9690 = vpop.f32.mrf.mxu0
  %v9691 = vadd.f32 %v8785, %v9690
  %v9692 = vand.u32 %v891, 4294901760
  %v9693 = vsub.f32 %v891, %v9692
  %9694 = vmatmul.f32.gmra.mxu0 %v9693
  %v9695 = vpop.f32.mrf.mxu0
  %v9696 = vadd.f32 %v8789, %v9695
  %v9697 = vand.u32 %v894, 4294901760
  %v9698 = vsub.f32 %v894, %v9697
  %9699 = vmatmul.f32.gmra.mxu0 %v9698
  %v9700 = vpop.f32.mrf.mxu0
  %v9701 = vadd.f32 %v8793, %v9700
  %v9702 = vand.u32 %v897, 4294901760
  %v9703 = vsub.f32 %v897, %v9702
  %9704 = vmatmul.f32.gmra.mxu0 %v9703
  %v9705 = vpop.f32.mrf.mxu0
  %v9706 = vadd.f32 %v8797, %v9705
  %v9707 = vand.u32 %v900, 4294901760
  %v9708 = vsub.f32 %v900, %v9707
  %9709 = vmatmul.f32.gmra.mxu0 %v9708
  %v9710 = vpop.f32.mrf.mxu0
  %v9711 = vadd.f32 %v8801, %v9710
  %v9712 = vand.u32 %v903, 4294901760
  %v9713 = vsub.f32 %v903, %v9712
  %9714 = vmatmul.f32.gmra.mxu0 %v9713
  %v9715 = vpop.f32.mrf.mxu0
  %v9716 = vadd.f32 %v8805, %v9715
  %v9717 = vand.u32 %v906, 4294901760
  %v9718 = vsub.f32 %v906, %v9717
  %9719 = vmatmul.f32.gmra.mxu0 %v9718
  %v9720 = vpop.f32.mrf.mxu0
  %v9721 = vadd.f32 %v8809, %v9720
  %v9722 = vand.u32 %v909, 4294901760
  %v9723 = vsub.f32 %v909, %v9722
  %9724 = vmatmul.f32.gmra.mxu0 %v9723
  %v9725 = vpop.f32.mrf.mxu0
  %v9726 = vadd.f32 %v8813, %v9725
  %9727 = vdwg.mxu0
  %9728 = vmatpush.msra.mxu0 0.0
  %9729 = vmatpush.msra.mxu0 0.0
  %9730 = vmatpush.msra.mxu0 0.0
  %v9731 = vand.u32 %v387, 4294901760
  %9732 = vmatpush.msra.mxu0 %v9731
  %v9733 = vand.u32 %v386, 4294901760
  %9734 = vmatpush.msra.mxu0 %v9733
  %v9735 = vand.u32 %v385, 4294901760
  %9736 = vmatpush.msra.mxu0 %v9735
  %v9737 = vand.u32 %v384, 4294901760
  %9738 = vmatpush.msra.mxu0 %v9737
  %v9739 = vand.u32 %v383, 4294901760
  %9740 = vmatpush.msra.mxu0 %v9739
  %v9741 = vand.u32 %v382, 4294901760
  %9742 = vmatpush.msra.mxu0 %v9741
  %v9743 = vand.u32 %v381, 4294901760
  %9744 = vmatpush.msra.mxu0 %v9743
  %v9745 = vand.u32 %v380, 4294901760
  %9746 = vmatpush.msra.mxu0 %v9745
  %v9747 = vand.u32 %v379, 4294901760
  %9748 = vmatpush.msra.mxu0 %v9747
  %v9749 = vand.u32 %v378, 4294901760
  %9750 = vmatpush.msra.mxu0 %v9749
  %v9751 = vand.u32 %v377, 4294901760
  %9752 = vmatpush.msra.mxu0 %v9751
  %v9753 = vand.u32 %v376, 4294901760
  %9754 = vmatpush.msra.mxu0 %v9753
  %v9755 = vand.u32 %v375, 4294901760
  %9756 = vmatpush.msra.mxu0 %v9755
  %v9757 = vand.u32 %v390, 4294901760
  %v9758 = vsub.f32 %v390, %v9757
  %v9759 = vand.u32 %v9758, 4294901760
  %9760 = vmatmul.f32.gmra.mxu0 %v9759
  %v9761 = vpop.f32.mrf.mxu0
  %v9762 = vadd.f32 %v8861, %v9761
  %v9763 = vand.u32 %v393, 4294901760
  %v9764 = vsub.f32 %v393, %v9763
  %v9765 = vand.u32 %v9764, 4294901760
  %9766 = vmatmul.f32.gmra.mxu0 %v9765
  %v9767 = vpop.f32.mrf.mxu0
  %v9768 = vadd.f32 %v8866, %v9767
  %v9769 = vand.u32 %v396, 4294901760
  %v9770 = vsub.f32 %v396, %v9769
  %v9771 = vand.u32 %v9770, 4294901760
  %9772 = vmatmul.f32.gmra.mxu0 %v9771
  %v9773 = vpop.f32.mrf.mxu0
  %v9774 = vadd.f32 %v8871, %v9773
  %v9775 = vand.u32 %v399, 4294901760
  %v9776 = vsub.f32 %v399, %v9775
  %v9777 = vand.u32 %v9776, 4294901760
  %9778 = vmatmul.f32.gmra.mxu0 %v9777
  %v9779 = vpop.f32.mrf.mxu0
  %v9780 = vadd.f32 %v8876, %v9779
  %v9781 = vand.u32 %v402, 4294901760
  %v9782 = vsub.f32 %v402, %v9781
  %v9783 = vand.u32 %v9782, 4294901760
  %9784 = vmatmul.f32.gmra.mxu0 %v9783
  %v9785 = vpop.f32.mrf.mxu0
  %v9786 = vadd.f32 %v8881, %v9785
  %v9787 = vand.u32 %v405, 4294901760
  %v9788 = vsub.f32 %v405, %v9787
  %v9789 = vand.u32 %v9788, 4294901760
  %9790 = vmatmul.f32.gmra.mxu0 %v9789
  %v9791 = vpop.f32.mrf.mxu0
  %v9792 = vadd.f32 %v8886, %v9791
  %v9793 = vand.u32 %v408, 4294901760
  %v9794 = vsub.f32 %v408, %v9793
  %v9795 = vand.u32 %v9794, 4294901760
  %9796 = vmatmul.f32.gmra.mxu0 %v9795
  %v9797 = vpop.f32.mrf.mxu0
  %v9798 = vadd.f32 %v8891, %v9797
  %v9799 = vand.u32 %v411, 4294901760
  %v9800 = vsub.f32 %v411, %v9799
  %v9801 = vand.u32 %v9800, 4294901760
  %9802 = vmatmul.f32.gmra.mxu0 %v9801
  %v9803 = vpop.f32.mrf.mxu0
  %v9804 = vadd.f32 %v8896, %v9803
  %v9805 = vand.u32 %v414, 4294901760
  %v9806 = vsub.f32 %v414, %v9805
  %v9807 = vand.u32 %v9806, 4294901760
  %9808 = vmatmul.f32.gmra.mxu0 %v9807
  %v9809 = vpop.f32.mrf.mxu0
  %v9810 = vadd.f32 %v8901, %v9809
  %v9811 = vand.u32 %v417, 4294901760
  %v9812 = vsub.f32 %v417, %v9811
  %v9813 = vand.u32 %v9812, 4294901760
  %9814 = vmatmul.f32.gmra.mxu0 %v9813
  %v9815 = vpop.f32.mrf.mxu0
  %v9816 = vadd.f32 %v8906, %v9815
  %v9817 = vand.u32 %v420, 4294901760
  %v9818 = vsub.f32 %v420, %v9817
  %v9819 = vand.u32 %v9818, 4294901760
  %9820 = vmatmul.f32.gmra.mxu0 %v9819
  %v9821 = vpop.f32.mrf.mxu0
  %v9822 = vadd.f32 %v8911, %v9821
  %v9823 = vand.u32 %v423, 4294901760
  %v9824 = vsub.f32 %v423, %v9823
  %v9825 = vand.u32 %v9824, 4294901760
  %9826 = vmatmul.f32.gmra.mxu0 %v9825
  %v9827 = vpop.f32.mrf.mxu0
  %v9828 = vadd.f32 %v8916, %v9827
  %v9829 = vand.u32 %v426, 4294901760
  %v9830 = vsub.f32 %v426, %v9829
  %v9831 = vand.u32 %v9830, 4294901760
  %9832 = vmatmul.f32.gmra.mxu0 %v9831
  %v9833 = vpop.f32.mrf.mxu0
  %v9834 = vadd.f32 %v8921, %v9833
  %v9835 = vand.u32 %v429, 4294901760
  %v9836 = vsub.f32 %v429, %v9835
  %v9837 = vand.u32 %v9836, 4294901760
  %9838 = vmatmul.f32.gmra.mxu0 %v9837
  %v9839 = vpop.f32.mrf.mxu0
  %v9840 = vadd.f32 %v8926, %v9839
  %v9841 = vand.u32 %v432, 4294901760
  %v9842 = vsub.f32 %v432, %v9841
  %v9843 = vand.u32 %v9842, 4294901760
  %9844 = vmatmul.f32.gmra.mxu0 %v9843
  %v9845 = vpop.f32.mrf.mxu0
  %v9846 = vadd.f32 %v8931, %v9845
  %v9847 = vand.u32 %v435, 4294901760
  %v9848 = vsub.f32 %v435, %v9847
  %v9849 = vand.u32 %v9848, 4294901760
  %9850 = vmatmul.f32.gmra.mxu0 %v9849
  %v9851 = vpop.f32.mrf.mxu0
  %v9852 = vadd.f32 %v8936, %v9851
  %v9853 = vand.u32 %v438, 4294901760
  %v9854 = vsub.f32 %v438, %v9853
  %v9855 = vand.u32 %v9854, 4294901760
  %9856 = vmatmul.f32.gmra.mxu0 %v9855
  %v9857 = vpop.f32.mrf.mxu0
  %v9858 = vadd.f32 %v8941, %v9857
  %v9859 = vand.u32 %v441, 4294901760
  %v9860 = vsub.f32 %v441, %v9859
  %v9861 = vand.u32 %v9860, 4294901760
  %9862 = vmatmul.f32.gmra.mxu0 %v9861
  %v9863 = vpop.f32.mrf.mxu0
  %v9864 = vadd.f32 %v8946, %v9863
  %v9865 = vand.u32 %v444, 4294901760
  %v9866 = vsub.f32 %v444, %v9865
  %v9867 = vand.u32 %v9866, 4294901760
  %9868 = vmatmul.f32.gmra.mxu0 %v9867
  %v9869 = vpop.f32.mrf.mxu0
  %v9870 = vadd.f32 %v8951, %v9869
  %v9871 = vand.u32 %v447, 4294901760
  %v9872 = vsub.f32 %v447, %v9871
  %v9873 = vand.u32 %v9872, 4294901760
  %9874 = vmatmul.f32.gmra.mxu0 %v9873
  %v9875 = vpop.f32.mrf.mxu0
  %v9876 = vadd.f32 %v8956, %v9875
  %v9877 = vand.u32 %v450, 4294901760
  %v9878 = vsub.f32 %v450, %v9877
  %v9879 = vand.u32 %v9878, 4294901760
  %9880 = vmatmul.f32.gmra.mxu0 %v9879
  %v9881 = vpop.f32.mrf.mxu0
  %v9882 = vadd.f32 %v8961, %v9881
  %v9883 = vand.u32 %v453, 4294901760
  %v9884 = vsub.f32 %v453, %v9883
  %v9885 = vand.u32 %v9884, 4294901760
  %9886 = vmatmul.f32.gmra.mxu0 %v9885
  %v9887 = vpop.f32.mrf.mxu0
  %v9888 = vadd.f32 %v8966, %v9887
  %v9889 = vand.u32 %v456, 4294901760
  %v9890 = vsub.f32 %v456, %v9889
  %v9891 = vand.u32 %v9890, 4294901760
  %9892 = vmatmul.f32.gmra.mxu0 %v9891
  %v9893 = vpop.f32.mrf.mxu0
  %v9894 = vadd.f32 %v8971, %v9893
  %v9895 = vand.u32 %v459, 4294901760
  %v9896 = vsub.f32 %v459, %v9895
  %v9897 = vand.u32 %v9896, 4294901760
  %9898 = vmatmul.f32.gmra.mxu0 %v9897
  %v9899 = vpop.f32.mrf.mxu0
  %v9900 = vadd.f32 %v8976, %v9899
  %v9901 = vand.u32 %v462, 4294901760
  %v9902 = vsub.f32 %v462, %v9901
  %v9903 = vand.u32 %v9902, 4294901760
  %9904 = vmatmul.f32.gmra.mxu0 %v9903
  %v9905 = vpop.f32.mrf.mxu0
  %v9906 = vadd.f32 %v8981, %v9905
  %v9907 = vand.u32 %v465, 4294901760
  %v9908 = vsub.f32 %v465, %v9907
  %v9909 = vand.u32 %v9908, 4294901760
  %9910 = vmatmul.f32.gmra.mxu0 %v9909
  %v9911 = vpop.f32.mrf.mxu0
  %v9912 = vadd.f32 %v8986, %v9911
  %v9913 = vand.u32 %v468, 4294901760
  %v9914 = vsub.f32 %v468, %v9913
  %v9915 = vand.u32 %v9914, 4294901760
  %9916 = vmatmul.f32.gmra.mxu0 %v9915
  %v9917 = vpop.f32.mrf.mxu0
  %v9918 = vadd.f32 %v8991, %v9917
  %v9919 = vand.u32 %v471, 4294901760
  %v9920 = vsub.f32 %v471, %v9919
  %v9921 = vand.u32 %v9920, 4294901760
  %9922 = vmatmul.f32.gmra.mxu0 %v9921
  %v9923 = vpop.f32.mrf.mxu0
  %v9924 = vadd.f32 %v8996, %v9923
  %v9925 = vand.u32 %v474, 4294901760
  %v9926 = vsub.f32 %v474, %v9925
  %v9927 = vand.u32 %v9926, 4294901760
  %9928 = vmatmul.f32.gmra.mxu0 %v9927
  %v9929 = vpop.f32.mrf.mxu0
  %v9930 = vadd.f32 %v9001, %v9929
  %v9931 = vand.u32 %v477, 4294901760
  %v9932 = vsub.f32 %v477, %v9931
  %v9933 = vand.u32 %v9932, 4294901760
  %9934 = vmatmul.f32.gmra.mxu0 %v9933
  %v9935 = vpop.f32.mrf.mxu0
  %v9936 = vadd.f32 %v9006, %v9935
  %v9937 = vand.u32 %v480, 4294901760
  %v9938 = vsub.f32 %v480, %v9937
  %v9939 = vand.u32 %v9938, 4294901760
  %9940 = vmatmul.f32.gmra.mxu0 %v9939
  %v9941 = vpop.f32.mrf.mxu0
  %v9942 = vadd.f32 %v9011, %v9941
  %v9943 = vand.u32 %v483, 4294901760
  %v9944 = vsub.f32 %v483, %v9943
  %v9945 = vand.u32 %v9944, 4294901760
  %9946 = vmatmul.f32.gmra.mxu0 %v9945
  %v9947 = vpop.f32.mrf.mxu0
  %v9948 = vadd.f32 %v9016, %v9947
  %v9949 = vand.u32 %v486, 4294901760
  %v9950 = vsub.f32 %v486, %v9949
  %v9951 = vand.u32 %v9950, 4294901760
  %9952 = vmatmul.f32.gmra.mxu0 %v9951
  %v9953 = vpop.f32.mrf.mxu0
  %v9954 = vadd.f32 %v9021, %v9953
  %v9955 = vand.u32 %v489, 4294901760
  %v9956 = vsub.f32 %v489, %v9955
  %v9957 = vand.u32 %v9956, 4294901760
  %9958 = vmatmul.f32.gmra.mxu0 %v9957
  %v9959 = vpop.f32.mrf.mxu0
  %v9960 = vadd.f32 %v9026, %v9959
  %v9961 = vand.u32 %v492, 4294901760
  %v9962 = vsub.f32 %v492, %v9961
  %v9963 = vand.u32 %v9962, 4294901760
  %9964 = vmatmul.f32.gmra.mxu0 %v9963
  %v9965 = vpop.f32.mrf.mxu0
  %v9966 = vadd.f32 %v9031, %v9965
  %v9967 = vand.u32 %v495, 4294901760
  %v9968 = vsub.f32 %v495, %v9967
  %v9969 = vand.u32 %v9968, 4294901760
  %9970 = vmatmul.f32.gmra.mxu0 %v9969
  %v9971 = vpop.f32.mrf.mxu0
  %v9972 = vadd.f32 %v9036, %v9971
  %v9973 = vand.u32 %v498, 4294901760
  %v9974 = vsub.f32 %v498, %v9973
  %v9975 = vand.u32 %v9974, 4294901760
  %9976 = vmatmul.f32.gmra.mxu0 %v9975
  %v9977 = vpop.f32.mrf.mxu0
  %v9978 = vadd.f32 %v9041, %v9977
  %v9979 = vand.u32 %v501, 4294901760
  %v9980 = vsub.f32 %v501, %v9979
  %v9981 = vand.u32 %v9980, 4294901760
  %9982 = vmatmul.f32.gmra.mxu0 %v9981
  %v9983 = vpop.f32.mrf.mxu0
  %v9984 = vadd.f32 %v9046, %v9983
  %v9985 = vand.u32 %v504, 4294901760
  %v9986 = vsub.f32 %v504, %v9985
  %v9987 = vand.u32 %v9986, 4294901760
  %9988 = vmatmul.f32.gmra.mxu0 %v9987
  %v9989 = vpop.f32.mrf.mxu0
  %v9990 = vadd.f32 %v9051, %v9989
  %v9991 = vand.u32 %v507, 4294901760
  %v9992 = vsub.f32 %v507, %v9991
  %v9993 = vand.u32 %v9992, 4294901760
  %9994 = vmatmul.f32.gmra.mxu0 %v9993
  %v9995 = vpop.f32.mrf.mxu0
  %v9996 = vadd.f32 %v9056, %v9995
  %v9997 = vand.u32 %v510, 4294901760
  %v9998 = vsub.f32 %v510, %v9997
  %v9999 = vand.u32 %v9998, 4294901760
  %10000 = vmatmul.f32.gmra.mxu0 %v9999
  %v10001 = vpop.f32.mrf.mxu0
  %v10002 = vadd.f32 %v9061, %v10001
  %v10003 = vand.u32 %v513, 4294901760
  %v10004 = vsub.f32 %v513, %v10003
  %v10005 = vand.u32 %v10004, 4294901760
  %10006 = vmatmul.f32.gmra.mxu0 %v10005
  %v10007 = vpop.f32.mrf.mxu0
  %v10008 = vadd.f32 %v9066, %v10007
  %v10009 = vand.u32 %v516, 4294901760
  %v10010 = vsub.f32 %v516, %v10009
  %v10011 = vand.u32 %v10010, 4294901760
  %10012 = vmatmul.f32.gmra.mxu0 %v10011
  %v10013 = vpop.f32.mrf.mxu0
  %v10014 = vadd.f32 %v9071, %v10013
  %v10015 = vand.u32 %v519, 4294901760
  %v10016 = vsub.f32 %v519, %v10015
  %v10017 = vand.u32 %v10016, 4294901760
  %10018 = vmatmul.f32.gmra.mxu0 %v10017
  %v10019 = vpop.f32.mrf.mxu0
  %v10020 = vadd.f32 %v9076, %v10019
  %v10021 = vand.u32 %v522, 4294901760
  %v10022 = vsub.f32 %v522, %v10021
  %v10023 = vand.u32 %v10022, 4294901760
  %10024 = vmatmul.f32.gmra.mxu0 %v10023
  %v10025 = vpop.f32.mrf.mxu0
  %v10026 = vadd.f32 %v9081, %v10025
  %v10027 = vand.u32 %v525, 4294901760
  %v10028 = vsub.f32 %v525, %v10027
  %v10029 = vand.u32 %v10028, 4294901760
  %10030 = vmatmul.f32.gmra.mxu0 %v10029
  %v10031 = vpop.f32.mrf.mxu0
  %v10032 = vadd.f32 %v9086, %v10031
  %v10033 = vand.u32 %v528, 4294901760
  %v10034 = vsub.f32 %v528, %v10033
  %v10035 = vand.u32 %v10034, 4294901760
  %10036 = vmatmul.f32.gmra.mxu0 %v10035
  %v10037 = vpop.f32.mrf.mxu0
  %v10038 = vadd.f32 %v9091, %v10037
  %v10039 = vand.u32 %v531, 4294901760
  %v10040 = vsub.f32 %v531, %v10039
  %v10041 = vand.u32 %v10040, 4294901760
  %10042 = vmatmul.f32.gmra.mxu0 %v10041
  %v10043 = vpop.f32.mrf.mxu0
  %v10044 = vadd.f32 %v9096, %v10043
  %v10045 = vand.u32 %v534, 4294901760
  %v10046 = vsub.f32 %v534, %v10045
  %v10047 = vand.u32 %v10046, 4294901760
  %10048 = vmatmul.f32.gmra.mxu0 %v10047
  %v10049 = vpop.f32.mrf.mxu0
  %v10050 = vadd.f32 %v9101, %v10049
  %v10051 = vand.u32 %v537, 4294901760
  %v10052 = vsub.f32 %v537, %v10051
  %v10053 = vand.u32 %v10052, 4294901760
  %10054 = vmatmul.f32.gmra.mxu0 %v10053
  %v10055 = vpop.f32.mrf.mxu0
  %v10056 = vadd.f32 %v9106, %v10055
  %v10057 = vand.u32 %v540, 4294901760
  %v10058 = vsub.f32 %v540, %v10057
  %v10059 = vand.u32 %v10058, 4294901760
  %10060 = vmatmul.f32.gmra.mxu0 %v10059
  %v10061 = vpop.f32.mrf.mxu0
  %v10062 = vadd.f32 %v9111, %v10061
  %v10063 = vand.u32 %v543, 4294901760
  %v10064 = vsub.f32 %v543, %v10063
  %v10065 = vand.u32 %v10064, 4294901760
  %10066 = vmatmul.f32.gmra.mxu0 %v10065
  %v10067 = vpop.f32.mrf.mxu0
  %v10068 = vadd.f32 %v9116, %v10067
  %v10069 = vand.u32 %v546, 4294901760
  %v10070 = vsub.f32 %v546, %v10069
  %v10071 = vand.u32 %v10070, 4294901760
  %10072 = vmatmul.f32.gmra.mxu0 %v10071
  %v10073 = vpop.f32.mrf.mxu0
  %v10074 = vadd.f32 %v9121, %v10073
  %v10075 = vand.u32 %v549, 4294901760
  %v10076 = vsub.f32 %v549, %v10075
  %v10077 = vand.u32 %v10076, 4294901760
  %10078 = vmatmul.f32.gmra.mxu0 %v10077
  %v10079 = vpop.f32.mrf.mxu0
  %v10080 = vadd.f32 %v9126, %v10079
  %v10081 = vand.u32 %v552, 4294901760
  %v10082 = vsub.f32 %v552, %v10081
  %v10083 = vand.u32 %v10082, 4294901760
  %10084 = vmatmul.f32.gmra.mxu0 %v10083
  %v10085 = vpop.f32.mrf.mxu0
  %v10086 = vadd.f32 %v9131, %v10085
  %v10087 = vand.u32 %v555, 4294901760
  %v10088 = vsub.f32 %v555, %v10087
  %v10089 = vand.u32 %v10088, 4294901760
  %10090 = vmatmul.f32.gmra.mxu0 %v10089
  %v10091 = vpop.f32.mrf.mxu0
  %v10092 = vadd.f32 %v9136, %v10091
  %v10093 = vand.u32 %v558, 4294901760
  %v10094 = vsub.f32 %v558, %v10093
  %v10095 = vand.u32 %v10094, 4294901760
  %10096 = vmatmul.f32.gmra.mxu0 %v10095
  %v10097 = vpop.f32.mrf.mxu0
  %v10098 = vadd.f32 %v9141, %v10097
  %v10099 = vand.u32 %v561, 4294901760
  %v10100 = vsub.f32 %v561, %v10099
  %v10101 = vand.u32 %v10100, 4294901760
  %10102 = vmatmul.f32.gmra.mxu0 %v10101
  %v10103 = vpop.f32.mrf.mxu0
  %v10104 = vadd.f32 %v9146, %v10103
  %v10105 = vand.u32 %v564, 4294901760
  %v10106 = vsub.f32 %v564, %v10105
  %v10107 = vand.u32 %v10106, 4294901760
  %10108 = vmatmul.f32.gmra.mxu0 %v10107
  %v10109 = vpop.f32.mrf.mxu0
  %v10110 = vadd.f32 %v9151, %v10109
  %v10111 = vand.u32 %v567, 4294901760
  %v10112 = vsub.f32 %v567, %v10111
  %v10113 = vand.u32 %v10112, 4294901760
  %10114 = vmatmul.f32.gmra.mxu0 %v10113
  %v10115 = vpop.f32.mrf.mxu0
  %v10116 = vadd.f32 %v9156, %v10115
  %v10117 = vand.u32 %v570, 4294901760
  %v10118 = vsub.f32 %v570, %v10117
  %v10119 = vand.u32 %v10118, 4294901760
  %10120 = vmatmul.f32.gmra.mxu0 %v10119
  %v10121 = vpop.f32.mrf.mxu0
  %v10122 = vadd.f32 %v9161, %v10121
  %v10123 = vand.u32 %v573, 4294901760
  %v10124 = vsub.f32 %v573, %v10123
  %v10125 = vand.u32 %v10124, 4294901760
  %10126 = vmatmul.f32.gmra.mxu0 %v10125
  %v10127 = vpop.f32.mrf.mxu0
  %v10128 = vadd.f32 %v9166, %v10127
  %v10129 = vand.u32 %v576, 4294901760
  %v10130 = vsub.f32 %v576, %v10129
  %v10131 = vand.u32 %v10130, 4294901760
  %10132 = vmatmul.f32.gmra.mxu0 %v10131
  %v10133 = vpop.f32.mrf.mxu0
  %v10134 = vadd.f32 %v9171, %v10133
  %v10135 = vand.u32 %v579, 4294901760
  %v10136 = vsub.f32 %v579, %v10135
  %v10137 = vand.u32 %v10136, 4294901760
  %10138 = vmatmul.f32.gmra.mxu0 %v10137
  %v10139 = vpop.f32.mrf.mxu0
  %v10140 = vadd.f32 %v9176, %v10139
  %v10141 = vand.u32 %v582, 4294901760
  %v10142 = vsub.f32 %v582, %v10141
  %v10143 = vand.u32 %v10142, 4294901760
  %10144 = vmatmul.f32.gmra.mxu0 %v10143
  %v10145 = vpop.f32.mrf.mxu0
  %v10146 = vadd.f32 %v9181, %v10145
  %v10147 = vand.u32 %v585, 4294901760
  %v10148 = vsub.f32 %v585, %v10147
  %v10149 = vand.u32 %v10148, 4294901760
  %10150 = vmatmul.f32.gmra.mxu0 %v10149
  %v10151 = vpop.f32.mrf.mxu0
  %v10152 = vadd.f32 %v9186, %v10151
  %v10153 = vand.u32 %v588, 4294901760
  %v10154 = vsub.f32 %v588, %v10153
  %v10155 = vand.u32 %v10154, 4294901760
  %10156 = vmatmul.f32.gmra.mxu0 %v10155
  %v10157 = vpop.f32.mrf.mxu0
  %v10158 = vadd.f32 %v9191, %v10157
  %v10159 = vand.u32 %v591, 4294901760
  %v10160 = vsub.f32 %v591, %v10159
  %v10161 = vand.u32 %v10160, 4294901760
  %10162 = vmatmul.f32.gmra.mxu0 %v10161
  %v10163 = vpop.f32.mrf.mxu0
  %v10164 = vadd.f32 %v9196, %v10163
  %v10165 = vand.u32 %v594, 4294901760
  %v10166 = vsub.f32 %v594, %v10165
  %v10167 = vand.u32 %v10166, 4294901760
  %10168 = vmatmul.f32.gmra.mxu0 %v10167
  %v10169 = vpop.f32.mrf.mxu0
  %v10170 = vadd.f32 %v9201, %v10169
  %v10171 = vand.u32 %v597, 4294901760
  %v10172 = vsub.f32 %v597, %v10171
  %v10173 = vand.u32 %v10172, 4294901760
  %10174 = vmatmul.f32.gmra.mxu0 %v10173
  %v10175 = vpop.f32.mrf.mxu0
  %v10176 = vadd.f32 %v9206, %v10175
  %v10177 = vand.u32 %v600, 4294901760
  %v10178 = vsub.f32 %v600, %v10177
  %v10179 = vand.u32 %v10178, 4294901760
  %10180 = vmatmul.f32.gmra.mxu0 %v10179
  %v10181 = vpop.f32.mrf.mxu0
  %v10182 = vadd.f32 %v9211, %v10181
  %v10183 = vand.u32 %v603, 4294901760
  %v10184 = vsub.f32 %v603, %v10183
  %v10185 = vand.u32 %v10184, 4294901760
  %10186 = vmatmul.f32.gmra.mxu0 %v10185
  %v10187 = vpop.f32.mrf.mxu0
  %v10188 = vadd.f32 %v9216, %v10187
  %v10189 = vand.u32 %v606, 4294901760
  %v10190 = vsub.f32 %v606, %v10189
  %v10191 = vand.u32 %v10190, 4294901760
  %10192 = vmatmul.f32.gmra.mxu0 %v10191
  %v10193 = vpop.f32.mrf.mxu0
  %v10194 = vadd.f32 %v9221, %v10193
  %v10195 = vand.u32 %v609, 4294901760
  %v10196 = vsub.f32 %v609, %v10195
  %v10197 = vand.u32 %v10196, 4294901760
  %10198 = vmatmul.f32.gmra.mxu0 %v10197
  %v10199 = vpop.f32.mrf.mxu0
  %v10200 = vadd.f32 %v9226, %v10199
  %v10201 = vand.u32 %v612, 4294901760
  %v10202 = vsub.f32 %v612, %v10201
  %v10203 = vand.u32 %v10202, 4294901760
  %10204 = vmatmul.f32.gmra.mxu0 %v10203
  %v10205 = vpop.f32.mrf.mxu0
  %v10206 = vadd.f32 %v9231, %v10205
  %v10207 = vand.u32 %v615, 4294901760
  %v10208 = vsub.f32 %v615, %v10207
  %v10209 = vand.u32 %v10208, 4294901760
  %10210 = vmatmul.f32.gmra.mxu0 %v10209
  %v10211 = vpop.f32.mrf.mxu0
  %v10212 = vadd.f32 %v9236, %v10211
  %v10213 = vand.u32 %v618, 4294901760
  %v10214 = vsub.f32 %v618, %v10213
  %v10215 = vand.u32 %v10214, 4294901760
  %10216 = vmatmul.f32.gmra.mxu0 %v10215
  %v10217 = vpop.f32.mrf.mxu0
  %v10218 = vadd.f32 %v9241, %v10217
  %v10219 = vand.u32 %v621, 4294901760
  %v10220 = vsub.f32 %v621, %v10219
  %v10221 = vand.u32 %v10220, 4294901760
  %10222 = vmatmul.f32.gmra.mxu0 %v10221
  %v10223 = vpop.f32.mrf.mxu0
  %v10224 = vadd.f32 %v9246, %v10223
  %v10225 = vand.u32 %v624, 4294901760
  %v10226 = vsub.f32 %v624, %v10225
  %v10227 = vand.u32 %v10226, 4294901760
  %10228 = vmatmul.f32.gmra.mxu0 %v10227
  %v10229 = vpop.f32.mrf.mxu0
  %v10230 = vadd.f32 %v9251, %v10229
  %v10231 = vand.u32 %v627, 4294901760
  %v10232 = vsub.f32 %v627, %v10231
  %v10233 = vand.u32 %v10232, 4294901760
  %10234 = vmatmul.f32.gmra.mxu0 %v10233
  %v10235 = vpop.f32.mrf.mxu0
  %v10236 = vadd.f32 %v9256, %v10235
  %v10237 = vand.u32 %v630, 4294901760
  %v10238 = vsub.f32 %v630, %v10237
  %v10239 = vand.u32 %v10238, 4294901760
  %10240 = vmatmul.f32.gmra.mxu0 %v10239
  %v10241 = vpop.f32.mrf.mxu0
  %v10242 = vadd.f32 %v9261, %v10241
  %v10243 = vand.u32 %v633, 4294901760
  %v10244 = vsub.f32 %v633, %v10243
  %v10245 = vand.u32 %v10244, 4294901760
  %10246 = vmatmul.f32.gmra.mxu0 %v10245
  %v10247 = vpop.f32.mrf.mxu0
  %v10248 = vadd.f32 %v9266, %v10247
  %v10249 = vand.u32 %v636, 4294901760
  %v10250 = vsub.f32 %v636, %v10249
  %v10251 = vand.u32 %v10250, 4294901760
  %10252 = vmatmul.f32.gmra.mxu0 %v10251
  %v10253 = vpop.f32.mrf.mxu0
  %v10254 = vadd.f32 %v9271, %v10253
  %v10255 = vand.u32 %v639, 4294901760
  %v10256 = vsub.f32 %v639, %v10255
  %v10257 = vand.u32 %v10256, 4294901760
  %10258 = vmatmul.f32.gmra.mxu0 %v10257
  %v10259 = vpop.f32.mrf.mxu0
  %v10260 = vadd.f32 %v9276, %v10259
  %v10261 = vand.u32 %v642, 4294901760
  %v10262 = vsub.f32 %v642, %v10261
  %v10263 = vand.u32 %v10262, 4294901760
  %10264 = vmatmul.f32.gmra.mxu0 %v10263
  %v10265 = vpop.f32.mrf.mxu0
  %v10266 = vadd.f32 %v9281, %v10265
  %v10267 = vand.u32 %v645, 4294901760
  %v10268 = vsub.f32 %v645, %v10267
  %v10269 = vand.u32 %v10268, 4294901760
  %10270 = vmatmul.f32.gmra.mxu0 %v10269
  %v10271 = vpop.f32.mrf.mxu0
  %v10272 = vadd.f32 %v9286, %v10271
  %v10273 = vand.u32 %v648, 4294901760
  %v10274 = vsub.f32 %v648, %v10273
  %v10275 = vand.u32 %v10274, 4294901760
  %10276 = vmatmul.f32.gmra.mxu0 %v10275
  %v10277 = vpop.f32.mrf.mxu0
  %v10278 = vadd.f32 %v9291, %v10277
  %v10279 = vand.u32 %v651, 4294901760
  %v10280 = vsub.f32 %v651, %v10279
  %v10281 = vand.u32 %v10280, 4294901760
  %10282 = vmatmul.f32.gmra.mxu0 %v10281
  %v10283 = vpop.f32.mrf.mxu0
  %v10284 = vadd.f32 %v9296, %v10283
  %v10285 = vand.u32 %v654, 4294901760
  %v10286 = vsub.f32 %v654, %v10285
  %v10287 = vand.u32 %v10286, 4294901760
  %10288 = vmatmul.f32.gmra.mxu0 %v10287
  %v10289 = vpop.f32.mrf.mxu0
  %v10290 = vadd.f32 %v9301, %v10289
  %v10291 = vand.u32 %v657, 4294901760
  %v10292 = vsub.f32 %v657, %v10291
  %v10293 = vand.u32 %v10292, 4294901760
  %10294 = vmatmul.f32.gmra.mxu0 %v10293
  %v10295 = vpop.f32.mrf.mxu0
  %v10296 = vadd.f32 %v9306, %v10295
  %v10297 = vand.u32 %v660, 4294901760
  %v10298 = vsub.f32 %v660, %v10297
  %v10299 = vand.u32 %v10298, 4294901760
  %10300 = vmatmul.f32.gmra.mxu0 %v10299
  %v10301 = vpop.f32.mrf.mxu0
  %v10302 = vadd.f32 %v9311, %v10301
  %v10303 = vand.u32 %v663, 4294901760
  %v10304 = vsub.f32 %v663, %v10303
  %v10305 = vand.u32 %v10304, 4294901760
  %10306 = vmatmul.f32.gmra.mxu0 %v10305
  %v10307 = vpop.f32.mrf.mxu0
  %v10308 = vadd.f32 %v9316, %v10307
  %v10309 = vand.u32 %v666, 4294901760
  %v10310 = vsub.f32 %v666, %v10309
  %v10311 = vand.u32 %v10310, 4294901760
  %10312 = vmatmul.f32.gmra.mxu0 %v10311
  %v10313 = vpop.f32.mrf.mxu0
  %v10314 = vadd.f32 %v9321, %v10313
  %v10315 = vand.u32 %v669, 4294901760
  %v10316 = vsub.f32 %v669, %v10315
  %v10317 = vand.u32 %v10316, 4294901760
  %10318 = vmatmul.f32.gmra.mxu0 %v10317
  %v10319 = vpop.f32.mrf.mxu0
  %v10320 = vadd.f32 %v9326, %v10319
  %v10321 = vand.u32 %v672, 4294901760
  %v10322 = vsub.f32 %v672, %v10321
  %v10323 = vand.u32 %v10322, 4294901760
  %10324 = vmatmul.f32.gmra.mxu0 %v10323
  %v10325 = vpop.f32.mrf.mxu0
  %v10326 = vadd.f32 %v9331, %v10325
  %v10327 = vand.u32 %v675, 4294901760
  %v10328 = vsub.f32 %v675, %v10327
  %v10329 = vand.u32 %v10328, 4294901760
  %10330 = vmatmul.f32.gmra.mxu0 %v10329
  %v10331 = vpop.f32.mrf.mxu0
  %v10332 = vadd.f32 %v9336, %v10331
  %v10333 = vand.u32 %v678, 4294901760
  %v10334 = vsub.f32 %v678, %v10333
  %v10335 = vand.u32 %v10334, 4294901760
  %10336 = vmatmul.f32.gmra.mxu0 %v10335
  %v10337 = vpop.f32.mrf.mxu0
  %v10338 = vadd.f32 %v9341, %v10337
  %v10339 = vand.u32 %v681, 4294901760
  %v10340 = vsub.f32 %v681, %v10339
  %v10341 = vand.u32 %v10340, 4294901760
  %10342 = vmatmul.f32.gmra.mxu0 %v10341
  %v10343 = vpop.f32.mrf.mxu0
  %v10344 = vadd.f32 %v9346, %v10343
  %v10345 = vand.u32 %v684, 4294901760
  %v10346 = vsub.f32 %v684, %v10345
  %v10347 = vand.u32 %v10346, 4294901760
  %10348 = vmatmul.f32.gmra.mxu0 %v10347
  %v10349 = vpop.f32.mrf.mxu0
  %v10350 = vadd.f32 %v9351, %v10349
  %v10351 = vand.u32 %v687, 4294901760
  %v10352 = vsub.f32 %v687, %v10351
  %v10353 = vand.u32 %v10352, 4294901760
  %10354 = vmatmul.f32.gmra.mxu0 %v10353
  %v10355 = vpop.f32.mrf.mxu0
  %v10356 = vadd.f32 %v9356, %v10355
  %v10357 = vand.u32 %v690, 4294901760
  %v10358 = vsub.f32 %v690, %v10357
  %v10359 = vand.u32 %v10358, 4294901760
  %10360 = vmatmul.f32.gmra.mxu0 %v10359
  %v10361 = vpop.f32.mrf.mxu0
  %v10362 = vadd.f32 %v9361, %v10361
  %v10363 = vand.u32 %v693, 4294901760
  %v10364 = vsub.f32 %v693, %v10363
  %v10365 = vand.u32 %v10364, 4294901760
  %10366 = vmatmul.f32.gmra.mxu0 %v10365
  %v10367 = vpop.f32.mrf.mxu0
  %v10368 = vadd.f32 %v9366, %v10367
  %v10369 = vand.u32 %v696, 4294901760
  %v10370 = vsub.f32 %v696, %v10369
  %v10371 = vand.u32 %v10370, 4294901760
  %10372 = vmatmul.f32.gmra.mxu0 %v10371
  %v10373 = vpop.f32.mrf.mxu0
  %v10374 = vadd.f32 %v9371, %v10373
  %v10375 = vand.u32 %v699, 4294901760
  %v10376 = vsub.f32 %v699, %v10375
  %v10377 = vand.u32 %v10376, 4294901760
  %10378 = vmatmul.f32.gmra.mxu0 %v10377
  %v10379 = vpop.f32.mrf.mxu0
  %v10380 = vadd.f32 %v9376, %v10379
  %v10381 = vand.u32 %v702, 4294901760
  %v10382 = vsub.f32 %v702, %v10381
  %v10383 = vand.u32 %v10382, 4294901760
  %10384 = vmatmul.f32.gmra.mxu0 %v10383
  %v10385 = vpop.f32.mrf.mxu0
  %v10386 = vadd.f32 %v9381, %v10385
  %v10387 = vand.u32 %v705, 4294901760
  %v10388 = vsub.f32 %v705, %v10387
  %v10389 = vand.u32 %v10388, 4294901760
  %10390 = vmatmul.f32.gmra.mxu0 %v10389
  %v10391 = vpop.f32.mrf.mxu0
  %v10392 = vadd.f32 %v9386, %v10391
  %v10393 = vand.u32 %v708, 4294901760
  %v10394 = vsub.f32 %v708, %v10393
  %v10395 = vand.u32 %v10394, 4294901760
  %10396 = vmatmul.f32.gmra.mxu0 %v10395
  %v10397 = vpop.f32.mrf.mxu0
  %v10398 = vadd.f32 %v9391, %v10397
  %v10399 = vand.u32 %v711, 4294901760
  %v10400 = vsub.f32 %v711, %v10399
  %v10401 = vand.u32 %v10400, 4294901760
  %10402 = vmatmul.f32.gmra.mxu0 %v10401
  %v10403 = vpop.f32.mrf.mxu0
  %v10404 = vadd.f32 %v9396, %v10403
  %v10405 = vand.u32 %v714, 4294901760
  %v10406 = vsub.f32 %v714, %v10405
  %v10407 = vand.u32 %v10406, 4294901760
  %10408 = vmatmul.f32.gmra.mxu0 %v10407
  %v10409 = vpop.f32.mrf.mxu0
  %v10410 = vadd.f32 %v9401, %v10409
  %v10411 = vand.u32 %v717, 4294901760
  %v10412 = vsub.f32 %v717, %v10411
  %v10413 = vand.u32 %v10412, 4294901760
  %10414 = vmatmul.f32.gmra.mxu0 %v10413
  %v10415 = vpop.f32.mrf.mxu0
  %v10416 = vadd.f32 %v9406, %v10415
  %v10417 = vand.u32 %v720, 4294901760
  %v10418 = vsub.f32 %v720, %v10417
  %v10419 = vand.u32 %v10418, 4294901760
  %10420 = vmatmul.f32.gmra.mxu0 %v10419
  %v10421 = vpop.f32.mrf.mxu0
  %v10422 = vadd.f32 %v9411, %v10421
  %v10423 = vand.u32 %v723, 4294901760
  %v10424 = vsub.f32 %v723, %v10423
  %v10425 = vand.u32 %v10424, 4294901760
  %10426 = vmatmul.f32.gmra.mxu0 %v10425
  %v10427 = vpop.f32.mrf.mxu0
  %v10428 = vadd.f32 %v9416, %v10427
  %v10429 = vand.u32 %v726, 4294901760
  %v10430 = vsub.f32 %v726, %v10429
  %v10431 = vand.u32 %v10430, 4294901760
  %10432 = vmatmul.f32.gmra.mxu0 %v10431
  %v10433 = vpop.f32.mrf.mxu0
  %v10434 = vadd.f32 %v9421, %v10433
  %v10435 = vand.u32 %v729, 4294901760
  %v10436 = vsub.f32 %v729, %v10435
  %v10437 = vand.u32 %v10436, 4294901760
  %10438 = vmatmul.f32.gmra.mxu0 %v10437
  %v10439 = vpop.f32.mrf.mxu0
  %v10440 = vadd.f32 %v9426, %v10439
  %v10441 = vand.u32 %v732, 4294901760
  %v10442 = vsub.f32 %v732, %v10441
  %v10443 = vand.u32 %v10442, 4294901760
  %10444 = vmatmul.f32.gmra.mxu0 %v10443
  %v10445 = vpop.f32.mrf.mxu0
  %v10446 = vadd.f32 %v9431, %v10445
  %v10447 = vand.u32 %v735, 4294901760
  %v10448 = vsub.f32 %v735, %v10447
  %v10449 = vand.u32 %v10448, 4294901760
  %10450 = vmatmul.f32.gmra.mxu0 %v10449
  %v10451 = vpop.f32.mrf.mxu0
  %v10452 = vadd.f32 %v9436, %v10451
  %v10453 = vand.u32 %v738, 4294901760
  %v10454 = vsub.f32 %v738, %v10453
  %v10455 = vand.u32 %v10454, 4294901760
  %10456 = vmatmul.f32.gmra.mxu0 %v10455
  %v10457 = vpop.f32.mrf.mxu0
  %v10458 = vadd.f32 %v9441, %v10457
  %v10459 = vand.u32 %v741, 4294901760
  %v10460 = vsub.f32 %v741, %v10459
  %v10461 = vand.u32 %v10460, 4294901760
  %10462 = vmatmul.f32.gmra.mxu0 %v10461
  %v10463 = vpop.f32.mrf.mxu0
  %v10464 = vadd.f32 %v9446, %v10463
  %v10465 = vand.u32 %v744, 4294901760
  %v10466 = vsub.f32 %v744, %v10465
  %v10467 = vand.u32 %v10466, 4294901760
  %10468 = vmatmul.f32.gmra.mxu0 %v10467
  %v10469 = vpop.f32.mrf.mxu0
  %v10470 = vadd.f32 %v9451, %v10469
  %v10471 = vand.u32 %v747, 4294901760
  %v10472 = vsub.f32 %v747, %v10471
  %v10473 = vand.u32 %v10472, 4294901760
  %10474 = vmatmul.f32.gmra.mxu0 %v10473
  %v10475 = vpop.f32.mrf.mxu0
  %v10476 = vadd.f32 %v9456, %v10475
  %v10477 = vand.u32 %v750, 4294901760
  %v10478 = vsub.f32 %v750, %v10477
  %v10479 = vand.u32 %v10478, 4294901760
  %10480 = vmatmul.f32.gmra.mxu0 %v10479
  %v10481 = vpop.f32.mrf.mxu0
  %v10482 = vadd.f32 %v9461, %v10481
  %v10483 = vand.u32 %v753, 4294901760
  %v10484 = vsub.f32 %v753, %v10483
  %v10485 = vand.u32 %v10484, 4294901760
  %10486 = vmatmul.f32.gmra.mxu0 %v10485
  %v10487 = vpop.f32.mrf.mxu0
  %v10488 = vadd.f32 %v9466, %v10487
  %v10489 = vand.u32 %v756, 4294901760
  %v10490 = vsub.f32 %v756, %v10489
  %v10491 = vand.u32 %v10490, 4294901760
  %10492 = vmatmul.f32.gmra.mxu0 %v10491
  %v10493 = vpop.f32.mrf.mxu0
  %v10494 = vadd.f32 %v9471, %v10493
  %v10495 = vand.u32 %v759, 4294901760
  %v10496 = vsub.f32 %v759, %v10495
  %v10497 = vand.u32 %v10496, 4294901760
  %10498 = vmatmul.f32.gmra.mxu0 %v10497
  %v10499 = vpop.f32.mrf.mxu0
  %v10500 = vadd.f32 %v9476, %v10499
  %v10501 = vand.u32 %v762, 4294901760
  %v10502 = vsub.f32 %v762, %v10501
  %v10503 = vand.u32 %v10502, 4294901760
  %10504 = vmatmul.f32.gmra.mxu0 %v10503
  %v10505 = vpop.f32.mrf.mxu0
  %v10506 = vadd.f32 %v9481, %v10505
  %v10507 = vand.u32 %v765, 4294901760
  %v10508 = vsub.f32 %v765, %v10507
  %v10509 = vand.u32 %v10508, 4294901760
  %10510 = vmatmul.f32.gmra.mxu0 %v10509
  %v10511 = vpop.f32.mrf.mxu0
  %v10512 = vadd.f32 %v9486, %v10511
  %v10513 = vand.u32 %v768, 4294901760
  %v10514 = vsub.f32 %v768, %v10513
  %v10515 = vand.u32 %v10514, 4294901760
  %10516 = vmatmul.f32.gmra.mxu0 %v10515
  %v10517 = vpop.f32.mrf.mxu0
  %v10518 = vadd.f32 %v9491, %v10517
  %v10519 = vand.u32 %v771, 4294901760
  %v10520 = vsub.f32 %v771, %v10519
  %v10521 = vand.u32 %v10520, 4294901760
  %10522 = vmatmul.f32.gmra.mxu0 %v10521
  %v10523 = vpop.f32.mrf.mxu0
  %v10524 = vadd.f32 %v9496, %v10523
  %v10525 = vand.u32 %v774, 4294901760
  %v10526 = vsub.f32 %v774, %v10525
  %v10527 = vand.u32 %v10526, 4294901760
  %10528 = vmatmul.f32.gmra.mxu0 %v10527
  %v10529 = vpop.f32.mrf.mxu0
  %v10530 = vadd.f32 %v9501, %v10529
  %v10531 = vand.u32 %v777, 4294901760
  %v10532 = vsub.f32 %v777, %v10531
  %v10533 = vand.u32 %v10532, 4294901760
  %10534 = vmatmul.f32.gmra.mxu0 %v10533
  %v10535 = vpop.f32.mrf.mxu0
  %v10536 = vadd.f32 %v9506, %v10535
  %v10537 = vand.u32 %v780, 4294901760
  %v10538 = vsub.f32 %v780, %v10537
  %v10539 = vand.u32 %v10538, 4294901760
  %10540 = vmatmul.f32.gmra.mxu0 %v10539
  %v10541 = vpop.f32.mrf.mxu0
  %v10542 = vadd.f32 %v9511, %v10541
  %v10543 = vand.u32 %v783, 4294901760
  %v10544 = vsub.f32 %v783, %v10543
  %v10545 = vand.u32 %v10544, 4294901760
  %10546 = vmatmul.f32.gmra.mxu0 %v10545
  %v10547 = vpop.f32.mrf.mxu0
  %v10548 = vadd.f32 %v9516, %v10547
  %v10549 = vand.u32 %v786, 4294901760
  %v10550 = vsub.f32 %v786, %v10549
  %v10551 = vand.u32 %v10550, 4294901760
  %10552 = vmatmul.f32.gmra.mxu0 %v10551
  %v10553 = vpop.f32.mrf.mxu0
  %v10554 = vadd.f32 %v9521, %v10553
  %v10555 = vand.u32 %v789, 4294901760
  %v10556 = vsub.f32 %v789, %v10555
  %v10557 = vand.u32 %v10556, 4294901760
  %10558 = vmatmul.f32.gmra.mxu0 %v10557
  %v10559 = vpop.f32.mrf.mxu0
  %v10560 = vadd.f32 %v9526, %v10559
  %v10561 = vand.u32 %v792, 4294901760
  %v10562 = vsub.f32 %v792, %v10561
  %v10563 = vand.u32 %v10562, 4294901760
  %10564 = vmatmul.f32.gmra.mxu0 %v10563
  %v10565 = vpop.f32.mrf.mxu0
  %v10566 = vadd.f32 %v9531, %v10565
  %v10567 = vand.u32 %v795, 4294901760
  %v10568 = vsub.f32 %v795, %v10567
  %v10569 = vand.u32 %v10568, 4294901760
  %10570 = vmatmul.f32.gmra.mxu0 %v10569
  %v10571 = vpop.f32.mrf.mxu0
  %v10572 = vadd.f32 %v9536, %v10571
  %v10573 = vand.u32 %v798, 4294901760
  %v10574 = vsub.f32 %v798, %v10573
  %v10575 = vand.u32 %v10574, 4294901760
  %10576 = vmatmul.f32.gmra.mxu0 %v10575
  %v10577 = vpop.f32.mrf.mxu0
  %v10578 = vadd.f32 %v9541, %v10577
  %v10579 = vand.u32 %v801, 4294901760
  %v10580 = vsub.f32 %v801, %v10579
  %v10581 = vand.u32 %v10580, 4294901760
  %10582 = vmatmul.f32.gmra.mxu0 %v10581
  %v10583 = vpop.f32.mrf.mxu0
  %v10584 = vadd.f32 %v9546, %v10583
  %v10585 = vand.u32 %v804, 4294901760
  %v10586 = vsub.f32 %v804, %v10585
  %v10587 = vand.u32 %v10586, 4294901760
  %10588 = vmatmul.f32.gmra.mxu0 %v10587
  %v10589 = vpop.f32.mrf.mxu0
  %v10590 = vadd.f32 %v9551, %v10589
  %v10591 = vand.u32 %v807, 4294901760
  %v10592 = vsub.f32 %v807, %v10591
  %v10593 = vand.u32 %v10592, 4294901760
  %10594 = vmatmul.f32.gmra.mxu0 %v10593
  %v10595 = vpop.f32.mrf.mxu0
  %v10596 = vadd.f32 %v9556, %v10595
  %v10597 = vand.u32 %v810, 4294901760
  %v10598 = vsub.f32 %v810, %v10597
  %v10599 = vand.u32 %v10598, 4294901760
  %10600 = vmatmul.f32.gmra.mxu0 %v10599
  %v10601 = vpop.f32.mrf.mxu0
  %v10602 = vadd.f32 %v9561, %v10601
  %v10603 = vand.u32 %v813, 4294901760
  %v10604 = vsub.f32 %v813, %v10603
  %v10605 = vand.u32 %v10604, 4294901760
  %10606 = vmatmul.f32.gmra.mxu0 %v10605
  %v10607 = vpop.f32.mrf.mxu0
  %v10608 = vadd.f32 %v9566, %v10607
  %v10609 = vand.u32 %v816, 4294901760
  %v10610 = vsub.f32 %v816, %v10609
  %v10611 = vand.u32 %v10610, 4294901760
  %10612 = vmatmul.f32.gmra.mxu0 %v10611
  %v10613 = vpop.f32.mrf.mxu0
  %v10614 = vadd.f32 %v9571, %v10613
  %v10615 = vand.u32 %v819, 4294901760
  %v10616 = vsub.f32 %v819, %v10615
  %v10617 = vand.u32 %v10616, 4294901760
  %10618 = vmatmul.f32.gmra.mxu0 %v10617
  %v10619 = vpop.f32.mrf.mxu0
  %v10620 = vadd.f32 %v9576, %v10619
  %v10621 = vand.u32 %v822, 4294901760
  %v10622 = vsub.f32 %v822, %v10621
  %v10623 = vand.u32 %v10622, 4294901760
  %10624 = vmatmul.f32.gmra.mxu0 %v10623
  %v10625 = vpop.f32.mrf.mxu0
  %v10626 = vadd.f32 %v9581, %v10625
  %v10627 = vand.u32 %v825, 4294901760
  %v10628 = vsub.f32 %v825, %v10627
  %v10629 = vand.u32 %v10628, 4294901760
  %10630 = vmatmul.f32.gmra.mxu0 %v10629
  %v10631 = vpop.f32.mrf.mxu0
  %v10632 = vadd.f32 %v9586, %v10631
  %v10633 = vand.u32 %v828, 4294901760
  %v10634 = vsub.f32 %v828, %v10633
  %v10635 = vand.u32 %v10634, 4294901760
  %10636 = vmatmul.f32.gmra.mxu0 %v10635
  %v10637 = vpop.f32.mrf.mxu0
  %v10638 = vadd.f32 %v9591, %v10637
  %v10639 = vand.u32 %v831, 4294901760
  %v10640 = vsub.f32 %v831, %v10639
  %v10641 = vand.u32 %v10640, 4294901760
  %10642 = vmatmul.f32.gmra.mxu0 %v10641
  %v10643 = vpop.f32.mrf.mxu0
  %v10644 = vadd.f32 %v9596, %v10643
  %v10645 = vand.u32 %v834, 4294901760
  %v10646 = vsub.f32 %v834, %v10645
  %v10647 = vand.u32 %v10646, 4294901760
  %10648 = vmatmul.f32.gmra.mxu0 %v10647
  %v10649 = vpop.f32.mrf.mxu0
  %v10650 = vadd.f32 %v9601, %v10649
  %v10651 = vand.u32 %v837, 4294901760
  %v10652 = vsub.f32 %v837, %v10651
  %v10653 = vand.u32 %v10652, 4294901760
  %10654 = vmatmul.f32.gmra.mxu0 %v10653
  %v10655 = vpop.f32.mrf.mxu0
  %v10656 = vadd.f32 %v9606, %v10655
  %v10657 = vand.u32 %v840, 4294901760
  %v10658 = vsub.f32 %v840, %v10657
  %v10659 = vand.u32 %v10658, 4294901760
  %10660 = vmatmul.f32.gmra.mxu0 %v10659
  %v10661 = vpop.f32.mrf.mxu0
  %v10662 = vadd.f32 %v9611, %v10661
  %v10663 = vand.u32 %v843, 4294901760
  %v10664 = vsub.f32 %v843, %v10663
  %v10665 = vand.u32 %v10664, 4294901760
  %10666 = vmatmul.f32.gmra.mxu0 %v10665
  %v10667 = vpop.f32.mrf.mxu0
  %v10668 = vadd.f32 %v9616, %v10667
  %v10669 = vand.u32 %v846, 4294901760
  %v10670 = vsub.f32 %v846, %v10669
  %v10671 = vand.u32 %v10670, 4294901760
  %10672 = vmatmul.f32.gmra.mxu0 %v10671
  %v10673 = vpop.f32.mrf.mxu0
  %v10674 = vadd.f32 %v9621, %v10673
  %v10675 = vand.u32 %v849, 4294901760
  %v10676 = vsub.f32 %v849, %v10675
  %v10677 = vand.u32 %v10676, 4294901760
  %10678 = vmatmul.f32.gmra.mxu0 %v10677
  %v10679 = vpop.f32.mrf.mxu0
  %v10680 = vadd.f32 %v9626, %v10679
  %v10681 = vand.u32 %v852, 4294901760
  %v10682 = vsub.f32 %v852, %v10681
  %v10683 = vand.u32 %v10682, 4294901760
  %10684 = vmatmul.f32.gmra.mxu0 %v10683
  %v10685 = vpop.f32.mrf.mxu0
  %v10686 = vadd.f32 %v9631, %v10685
  %v10687 = vand.u32 %v855, 4294901760
  %v10688 = vsub.f32 %v855, %v10687
  %v10689 = vand.u32 %v10688, 4294901760
  %10690 = vmatmul.f32.gmra.mxu0 %v10689
  %v10691 = vpop.f32.mrf.mxu0
  %v10692 = vadd.f32 %v9636, %v10691
  %v10693 = vand.u32 %v858, 4294901760
  %v10694 = vsub.f32 %v858, %v10693
  %v10695 = vand.u32 %v10694, 4294901760
  %10696 = vmatmul.f32.gmra.mxu0 %v10695
  %v10697 = vpop.f32.mrf.mxu0
  %v10698 = vadd.f32 %v9641, %v10697
  %v10699 = vand.u32 %v861, 4294901760
  %v10700 = vsub.f32 %v861, %v10699
  %v10701 = vand.u32 %v10700, 4294901760
  %10702 = vmatmul.f32.gmra.mxu0 %v10701
  %v10703 = vpop.f32.mrf.mxu0
  %v10704 = vadd.f32 %v9646, %v10703
  %v10705 = vand.u32 %v864, 4294901760
  %v10706 = vsub.f32 %v864, %v10705
  %v10707 = vand.u32 %v10706, 4294901760
  %10708 = vmatmul.f32.gmra.mxu0 %v10707
  %v10709 = vpop.f32.mrf.mxu0
  %v10710 = vadd.f32 %v9651, %v10709
  %v10711 = vand.u32 %v867, 4294901760
  %v10712 = vsub.f32 %v867, %v10711
  %v10713 = vand.u32 %v10712, 4294901760
  %10714 = vmatmul.f32.gmra.mxu0 %v10713
  %v10715 = vpop.f32.mrf.mxu0
  %v10716 = vadd.f32 %v9656, %v10715
  %v10717 = vand.u32 %v870, 4294901760
  %v10718 = vsub.f32 %v870, %v10717
  %v10719 = vand.u32 %v10718, 4294901760
  %10720 = vmatmul.f32.gmra.mxu0 %v10719
  %v10721 = vpop.f32.mrf.mxu0
  %v10722 = vadd.f32 %v9661, %v10721
  %v10723 = vand.u32 %v873, 4294901760
  %v10724 = vsub.f32 %v873, %v10723
  %v10725 = vand.u32 %v10724, 4294901760
  %10726 = vmatmul.f32.gmra.mxu0 %v10725
  %v10727 = vpop.f32.mrf.mxu0
  %v10728 = vadd.f32 %v9666, %v10727
  %v10729 = vand.u32 %v876, 4294901760
  %v10730 = vsub.f32 %v876, %v10729
  %v10731 = vand.u32 %v10730, 4294901760
  %10732 = vmatmul.f32.gmra.mxu0 %v10731
  %v10733 = vpop.f32.mrf.mxu0
  %v10734 = vadd.f32 %v9671, %v10733
  %v10735 = vand.u32 %v879, 4294901760
  %v10736 = vsub.f32 %v879, %v10735
  %v10737 = vand.u32 %v10736, 4294901760
  %10738 = vmatmul.f32.gmra.mxu0 %v10737
  %v10739 = vpop.f32.mrf.mxu0
  %v10740 = vadd.f32 %v9676, %v10739
  %v10741 = vand.u32 %v882, 4294901760
  %v10742 = vsub.f32 %v882, %v10741
  %v10743 = vand.u32 %v10742, 4294901760
  %10744 = vmatmul.f32.gmra.mxu0 %v10743
  %v10745 = vpop.f32.mrf.mxu0
  %v10746 = vadd.f32 %v9681, %v10745
  %v10747 = vand.u32 %v885, 4294901760
  %v10748 = vsub.f32 %v885, %v10747
  %v10749 = vand.u32 %v10748, 4294901760
  %10750 = vmatmul.f32.gmra.mxu0 %v10749
  %v10751 = vpop.f32.mrf.mxu0
  %v10752 = vadd.f32 %v9686, %v10751
  %v10753 = vand.u32 %v888, 4294901760
  %v10754 = vsub.f32 %v888, %v10753
  %v10755 = vand.u32 %v10754, 4294901760
  %10756 = vmatmul.f32.gmra.mxu0 %v10755
  %v10757 = vpop.f32.mrf.mxu0
  %v10758 = vadd.f32 %v9691, %v10757
  %v10759 = vand.u32 %v891, 4294901760
  %v10760 = vsub.f32 %v891, %v10759
  %v10761 = vand.u32 %v10760, 4294901760
  %10762 = vmatmul.f32.gmra.mxu0 %v10761
  %v10763 = vpop.f32.mrf.mxu0
  %v10764 = vadd.f32 %v9696, %v10763
  %v10765 = vand.u32 %v894, 4294901760
  %v10766 = vsub.f32 %v894, %v10765
  %v10767 = vand.u32 %v10766, 4294901760
  %10768 = vmatmul.f32.gmra.mxu0 %v10767
  %v10769 = vpop.f32.mrf.mxu0
  %v10770 = vadd.f32 %v9701, %v10769
  %v10771 = vand.u32 %v897, 4294901760
  %v10772 = vsub.f32 %v897, %v10771
  %v10773 = vand.u32 %v10772, 4294901760
  %10774 = vmatmul.f32.gmra.mxu0 %v10773
  %v10775 = vpop.f32.mrf.mxu0
  %v10776 = vadd.f32 %v9706, %v10775
  %v10777 = vand.u32 %v900, 4294901760
  %v10778 = vsub.f32 %v900, %v10777
  %v10779 = vand.u32 %v10778, 4294901760
  %10780 = vmatmul.f32.gmra.mxu0 %v10779
  %v10781 = vpop.f32.mrf.mxu0
  %v10782 = vadd.f32 %v9711, %v10781
  %v10783 = vand.u32 %v903, 4294901760
  %v10784 = vsub.f32 %v903, %v10783
  %v10785 = vand.u32 %v10784, 4294901760
  %10786 = vmatmul.f32.gmra.mxu0 %v10785
  %v10787 = vpop.f32.mrf.mxu0
  %v10788 = vadd.f32 %v9716, %v10787
  %v10789 = vand.u32 %v906, 4294901760
  %v10790 = vsub.f32 %v906, %v10789
  %v10791 = vand.u32 %v10790, 4294901760
  %10792 = vmatmul.f32.gmra.mxu0 %v10791
  %v10793 = vpop.f32.mrf.mxu0
  %v10794 = vadd.f32 %v9721, %v10793
  %v10795 = vand.u32 %v909, 4294901760
  %v10796 = vsub.f32 %v909, %v10795
  %v10797 = vand.u32 %v10796, 4294901760
  %10798 = vmatmul.f32.gmra.mxu0 %v10797
  %v10799 = vpop.f32.mrf.mxu0
  %v10800 = vadd.f32 %v9726, %v10799
  %10801 = vdwg.mxu0
  %10802 = vmatpush.msra.mxu0 0.0
  %10803 = vmatpush.msra.mxu0 0.0
  %10804 = vmatpush.msra.mxu0 0.0
  %v10805 = vand.u32 %v387, 4294901760
  %v10806 = vsub.f32 %v387, %v10805
  %v10807 = vand.u32 %v10806, 4294901760
  %10808 = vmatpush.msra.mxu0 %v10807
  %v10809 = vand.u32 %v386, 4294901760
  %v10810 = vsub.f32 %v386, %v10809
  %v10811 = vand.u32 %v10810, 4294901760
  %10812 = vmatpush.msra.mxu0 %v10811
  %v10813 = vand.u32 %v385, 4294901760
  %v10814 = vsub.f32 %v385, %v10813
  %v10815 = vand.u32 %v10814, 4294901760
  %10816 = vmatpush.msra.mxu0 %v10815
  %v10817 = vand.u32 %v384, 4294901760
  %v10818 = vsub.f32 %v384, %v10817
  %v10819 = vand.u32 %v10818, 4294901760
  %10820 = vmatpush.msra.mxu0 %v10819
  %v10821 = vand.u32 %v383, 4294901760
  %v10822 = vsub.f32 %v383, %v10821
  %v10823 = vand.u32 %v10822, 4294901760
  %10824 = vmatpush.msra.mxu0 %v10823
  %v10825 = vand.u32 %v382, 4294901760
  %v10826 = vsub.f32 %v382, %v10825
  %v10827 = vand.u32 %v10826, 4294901760
  %10828 = vmatpush.msra.mxu0 %v10827
  %v10829 = vand.u32 %v381, 4294901760
  %v10830 = vsub.f32 %v381, %v10829
  %v10831 = vand.u32 %v10830, 4294901760
  %10832 = vmatpush.msra.mxu0 %v10831
  %v10833 = vand.u32 %v380, 4294901760
  %v10834 = vsub.f32 %v380, %v10833
  %v10835 = vand.u32 %v10834, 4294901760
  %10836 = vmatpush.msra.mxu0 %v10835
  %v10837 = vand.u32 %v379, 4294901760
  %v10838 = vsub.f32 %v379, %v10837
  %v10839 = vand.u32 %v10838, 4294901760
  %10840 = vmatpush.msra.mxu0 %v10839
  %v10841 = vand.u32 %v378, 4294901760
  %v10842 = vsub.f32 %v378, %v10841
  %v10843 = vand.u32 %v10842, 4294901760
  %10844 = vmatpush.msra.mxu0 %v10843
  %v10845 = vand.u32 %v377, 4294901760
  %v10846 = vsub.f32 %v377, %v10845
  %v10847 = vand.u32 %v10846, 4294901760
  %10848 = vmatpush.msra.mxu0 %v10847
  %v10849 = vand.u32 %v376, 4294901760
  %v10850 = vsub.f32 %v376, %v10849
  %v10851 = vand.u32 %v10850, 4294901760
  %10852 = vmatpush.msra.mxu0 %v10851
  %v10853 = vand.u32 %v375, 4294901760
  %v10854 = vsub.f32 %v375, %v10853
  %v10855 = vand.u32 %v10854, 4294901760
  %10856 = vmatpush.msra.mxu0 %v10855
  %v10857 = vand.u32 %v390, 4294901760
  %10858 = vmatmul.f32.gmra.mxu0 %v10857
  %v10859 = vpop.f32.mrf.mxu0
  %v10860 = vadd.f32 %v9762, %v10859
  %v10861 = vand.u32 %v393, 4294901760
  %10862 = vmatmul.f32.gmra.mxu0 %v10861
  %v10863 = vpop.f32.mrf.mxu0
  %v10864 = vadd.f32 %v9768, %v10863
  %v10865 = vand.u32 %v396, 4294901760
  %10866 = vmatmul.f32.gmra.mxu0 %v10865
  %v10867 = vpop.f32.mrf.mxu0
  %v10868 = vadd.f32 %v9774, %v10867
  %v10869 = vand.u32 %v399, 4294901760
  %10870 = vmatmul.f32.gmra.mxu0 %v10869
  %v10871 = vpop.f32.mrf.mxu0
  %v10872 = vadd.f32 %v9780, %v10871
  %v10873 = vand.u32 %v402, 4294901760
  %10874 = vmatmul.f32.gmra.mxu0 %v10873
  %v10875 = vpop.f32.mrf.mxu0
  %v10876 = vadd.f32 %v9786, %v10875
  %v10877 = vand.u32 %v405, 4294901760
  %10878 = vmatmul.f32.gmra.mxu0 %v10877
  %v10879 = vpop.f32.mrf.mxu0
  %v10880 = vadd.f32 %v9792, %v10879
  %v10881 = vand.u32 %v408, 4294901760
  %10882 = vmatmul.f32.gmra.mxu0 %v10881
  %v10883 = vpop.f32.mrf.mxu0
  %v10884 = vadd.f32 %v9798, %v10883
  %v10885 = vand.u32 %v411, 4294901760
  %10886 = vmatmul.f32.gmra.mxu0 %v10885
  %v10887 = vpop.f32.mrf.mxu0
  %v10888 = vadd.f32 %v9804, %v10887
  %v10889 = vand.u32 %v414, 4294901760
  %10890 = vmatmul.f32.gmra.mxu0 %v10889
  %v10891 = vpop.f32.mrf.mxu0
  %v10892 = vadd.f32 %v9810, %v10891
  %v10893 = vand.u32 %v417, 4294901760
  %10894 = vmatmul.f32.gmra.mxu0 %v10893
  %v10895 = vpop.f32.mrf.mxu0
  %v10896 = vadd.f32 %v9816, %v10895
  %v10897 = vand.u32 %v420, 4294901760
  %10898 = vmatmul.f32.gmra.mxu0 %v10897
  %v10899 = vpop.f32.mrf.mxu0
  %v10900 = vadd.f32 %v9822, %v10899
  %v10901 = vand.u32 %v423, 4294901760
  %10902 = vmatmul.f32.gmra.mxu0 %v10901
  %v10903 = vpop.f32.mrf.mxu0
  %v10904 = vadd.f32 %v9828, %v10903
  %v10905 = vand.u32 %v426, 4294901760
  %10906 = vmatmul.f32.gmra.mxu0 %v10905
  %v10907 = vpop.f32.mrf.mxu0
  %v10908 = vadd.f32 %v9834, %v10907
  %v10909 = vand.u32 %v429, 4294901760
  %10910 = vmatmul.f32.gmra.mxu0 %v10909
  %v10911 = vpop.f32.mrf.mxu0
  %v10912 = vadd.f32 %v9840, %v10911
  %v10913 = vand.u32 %v432, 4294901760
  %10914 = vmatmul.f32.gmra.mxu0 %v10913
  %v10915 = vpop.f32.mrf.mxu0
  %v10916 = vadd.f32 %v9846, %v10915
  %v10917 = vand.u32 %v435, 4294901760
  %10918 = vmatmul.f32.gmra.mxu0 %v10917
  %v10919 = vpop.f32.mrf.mxu0
  %v10920 = vadd.f32 %v9852, %v10919
  %v10921 = vand.u32 %v438, 4294901760
  %10922 = vmatmul.f32.gmra.mxu0 %v10921
  %v10923 = vpop.f32.mrf.mxu0
  %v10924 = vadd.f32 %v9858, %v10923
  %v10925 = vand.u32 %v441, 4294901760
  %10926 = vmatmul.f32.gmra.mxu0 %v10925
  %v10927 = vpop.f32.mrf.mxu0
  %v10928 = vadd.f32 %v9864, %v10927
  %v10929 = vand.u32 %v444, 4294901760
  %10930 = vmatmul.f32.gmra.mxu0 %v10929
  %v10931 = vpop.f32.mrf.mxu0
  %v10932 = vadd.f32 %v9870, %v10931
  %v10933 = vand.u32 %v447, 4294901760
  %10934 = vmatmul.f32.gmra.mxu0 %v10933
  %v10935 = vpop.f32.mrf.mxu0
  %v10936 = vadd.f32 %v9876, %v10935
  %v10937 = vand.u32 %v450, 4294901760
  %10938 = vmatmul.f32.gmra.mxu0 %v10937
  %v10939 = vpop.f32.mrf.mxu0
  %v10940 = vadd.f32 %v9882, %v10939
  %v10941 = vand.u32 %v453, 4294901760
  %10942 = vmatmul.f32.gmra.mxu0 %v10941
  %v10943 = vpop.f32.mrf.mxu0
  %v10944 = vadd.f32 %v9888, %v10943
  %v10945 = vand.u32 %v456, 4294901760
  %10946 = vmatmul.f32.gmra.mxu0 %v10945
  %v10947 = vpop.f32.mrf.mxu0
  %v10948 = vadd.f32 %v9894, %v10947
  %v10949 = vand.u32 %v459, 4294901760
  %10950 = vmatmul.f32.gmra.mxu0 %v10949
  %v10951 = vpop.f32.mrf.mxu0
  %v10952 = vadd.f32 %v9900, %v10951
  %v10953 = vand.u32 %v462, 4294901760
  %10954 = vmatmul.f32.gmra.mxu0 %v10953
  %v10955 = vpop.f32.mrf.mxu0
  %v10956 = vadd.f32 %v9906, %v10955
  %v10957 = vand.u32 %v465, 4294901760
  %10958 = vmatmul.f32.gmra.mxu0 %v10957
  %v10959 = vpop.f32.mrf.mxu0
  %v10960 = vadd.f32 %v9912, %v10959
  %v10961 = vand.u32 %v468, 4294901760
  %10962 = vmatmul.f32.gmra.mxu0 %v10961
  %v10963 = vpop.f32.mrf.mxu0
  %v10964 = vadd.f32 %v9918, %v10963
  %v10965 = vand.u32 %v471, 4294901760
  %10966 = vmatmul.f32.gmra.mxu0 %v10965
  %v10967 = vpop.f32.mrf.mxu0
  %v10968 = vadd.f32 %v9924, %v10967
  %v10969 = vand.u32 %v474, 4294901760
  %10970 = vmatmul.f32.gmra.mxu0 %v10969
  %v10971 = vpop.f32.mrf.mxu0
  %v10972 = vadd.f32 %v9930, %v10971
  %v10973 = vand.u32 %v477, 4294901760
  %10974 = vmatmul.f32.gmra.mxu0 %v10973
  %v10975 = vpop.f32.mrf.mxu0
  %v10976 = vadd.f32 %v9936, %v10975
  %v10977 = vand.u32 %v480, 4294901760
  %10978 = vmatmul.f32.gmra.mxu0 %v10977
  %v10979 = vpop.f32.mrf.mxu0
  %v10980 = vadd.f32 %v9942, %v10979
  %v10981 = vand.u32 %v483, 4294901760
  %10982 = vmatmul.f32.gmra.mxu0 %v10981
  %v10983 = vpop.f32.mrf.mxu0
  %v10984 = vadd.f32 %v9948, %v10983
  %v10985 = vand.u32 %v486, 4294901760
  %10986 = vmatmul.f32.gmra.mxu0 %v10985
  %v10987 = vpop.f32.mrf.mxu0
  %v10988 = vadd.f32 %v9954, %v10987
  %v10989 = vand.u32 %v489, 4294901760
  %10990 = vmatmul.f32.gmra.mxu0 %v10989
  %v10991 = vpop.f32.mrf.mxu0
  %v10992 = vadd.f32 %v9960, %v10991
  %v10993 = vand.u32 %v492, 4294901760
  %10994 = vmatmul.f32.gmra.mxu0 %v10993
  %v10995 = vpop.f32.mrf.mxu0
  %v10996 = vadd.f32 %v9966, %v10995
  %v10997 = vand.u32 %v495, 4294901760
  %10998 = vmatmul.f32.gmra.mxu0 %v10997
  %v10999 = vpop.f32.mrf.mxu0
  %v11000 = vadd.f32 %v9972, %v10999
  %v11001 = vand.u32 %v498, 4294901760
  %11002 = vmatmul.f32.gmra.mxu0 %v11001
  %v11003 = vpop.f32.mrf.mxu0
  %v11004 = vadd.f32 %v9978, %v11003
  %v11005 = vand.u32 %v501, 4294901760
  %11006 = vmatmul.f32.gmra.mxu0 %v11005
  %v11007 = vpop.f32.mrf.mxu0
  %v11008 = vadd.f32 %v9984, %v11007
  %v11009 = vand.u32 %v504, 4294901760
  %11010 = vmatmul.f32.gmra.mxu0 %v11009
  %v11011 = vpop.f32.mrf.mxu0
  %v11012 = vadd.f32 %v9990, %v11011
  %v11013 = vand.u32 %v507, 4294901760
  %11014 = vmatmul.f32.gmra.mxu0 %v11013
  %v11015 = vpop.f32.mrf.mxu0
  %v11016 = vadd.f32 %v9996, %v11015
  %v11017 = vand.u32 %v510, 4294901760
  %11018 = vmatmul.f32.gmra.mxu0 %v11017
  %v11019 = vpop.f32.mrf.mxu0
  %v11020 = vadd.f32 %v10002, %v11019
  %v11021 = vand.u32 %v513, 4294901760
  %11022 = vmatmul.f32.gmra.mxu0 %v11021
  %v11023 = vpop.f32.mrf.mxu0
  %v11024 = vadd.f32 %v10008, %v11023
  %v11025 = vand.u32 %v516, 4294901760
  %11026 = vmatmul.f32.gmra.mxu0 %v11025
  %v11027 = vpop.f32.mrf.mxu0
  %v11028 = vadd.f32 %v10014, %v11027
  %v11029 = vand.u32 %v519, 4294901760
  %11030 = vmatmul.f32.gmra.mxu0 %v11029
  %v11031 = vpop.f32.mrf.mxu0
  %v11032 = vadd.f32 %v10020, %v11031
  %v11033 = vand.u32 %v522, 4294901760
  %11034 = vmatmul.f32.gmra.mxu0 %v11033
  %v11035 = vpop.f32.mrf.mxu0
  %v11036 = vadd.f32 %v10026, %v11035
  %v11037 = vand.u32 %v525, 4294901760
  %11038 = vmatmul.f32.gmra.mxu0 %v11037
  %v11039 = vpop.f32.mrf.mxu0
  %v11040 = vadd.f32 %v10032, %v11039
  %v11041 = vand.u32 %v528, 4294901760
  %11042 = vmatmul.f32.gmra.mxu0 %v11041
  %v11043 = vpop.f32.mrf.mxu0
  %v11044 = vadd.f32 %v10038, %v11043
  %v11045 = vand.u32 %v531, 4294901760
  %11046 = vmatmul.f32.gmra.mxu0 %v11045
  %v11047 = vpop.f32.mrf.mxu0
  %v11048 = vadd.f32 %v10044, %v11047
  %v11049 = vand.u32 %v534, 4294901760
  %11050 = vmatmul.f32.gmra.mxu0 %v11049
  %v11051 = vpop.f32.mrf.mxu0
  %v11052 = vadd.f32 %v10050, %v11051
  %v11053 = vand.u32 %v537, 4294901760
  %11054 = vmatmul.f32.gmra.mxu0 %v11053
  %v11055 = vpop.f32.mrf.mxu0
  %v11056 = vadd.f32 %v10056, %v11055
  %v11057 = vand.u32 %v540, 4294901760
  %11058 = vmatmul.f32.gmra.mxu0 %v11057
  %v11059 = vpop.f32.mrf.mxu0
  %v11060 = vadd.f32 %v10062, %v11059
  %v11061 = vand.u32 %v543, 4294901760
  %11062 = vmatmul.f32.gmra.mxu0 %v11061
  %v11063 = vpop.f32.mrf.mxu0
  %v11064 = vadd.f32 %v10068, %v11063
  %v11065 = vand.u32 %v546, 4294901760
  %11066 = vmatmul.f32.gmra.mxu0 %v11065
  %v11067 = vpop.f32.mrf.mxu0
  %v11068 = vadd.f32 %v10074, %v11067
  %v11069 = vand.u32 %v549, 4294901760
  %11070 = vmatmul.f32.gmra.mxu0 %v11069
  %v11071 = vpop.f32.mrf.mxu0
  %v11072 = vadd.f32 %v10080, %v11071
  %v11073 = vand.u32 %v552, 4294901760
  %11074 = vmatmul.f32.gmra.mxu0 %v11073
  %v11075 = vpop.f32.mrf.mxu0
  %v11076 = vadd.f32 %v10086, %v11075
  %v11077 = vand.u32 %v555, 4294901760
  %11078 = vmatmul.f32.gmra.mxu0 %v11077
  %v11079 = vpop.f32.mrf.mxu0
  %v11080 = vadd.f32 %v10092, %v11079
  %v11081 = vand.u32 %v558, 4294901760
  %11082 = vmatmul.f32.gmra.mxu0 %v11081
  %v11083 = vpop.f32.mrf.mxu0
  %v11084 = vadd.f32 %v10098, %v11083
  %v11085 = vand.u32 %v561, 4294901760
  %11086 = vmatmul.f32.gmra.mxu0 %v11085
  %v11087 = vpop.f32.mrf.mxu0
  %v11088 = vadd.f32 %v10104, %v11087
  %v11089 = vand.u32 %v564, 4294901760
  %11090 = vmatmul.f32.gmra.mxu0 %v11089
  %v11091 = vpop.f32.mrf.mxu0
  %v11092 = vadd.f32 %v10110, %v11091
  %v11093 = vand.u32 %v567, 4294901760
  %11094 = vmatmul.f32.gmra.mxu0 %v11093
  %v11095 = vpop.f32.mrf.mxu0
  %v11096 = vadd.f32 %v10116, %v11095
  %v11097 = vand.u32 %v570, 4294901760
  %11098 = vmatmul.f32.gmra.mxu0 %v11097
  %v11099 = vpop.f32.mrf.mxu0
  %v11100 = vadd.f32 %v10122, %v11099
  %v11101 = vand.u32 %v573, 4294901760
  %11102 = vmatmul.f32.gmra.mxu0 %v11101
  %v11103 = vpop.f32.mrf.mxu0
  %v11104 = vadd.f32 %v10128, %v11103
  %v11105 = vand.u32 %v576, 4294901760
  %11106 = vmatmul.f32.gmra.mxu0 %v11105
  %v11107 = vpop.f32.mrf.mxu0
  %v11108 = vadd.f32 %v10134, %v11107
  %v11109 = vand.u32 %v579, 4294901760
  %11110 = vmatmul.f32.gmra.mxu0 %v11109
  %v11111 = vpop.f32.mrf.mxu0
  %v11112 = vadd.f32 %v10140, %v11111
  %v11113 = vand.u32 %v582, 4294901760
  %11114 = vmatmul.f32.gmra.mxu0 %v11113
  %v11115 = vpop.f32.mrf.mxu0
  %v11116 = vadd.f32 %v10146, %v11115
  %v11117 = vand.u32 %v585, 4294901760
  %11118 = vmatmul.f32.gmra.mxu0 %v11117
  %v11119 = vpop.f32.mrf.mxu0
  %v11120 = vadd.f32 %v10152, %v11119
  %v11121 = vand.u32 %v588, 4294901760
  %11122 = vmatmul.f32.gmra.mxu0 %v11121
  %v11123 = vpop.f32.mrf.mxu0
  %v11124 = vadd.f32 %v10158, %v11123
  %v11125 = vand.u32 %v591, 4294901760
  %11126 = vmatmul.f32.gmra.mxu0 %v11125
  %v11127 = vpop.f32.mrf.mxu0
  %v11128 = vadd.f32 %v10164, %v11127
  %v11129 = vand.u32 %v594, 4294901760
  %11130 = vmatmul.f32.gmra.mxu0 %v11129
  %v11131 = vpop.f32.mrf.mxu0
  %v11132 = vadd.f32 %v10170, %v11131
  %v11133 = vand.u32 %v597, 4294901760
  %11134 = vmatmul.f32.gmra.mxu0 %v11133
  %v11135 = vpop.f32.mrf.mxu0
  %v11136 = vadd.f32 %v10176, %v11135
  %v11137 = vand.u32 %v600, 4294901760
  %11138 = vmatmul.f32.gmra.mxu0 %v11137
  %v11139 = vpop.f32.mrf.mxu0
  %v11140 = vadd.f32 %v10182, %v11139
  %v11141 = vand.u32 %v603, 4294901760
  %11142 = vmatmul.f32.gmra.mxu0 %v11141
  %v11143 = vpop.f32.mrf.mxu0
  %v11144 = vadd.f32 %v10188, %v11143
  %v11145 = vand.u32 %v606, 4294901760
  %11146 = vmatmul.f32.gmra.mxu0 %v11145
  %v11147 = vpop.f32.mrf.mxu0
  %v11148 = vadd.f32 %v10194, %v11147
  %v11149 = vand.u32 %v609, 4294901760
  %11150 = vmatmul.f32.gmra.mxu0 %v11149
  %v11151 = vpop.f32.mrf.mxu0
  %v11152 = vadd.f32 %v10200, %v11151
  %v11153 = vand.u32 %v612, 4294901760
  %11154 = vmatmul.f32.gmra.mxu0 %v11153
  %v11155 = vpop.f32.mrf.mxu0
  %v11156 = vadd.f32 %v10206, %v11155
  %v11157 = vand.u32 %v615, 4294901760
  %11158 = vmatmul.f32.gmra.mxu0 %v11157
  %v11159 = vpop.f32.mrf.mxu0
  %v11160 = vadd.f32 %v10212, %v11159
  %v11161 = vand.u32 %v618, 4294901760
  %11162 = vmatmul.f32.gmra.mxu0 %v11161
  %v11163 = vpop.f32.mrf.mxu0
  %v11164 = vadd.f32 %v10218, %v11163
  %v11165 = vand.u32 %v621, 4294901760
  %11166 = vmatmul.f32.gmra.mxu0 %v11165
  %v11167 = vpop.f32.mrf.mxu0
  %v11168 = vadd.f32 %v10224, %v11167
  %v11169 = vand.u32 %v624, 4294901760
  %11170 = vmatmul.f32.gmra.mxu0 %v11169
  %v11171 = vpop.f32.mrf.mxu0
  %v11172 = vadd.f32 %v10230, %v11171
  %v11173 = vand.u32 %v627, 4294901760
  %11174 = vmatmul.f32.gmra.mxu0 %v11173
  %v11175 = vpop.f32.mrf.mxu0
  %v11176 = vadd.f32 %v10236, %v11175
  %v11177 = vand.u32 %v630, 4294901760
  %11178 = vmatmul.f32.gmra.mxu0 %v11177
  %v11179 = vpop.f32.mrf.mxu0
  %v11180 = vadd.f32 %v10242, %v11179
  %v11181 = vand.u32 %v633, 4294901760
  %11182 = vmatmul.f32.gmra.mxu0 %v11181
  %v11183 = vpop.f32.mrf.mxu0
  %v11184 = vadd.f32 %v10248, %v11183
  %v11185 = vand.u32 %v636, 4294901760
  %11186 = vmatmul.f32.gmra.mxu0 %v11185
  %v11187 = vpop.f32.mrf.mxu0
  %v11188 = vadd.f32 %v10254, %v11187
  %v11189 = vand.u32 %v639, 4294901760
  %11190 = vmatmul.f32.gmra.mxu0 %v11189
  %v11191 = vpop.f32.mrf.mxu0
  %v11192 = vadd.f32 %v10260, %v11191
  %v11193 = vand.u32 %v642, 4294901760
  %11194 = vmatmul.f32.gmra.mxu0 %v11193
  %v11195 = vpop.f32.mrf.mxu0
  %v11196 = vadd.f32 %v10266, %v11195
  %v11197 = vand.u32 %v645, 4294901760
  %11198 = vmatmul.f32.gmra.mxu0 %v11197
  %v11199 = vpop.f32.mrf.mxu0
  %v11200 = vadd.f32 %v10272, %v11199
  %v11201 = vand.u32 %v648, 4294901760
  %11202 = vmatmul.f32.gmra.mxu0 %v11201
  %v11203 = vpop.f32.mrf.mxu0
  %v11204 = vadd.f32 %v10278, %v11203
  %v11205 = vand.u32 %v651, 4294901760
  %11206 = vmatmul.f32.gmra.mxu0 %v11205
  %v11207 = vpop.f32.mrf.mxu0
  %v11208 = vadd.f32 %v10284, %v11207
  %v11209 = vand.u32 %v654, 4294901760
  %11210 = vmatmul.f32.gmra.mxu0 %v11209
  %v11211 = vpop.f32.mrf.mxu0
  %v11212 = vadd.f32 %v10290, %v11211
  %v11213 = vand.u32 %v657, 4294901760
  %11214 = vmatmul.f32.gmra.mxu0 %v11213
  %v11215 = vpop.f32.mrf.mxu0
  %v11216 = vadd.f32 %v10296, %v11215
  %v11217 = vand.u32 %v660, 4294901760
  %11218 = vmatmul.f32.gmra.mxu0 %v11217
  %v11219 = vpop.f32.mrf.mxu0
  %v11220 = vadd.f32 %v10302, %v11219
  %v11221 = vand.u32 %v663, 4294901760
  %11222 = vmatmul.f32.gmra.mxu0 %v11221
  %v11223 = vpop.f32.mrf.mxu0
  %v11224 = vadd.f32 %v10308, %v11223
  %v11225 = vand.u32 %v666, 4294901760
  %11226 = vmatmul.f32.gmra.mxu0 %v11225
  %v11227 = vpop.f32.mrf.mxu0
  %v11228 = vadd.f32 %v10314, %v11227
  %v11229 = vand.u32 %v669, 4294901760
  %11230 = vmatmul.f32.gmra.mxu0 %v11229
  %v11231 = vpop.f32.mrf.mxu0
  %v11232 = vadd.f32 %v10320, %v11231
  %v11233 = vand.u32 %v672, 4294901760
  %11234 = vmatmul.f32.gmra.mxu0 %v11233
  %v11235 = vpop.f32.mrf.mxu0
  %v11236 = vadd.f32 %v10326, %v11235
  %v11237 = vand.u32 %v675, 4294901760
  %11238 = vmatmul.f32.gmra.mxu0 %v11237
  %v11239 = vpop.f32.mrf.mxu0
  %v11240 = vadd.f32 %v10332, %v11239
  %v11241 = vand.u32 %v678, 4294901760
  %11242 = vmatmul.f32.gmra.mxu0 %v11241
  %v11243 = vpop.f32.mrf.mxu0
  %v11244 = vadd.f32 %v10338, %v11243
  %v11245 = vand.u32 %v681, 4294901760
  %11246 = vmatmul.f32.gmra.mxu0 %v11245
  %v11247 = vpop.f32.mrf.mxu0
  %v11248 = vadd.f32 %v10344, %v11247
  %v11249 = vand.u32 %v684, 4294901760
  %11250 = vmatmul.f32.gmra.mxu0 %v11249
  %v11251 = vpop.f32.mrf.mxu0
  %v11252 = vadd.f32 %v10350, %v11251
  %v11253 = vand.u32 %v687, 4294901760
  %11254 = vmatmul.f32.gmra.mxu0 %v11253
  %v11255 = vpop.f32.mrf.mxu0
  %v11256 = vadd.f32 %v10356, %v11255
  %v11257 = vand.u32 %v690, 4294901760
  %11258 = vmatmul.f32.gmra.mxu0 %v11257
  %v11259 = vpop.f32.mrf.mxu0
  %v11260 = vadd.f32 %v10362, %v11259
  %v11261 = vand.u32 %v693, 4294901760
  %11262 = vmatmul.f32.gmra.mxu0 %v11261
  %v11263 = vpop.f32.mrf.mxu0
  %v11264 = vadd.f32 %v10368, %v11263
  %v11265 = vand.u32 %v696, 4294901760
  %11266 = vmatmul.f32.gmra.mxu0 %v11265
  %v11267 = vpop.f32.mrf.mxu0
  %v11268 = vadd.f32 %v10374, %v11267
  %v11269 = vand.u32 %v699, 4294901760
  %11270 = vmatmul.f32.gmra.mxu0 %v11269
  %v11271 = vpop.f32.mrf.mxu0
  %v11272 = vadd.f32 %v10380, %v11271
  %v11273 = vand.u32 %v702, 4294901760
  %11274 = vmatmul.f32.gmra.mxu0 %v11273
  %v11275 = vpop.f32.mrf.mxu0
  %v11276 = vadd.f32 %v10386, %v11275
  %v11277 = vand.u32 %v705, 4294901760
  %11278 = vmatmul.f32.gmra.mxu0 %v11277
  %v11279 = vpop.f32.mrf.mxu0
  %v11280 = vadd.f32 %v10392, %v11279
  %v11281 = vand.u32 %v708, 4294901760
  %11282 = vmatmul.f32.gmra.mxu0 %v11281
  %v11283 = vpop.f32.mrf.mxu0
  %v11284 = vadd.f32 %v10398, %v11283
  %v11285 = vand.u32 %v711, 4294901760
  %11286 = vmatmul.f32.gmra.mxu0 %v11285
  %v11287 = vpop.f32.mrf.mxu0
  %v11288 = vadd.f32 %v10404, %v11287
  %v11289 = vand.u32 %v714, 4294901760
  %11290 = vmatmul.f32.gmra.mxu0 %v11289
  %v11291 = vpop.f32.mrf.mxu0
  %v11292 = vadd.f32 %v10410, %v11291
  %v11293 = vand.u32 %v717, 4294901760
  %11294 = vmatmul.f32.gmra.mxu0 %v11293
  %v11295 = vpop.f32.mrf.mxu0
  %v11296 = vadd.f32 %v10416, %v11295
  %v11297 = vand.u32 %v720, 4294901760
  %11298 = vmatmul.f32.gmra.mxu0 %v11297
  %v11299 = vpop.f32.mrf.mxu0
  %v11300 = vadd.f32 %v10422, %v11299
  %v11301 = vand.u32 %v723, 4294901760
  %11302 = vmatmul.f32.gmra.mxu0 %v11301
  %v11303 = vpop.f32.mrf.mxu0
  %v11304 = vadd.f32 %v10428, %v11303
  %v11305 = vand.u32 %v726, 4294901760
  %11306 = vmatmul.f32.gmra.mxu0 %v11305
  %v11307 = vpop.f32.mrf.mxu0
  %v11308 = vadd.f32 %v10434, %v11307
  %v11309 = vand.u32 %v729, 4294901760
  %11310 = vmatmul.f32.gmra.mxu0 %v11309
  %v11311 = vpop.f32.mrf.mxu0
  %v11312 = vadd.f32 %v10440, %v11311
  %v11313 = vand.u32 %v732, 4294901760
  %11314 = vmatmul.f32.gmra.mxu0 %v11313
  %v11315 = vpop.f32.mrf.mxu0
  %v11316 = vadd.f32 %v10446, %v11315
  %v11317 = vand.u32 %v735, 4294901760
  %11318 = vmatmul.f32.gmra.mxu0 %v11317
  %v11319 = vpop.f32.mrf.mxu0
  %v11320 = vadd.f32 %v10452, %v11319
  %v11321 = vand.u32 %v738, 4294901760
  %11322 = vmatmul.f32.gmra.mxu0 %v11321
  %v11323 = vpop.f32.mrf.mxu0
  %v11324 = vadd.f32 %v10458, %v11323
  %v11325 = vand.u32 %v741, 4294901760
  %11326 = vmatmul.f32.gmra.mxu0 %v11325
  %v11327 = vpop.f32.mrf.mxu0
  %v11328 = vadd.f32 %v10464, %v11327
  %v11329 = vand.u32 %v744, 4294901760
  %11330 = vmatmul.f32.gmra.mxu0 %v11329
  %v11331 = vpop.f32.mrf.mxu0
  %v11332 = vadd.f32 %v10470, %v11331
  %v11333 = vand.u32 %v747, 4294901760
  %11334 = vmatmul.f32.gmra.mxu0 %v11333
  %v11335 = vpop.f32.mrf.mxu0
  %v11336 = vadd.f32 %v10476, %v11335
  %v11337 = vand.u32 %v750, 4294901760
  %11338 = vmatmul.f32.gmra.mxu0 %v11337
  %v11339 = vpop.f32.mrf.mxu0
  %v11340 = vadd.f32 %v10482, %v11339
  %v11341 = vand.u32 %v753, 4294901760
  %11342 = vmatmul.f32.gmra.mxu0 %v11341
  %v11343 = vpop.f32.mrf.mxu0
  %v11344 = vadd.f32 %v10488, %v11343
  %v11345 = vand.u32 %v756, 4294901760
  %11346 = vmatmul.f32.gmra.mxu0 %v11345
  %v11347 = vpop.f32.mrf.mxu0
  %v11348 = vadd.f32 %v10494, %v11347
  %v11349 = vand.u32 %v759, 4294901760
  %11350 = vmatmul.f32.gmra.mxu0 %v11349
  %v11351 = vpop.f32.mrf.mxu0
  %v11352 = vadd.f32 %v10500, %v11351
  %v11353 = vand.u32 %v762, 4294901760
  %11354 = vmatmul.f32.gmra.mxu0 %v11353
  %v11355 = vpop.f32.mrf.mxu0
  %v11356 = vadd.f32 %v10506, %v11355
  %v11357 = vand.u32 %v765, 4294901760
  %11358 = vmatmul.f32.gmra.mxu0 %v11357
  %v11359 = vpop.f32.mrf.mxu0
  %v11360 = vadd.f32 %v10512, %v11359
  %v11361 = vand.u32 %v768, 4294901760
  %11362 = vmatmul.f32.gmra.mxu0 %v11361
  %v11363 = vpop.f32.mrf.mxu0
  %v11364 = vadd.f32 %v10518, %v11363
  %v11365 = vand.u32 %v771, 4294901760
  %11366 = vmatmul.f32.gmra.mxu0 %v11365
  %v11367 = vpop.f32.mrf.mxu0
  %v11368 = vadd.f32 %v10524, %v11367
  %v11369 = vand.u32 %v774, 4294901760
  %11370 = vmatmul.f32.gmra.mxu0 %v11369
  %v11371 = vpop.f32.mrf.mxu0
  %v11372 = vadd.f32 %v10530, %v11371
  %v11373 = vand.u32 %v777, 4294901760
  %11374 = vmatmul.f32.gmra.mxu0 %v11373
  %v11375 = vpop.f32.mrf.mxu0
  %v11376 = vadd.f32 %v10536, %v11375
  %v11377 = vand.u32 %v780, 4294901760
  %11378 = vmatmul.f32.gmra.mxu0 %v11377
  %v11379 = vpop.f32.mrf.mxu0
  %v11380 = vadd.f32 %v10542, %v11379
  %v11381 = vand.u32 %v783, 4294901760
  %11382 = vmatmul.f32.gmra.mxu0 %v11381
  %v11383 = vpop.f32.mrf.mxu0
  %v11384 = vadd.f32 %v10548, %v11383
  %v11385 = vand.u32 %v786, 4294901760
  %11386 = vmatmul.f32.gmra.mxu0 %v11385
  %v11387 = vpop.f32.mrf.mxu0
  %v11388 = vadd.f32 %v10554, %v11387
  %v11389 = vand.u32 %v789, 4294901760
  %11390 = vmatmul.f32.gmra.mxu0 %v11389
  %v11391 = vpop.f32.mrf.mxu0
  %v11392 = vadd.f32 %v10560, %v11391
  %v11393 = vand.u32 %v792, 4294901760
  %11394 = vmatmul.f32.gmra.mxu0 %v11393
  %v11395 = vpop.f32.mrf.mxu0
  %v11396 = vadd.f32 %v10566, %v11395
  %v11397 = vand.u32 %v795, 4294901760
  %11398 = vmatmul.f32.gmra.mxu0 %v11397
  %v11399 = vpop.f32.mrf.mxu0
  %v11400 = vadd.f32 %v10572, %v11399
  %v11401 = vand.u32 %v798, 4294901760
  %11402 = vmatmul.f32.gmra.mxu0 %v11401
  %v11403 = vpop.f32.mrf.mxu0
  %v11404 = vadd.f32 %v10578, %v11403
  %v11405 = vand.u32 %v801, 4294901760
  %11406 = vmatmul.f32.gmra.mxu0 %v11405
  %v11407 = vpop.f32.mrf.mxu0
  %v11408 = vadd.f32 %v10584, %v11407
  %v11409 = vand.u32 %v804, 4294901760
  %11410 = vmatmul.f32.gmra.mxu0 %v11409
  %v11411 = vpop.f32.mrf.mxu0
  %v11412 = vadd.f32 %v10590, %v11411
  %v11413 = vand.u32 %v807, 4294901760
  %11414 = vmatmul.f32.gmra.mxu0 %v11413
  %v11415 = vpop.f32.mrf.mxu0
  %v11416 = vadd.f32 %v10596, %v11415
  %v11417 = vand.u32 %v810, 4294901760
  %11418 = vmatmul.f32.gmra.mxu0 %v11417
  %v11419 = vpop.f32.mrf.mxu0
  %v11420 = vadd.f32 %v10602, %v11419
  %v11421 = vand.u32 %v813, 4294901760
  %11422 = vmatmul.f32.gmra.mxu0 %v11421
  %v11423 = vpop.f32.mrf.mxu0
  %v11424 = vadd.f32 %v10608, %v11423
  %v11425 = vand.u32 %v816, 4294901760
  %11426 = vmatmul.f32.gmra.mxu0 %v11425
  %v11427 = vpop.f32.mrf.mxu0
  %v11428 = vadd.f32 %v10614, %v11427
  %v11429 = vand.u32 %v819, 4294901760
  %11430 = vmatmul.f32.gmra.mxu0 %v11429
  %v11431 = vpop.f32.mrf.mxu0
  %v11432 = vadd.f32 %v10620, %v11431
  %v11433 = vand.u32 %v822, 4294901760
  %11434 = vmatmul.f32.gmra.mxu0 %v11433
  %v11435 = vpop.f32.mrf.mxu0
  %v11436 = vadd.f32 %v10626, %v11435
  %v11437 = vand.u32 %v825, 4294901760
  %11438 = vmatmul.f32.gmra.mxu0 %v11437
  %v11439 = vpop.f32.mrf.mxu0
  %v11440 = vadd.f32 %v10632, %v11439
  %v11441 = vand.u32 %v828, 4294901760
  %11442 = vmatmul.f32.gmra.mxu0 %v11441
  %v11443 = vpop.f32.mrf.mxu0
  %v11444 = vadd.f32 %v10638, %v11443
  %v11445 = vand.u32 %v831, 4294901760
  %11446 = vmatmul.f32.gmra.mxu0 %v11445
  %v11447 = vpop.f32.mrf.mxu0
  %v11448 = vadd.f32 %v10644, %v11447
  %v11449 = vand.u32 %v834, 4294901760
  %11450 = vmatmul.f32.gmra.mxu0 %v11449
  %v11451 = vpop.f32.mrf.mxu0
  %v11452 = vadd.f32 %v10650, %v11451
  %v11453 = vand.u32 %v837, 4294901760
  %11454 = vmatmul.f32.gmra.mxu0 %v11453
  %v11455 = vpop.f32.mrf.mxu0
  %v11456 = vadd.f32 %v10656, %v11455
  %v11457 = vand.u32 %v840, 4294901760
  %11458 = vmatmul.f32.gmra.mxu0 %v11457
  %v11459 = vpop.f32.mrf.mxu0
  %v11460 = vadd.f32 %v10662, %v11459
  %v11461 = vand.u32 %v843, 4294901760
  %11462 = vmatmul.f32.gmra.mxu0 %v11461
  %v11463 = vpop.f32.mrf.mxu0
  %v11464 = vadd.f32 %v10668, %v11463
  %v11465 = vand.u32 %v846, 4294901760
  %11466 = vmatmul.f32.gmra.mxu0 %v11465
  %v11467 = vpop.f32.mrf.mxu0
  %v11468 = vadd.f32 %v10674, %v11467
  %v11469 = vand.u32 %v849, 4294901760
  %11470 = vmatmul.f32.gmra.mxu0 %v11469
  %v11471 = vpop.f32.mrf.mxu0
  %v11472 = vadd.f32 %v10680, %v11471
  %v11473 = vand.u32 %v852, 4294901760
  %11474 = vmatmul.f32.gmra.mxu0 %v11473
  %v11475 = vpop.f32.mrf.mxu0
  %v11476 = vadd.f32 %v10686, %v11475
  %v11477 = vand.u32 %v855, 4294901760
  %11478 = vmatmul.f32.gmra.mxu0 %v11477
  %v11479 = vpop.f32.mrf.mxu0
  %v11480 = vadd.f32 %v10692, %v11479
  %v11481 = vand.u32 %v858, 4294901760
  %11482 = vmatmul.f32.gmra.mxu0 %v11481
  %v11483 = vpop.f32.mrf.mxu0
  %v11484 = vadd.f32 %v10698, %v11483
  %v11485 = vand.u32 %v861, 4294901760
  %11486 = vmatmul.f32.gmra.mxu0 %v11485
  %v11487 = vpop.f32.mrf.mxu0
  %v11488 = vadd.f32 %v10704, %v11487
  %v11489 = vand.u32 %v864, 4294901760
  %11490 = vmatmul.f32.gmra.mxu0 %v11489
  %v11491 = vpop.f32.mrf.mxu0
  %v11492 = vadd.f32 %v10710, %v11491
  %v11493 = vand.u32 %v867, 4294901760
  %11494 = vmatmul.f32.gmra.mxu0 %v11493
  %v11495 = vpop.f32.mrf.mxu0
  %v11496 = vadd.f32 %v10716, %v11495
  %v11497 = vand.u32 %v870, 4294901760
  %11498 = vmatmul.f32.gmra.mxu0 %v11497
  %v11499 = vpop.f32.mrf.mxu0
  %v11500 = vadd.f32 %v10722, %v11499
  %v11501 = vand.u32 %v873, 4294901760
  %11502 = vmatmul.f32.gmra.mxu0 %v11501
  %v11503 = vpop.f32.mrf.mxu0
  %v11504 = vadd.f32 %v10728, %v11503
  %v11505 = vand.u32 %v876, 4294901760
  %11506 = vmatmul.f32.gmra.mxu0 %v11505
  %v11507 = vpop.f32.mrf.mxu0
  %v11508 = vadd.f32 %v10734, %v11507
  %v11509 = vand.u32 %v879, 4294901760
  %11510 = vmatmul.f32.gmra.mxu0 %v11509
  %v11511 = vpop.f32.mrf.mxu0
  %v11512 = vadd.f32 %v10740, %v11511
  %v11513 = vand.u32 %v882, 4294901760
  %11514 = vmatmul.f32.gmra.mxu0 %v11513
  %v11515 = vpop.f32.mrf.mxu0
  %v11516 = vadd.f32 %v10746, %v11515
  %v11517 = vand.u32 %v885, 4294901760
  %11518 = vmatmul.f32.gmra.mxu0 %v11517
  %v11519 = vpop.f32.mrf.mxu0
  %v11520 = vadd.f32 %v10752, %v11519
  %v11521 = vand.u32 %v888, 4294901760
  %11522 = vmatmul.f32.gmra.mxu0 %v11521
  %v11523 = vpop.f32.mrf.mxu0
  %v11524 = vadd.f32 %v10758, %v11523
  %v11525 = vand.u32 %v891, 4294901760
  %11526 = vmatmul.f32.gmra.mxu0 %v11525
  %v11527 = vpop.f32.mrf.mxu0
  %v11528 = vadd.f32 %v10764, %v11527
  %v11529 = vand.u32 %v894, 4294901760
  %11530 = vmatmul.f32.gmra.mxu0 %v11529
  %v11531 = vpop.f32.mrf.mxu0
  %v11532 = vadd.f32 %v10770, %v11531
  %v11533 = vand.u32 %v897, 4294901760
  %11534 = vmatmul.f32.gmra.mxu0 %v11533
  %v11535 = vpop.f32.mrf.mxu0
  %v11536 = vadd.f32 %v10776, %v11535
  %v11537 = vand.u32 %v900, 4294901760
  %11538 = vmatmul.f32.gmra.mxu0 %v11537
  %v11539 = vpop.f32.mrf.mxu0
  %v11540 = vadd.f32 %v10782, %v11539
  %v11541 = vand.u32 %v903, 4294901760
  %11542 = vmatmul.f32.gmra.mxu0 %v11541
  %v11543 = vpop.f32.mrf.mxu0
  %v11544 = vadd.f32 %v10788, %v11543
  %v11545 = vand.u32 %v906, 4294901760
  %11546 = vmatmul.f32.gmra.mxu0 %v11545
  %v11547 = vpop.f32.mrf.mxu0
  %v11548 = vadd.f32 %v10794, %v11547
  %v11549 = vand.u32 %v909, 4294901760
  %11550 = vmatmul.f32.gmra.mxu0 %v11549
  %v11551 = vpop.f32.mrf.mxu0
  %v11552 = vadd.f32 %v10800, %v11551
  %11553 = vdwg.mxu0
  %11554 = vmatpush.msra.mxu0 0.0
  %11555 = vmatpush.msra.mxu0 0.0
  %11556 = vmatpush.msra.mxu0 0.0
  %v11557 = vand.u32 %v387, 4294901760
  %11558 = vmatpush.msra.mxu0 %v11557
  %v11559 = vand.u32 %v386, 4294901760
  %11560 = vmatpush.msra.mxu0 %v11559
  %v11561 = vand.u32 %v385, 4294901760
  %11562 = vmatpush.msra.mxu0 %v11561
  %v11563 = vand.u32 %v384, 4294901760
  %11564 = vmatpush.msra.mxu0 %v11563
  %v11565 = vand.u32 %v383, 4294901760
  %11566 = vmatpush.msra.mxu0 %v11565
  %v11567 = vand.u32 %v382, 4294901760
  %11568 = vmatpush.msra.mxu0 %v11567
  %v11569 = vand.u32 %v381, 4294901760
  %11570 = vmatpush.msra.mxu0 %v11569
  %v11571 = vand.u32 %v380, 4294901760
  %11572 = vmatpush.msra.mxu0 %v11571
  %v11573 = vand.u32 %v379, 4294901760
  %11574 = vmatpush.msra.mxu0 %v11573
  %v11575 = vand.u32 %v378, 4294901760
  %11576 = vmatpush.msra.mxu0 %v11575
  %v11577 = vand.u32 %v377, 4294901760
  %11578 = vmatpush.msra.mxu0 %v11577
  %v11579 = vand.u32 %v376, 4294901760
  %11580 = vmatpush.msra.mxu0 %v11579
  %v11581 = vand.u32 %v375, 4294901760
  %11582 = vmatpush.msra.mxu0 %v11581
  %v11583 = vand.u32 %v390, 4294901760
  %11584 = vmatmul.f32.gmra.mxu0 %v11583
  %v11585 = vpop.f32.mrf.mxu0
  %v11586 = vadd.f32 %v10860, %v11585
  %v11587 = vand.u32 %v393, 4294901760
  %11588 = vmatmul.f32.gmra.mxu0 %v11587
  %v11589 = vpop.f32.mrf.mxu0
  %v11590 = vadd.f32 %v10864, %v11589
  %v11591 = vand.u32 %v396, 4294901760
  %11592 = vmatmul.f32.gmra.mxu0 %v11591
  %v11593 = vpop.f32.mrf.mxu0
  %v11594 = vadd.f32 %v10868, %v11593
  %v11595 = vand.u32 %v399, 4294901760
  %11596 = vmatmul.f32.gmra.mxu0 %v11595
  %v11597 = vpop.f32.mrf.mxu0
  %v11598 = vadd.f32 %v10872, %v11597
  %v11599 = vand.u32 %v402, 4294901760
  %11600 = vmatmul.f32.gmra.mxu0 %v11599
  %v11601 = vpop.f32.mrf.mxu0
  %v11602 = vadd.f32 %v10876, %v11601
  %v11603 = vand.u32 %v405, 4294901760
  %11604 = vmatmul.f32.gmra.mxu0 %v11603
  %v11605 = vpop.f32.mrf.mxu0
  %v11606 = vadd.f32 %v10880, %v11605
  %v11607 = vand.u32 %v408, 4294901760
  %11608 = vmatmul.f32.gmra.mxu0 %v11607
  %v11609 = vpop.f32.mrf.mxu0
  %v11610 = vadd.f32 %v10884, %v11609
  %v11611 = vand.u32 %v411, 4294901760
  %11612 = vmatmul.f32.gmra.mxu0 %v11611
  %v11613 = vpop.f32.mrf.mxu0
  %v11614 = vadd.f32 %v10888, %v11613
  %v11615 = vand.u32 %v414, 4294901760
  %11616 = vmatmul.f32.gmra.mxu0 %v11615
  %v11617 = vpop.f32.mrf.mxu0
  %v11618 = vadd.f32 %v10892, %v11617
  %v11619 = vand.u32 %v417, 4294901760
  %11620 = vmatmul.f32.gmra.mxu0 %v11619
  %v11621 = vpop.f32.mrf.mxu0
  %v11622 = vadd.f32 %v10896, %v11621
  %v11623 = vand.u32 %v420, 4294901760
  %11624 = vmatmul.f32.gmra.mxu0 %v11623
  %v11625 = vpop.f32.mrf.mxu0
  %v11626 = vadd.f32 %v10900, %v11625
  %v11627 = vand.u32 %v423, 4294901760
  %11628 = vmatmul.f32.gmra.mxu0 %v11627
  %v11629 = vpop.f32.mrf.mxu0
  %v11630 = vadd.f32 %v10904, %v11629
  %v11631 = vand.u32 %v426, 4294901760
  %11632 = vmatmul.f32.gmra.mxu0 %v11631
  %v11633 = vpop.f32.mrf.mxu0
  %v11634 = vadd.f32 %v10908, %v11633
  %v11635 = vand.u32 %v429, 4294901760
  %11636 = vmatmul.f32.gmra.mxu0 %v11635
  %v11637 = vpop.f32.mrf.mxu0
  %v11638 = vadd.f32 %v10912, %v11637
  %v11639 = vand.u32 %v432, 4294901760
  %11640 = vmatmul.f32.gmra.mxu0 %v11639
  %v11641 = vpop.f32.mrf.mxu0
  %v11642 = vadd.f32 %v10916, %v11641
  %v11643 = vand.u32 %v435, 4294901760
  %11644 = vmatmul.f32.gmra.mxu0 %v11643
  %v11645 = vpop.f32.mrf.mxu0
  %v11646 = vadd.f32 %v10920, %v11645
  %v11647 = vand.u32 %v438, 4294901760
  %11648 = vmatmul.f32.gmra.mxu0 %v11647
  %v11649 = vpop.f32.mrf.mxu0
  %v11650 = vadd.f32 %v10924, %v11649
  %v11651 = vand.u32 %v441, 4294901760
  %11652 = vmatmul.f32.gmra.mxu0 %v11651
  %v11653 = vpop.f32.mrf.mxu0
  %v11654 = vadd.f32 %v10928, %v11653
  %v11655 = vand.u32 %v444, 4294901760
  %11656 = vmatmul.f32.gmra.mxu0 %v11655
  %v11657 = vpop.f32.mrf.mxu0
  %v11658 = vadd.f32 %v10932, %v11657
  %v11659 = vand.u32 %v447, 4294901760
  %11660 = vmatmul.f32.gmra.mxu0 %v11659
  %v11661 = vpop.f32.mrf.mxu0
  %v11662 = vadd.f32 %v10936, %v11661
  %v11663 = vand.u32 %v450, 4294901760
  %11664 = vmatmul.f32.gmra.mxu0 %v11663
  %v11665 = vpop.f32.mrf.mxu0
  %v11666 = vadd.f32 %v10940, %v11665
  %v11667 = vand.u32 %v453, 4294901760
  %11668 = vmatmul.f32.gmra.mxu0 %v11667
  %v11669 = vpop.f32.mrf.mxu0
  %v11670 = vadd.f32 %v10944, %v11669
  %v11671 = vand.u32 %v456, 4294901760
  %11672 = vmatmul.f32.gmra.mxu0 %v11671
  %v11673 = vpop.f32.mrf.mxu0
  %v11674 = vadd.f32 %v10948, %v11673
  %v11675 = vand.u32 %v459, 4294901760
  %11676 = vmatmul.f32.gmra.mxu0 %v11675
  %v11677 = vpop.f32.mrf.mxu0
  %v11678 = vadd.f32 %v10952, %v11677
  %v11679 = vand.u32 %v462, 4294901760
  %11680 = vmatmul.f32.gmra.mxu0 %v11679
  %v11681 = vpop.f32.mrf.mxu0
  %v11682 = vadd.f32 %v10956, %v11681
  %v11683 = vand.u32 %v465, 4294901760
  %11684 = vmatmul.f32.gmra.mxu0 %v11683
  %v11685 = vpop.f32.mrf.mxu0
  %v11686 = vadd.f32 %v10960, %v11685
  %v11687 = vand.u32 %v468, 4294901760
  %11688 = vmatmul.f32.gmra.mxu0 %v11687
  %v11689 = vpop.f32.mrf.mxu0
  %v11690 = vadd.f32 %v10964, %v11689
  %v11691 = vand.u32 %v471, 4294901760
  %11692 = vmatmul.f32.gmra.mxu0 %v11691
  %v11693 = vpop.f32.mrf.mxu0
  %v11694 = vadd.f32 %v10968, %v11693
  %v11695 = vand.u32 %v474, 4294901760
  %11696 = vmatmul.f32.gmra.mxu0 %v11695
  %v11697 = vpop.f32.mrf.mxu0
  %v11698 = vadd.f32 %v10972, %v11697
  %v11699 = vand.u32 %v477, 4294901760
  %11700 = vmatmul.f32.gmra.mxu0 %v11699
  %v11701 = vpop.f32.mrf.mxu0
  %v11702 = vadd.f32 %v10976, %v11701
  %v11703 = vand.u32 %v480, 4294901760
  %11704 = vmatmul.f32.gmra.mxu0 %v11703
  %v11705 = vpop.f32.mrf.mxu0
  %v11706 = vadd.f32 %v10980, %v11705
  %v11707 = vand.u32 %v483, 4294901760
  %11708 = vmatmul.f32.gmra.mxu0 %v11707
  %v11709 = vpop.f32.mrf.mxu0
  %v11710 = vadd.f32 %v10984, %v11709
  %v11711 = vand.u32 %v486, 4294901760
  %11712 = vmatmul.f32.gmra.mxu0 %v11711
  %v11713 = vpop.f32.mrf.mxu0
  %v11714 = vadd.f32 %v10988, %v11713
  %v11715 = vand.u32 %v489, 4294901760
  %11716 = vmatmul.f32.gmra.mxu0 %v11715
  %v11717 = vpop.f32.mrf.mxu0
  %v11718 = vadd.f32 %v10992, %v11717
  %v11719 = vand.u32 %v492, 4294901760
  %11720 = vmatmul.f32.gmra.mxu0 %v11719
  %v11721 = vpop.f32.mrf.mxu0
  %v11722 = vadd.f32 %v10996, %v11721
  %v11723 = vand.u32 %v495, 4294901760
  %11724 = vmatmul.f32.gmra.mxu0 %v11723
  %v11725 = vpop.f32.mrf.mxu0
  %v11726 = vadd.f32 %v11000, %v11725
  %v11727 = vand.u32 %v498, 4294901760
  %11728 = vmatmul.f32.gmra.mxu0 %v11727
  %v11729 = vpop.f32.mrf.mxu0
  %v11730 = vadd.f32 %v11004, %v11729
  %v11731 = vand.u32 %v501, 4294901760
  %11732 = vmatmul.f32.gmra.mxu0 %v11731
  %v11733 = vpop.f32.mrf.mxu0
  %v11734 = vadd.f32 %v11008, %v11733
  %v11735 = vand.u32 %v504, 4294901760
  %11736 = vmatmul.f32.gmra.mxu0 %v11735
  %v11737 = vpop.f32.mrf.mxu0
  %v11738 = vadd.f32 %v11012, %v11737
  %v11739 = vand.u32 %v507, 4294901760
  %11740 = vmatmul.f32.gmra.mxu0 %v11739
  %v11741 = vpop.f32.mrf.mxu0
  %v11742 = vadd.f32 %v11016, %v11741
  %v11743 = vand.u32 %v510, 4294901760
  %11744 = vmatmul.f32.gmra.mxu0 %v11743
  %v11745 = vpop.f32.mrf.mxu0
  %v11746 = vadd.f32 %v11020, %v11745
  %v11747 = vand.u32 %v513, 4294901760
  %11748 = vmatmul.f32.gmra.mxu0 %v11747
  %v11749 = vpop.f32.mrf.mxu0
  %v11750 = vadd.f32 %v11024, %v11749
  %v11751 = vand.u32 %v516, 4294901760
  %11752 = vmatmul.f32.gmra.mxu0 %v11751
  %v11753 = vpop.f32.mrf.mxu0
  %v11754 = vadd.f32 %v11028, %v11753
  %v11755 = vand.u32 %v519, 4294901760
  %11756 = vmatmul.f32.gmra.mxu0 %v11755
  %v11757 = vpop.f32.mrf.mxu0
  %v11758 = vadd.f32 %v11032, %v11757
  %v11759 = vand.u32 %v522, 4294901760
  %11760 = vmatmul.f32.gmra.mxu0 %v11759
  %v11761 = vpop.f32.mrf.mxu0
  %v11762 = vadd.f32 %v11036, %v11761
  %v11763 = vand.u32 %v525, 4294901760
  %11764 = vmatmul.f32.gmra.mxu0 %v11763
  %v11765 = vpop.f32.mrf.mxu0
  %v11766 = vadd.f32 %v11040, %v11765
  %v11767 = vand.u32 %v528, 4294901760
  %11768 = vmatmul.f32.gmra.mxu0 %v11767
  %v11769 = vpop.f32.mrf.mxu0
  %v11770 = vadd.f32 %v11044, %v11769
  %v11771 = vand.u32 %v531, 4294901760
  %11772 = vmatmul.f32.gmra.mxu0 %v11771
  %v11773 = vpop.f32.mrf.mxu0
  %v11774 = vadd.f32 %v11048, %v11773
  %v11775 = vand.u32 %v534, 4294901760
  %11776 = vmatmul.f32.gmra.mxu0 %v11775
  %v11777 = vpop.f32.mrf.mxu0
  %v11778 = vadd.f32 %v11052, %v11777
  %v11779 = vand.u32 %v537, 4294901760
  %11780 = vmatmul.f32.gmra.mxu0 %v11779
  %v11781 = vpop.f32.mrf.mxu0
  %v11782 = vadd.f32 %v11056, %v11781
  %v11783 = vand.u32 %v540, 4294901760
  %11784 = vmatmul.f32.gmra.mxu0 %v11783
  %v11785 = vpop.f32.mrf.mxu0
  %v11786 = vadd.f32 %v11060, %v11785
  %v11787 = vand.u32 %v543, 4294901760
  %11788 = vmatmul.f32.gmra.mxu0 %v11787
  %v11789 = vpop.f32.mrf.mxu0
  %v11790 = vadd.f32 %v11064, %v11789
  %v11791 = vand.u32 %v546, 4294901760
  %11792 = vmatmul.f32.gmra.mxu0 %v11791
  %v11793 = vpop.f32.mrf.mxu0
  %v11794 = vadd.f32 %v11068, %v11793
  %v11795 = vand.u32 %v549, 4294901760
  %11796 = vmatmul.f32.gmra.mxu0 %v11795
  %v11797 = vpop.f32.mrf.mxu0
  %v11798 = vadd.f32 %v11072, %v11797
  %v11799 = vand.u32 %v552, 4294901760
  %11800 = vmatmul.f32.gmra.mxu0 %v11799
  %v11801 = vpop.f32.mrf.mxu0
  %v11802 = vadd.f32 %v11076, %v11801
  %v11803 = vand.u32 %v555, 4294901760
  %11804 = vmatmul.f32.gmra.mxu0 %v11803
  %v11805 = vpop.f32.mrf.mxu0
  %v11806 = vadd.f32 %v11080, %v11805
  %v11807 = vand.u32 %v558, 4294901760
  %11808 = vmatmul.f32.gmra.mxu0 %v11807
  %v11809 = vpop.f32.mrf.mxu0
  %v11810 = vadd.f32 %v11084, %v11809
  %v11811 = vand.u32 %v561, 4294901760
  %11812 = vmatmul.f32.gmra.mxu0 %v11811
  %v11813 = vpop.f32.mrf.mxu0
  %v11814 = vadd.f32 %v11088, %v11813
  %v11815 = vand.u32 %v564, 4294901760
  %11816 = vmatmul.f32.gmra.mxu0 %v11815
  %v11817 = vpop.f32.mrf.mxu0
  %v11818 = vadd.f32 %v11092, %v11817
  %v11819 = vand.u32 %v567, 4294901760
  %11820 = vmatmul.f32.gmra.mxu0 %v11819
  %v11821 = vpop.f32.mrf.mxu0
  %v11822 = vadd.f32 %v11096, %v11821
  %v11823 = vand.u32 %v570, 4294901760
  %11824 = vmatmul.f32.gmra.mxu0 %v11823
  %v11825 = vpop.f32.mrf.mxu0
  %v11826 = vadd.f32 %v11100, %v11825
  %v11827 = vand.u32 %v573, 4294901760
  %11828 = vmatmul.f32.gmra.mxu0 %v11827
  %v11829 = vpop.f32.mrf.mxu0
  %v11830 = vadd.f32 %v11104, %v11829
  %v11831 = vand.u32 %v576, 4294901760
  %11832 = vmatmul.f32.gmra.mxu0 %v11831
  %v11833 = vpop.f32.mrf.mxu0
  %v11834 = vadd.f32 %v11108, %v11833
  %v11835 = vand.u32 %v579, 4294901760
  %11836 = vmatmul.f32.gmra.mxu0 %v11835
  %v11837 = vpop.f32.mrf.mxu0
  %v11838 = vadd.f32 %v11112, %v11837
  %v11839 = vand.u32 %v582, 4294901760
  %11840 = vmatmul.f32.gmra.mxu0 %v11839
  %v11841 = vpop.f32.mrf.mxu0
  %v11842 = vadd.f32 %v11116, %v11841
  %v11843 = vand.u32 %v585, 4294901760
  %11844 = vmatmul.f32.gmra.mxu0 %v11843
  %v11845 = vpop.f32.mrf.mxu0
  %v11846 = vadd.f32 %v11120, %v11845
  %v11847 = vand.u32 %v588, 4294901760
  %11848 = vmatmul.f32.gmra.mxu0 %v11847
  %v11849 = vpop.f32.mrf.mxu0
  %v11850 = vadd.f32 %v11124, %v11849
  %v11851 = vand.u32 %v591, 4294901760
  %11852 = vmatmul.f32.gmra.mxu0 %v11851
  %v11853 = vpop.f32.mrf.mxu0
  %v11854 = vadd.f32 %v11128, %v11853
  %v11855 = vand.u32 %v594, 4294901760
  %11856 = vmatmul.f32.gmra.mxu0 %v11855
  %v11857 = vpop.f32.mrf.mxu0
  %v11858 = vadd.f32 %v11132, %v11857
  %v11859 = vand.u32 %v597, 4294901760
  %11860 = vmatmul.f32.gmra.mxu0 %v11859
  %v11861 = vpop.f32.mrf.mxu0
  %v11862 = vadd.f32 %v11136, %v11861
  %v11863 = vand.u32 %v600, 4294901760
  %11864 = vmatmul.f32.gmra.mxu0 %v11863
  %v11865 = vpop.f32.mrf.mxu0
  %v11866 = vadd.f32 %v11140, %v11865
  %v11867 = vand.u32 %v603, 4294901760
  %11868 = vmatmul.f32.gmra.mxu0 %v11867
  %v11869 = vpop.f32.mrf.mxu0
  %v11870 = vadd.f32 %v11144, %v11869
  %v11871 = vand.u32 %v606, 4294901760
  %11872 = vmatmul.f32.gmra.mxu0 %v11871
  %v11873 = vpop.f32.mrf.mxu0
  %v11874 = vadd.f32 %v11148, %v11873
  %v11875 = vand.u32 %v609, 4294901760
  %11876 = vmatmul.f32.gmra.mxu0 %v11875
  %v11877 = vpop.f32.mrf.mxu0
  %v11878 = vadd.f32 %v11152, %v11877
  %v11879 = vand.u32 %v612, 4294901760
  %11880 = vmatmul.f32.gmra.mxu0 %v11879
  %v11881 = vpop.f32.mrf.mxu0
  %v11882 = vadd.f32 %v11156, %v11881
  %v11883 = vand.u32 %v615, 4294901760
  %11884 = vmatmul.f32.gmra.mxu0 %v11883
  %v11885 = vpop.f32.mrf.mxu0
  %v11886 = vadd.f32 %v11160, %v11885
  %v11887 = vand.u32 %v618, 4294901760
  %11888 = vmatmul.f32.gmra.mxu0 %v11887
  %v11889 = vpop.f32.mrf.mxu0
  %v11890 = vadd.f32 %v11164, %v11889
  %v11891 = vand.u32 %v621, 4294901760
  %11892 = vmatmul.f32.gmra.mxu0 %v11891
  %v11893 = vpop.f32.mrf.mxu0
  %v11894 = vadd.f32 %v11168, %v11893
  %v11895 = vand.u32 %v624, 4294901760
  %11896 = vmatmul.f32.gmra.mxu0 %v11895
  %v11897 = vpop.f32.mrf.mxu0
  %v11898 = vadd.f32 %v11172, %v11897
  %v11899 = vand.u32 %v627, 4294901760
  %11900 = vmatmul.f32.gmra.mxu0 %v11899
  %v11901 = vpop.f32.mrf.mxu0
  %v11902 = vadd.f32 %v11176, %v11901
  %v11903 = vand.u32 %v630, 4294901760
  %11904 = vmatmul.f32.gmra.mxu0 %v11903
  %v11905 = vpop.f32.mrf.mxu0
  %v11906 = vadd.f32 %v11180, %v11905
  %v11907 = vand.u32 %v633, 4294901760
  %11908 = vmatmul.f32.gmra.mxu0 %v11907
  %v11909 = vpop.f32.mrf.mxu0
  %v11910 = vadd.f32 %v11184, %v11909
  %v11911 = vand.u32 %v636, 4294901760
  %11912 = vmatmul.f32.gmra.mxu0 %v11911
  %v11913 = vpop.f32.mrf.mxu0
  %v11914 = vadd.f32 %v11188, %v11913
  %v11915 = vand.u32 %v639, 4294901760
  %11916 = vmatmul.f32.gmra.mxu0 %v11915
  %v11917 = vpop.f32.mrf.mxu0
  %v11918 = vadd.f32 %v11192, %v11917
  %v11919 = vand.u32 %v642, 4294901760
  %11920 = vmatmul.f32.gmra.mxu0 %v11919
  %v11921 = vpop.f32.mrf.mxu0
  %v11922 = vadd.f32 %v11196, %v11921
  %v11923 = vand.u32 %v645, 4294901760
  %11924 = vmatmul.f32.gmra.mxu0 %v11923
  %v11925 = vpop.f32.mrf.mxu0
  %v11926 = vadd.f32 %v11200, %v11925
  %v11927 = vand.u32 %v648, 4294901760
  %11928 = vmatmul.f32.gmra.mxu0 %v11927
  %v11929 = vpop.f32.mrf.mxu0
  %v11930 = vadd.f32 %v11204, %v11929
  %v11931 = vand.u32 %v651, 4294901760
  %11932 = vmatmul.f32.gmra.mxu0 %v11931
  %v11933 = vpop.f32.mrf.mxu0
  %v11934 = vadd.f32 %v11208, %v11933
  %v11935 = vand.u32 %v654, 4294901760
  %11936 = vmatmul.f32.gmra.mxu0 %v11935
  %v11937 = vpop.f32.mrf.mxu0
  %v11938 = vadd.f32 %v11212, %v11937
  %v11939 = vand.u32 %v657, 4294901760
  %11940 = vmatmul.f32.gmra.mxu0 %v11939
  %v11941 = vpop.f32.mrf.mxu0
  %v11942 = vadd.f32 %v11216, %v11941
  %v11943 = vand.u32 %v660, 4294901760
  %11944 = vmatmul.f32.gmra.mxu0 %v11943
  %v11945 = vpop.f32.mrf.mxu0
  %v11946 = vadd.f32 %v11220, %v11945
  %v11947 = vand.u32 %v663, 4294901760
  %11948 = vmatmul.f32.gmra.mxu0 %v11947
  %v11949 = vpop.f32.mrf.mxu0
  %v11950 = vadd.f32 %v11224, %v11949
  %v11951 = vand.u32 %v666, 4294901760
  %11952 = vmatmul.f32.gmra.mxu0 %v11951
  %v11953 = vpop.f32.mrf.mxu0
  %v11954 = vadd.f32 %v11228, %v11953
  %v11955 = vand.u32 %v669, 4294901760
  %11956 = vmatmul.f32.gmra.mxu0 %v11955
  %v11957 = vpop.f32.mrf.mxu0
  %v11958 = vadd.f32 %v11232, %v11957
  %v11959 = vand.u32 %v672, 4294901760
  %11960 = vmatmul.f32.gmra.mxu0 %v11959
  %v11961 = vpop.f32.mrf.mxu0
  %v11962 = vadd.f32 %v11236, %v11961
  %v11963 = vand.u32 %v675, 4294901760
  %11964 = vmatmul.f32.gmra.mxu0 %v11963
  %v11965 = vpop.f32.mrf.mxu0
  %v11966 = vadd.f32 %v11240, %v11965
  %v11967 = vand.u32 %v678, 4294901760
  %11968 = vmatmul.f32.gmra.mxu0 %v11967
  %v11969 = vpop.f32.mrf.mxu0
  %v11970 = vadd.f32 %v11244, %v11969
  %v11971 = vand.u32 %v681, 4294901760
  %11972 = vmatmul.f32.gmra.mxu0 %v11971
  %v11973 = vpop.f32.mrf.mxu0
  %v11974 = vadd.f32 %v11248, %v11973
  %v11975 = vand.u32 %v684, 4294901760
  %11976 = vmatmul.f32.gmra.mxu0 %v11975
  %v11977 = vpop.f32.mrf.mxu0
  %v11978 = vadd.f32 %v11252, %v11977
  %v11979 = vand.u32 %v687, 4294901760
  %11980 = vmatmul.f32.gmra.mxu0 %v11979
  %v11981 = vpop.f32.mrf.mxu0
  %v11982 = vadd.f32 %v11256, %v11981
  %v11983 = vand.u32 %v690, 4294901760
  %11984 = vmatmul.f32.gmra.mxu0 %v11983
  %v11985 = vpop.f32.mrf.mxu0
  %v11986 = vadd.f32 %v11260, %v11985
  %v11987 = vand.u32 %v693, 4294901760
  %11988 = vmatmul.f32.gmra.mxu0 %v11987
  %v11989 = vpop.f32.mrf.mxu0
  %v11990 = vadd.f32 %v11264, %v11989
  %v11991 = vand.u32 %v696, 4294901760
  %11992 = vmatmul.f32.gmra.mxu0 %v11991
  %v11993 = vpop.f32.mrf.mxu0
  %v11994 = vadd.f32 %v11268, %v11993
  %v11995 = vand.u32 %v699, 4294901760
  %11996 = vmatmul.f32.gmra.mxu0 %v11995
  %v11997 = vpop.f32.mrf.mxu0
  %v11998 = vadd.f32 %v11272, %v11997
  %v11999 = vand.u32 %v702, 4294901760
  %12000 = vmatmul.f32.gmra.mxu0 %v11999
  %v12001 = vpop.f32.mrf.mxu0
  %v12002 = vadd.f32 %v11276, %v12001
  %v12003 = vand.u32 %v705, 4294901760
  %12004 = vmatmul.f32.gmra.mxu0 %v12003
  %v12005 = vpop.f32.mrf.mxu0
  %v12006 = vadd.f32 %v11280, %v12005
  %v12007 = vand.u32 %v708, 4294901760
  %12008 = vmatmul.f32.gmra.mxu0 %v12007
  %v12009 = vpop.f32.mrf.mxu0
  %v12010 = vadd.f32 %v11284, %v12009
  %v12011 = vand.u32 %v711, 4294901760
  %12012 = vmatmul.f32.gmra.mxu0 %v12011
  %v12013 = vpop.f32.mrf.mxu0
  %v12014 = vadd.f32 %v11288, %v12013
  %v12015 = vand.u32 %v714, 4294901760
  %12016 = vmatmul.f32.gmra.mxu0 %v12015
  %v12017 = vpop.f32.mrf.mxu0
  %v12018 = vadd.f32 %v11292, %v12017
  %v12019 = vand.u32 %v717, 4294901760
  %12020 = vmatmul.f32.gmra.mxu0 %v12019
  %v12021 = vpop.f32.mrf.mxu0
  %v12022 = vadd.f32 %v11296, %v12021
  %v12023 = vand.u32 %v720, 4294901760
  %12024 = vmatmul.f32.gmra.mxu0 %v12023
  %v12025 = vpop.f32.mrf.mxu0
  %v12026 = vadd.f32 %v11300, %v12025
  %v12027 = vand.u32 %v723, 4294901760
  %12028 = vmatmul.f32.gmra.mxu0 %v12027
  %v12029 = vpop.f32.mrf.mxu0
  %v12030 = vadd.f32 %v11304, %v12029
  %v12031 = vand.u32 %v726, 4294901760
  %12032 = vmatmul.f32.gmra.mxu0 %v12031
  %v12033 = vpop.f32.mrf.mxu0
  %v12034 = vadd.f32 %v11308, %v12033
  %v12035 = vand.u32 %v729, 4294901760
  %12036 = vmatmul.f32.gmra.mxu0 %v12035
  %v12037 = vpop.f32.mrf.mxu0
  %v12038 = vadd.f32 %v11312, %v12037
  %v12039 = vand.u32 %v732, 4294901760
  %12040 = vmatmul.f32.gmra.mxu0 %v12039
  %v12041 = vpop.f32.mrf.mxu0
  %v12042 = vadd.f32 %v11316, %v12041
  %v12043 = vand.u32 %v735, 4294901760
  %12044 = vmatmul.f32.gmra.mxu0 %v12043
  %v12045 = vpop.f32.mrf.mxu0
  %v12046 = vadd.f32 %v11320, %v12045
  %v12047 = vand.u32 %v738, 4294901760
  %12048 = vmatmul.f32.gmra.mxu0 %v12047
  %v12049 = vpop.f32.mrf.mxu0
  %v12050 = vadd.f32 %v11324, %v12049
  %v12051 = vand.u32 %v741, 4294901760
  %12052 = vmatmul.f32.gmra.mxu0 %v12051
  %v12053 = vpop.f32.mrf.mxu0
  %v12054 = vadd.f32 %v11328, %v12053
  %v12055 = vand.u32 %v744, 4294901760
  %12056 = vmatmul.f32.gmra.mxu0 %v12055
  %v12057 = vpop.f32.mrf.mxu0
  %v12058 = vadd.f32 %v11332, %v12057
  %v12059 = vand.u32 %v747, 4294901760
  %12060 = vmatmul.f32.gmra.mxu0 %v12059
  %v12061 = vpop.f32.mrf.mxu0
  %v12062 = vadd.f32 %v11336, %v12061
  %v12063 = vand.u32 %v750, 4294901760
  %12064 = vmatmul.f32.gmra.mxu0 %v12063
  %v12065 = vpop.f32.mrf.mxu0
  %v12066 = vadd.f32 %v11340, %v12065
  %v12067 = vand.u32 %v753, 4294901760
  %12068 = vmatmul.f32.gmra.mxu0 %v12067
  %v12069 = vpop.f32.mrf.mxu0
  %v12070 = vadd.f32 %v11344, %v12069
  %v12071 = vand.u32 %v756, 4294901760
  %12072 = vmatmul.f32.gmra.mxu0 %v12071
  %v12073 = vpop.f32.mrf.mxu0
  %v12074 = vadd.f32 %v11348, %v12073
  %v12075 = vand.u32 %v759, 4294901760
  %12076 = vmatmul.f32.gmra.mxu0 %v12075
  %v12077 = vpop.f32.mrf.mxu0
  %v12078 = vadd.f32 %v11352, %v12077
  %v12079 = vand.u32 %v762, 4294901760
  %12080 = vmatmul.f32.gmra.mxu0 %v12079
  %v12081 = vpop.f32.mrf.mxu0
  %v12082 = vadd.f32 %v11356, %v12081
  %v12083 = vand.u32 %v765, 4294901760
  %12084 = vmatmul.f32.gmra.mxu0 %v12083
  %v12085 = vpop.f32.mrf.mxu0
  %v12086 = vadd.f32 %v11360, %v12085
  %v12087 = vand.u32 %v768, 4294901760
  %12088 = vmatmul.f32.gmra.mxu0 %v12087
  %v12089 = vpop.f32.mrf.mxu0
  %v12090 = vadd.f32 %v11364, %v12089
  %v12091 = vand.u32 %v771, 4294901760
  %12092 = vmatmul.f32.gmra.mxu0 %v12091
  %v12093 = vpop.f32.mrf.mxu0
  %v12094 = vadd.f32 %v11368, %v12093
  %v12095 = vand.u32 %v774, 4294901760
  %12096 = vmatmul.f32.gmra.mxu0 %v12095
  %v12097 = vpop.f32.mrf.mxu0
  %v12098 = vadd.f32 %v11372, %v12097
  %v12099 = vand.u32 %v777, 4294901760
  %12100 = vmatmul.f32.gmra.mxu0 %v12099
  %v12101 = vpop.f32.mrf.mxu0
  %v12102 = vadd.f32 %v11376, %v12101
  %v12103 = vand.u32 %v780, 4294901760
  %12104 = vmatmul.f32.gmra.mxu0 %v12103
  %v12105 = vpop.f32.mrf.mxu0
  %v12106 = vadd.f32 %v11380, %v12105
  %v12107 = vand.u32 %v783, 4294901760
  %12108 = vmatmul.f32.gmra.mxu0 %v12107
  %v12109 = vpop.f32.mrf.mxu0
  %v12110 = vadd.f32 %v11384, %v12109
  %v12111 = vand.u32 %v786, 4294901760
  %12112 = vmatmul.f32.gmra.mxu0 %v12111
  %v12113 = vpop.f32.mrf.mxu0
  %v12114 = vadd.f32 %v11388, %v12113
  %v12115 = vand.u32 %v789, 4294901760
  %12116 = vmatmul.f32.gmra.mxu0 %v12115
  %v12117 = vpop.f32.mrf.mxu0
  %v12118 = vadd.f32 %v11392, %v12117
  %v12119 = vand.u32 %v792, 4294901760
  %12120 = vmatmul.f32.gmra.mxu0 %v12119
  %v12121 = vpop.f32.mrf.mxu0
  %v12122 = vadd.f32 %v11396, %v12121
  %v12123 = vand.u32 %v795, 4294901760
  %12124 = vmatmul.f32.gmra.mxu0 %v12123
  %v12125 = vpop.f32.mrf.mxu0
  %v12126 = vadd.f32 %v11400, %v12125
  %v12127 = vand.u32 %v798, 4294901760
  %12128 = vmatmul.f32.gmra.mxu0 %v12127
  %v12129 = vpop.f32.mrf.mxu0
  %v12130 = vadd.f32 %v11404, %v12129
  %v12131 = vand.u32 %v801, 4294901760
  %12132 = vmatmul.f32.gmra.mxu0 %v12131
  %v12133 = vpop.f32.mrf.mxu0
  %v12134 = vadd.f32 %v11408, %v12133
  %v12135 = vand.u32 %v804, 4294901760
  %12136 = vmatmul.f32.gmra.mxu0 %v12135
  %v12137 = vpop.f32.mrf.mxu0
  %v12138 = vadd.f32 %v11412, %v12137
  %v12139 = vand.u32 %v807, 4294901760
  %12140 = vmatmul.f32.gmra.mxu0 %v12139
  %v12141 = vpop.f32.mrf.mxu0
  %v12142 = vadd.f32 %v11416, %v12141
  %v12143 = vand.u32 %v810, 4294901760
  %12144 = vmatmul.f32.gmra.mxu0 %v12143
  %v12145 = vpop.f32.mrf.mxu0
  %v12146 = vadd.f32 %v11420, %v12145
  %v12147 = vand.u32 %v813, 4294901760
  %12148 = vmatmul.f32.gmra.mxu0 %v12147
  %v12149 = vpop.f32.mrf.mxu0
  %v12150 = vadd.f32 %v11424, %v12149
  %v12151 = vand.u32 %v816, 4294901760
  %12152 = vmatmul.f32.gmra.mxu0 %v12151
  %v12153 = vpop.f32.mrf.mxu0
  %v12154 = vadd.f32 %v11428, %v12153
  %v12155 = vand.u32 %v819, 4294901760
  %12156 = vmatmul.f32.gmra.mxu0 %v12155
  %v12157 = vpop.f32.mrf.mxu0
  %v12158 = vadd.f32 %v11432, %v12157
  %v12159 = vand.u32 %v822, 4294901760
  %12160 = vmatmul.f32.gmra.mxu0 %v12159
  %v12161 = vpop.f32.mrf.mxu0
  %v12162 = vadd.f32 %v11436, %v12161
  %v12163 = vand.u32 %v825, 4294901760
  %12164 = vmatmul.f32.gmra.mxu0 %v12163
  %v12165 = vpop.f32.mrf.mxu0
  %v12166 = vadd.f32 %v11440, %v12165
  %v12167 = vand.u32 %v828, 4294901760
  %12168 = vmatmul.f32.gmra.mxu0 %v12167
  %v12169 = vpop.f32.mrf.mxu0
  %v12170 = vadd.f32 %v11444, %v12169
  %v12171 = vand.u32 %v831, 4294901760
  %12172 = vmatmul.f32.gmra.mxu0 %v12171
  %v12173 = vpop.f32.mrf.mxu0
  %v12174 = vadd.f32 %v11448, %v12173
  %v12175 = vand.u32 %v834, 4294901760
  %12176 = vmatmul.f32.gmra.mxu0 %v12175
  %v12177 = vpop.f32.mrf.mxu0
  %v12178 = vadd.f32 %v11452, %v12177
  %v12179 = vand.u32 %v837, 4294901760
  %12180 = vmatmul.f32.gmra.mxu0 %v12179
  %v12181 = vpop.f32.mrf.mxu0
  %v12182 = vadd.f32 %v11456, %v12181
  %v12183 = vand.u32 %v840, 4294901760
  %12184 = vmatmul.f32.gmra.mxu0 %v12183
  %v12185 = vpop.f32.mrf.mxu0
  %v12186 = vadd.f32 %v11460, %v12185
  %v12187 = vand.u32 %v843, 4294901760
  %12188 = vmatmul.f32.gmra.mxu0 %v12187
  %v12189 = vpop.f32.mrf.mxu0
  %v12190 = vadd.f32 %v11464, %v12189
  %v12191 = vand.u32 %v846, 4294901760
  %12192 = vmatmul.f32.gmra.mxu0 %v12191
  %v12193 = vpop.f32.mrf.mxu0
  %v12194 = vadd.f32 %v11468, %v12193
  %v12195 = vand.u32 %v849, 4294901760
  %12196 = vmatmul.f32.gmra.mxu0 %v12195
  %v12197 = vpop.f32.mrf.mxu0
  %v12198 = vadd.f32 %v11472, %v12197
  %v12199 = vand.u32 %v852, 4294901760
  %12200 = vmatmul.f32.gmra.mxu0 %v12199
  %v12201 = vpop.f32.mrf.mxu0
  %v12202 = vadd.f32 %v11476, %v12201
  %v12203 = vand.u32 %v855, 4294901760
  %12204 = vmatmul.f32.gmra.mxu0 %v12203
  %v12205 = vpop.f32.mrf.mxu0
  %v12206 = vadd.f32 %v11480, %v12205
  %v12207 = vand.u32 %v858, 4294901760
  %12208 = vmatmul.f32.gmra.mxu0 %v12207
  %v12209 = vpop.f32.mrf.mxu0
  %v12210 = vadd.f32 %v11484, %v12209
  %v12211 = vand.u32 %v861, 4294901760
  %12212 = vmatmul.f32.gmra.mxu0 %v12211
  %v12213 = vpop.f32.mrf.mxu0
  %v12214 = vadd.f32 %v11488, %v12213
  %v12215 = vand.u32 %v864, 4294901760
  %12216 = vmatmul.f32.gmra.mxu0 %v12215
  %v12217 = vpop.f32.mrf.mxu0
  %v12218 = vadd.f32 %v11492, %v12217
  %v12219 = vand.u32 %v867, 4294901760
  %12220 = vmatmul.f32.gmra.mxu0 %v12219
  %v12221 = vpop.f32.mrf.mxu0
  %v12222 = vadd.f32 %v11496, %v12221
  %v12223 = vand.u32 %v870, 4294901760
  %12224 = vmatmul.f32.gmra.mxu0 %v12223
  %v12225 = vpop.f32.mrf.mxu0
  %v12226 = vadd.f32 %v11500, %v12225
  %v12227 = vand.u32 %v873, 4294901760
  %12228 = vmatmul.f32.gmra.mxu0 %v12227
  %v12229 = vpop.f32.mrf.mxu0
  %v12230 = vadd.f32 %v11504, %v12229
  %v12231 = vand.u32 %v876, 4294901760
  %12232 = vmatmul.f32.gmra.mxu0 %v12231
  %v12233 = vpop.f32.mrf.mxu0
  %v12234 = vadd.f32 %v11508, %v12233
  %v12235 = vand.u32 %v879, 4294901760
  %12236 = vmatmul.f32.gmra.mxu0 %v12235
  %v12237 = vpop.f32.mrf.mxu0
  %v12238 = vadd.f32 %v11512, %v12237
  %v12239 = vand.u32 %v882, 4294901760
  %12240 = vmatmul.f32.gmra.mxu0 %v12239
  %v12241 = vpop.f32.mrf.mxu0
  %v12242 = vadd.f32 %v11516, %v12241
  %v12243 = vand.u32 %v885, 4294901760
  %12244 = vmatmul.f32.gmra.mxu0 %v12243
  %v12245 = vpop.f32.mrf.mxu0
  %v12246 = vadd.f32 %v11520, %v12245
  %v12247 = vand.u32 %v888, 4294901760
  %12248 = vmatmul.f32.gmra.mxu0 %v12247
  %v12249 = vpop.f32.mrf.mxu0
  %v12250 = vadd.f32 %v11524, %v12249
  %v12251 = vand.u32 %v891, 4294901760
  %12252 = vmatmul.f32.gmra.mxu0 %v12251
  %v12253 = vpop.f32.mrf.mxu0
  %v12254 = vadd.f32 %v11528, %v12253
  %v12255 = vand.u32 %v894, 4294901760
  %12256 = vmatmul.f32.gmra.mxu0 %v12255
  %v12257 = vpop.f32.mrf.mxu0
  %v12258 = vadd.f32 %v11532, %v12257
  %v12259 = vand.u32 %v897, 4294901760
  %12260 = vmatmul.f32.gmra.mxu0 %v12259
  %v12261 = vpop.f32.mrf.mxu0
  %v12262 = vadd.f32 %v11536, %v12261
  %v12263 = vand.u32 %v900, 4294901760
  %12264 = vmatmul.f32.gmra.mxu0 %v12263
  %v12265 = vpop.f32.mrf.mxu0
  %v12266 = vadd.f32 %v11540, %v12265
  %v12267 = vand.u32 %v903, 4294901760
  %12268 = vmatmul.f32.gmra.mxu0 %v12267
  %v12269 = vpop.f32.mrf.mxu0
  %v12270 = vadd.f32 %v11544, %v12269
  %v12271 = vand.u32 %v906, 4294901760
  %12272 = vmatmul.f32.gmra.mxu0 %v12271
  %v12273 = vpop.f32.mrf.mxu0
  %v12274 = vadd.f32 %v11548, %v12273
  %v12275 = vand.u32 %v909, 4294901760
  %12276 = vmatmul.f32.gmra.mxu0 %v12275
  %v12277 = vpop.f32.mrf.mxu0
  %v12278 = vadd.f32 %v11552, %v12277
  %12279 = vdwg.mxu0
  %12280 = vst [vmem:[%s2] sm:$0xff] %v11586
  %12281 = vst [vmem:[%s2 + $0x8] sm:$0xff] %v11590
  %12282 = vst [vmem:[%s2 + $0x10] sm:$0xff] %v11594
  %12283 = vst [vmem:[%s2 + $0x18] sm:$0xff] %v11598
  %12284 = vst [vmem:[%s2 + $0x20] sm:$0xff] %v11602
  %12285 = vst [vmem:[%s2 + $0x28] sm:$0xff] %v11606
  %12286 = vst [vmem:[%s2 + $0x30] sm:$0xff] %v11610
  %12287 = vst [vmem:[%s2 + $0x38] sm:$0xff] %v11614
  %12288 = vst [vmem:[%s2 + $0x40] sm:$0xff] %v11618
  %12289 = vst [vmem:[%s2 + $0x48] sm:$0xff] %v11622
  %12290 = vst [vmem:[%s2 + $0x50] sm:$0xff] %v11626
  %12291 = vst [vmem:[%s2 + $0x58] sm:$0xff] %v11630
  %12292 = vst [vmem:[%s2 + $0x60] sm:$0xff] %v11634
  %12293 = vst [vmem:[%s2 + $0x68] sm:$0xff] %v11638
  %12294 = vst [vmem:[%s2 + $0x70] sm:$0xff] %v11642
  %12295 = vst [vmem:[%s2 + $0x78] sm:$0xff] %v11646
  %12296 = vst [vmem:[%s2 + $0x80] sm:$0xff] %v11650
  %12297 = vst [vmem:[%s2 + $0x88] sm:$0xff] %v11654
  %12298 = vst [vmem:[%s2 + $0x90] sm:$0xff] %v11658
  %12299 = vst [vmem:[%s2 + $0x98] sm:$0xff] %v11662
  %12300 = vst [vmem:[%s2 + $0xa0] sm:$0xff] %v11666
  %12301 = vst [vmem:[%s2 + $0xa8] sm:$0xff] %v11670
  %12302 = vst [vmem:[%s2 + $0xb0] sm:$0xff] %v11674
  %12303 = vst [vmem:[%s2 + $0xb8] sm:$0xff] %v11678
  %12304 = vst [vmem:[%s2 + $0xc0] sm:$0xff] %v11682
  %12305 = vst [vmem:[%s2 + $0xc8] sm:$0xff] %v11686
  %12306 = vst [vmem:[%s2 + $0xd0] sm:$0xff] %v11690
  %12307 = vst [vmem:[%s2 + $0xd8] sm:$0xff] %v11694
  %12308 = vst [vmem:[%s2 + $0xe0] sm:$0xff] %v11698
  %12309 = vst [vmem:[%s2 + $0xe8] sm:$0xff] %v11702
  %12310 = vst [vmem:[%s2 + $0xf0] sm:$0xff] %v11706
  %12311 = vst [vmem:[%s2 + $0xf8] sm:$0xff] %v11710
  %12312 = vst [vmem:[%s2 + $0x100] sm:$0xff] %v11714
  %12313 = vst [vmem:[%s2 + $0x108] sm:$0xff] %v11718
  %12314 = vst [vmem:[%s2 + $0x110] sm:$0xff] %v11722
  %12315 = vst [vmem:[%s2 + $0x118] sm:$0xff] %v11726
  %12316 = vst [vmem:[%s2 + $0x120] sm:$0xff] %v11730
  %12317 = vst [vmem:[%s2 + $0x128] sm:$0xff] %v11734
  %12318 = vst [vmem:[%s2 + $0x130] sm:$0xff] %v11738
  %12319 = vst [vmem:[%s2 + $0x138] sm:$0xff] %v11742
  %12320 = vst [vmem:[%s2 + $0x140] sm:$0xff] %v11746
  %12321 = vst [vmem:[%s2 + $0x148] sm:$0xff] %v11750
  %12322 = vst [vmem:[%s2 + $0x150] sm:$0xff] %v11754
  %12323 = vst [vmem:[%s2 + $0x158] sm:$0xff] %v11758
  %12324 = vst [vmem:[%s2 + $0x160] sm:$0xff] %v11762
  %12325 = vst [vmem:[%s2 + $0x168] sm:$0xff] %v11766
  %12326 = vst [vmem:[%s2 + $0x170] sm:$0xff] %v11770
  %12327 = vst [vmem:[%s2 + $0x178] sm:$0xff] %v11774
  %12328 = vst [vmem:[%s2 + $0x180] sm:$0xff] %v11778
  %12329 = vst [vmem:[%s2 + $0x188] sm:$0xff] %v11782
  %12330 = vst [vmem:[%s2 + $0x190] sm:$0xff] %v11786
  %12331 = vst [vmem:[%s2 + $0x198] sm:$0xff] %v11790
  %12332 = vst [vmem:[%s2 + $0x1a0] sm:$0xff] %v11794
  %12333 = vst [vmem:[%s2 + $0x1a8] sm:$0xff] %v11798
  %12334 = vst [vmem:[%s2 + $0x1b0] sm:$0xff] %v11802
  %12335 = vst [vmem:[%s2 + $0x1b8] sm:$0xff] %v11806
  %12336 = vst [vmem:[%s2 + $0x1c0] sm:$0xff] %v11810
  %12337 = vst [vmem:[%s2 + $0x1c8] sm:$0xff] %v11814
  %12338 = vst [vmem:[%s2 + $0x1d0] sm:$0xff] %v11818
  %12339 = vst [vmem:[%s2 + $0x1d8] sm:$0xff] %v11822
  %12340 = vst [vmem:[%s2 + $0x1e0] sm:$0xff] %v11826
  %12341 = vst [vmem:[%s2 + $0x1e8] sm:$0xff] %v11830
  %12342 = vst [vmem:[%s2 + $0x1f0] sm:$0xff] %v11834
  %12343 = vst [vmem:[%s2 + $0x1f8] sm:$0xff] %v11838
  %12344 = vst [vmem:[%s2 + $0x200] sm:$0xff] %v11842
  %12345 = vst [vmem:[%s2 + $0x208] sm:$0xff] %v11846
  %12346 = vst [vmem:[%s2 + $0x210] sm:$0xff] %v11850
  %12347 = vst [vmem:[%s2 + $0x218] sm:$0xff] %v11854
  %12348 = vst [vmem:[%s2 + $0x220] sm:$0xff] %v11858
  %12349 = vst [vmem:[%s2 + $0x228] sm:$0xff] %v11862
  %12350 = vst [vmem:[%s2 + $0x230] sm:$0xff] %v11866
  %12351 = vst [vmem:[%s2 + $0x238] sm:$0xff] %v11870
  %12352 = vst [vmem:[%s2 + $0x240] sm:$0xff] %v11874
  %12353 = vst [vmem:[%s2 + $0x248] sm:$0xff] %v11878
  %12354 = vst [vmem:[%s2 + $0x250] sm:$0xff] %v11882
  %12355 = vst [vmem:[%s2 + $0x258] sm:$0xff] %v11886
  %12356 = vst [vmem:[%s2 + $0x260] sm:$0xff] %v11890
  %12357 = vst [vmem:[%s2 + $0x268] sm:$0xff] %v11894
  %12358 = vst [vmem:[%s2 + $0x270] sm:$0xff] %v11898
  %12359 = vst [vmem:[%s2 + $0x278] sm:$0xff] %v11902
  %12360 = vst [vmem:[%s2 + $0x280] sm:$0xff] %v11906
  %12361 = vst [vmem:[%s2 + $0x288] sm:$0xff] %v11910
  %12362 = vst [vmem:[%s2 + $0x290] sm:$0xff] %v11914
  %12363 = vst [vmem:[%s2 + $0x298] sm:$0xff] %v11918
  %12364 = vst [vmem:[%s2 + $0x2a0] sm:$0xff] %v11922
  %12365 = vst [vmem:[%s2 + $0x2a8] sm:$0xff] %v11926
  %12366 = vst [vmem:[%s2 + $0x2b0] sm:$0xff] %v11930
  %12367 = vst [vmem:[%s2 + $0x2b8] sm:$0xff] %v11934
  %12368 = vst [vmem:[%s2 + $0x2c0] sm:$0xff] %v11938
  %12369 = vst [vmem:[%s2 + $0x2c8] sm:$0xff] %v11942
  %12370 = vst [vmem:[%s2 + $0x2d0] sm:$0xff] %v11946
  %12371 = vst [vmem:[%s2 + $0x2d8] sm:$0xff] %v11950
  %12372 = vst [vmem:[%s2 + $0x2e0] sm:$0xff] %v11954
  %12373 = vst [vmem:[%s2 + $0x2e8] sm:$0xff] %v11958
  %12374 = vst [vmem:[%s2 + $0x2f0] sm:$0xff] %v11962
  %12375 = vst [vmem:[%s2 + $0x2f8] sm:$0xff] %v11966
  %12376 = vst [vmem:[%s2 + $0x300] sm:$0xff] %v11970
  %12377 = vst [vmem:[%s2 + $0x308] sm:$0xff] %v11974
  %12378 = vst [vmem:[%s2 + $0x310] sm:$0xff] %v11978
  %12379 = vst [vmem:[%s2 + $0x318] sm:$0xff] %v11982
  %12380 = vst [vmem:[%s2 + $0x320] sm:$0xff] %v11986
  %12381 = vst [vmem:[%s2 + $0x328] sm:$0xff] %v11990
  %12382 = vst [vmem:[%s2 + $0x330] sm:$0xff] %v11994
  %12383 = vst [vmem:[%s2 + $0x338] sm:$0xff] %v11998
  %12384 = vst [vmem:[%s2 + $0x340] sm:$0xff] %v12002
  %12385 = vst [vmem:[%s2 + $0x348] sm:$0xff] %v12006
  %12386 = vst [vmem:[%s2 + $0x350] sm:$0xff] %v12010
  %12387 = vst [vmem:[%s2 + $0x358] sm:$0xff] %v12014
  %12388 = vst [vmem:[%s2 + $0x360] sm:$0xff] %v12018
  %12389 = vst [vmem:[%s2 + $0x368] sm:$0xff] %v12022
  %12390 = vst [vmem:[%s2 + $0x370] sm:$0xff] %v12026
  %12391 = vst [vmem:[%s2 + $0x378] sm:$0xff] %v12030
  %12392 = vst [vmem:[%s2 + $0x380] sm:$0xff] %v12034
  %12393 = vst [vmem:[%s2 + $0x388] sm:$0xff] %v12038
  %12394 = vst [vmem:[%s2 + $0x390] sm:$0xff] %v12042
  %12395 = vst [vmem:[%s2 + $0x398] sm:$0xff] %v12046
  %12396 = vst [vmem:[%s2 + $0x3a0] sm:$0xff] %v12050
  %12397 = vst [vmem:[%s2 + $0x3a8] sm:$0xff] %v12054
  %12398 = vst [vmem:[%s2 + $0x3b0] sm:$0xff] %v12058
  %12399 = vst [vmem:[%s2 + $0x3b8] sm:$0xff] %v12062
  %12400 = vst [vmem:[%s2 + $0x3c0] sm:$0xff] %v12066
  %12401 = vst [vmem:[%s2 + $0x3c8] sm:$0xff] %v12070
  %12402 = vst [vmem:[%s2 + $0x3d0] sm:$0xff] %v12074
  %12403 = vst [vmem:[%s2 + $0x3d8] sm:$0xff] %v12078
  %12404 = vst [vmem:[%s2 + $0x3e0] sm:$0xff] %v12082
  %12405 = vst [vmem:[%s2 + $0x3e8] sm:$0xff] %v12086
  %12406 = vst [vmem:[%s2 + $0x3f0] sm:$0xff] %v12090
  %12407 = vst [vmem:[%s2 + $0x3f8] sm:$0xff] %v12094
  %12408 = vst [vmem:[%s2 + $0x400] sm:$0xff] %v12098
  %12409 = vst [vmem:[%s2 + $0x408] sm:$0xff] %v12102
  %12410 = vst [vmem:[%s2 + $0x410] sm:$0xff] %v12106
  %12411 = vst [vmem:[%s2 + $0x418] sm:$0xff] %v12110
  %12412 = vst [vmem:[%s2 + $0x420] sm:$0xff] %v12114
  %12413 = vst [vmem:[%s2 + $0x428] sm:$0xff] %v12118
  %12414 = vst [vmem:[%s2 + $0x430] sm:$0xff] %v12122
  %12415 = vst [vmem:[%s2 + $0x438] sm:$0xff] %v12126
  %12416 = vst [vmem:[%s2 + $0x440] sm:$0xff] %v12130
  %12417 = vst [vmem:[%s2 + $0x448] sm:$0xff] %v12134
  %12418 = vst [vmem:[%s2 + $0x450] sm:$0xff] %v12138
  %12419 = vst [vmem:[%s2 + $0x458] sm:$0xff] %v12142
  %12420 = vst [vmem:[%s2 + $0x460] sm:$0xff] %v12146
  %12421 = vst [vmem:[%s2 + $0x468] sm:$0xff] %v12150
  %12422 = vst [vmem:[%s2 + $0x470] sm:$0xff] %v12154
  %12423 = vst [vmem:[%s2 + $0x478] sm:$0xff] %v12158
  %12424 = vst [vmem:[%s2 + $0x480] sm:$0xff] %v12162
  %12425 = vst [vmem:[%s2 + $0x488] sm:$0xff] %v12166
  %12426 = vst [vmem:[%s2 + $0x490] sm:$0xff] %v12170
  %12427 = vst [vmem:[%s2 + $0x498] sm:$0xff] %v12174
  %12428 = vst [vmem:[%s2 + $0x4a0] sm:$0xff] %v12178
  %12429 = vst [vmem:[%s2 + $0x4a8] sm:$0xff] %v12182
  %12430 = vst [vmem:[%s2 + $0x4b0] sm:$0xff] %v12186
  %12431 = vst [vmem:[%s2 + $0x4b8] sm:$0xff] %v12190
  %12432 = vst [vmem:[%s2 + $0x4c0] sm:$0xff] %v12194
  %12433 = vst [vmem:[%s2 + $0x4c8] sm:$0xff] %v12198
  %12434 = vst [vmem:[%s2 + $0x4d0] sm:$0xff] %v12202
  %12435 = vst [vmem:[%s2 + $0x4d8] sm:$0xff] %v12206
  %12436 = vst [vmem:[%s2 + $0x4e0] sm:$0xff] %v12210
  %12437 = vst [vmem:[%s2 + $0x4e8] sm:$0xff] %v12214
  %12438 = vst [vmem:[%s2 + $0x4f0] sm:$0xff] %v12218
  %12439 = vst [vmem:[%s2 + $0x4f8] sm:$0xff] %v12222
  %12440 = vst [vmem:[%s2 + $0x500] sm:$0xff] %v12226
  %12441 = vst [vmem:[%s2 + $0x508] sm:$0xff] %v12230
  %12442 = vst [vmem:[%s2 + $0x510] sm:$0xff] %v12234
  %12443 = vst [vmem:[%s2 + $0x518] sm:$0xff] %v12238
  %12444 = vst [vmem:[%s2 + $0x520] sm:$0xff] %v12242
  %12445 = vst [vmem:[%s2 + $0x528] sm:$0xff] %v12246
  %12446 = vst [vmem:[%s2 + $0x530] sm:$0xff] %v12250
  %12447 = vst [vmem:[%s2 + $0x538] sm:$0xff] %v12254
  %12448 = vst [vmem:[%s2 + $0x540] sm:$0xff] %v12258
  %12449 = vst [vmem:[%s2 + $0x548] sm:$0xff] %v12262
  %12450 = vst [vmem:[%s2 + $0x550] sm:$0xff] %v12266
  %12451 = vst [vmem:[%s2 + $0x558] sm:$0xff] %v12270
  %12452 = vst [vmem:[%s2 + $0x560] sm:$0xff] %v12274
  %12453 = vst [vmem:[%s2 + $0x568] sm:$0xff] %v12278
  // Predicated region
  $region10: #{tpu_custom_call.1} parent=0 // pred_check
    _
  $region11: #{tpu_custom_call.1} parent=0 // pred_check_branch
    %12455 = sbr.rel (0) target = $region13
  $region12: #{tpu_custom_call.1} parent=0 // pred_region
    _
  $region13: #{tpu_custom_call.1} parent=0 // pred_fallthru
    _
  // Predicated region
  $region14: #{tpu_custom_call.1} parent=0 // pred_check
    _
  $region15: #{tpu_custom_call.1} parent=0 // pred_check_branch
    %12457 = sbr.rel (0) target = $region17
  $region16: #{tpu_custom_call.1} parent=0 // pred_region
    _
  $region17: #{tpu_custom_call.1} parent=0 // pred_fallthru
    _

</llo_original>
